<compile_context>
chip_gen: v7x
topology: tpu7x:2x2x1
jax: 0.10.0
libtpu: 0.0.40
codegen_flags: <defaults>
</compile_context>

<pallas_src>
import jax
import jax.numpy as jnp
from jax import lax
from jax.experimental import pallas as pl
from jax.experimental.pallas import tpu as pltpu


# ----------------------------------------------------------------------------
# Fused whole-network kernel: one grid step == one batch tile end-to-end.
# ----------------------------------------------------------------------------
def make_alexnet1d_kernel(layer_nums, tb, l0, lf):
    def kernel(x_ref, *refs):
        conv_refs = refs[:2 * layer_nums]
        wd_ref, bd_ref, wri_ref, bri_ref, o_ref, buf_ref = refs[2 * layer_nums:]

        k0 = tb * l0
        # Hoisted stride-2 downsample one-hot (built once, sliced per layer).
        # Global stride-2 lane pick == per-batch-segment stride-2 pick because
        # the per-batch segment length stays even at every layer.
        d_r = lax.broadcasted_iota(jnp.int32, (k0, k0 // 2), 0)
        d_c = lax.broadcasted_iota(jnp.int32, (k0, k0 // 2), 1)
        sel_half = jnp.where(d_r == 2 * d_c, 1.0, 0.0)

        # Activations: (channels, tb*seg); channels on sublanes, batch tile
        # packed into the lane axis (lane-dense conv path).
        a = x_ref[...]
        seg = l0
        for i in range(layer_nums):
            w_ref = conv_refs[2 * i]        # (3*cout, cin) tap-stacked weights
            b_ref = conv_refs[2 * i + 1]    # (cout, 1)
            cin, k = a.shape
            cout = b_ref.shape[0]

            # Per-segment boundary masks: batch elements must not leak into
            # their lane neighbours.
            pos = lax.rem(lax.broadcasted_iota(jnp.int32, (1, k), 1), seg)
            is_first = pos == 0
            is_last = pos == seg - 1

            # ---- Conv1d(kernel=3, stride=1, padding=1) + ReLU --------------
            # Shifted taps via offset reads of a VMEM scratch window; the
            # select replaces every out-of-segment lane with 0, so stale or
            # uninitialised scratch data is never consumed.
            buf_ref[:cin, 1:k + 1] = a
            a_lft = jnp.where(is_first, 0.0, buf_ref[:cin, 0:k])      # x[p-1]
            a_rgt = jnp.where(is_last, 0.0, buf_ref[:cin, 2:k + 2])   # x[p+1]
            w = w_ref[...]
            acc = jnp.dot(w[0 * cout:1 * cout], a_lft,
                          preferred_element_type=jnp.float32)
            acc = acc + jnp.dot(w[1 * cout:2 * cout], a,
                                preferred_element_type=jnp.float32)
            acc = acc + jnp.dot(w[2 * cout:3 * cout], a_rgt,
                                preferred_element_type=jnp.float32)
            y = jnp.maximum(acc + b_ref[...], 0.0)                    # (cout, k)

            # ---- MaxPool1d(kernel=3, stride=2, padding=1) ------------------
            # Zero padding is equivalent to PyTorch's -inf padding because
            # y >= 0 after the ReLU above.
            buf_ref[:cout, 1:k + 1] = y
            y_lft = jnp.where(is_first, 0.0, buf_ref[:cout, 0:k])
            y_rgt = jnp.where(is_last, 0.0, buf_ref[:cout, 2:k + 2])
            m = jnp.maximum(jnp.maximum(y_lft, y), y_rgt)
            a = jnp.dot(m, sel_half[:k, :k // 2],
                        preferred_element_type=jnp.float32)           # (cout, k//2)
            seg = seg // 2

        # ---- flatten(1) + Dense(->2048) + fused (real|image) head ----------
        # Transposed space: features on sublanes, batch on lanes, so every
        # contraction is a plain jnp.dot covering the whole batch tile.
        #   fcT[n, b] = bd[n] + sum_{c,l} wd[n, c*lf + l] * a[c, b*lf + l]
        c_feat, kf = a.shape
        g_r = lax.broadcasted_iota(jnp.int32, (kf, tb), 0)
        g_c = lax.broadcasted_iota(jnp.int32, (kf, tb), 1)
        fct = bd_ref[...]                                   # (2048, 1) -> bcast
        for l in range(lf):
            # one-hot gather of position l of every batch segment: (c_feat, tb)
            g_l = jnp.where(g_r == g_c * lf + l, 1.0, 0.0)
            a_l = jnp.dot(a, g_l, preferred_element_type=jnp.float32)
            # wd columns were permuted offline to (l*C + c) order, so this slab
            # is exactly the weight block for flatten position l.
            fct = fct + jnp.dot(wd_ref[:, l * c_feat:(l + 1) * c_feat],
                                a_l.astype(jnp.bfloat16),
                                preferred_element_type=jnp.float32)
        out = jnp.dot(wri_ref[...], fct.astype(jnp.bfloat16),
                      preferred_element_type=jnp.float32) + bri_ref[...]
        o_ref[...] = out                                    # (2R, tb), batch on lanes

    return kernel


def alexnet1d_forward(x, prep, tb_cap=128):
    """x: (B, 2, L0) f32 NCL; prep: prepared params.  Returns (B, 2, R) f32."""
    B, cin0, L0 = x.shape
    conv_w, conv_b = prep["conv_w"], prep["conv_b"]
    wdT, bdT = prep["dense"]
    wriT, briT = prep["head"]
    layer_nums = len(conv_w)
    hidden = conv_b[0].shape[0]
    assert L0 % (2 ** layer_nums) == 0
    lf = L0 // (2 ** layer_nums)
    out_rows = wriT.shape[0]                      # 2 * regression_channel

    # One grid step handles a whole tile of TB batch elements: tiny batches are
    # not split across cores, big batches get >=128-row tiles per step.
    # TODO(synk): bump tb_cap to 256 on v6e/v7x to match the 256-wide MXU.
    tb = B if B <= tb_cap else tb_cap
    b_pad = pl.cdiv(B, tb) * tb
    if b_pad != B:
        x = jnp.pad(x, ((0, b_pad - B), (0, 0), (0, 0)))
    # Pack the batch into the lane axis: xp[c, b*L0 + l] = x[b, c, l].
    xp = jnp.transpose(x, (1, 0, 2)).reshape(cin0, b_pad * L0)

    inputs = [xp]
    in_specs = [pl.BlockSpec((cin0, tb * L0), lambda g: (0, g))]
    for w_k, bias in zip(conv_w, conv_b):
        inputs += [w_k, bias]
        in_specs += [pl.BlockSpec(w_k.shape, lambda g: (0, 0)),
                     pl.BlockSpec(bias.shape, lambda g: (0, 0))]
    inputs += [wdT, bdT, wriT, briT]
    in_specs += [pl.BlockSpec(wdT.shape, lambda g: (0, 0)),
                 pl.BlockSpec(bdT.shape, lambda g: (0, 0)),
                 pl.BlockSpec(wriT.shape, lambda g: (0, 0)),
                 pl.BlockSpec(briT.shape, lambda g: (0, 0))]

    out = pl.pallas_call(
        make_alexnet1d_kernel(layer_nums, tb, L0, lf),
        out_shape=jax.ShapeDtypeStruct((out_rows, b_pad), jnp.float32),
        grid_spec=pltpu.PrefetchScalarGridSpec(
            num_scalar_prefetch=0,
            grid=(b_pad // tb,),                  # weights: constant block idx
            in_specs=in_specs,
            out_specs=pl.BlockSpec((out_rows, tb), lambda g: (0, g)),
            scratch_shapes=[
                # shared shift window: data lives in lanes [1:K+1], the conv /
                # pool taps read it at lane offsets 0/1/2.
                pltpu.VMEM((max(cin0, hidden), tb * L0 + 2), jnp.float32),
            ],
        ),
        compiler_params=pltpu.CompilerParams(
            dimension_semantics=("parallel",),
            vmem_limit_bytes=32 * 1024 * 1024),
    )(*inputs)

    # (2R, B) transposed-space result -> (B, 2, R); head rows are [real; image].
    r = out_rows // 2
    return jnp.transpose(out[:, :B]).reshape(B, 2, r)


# ----------------------------------------------------------------------------
# Parameters: PyTorch-shaped synthetic init + one-time kernel-layout prep.
# ----------------------------------------------------------------------------
def init_params(key, hidden_channel, layer_nums, regression_channel):
    params = {"convs": []}
    cin = 2
    for _ in range(layer_nums):  # in_layer + (layer_nums-2) hidden + feature_final
        key, kw, kb = jax.random.split(key, 3)
        w = 0.2 * jax.random.normal(kw, (hidden_channel, cin, 3), jnp.float32)
        b = 0.1 * jax.random.normal(kb, (hidden_channel,), jnp.float32)
        params["convs"].append((w, b))
        cin = hidden_channel

    din = hidden_channel * (regression_channel // 2 ** layer_nums)
    key, k1, k2, k3, k4, k5, k6 = jax.random.split(key, 7)
    params["dense"] = (0.05 * jax.random.normal(k1, (2048, din), jnp.float32),
                       0.05 * jax.random.normal(k2, (2048,), jnp.float32))
    params["real"] = (0.05 * jax.random.normal(k3, (regression_channel, 2048),
                                               jnp.float32),
                      0.05 * jax.random.normal(k4, (regression_channel,),
                                               jnp.float32))
    params["image"] = (0.05 * jax.random.normal(k5, (regression_channel, 2048),
                                                jnp.float32),
                       0.05 * jax.random.normal(k6, (regression_channel,),
                                                jnp.float32))
    return params


def prepare_params(params):
    """One-time re-layout of PyTorch-shaped params for the fused kernel."""
    conv_w, conv_b = [], []
    for (w, b) in params["convs"]:
        cout, cin, _ = w.shape
        # tap-stacked: rows [t*cout + co], so w_stack[t*cout+co, ci] = w[co, ci, t]
        conv_w.append(jnp.transpose(w, (2, 0, 1)).reshape(3 * cout, cin))
        conv_b.append(b.reshape(cout, 1))

    wd, bd = params["dense"]       # (2048, Din), (2048,)
    wr, br = params["real"]        # (R, 2048), (R,)
    wi, bi = params["image"]
    n_dense, din = wd.shape
    cout = params["convs"][-1][0].shape[0]
    lf = din // cout
    # Fold torch flatten(1) order (c*Lf + l) into a column permutation so the
    # kernel consumes per-position channel blocks: wdT[:, l*C + c] = wd[:, c*Lf + l].
    wdT = (wd.reshape(n_dense, cout, lf).transpose(0, 2, 1)
             .reshape(n_dense, lf * cout).astype(jnp.bfloat16))
    bdT = bd.reshape(n_dense, 1)
    # Fused real|image head in transposed space: output rows are [real; image].
    wriT = jnp.concatenate([wr, wi], axis=0).astype(jnp.bfloat16)     # (2R, 2048)
    briT = jnp.concatenate([br, bi]).reshape(-1, 1)                   # (2R, 1)
    return {"conv_w": conv_w, "conv_b": conv_b,
            "dense": (wdT, bdT), "head": (wriT, briT)}


# ----------------------------------------------------------------------------
# Pure-JAX reference (PyTorch semantics) for correctness checking.
# ----------------------------------------------------------------------------
def alexnet1d_reference(x, params):
    hi = jax.lax.Precision.HIGHEST
    h = x
    for (w, b) in params["convs"]:
        y = jax.lax.conv_general_dilated(
            h, w, window_strides=(1,), padding=((1, 1),),
            dimension_numbers=("NCH", "OIH", "NCH"), precision=hi)
        y = jnp.maximum(y + b[None, :, None], 0.0)
        L = y.shape[-1]
        yp = jnp.pad(y, ((0, 0), (0, 0), (1, 1)), constant_values=-jnp.inf)
        m1 = jnp.maximum(jnp.maximum(yp[..., 0:L], yp[..., 1:L + 1]),
                         yp[..., 2:L + 2])
        h = m1[..., ::2]
    feat = h.reshape(h.shape[0], -1)
    wd, bd = params["dense"]
    wr, br = params["real"]
    wi, bi = params["image"]
    fc = jnp.dot(feat, wd.T, precision=hi) + bd
    real = jnp.dot(fc, wr.T, precision=hi) + br
    imag = jnp.dot(fc, wi.T, precision=hi) + bi
    return jnp.stack([real, imag], axis=1)


if __name__ == "__main__":
    hidden_channel = 8
    layer_nums = 3
    regression_channel = 32        # also the input sequence length
    batch = 2

    key = jax.random.PRNGKey(0)
    key, kx = jax.random.split(key)
    x = jax.random.normal(kx, (batch, 2, regression_channel), jnp.float32)

    params = init_params(key, hidden_channel, layer_nums, regression_channel)
    prep = prepare_params(params)          # one-time layout / bf16 prep

    fwd = jax.jit(alexnet1d_forward)
    out = jax.block_until_ready(fwd(x, prep))
    assert out.shape == (batch, 2, regression_channel), out.shape
    assert out.dtype == jnp.float32

    ref = jax.block_until_ready(alexnet1d_reference(x, params))
    max_err = float(jnp.max(jnp.abs(out - ref)))
    # 5e-2 abs tolerance: covers the intentional bf16 dense/head weights
    # (expected error ~3e-3 on outputs of magnitude ~0.3).
    assert max_err < 5e-2, f"mismatch vs reference: max abs err = {max_err}"

    print("KERNEL_OK")
</pallas_src>

<mosaic_0001>
module attributes {stable_mosaic.version = 11 : i64} {
  func.func @kernel(%arg0: i32, %arg1: memref<2x64xf32, #tpu.memory_space<vmem>>, %arg2: memref<24x2xf32, #tpu.memory_space<vmem>>, %arg3: memref<8x1xf32, #tpu.memory_space<vmem>>, %arg4: memref<24x8xf32, #tpu.memory_space<vmem>>, %arg5: memref<8x1xf32, #tpu.memory_space<vmem>>, %arg6: memref<24x8xf32, #tpu.memory_space<vmem>>, %arg7: memref<8x1xf32, #tpu.memory_space<vmem>>, %arg8: memref<2048x32xbf16, #tpu.memory_space<vmem>>, %arg9: memref<2048x1xf32, #tpu.memory_space<vmem>>, %arg10: memref<64x2048xbf16, #tpu.memory_space<vmem>>, %arg11: memref<64x1xf32, #tpu.memory_space<vmem>>, %arg12: memref<64x2xf32, #tpu.memory_space<vmem>>, %arg13: memref<8x66xf32, #tpu.memory_space<vmem>>) attributes {dimension_semantics = [#tpu.dimension_semantics<parallel>], iteration_bounds = array<i64: 1>, scalar_prefetch = 0 : i64, scratch_operands = 1 : i64, tpu.core_type = #tpu.core_type<tc>, window_params = [{transform_indices = @transform_0, window_bounds = array<i64: 2, 64>}, {pipeline_mode = #tpu.pipeline_mode<synchronous>, transform_indices = @transform_1, window_bounds = array<i64: 24, 2>}, {pipeline_mode = #tpu.pipeline_mode<synchronous>, transform_indices = @transform_2, window_bounds = array<i64: 8, 1>}, {pipeline_mode = #tpu.pipeline_mode<synchronous>, transform_indices = @transform_3, window_bounds = array<i64: 24, 8>}, {pipeline_mode = #tpu.pipeline_mode<synchronous>, transform_indices = @transform_4, window_bounds = array<i64: 8, 1>}, {pipeline_mode = #tpu.pipeline_mode<synchronous>, transform_indices = @transform_5, window_bounds = array<i64: 24, 8>}, {pipeline_mode = #tpu.pipeline_mode<synchronous>, transform_indices = @transform_6, window_bounds = array<i64: 8, 1>}, {pipeline_mode = #tpu.pipeline_mode<synchronous>, transform_indices = @transform_7, window_bounds = array<i64: 2048, 32>}, {pipeline_mode = #tpu.pipeline_mode<synchronous>, transform_indices = @transform_8, window_bounds = array<i64: 2048, 1>}, {pipeline_mode = #tpu.pipeline_mode<synchronous>, transform_indices = @transform_9, window_bounds = array<i64: 64, 2048>}, {pipeline_mode = #tpu.pipeline_mode<synchronous>, transform_indices = @transform_10, window_bounds = array<i64: 64, 1>}, {transform_indices = @transform_11, window_bounds = array<i64: 64, 2>}]} {
    %0 = tpu.iota {dimensions = array<i32: 0>} : vector<64x32xi32>
    %1 = tpu.iota {dimensions = array<i32: 1>} : vector<64x32xi32>
    %c2_i32 = arith.constant 2 : i32
    %2 = vector.broadcast %c2_i32 : i32 to vector<64x32xi32>
    %3 = arith.muli %2, %1 : vector<64x32xi32>
    %4 = arith.cmpi eq, %0, %3 : vector<64x32xi32>
    %cst = arith.constant 1.000000e+00 : f32
    %cst_0 = arith.constant 0.000000e+00 : f32
    %5 = vector.broadcast %cst : f32 to vector<64x32xf32>
    %6 = vector.broadcast %cst_0 : f32 to vector<64x32xf32>
    %7 = arith.select %4, %5, %6 : vector<64x32xi1>, vector<64x32xf32>
    %c0 = arith.constant 0 : index
    %c0_1 = arith.constant 0 : index
    %8 = vector.load %arg1[%c0, %c0_1] : memref<2x64xf32, #tpu.memory_space<vmem>>, vector<2x64xf32>
    %9 = tpu.iota {dimensions = array<i32: 1>} : vector<1x64xi32>
    %c32_i32 = arith.constant 32 : i32
    %10 = vector.broadcast %c32_i32 : i32 to vector<1x64xi32>
    %11 = arith.remsi %9, %10 : vector<1x64xi32>
    %c0_i32 = arith.constant 0 : i32
    %12 = vector.broadcast %c0_i32 : i32 to vector<1x64xi32>
    %13 = arith.cmpi eq, %11, %12 : vector<1x64xi32>
    %c31_i32 = arith.constant 31 : i32
    %14 = vector.broadcast %c31_i32 : i32 to vector<1x64xi32>
    %15 = arith.cmpi eq, %11, %14 : vector<1x64xi32>
    %c0_2 = arith.constant 0 : index
    %c1 = arith.constant 1 : index
    %16 = vector.load %arg13[%c0_2, %c1] : memref<8x66xf32, #tpu.memory_space<vmem>>, vector<2x64xf32>
    tpu.vector_store %arg13[%c0_2, %c1], %8 {strides = array<i32>} : memref<8x66xf32, #tpu.memory_space<vmem>>, vector<2x64xf32>,
    %c0_3 = arith.constant 0 : index
    %c0_4 = arith.constant 0 : index
    %17 = vector.load %arg13[%c0_3, %c0_4] : memref<8x66xf32, #tpu.memory_space<vmem>>, vector<2x64xf32>
    %cst_5 = arith.constant 0.000000e+00 : f32
    %18 = vector.shape_cast %13 : vector<1x64xi1> to vector<1x64xi1>
    %19 = vector.broadcast %18 : vector<1x64xi1> to vector<2x64xi1>
    %20 = vector.broadcast %cst_5 : f32 to vector<2x64xf32>
    %21 = arith.select %19, %20, %17 : vector<2x64xi1>, vector<2x64xf32>
    %c0_6 = arith.constant 0 : index
    %c2 = arith.constant 2 : index
    %22 = vector.load %arg13[%c0_6, %c2] : memref<8x66xf32, #tpu.memory_space<vmem>>, vector<2x64xf32>
    %cst_7 = arith.constant 0.000000e+00 : f32
    %23 = vector.shape_cast %15 : vector<1x64xi1> to vector<1x64xi1>
    %24 = vector.broadcast %23 : vector<1x64xi1> to vector<2x64xi1>
    %25 = vector.broadcast %cst_7 : f32 to vector<2x64xf32>
    %26 = arith.select %24, %25, %22 : vector<2x64xi1>, vector<2x64xf32>
    %c0_8 = arith.constant 0 : index
    %c0_9 = arith.constant 0 : index
    %27 = vector.load %arg2[%c0_8, %c0_9] : memref<24x2xf32, #tpu.memory_space<vmem>>, vector<24x2xf32>
    %28 = vector.extract_strided_slice %27 {offsets = [0, 0], sizes = [8, 2], strides = [1, 1]} : vector<24x2xf32> to vector<8x2xf32>
    %cst_10 = arith.constant dense<0.000000e+00> : vector<8x64xf32>
    %29 = tpu.matmul %28, %21, %cst_10 {dimension_numbers = #tpu.dot_dimension_numbers<[1], [0], [0], [1], [0, 0, 1, 1], [], []>} : vector<8x2xf32>, vector<2x64xf32>, vector<8x64xf32> -> vector<8x64xf32>
    %30 = vector.extract_strided_slice %27 {offsets = [8, 0], sizes = [8, 2], strides = [1, 1]} : vector<24x2xf32> to vector<8x2xf32>
    %cst_11 = arith.constant dense<0.000000e+00> : vector<8x64xf32>
    %31 = tpu.matmul %30, %8, %cst_11 {dimension_numbers = #tpu.dot_dimension_numbers<[1], [0], [0], [1], [0, 0, 1, 1], [], []>} : vector<8x2xf32>, vector<2x64xf32>, vector<8x64xf32> -> vector<8x64xf32>
    %32 = arith.addf %29, %31 : vector<8x64xf32>
    %33 = vector.extract_strided_slice %27 {offsets = [16, 0], sizes = [8, 2], strides = [1, 1]} : vector<24x2xf32> to vector<8x2xf32>
    %cst_12 = arith.constant dense<0.000000e+00> : vector<8x64xf32>
    %34 = tpu.matmul %33, %26, %cst_12 {dimension_numbers = #tpu.dot_dimension_numbers<[1], [0], [0], [1], [0, 0, 1, 1], [], []>} : vector<8x2xf32>, vector<2x64xf32>, vector<8x64xf32> -> vector<8x64xf32>
    %35 = arith.addf %32, %34 : vector<8x64xf32>
    %c0_13 = arith.constant 0 : index
    %c0_14 = arith.constant 0 : index
    %36 = vector.load %arg3[%c0_13, %c0_14] : memref<8x1xf32, #tpu.memory_space<vmem>>, vector<8x1xf32>
    %37 = vector.broadcast %36 : vector<8x1xf32> to vector<8x64xf32>
    %38 = arith.addf %35, %37 : vector<8x64xf32>
    %cst_15 = arith.constant 0.000000e+00 : f32
    %39 = vector.broadcast %cst_15 : f32 to vector<8x64xf32>
    %40 = arith.maximumf %38, %39 : vector<8x64xf32>
    %c0_16 = arith.constant 0 : index
    %c1_17 = arith.constant 1 : index
    %41 = vector.load %arg13[%c0_16, %c1_17] : memref<8x66xf32, #tpu.memory_space<vmem>>, vector<8x64xf32>
    tpu.vector_store %arg13[%c0_16, %c1_17], %40 {strides = array<i32>} : memref<8x66xf32, #tpu.memory_space<vmem>>, vector<8x64xf32>,
    %c0_18 = arith.constant 0 : index
    %c0_19 = arith.constant 0 : index
    %42 = vector.load %arg13[%c0_18, %c0_19] : memref<8x66xf32, #tpu.memory_space<vmem>>, vector<8x64xf32>
    %cst_20 = arith.constant 0.000000e+00 : f32
    %43 = vector.shape_cast %13 : vector<1x64xi1> to vector<1x64xi1>
    %44 = vector.broadcast %43 : vector<1x64xi1> to vector<8x64xi1>
    %45 = vector.broadcast %cst_20 : f32 to vector<8x64xf32>
    %46 = arith.select %44, %45, %42 : vector<8x64xi1>, vector<8x64xf32>
    %c0_21 = arith.constant 0 : index
    %c2_22 = arith.constant 2 : index
    %47 = vector.load %arg13[%c0_21, %c2_22] : memref<8x66xf32, #tpu.memory_space<vmem>>, vector<8x64xf32>
    %cst_23 = arith.constant 0.000000e+00 : f32
    %48 = vector.shape_cast %15 : vector<1x64xi1> to vector<1x64xi1>
    %49 = vector.broadcast %48 : vector<1x64xi1> to vector<8x64xi1>
    %50 = vector.broadcast %cst_23 : f32 to vector<8x64xf32>
    %51 = arith.select %49, %50, %47 : vector<8x64xi1>, vector<8x64xf32>
    %52 = arith.maximumf %46, %40 : vector<8x64xf32>
    %53 = arith.maximumf %52, %51 : vector<8x64xf32>
    %cst_24 = arith.constant dense<0.000000e+00> : vector<8x32xf32>
    %54 = tpu.matmul %53, %7, %cst_24 {dimension_numbers = #tpu.dot_dimension_numbers<[1], [0], [0], [1], [0, 0, 1, 1], [], []>} : vector<8x64xf32>, vector<64x32xf32>, vector<8x32xf32> -> vector<8x32xf32>
    %55 = tpu.iota {dimensions = array<i32: 1>} : vector<1x32xi32>
    %c16_i32 = arith.constant 16 : i32
    %56 = vector.broadcast %c16_i32 : i32 to vector<1x32xi32>
    %57 = arith.remsi %55, %56 : vector<1x32xi32>
    %c0_i32_25 = arith.constant 0 : i32
    %58 = vector.broadcast %c0_i32_25 : i32 to vector<1x32xi32>
    %59 = arith.cmpi eq, %57, %58 : vector<1x32xi32>
    %c15_i32 = arith.constant 15 : i32
    %60 = vector.broadcast %c15_i32 : i32 to vector<1x32xi32>
    %61 = arith.cmpi eq, %57, %60 : vector<1x32xi32>
    %c0_26 = arith.constant 0 : index
    %c1_27 = arith.constant 1 : index
    %62 = vector.load %arg13[%c0_26, %c1_27] : memref<8x66xf32, #tpu.memory_space<vmem>>, vector<8x32xf32>
    tpu.vector_store %arg13[%c0_26, %c1_27], %54 {strides = array<i32>} : memref<8x66xf32, #tpu.memory_space<vmem>>, vector<8x32xf32>,
    %c0_28 = arith.constant 0 : index
    %c0_29 = arith.constant 0 : index
    %63 = vector.load %arg13[%c0_28, %c0_29] : memref<8x66xf32, #tpu.memory_space<vmem>>, vector<8x32xf32>
    %cst_30 = arith.constant 0.000000e+00 : f32
    %64 = vector.shape_cast %59 : vector<1x32xi1> to vector<1x32xi1>
    %65 = vector.broadcast %64 : vector<1x32xi1> to vector<8x32xi1>
    %66 = vector.broadcast %cst_30 : f32 to vector<8x32xf32>
    %67 = arith.select %65, %66, %63 : vector<8x32xi1>, vector<8x32xf32>
    %c0_31 = arith.constant 0 : index
    %c2_32 = arith.constant 2 : index
    %68 = vector.load %arg13[%c0_31, %c2_32] : memref<8x66xf32, #tpu.memory_space<vmem>>, vector<8x32xf32>
    %cst_33 = arith.constant 0.000000e+00 : f32
    %69 = vector.shape_cast %61 : vector<1x32xi1> to vector<1x32xi1>
    %70 = vector.broadcast %69 : vector<1x32xi1> to vector<8x32xi1>
    %71 = vector.broadcast %cst_33 : f32 to vector<8x32xf32>
    %72 = arith.select %70, %71, %68 : vector<8x32xi1>, vector<8x32xf32>
    %c0_34 = arith.constant 0 : index
    %c0_35 = arith.constant 0 : index
    %73 = vector.load %arg4[%c0_34, %c0_35] : memref<24x8xf32, #tpu.memory_space<vmem>>, vector<24x8xf32>
    %74 = vector.extract_strided_slice %73 {offsets = [0, 0], sizes = [8, 8], strides = [1, 1]} : vector<24x8xf32> to vector<8x8xf32>
    %cst_36 = arith.constant dense<0.000000e+00> : vector<8x32xf32>
    %75 = tpu.matmul %74, %67, %cst_36 {dimension_numbers = #tpu.dot_dimension_numbers<[1], [0], [0], [1], [0, 0, 1, 1], [], []>} : vector<8x8xf32>, vector<8x32xf32>, vector<8x32xf32> -> vector<8x32xf32>
    %76 = vector.extract_strided_slice %73 {offsets = [8, 0], sizes = [8, 8], strides = [1, 1]} : vector<24x8xf32> to vector<8x8xf32>
    %cst_37 = arith.constant dense<0.000000e+00> : vector<8x32xf32>
    %77 = tpu.matmul %76, %54, %cst_37 {dimension_numbers = #tpu.dot_dimension_numbers<[1], [0], [0], [1], [0, 0, 1, 1], [], []>} : vector<8x8xf32>, vector<8x32xf32>, vector<8x32xf32> -> vector<8x32xf32>
    %78 = arith.addf %75, %77 : vector<8x32xf32>
    %79 = vector.extract_strided_slice %73 {offsets = [16, 0], sizes = [8, 8], strides = [1, 1]} : vector<24x8xf32> to vector<8x8xf32>
    %cst_38 = arith.constant dense<0.000000e+00> : vector<8x32xf32>
    %80 = tpu.matmul %79, %72, %cst_38 {dimension_numbers = #tpu.dot_dimension_numbers<[1], [0], [0], [1], [0, 0, 1, 1], [], []>} : vector<8x8xf32>, vector<8x32xf32>, vector<8x32xf32> -> vector<8x32xf32>
    %81 = arith.addf %78, %80 : vector<8x32xf32>
    %c0_39 = arith.constant 0 : index
    %c0_40 = arith.constant 0 : index
    %82 = vector.load %arg5[%c0_39, %c0_40] : memref<8x1xf32, #tpu.memory_space<vmem>>, vector<8x1xf32>
    %83 = vector.broadcast %82 : vector<8x1xf32> to vector<8x32xf32>
    %84 = arith.addf %81, %83 : vector<8x32xf32>
    %cst_41 = arith.constant 0.000000e+00 : f32
    %85 = vector.broadcast %cst_41 : f32 to vector<8x32xf32>
    %86 = arith.maximumf %84, %85 : vector<8x32xf32>
    %c0_42 = arith.constant 0 : index
    %c1_43 = arith.constant 1 : index
    %87 = vector.load %arg13[%c0_42, %c1_43] : memref<8x66xf32, #tpu.memory_space<vmem>>, vector<8x32xf32>
    tpu.vector_store %arg13[%c0_42, %c1_43], %86 {strides = array<i32>} : memref<8x66xf32, #tpu.memory_space<vmem>>, vector<8x32xf32>,
    %c0_44 = arith.constant 0 : index
    %c0_45 = arith.constant 0 : index
    %88 = vector.load %arg13[%c0_44, %c0_45] : memref<8x66xf32, #tpu.memory_space<vmem>>, vector<8x32xf32>
    %cst_46 = arith.constant 0.000000e+00 : f32
    %89 = vector.shape_cast %59 : vector<1x32xi1> to vector<1x32xi1>
    %90 = vector.broadcast %89 : vector<1x32xi1> to vector<8x32xi1>
    %91 = vector.broadcast %cst_46 : f32 to vector<8x32xf32>
    %92 = arith.select %90, %91, %88 : vector<8x32xi1>, vector<8x32xf32>
    %c0_47 = arith.constant 0 : index
    %c2_48 = arith.constant 2 : index
    %93 = vector.load %arg13[%c0_47, %c2_48] : memref<8x66xf32, #tpu.memory_space<vmem>>, vector<8x32xf32>
    %cst_49 = arith.constant 0.000000e+00 : f32
    %94 = vector.shape_cast %61 : vector<1x32xi1> to vector<1x32xi1>
    %95 = vector.broadcast %94 : vector<1x32xi1> to vector<8x32xi1>
    %96 = vector.broadcast %cst_49 : f32 to vector<8x32xf32>
    %97 = arith.select %95, %96, %93 : vector<8x32xi1>, vector<8x32xf32>
    %98 = arith.maximumf %92, %86 : vector<8x32xf32>
    %99 = arith.maximumf %98, %97 : vector<8x32xf32>
    %100 = vector.extract_strided_slice %7 {offsets = [0, 0], sizes = [32, 16], strides = [1, 1]} : vector<64x32xf32> to vector<32x16xf32>
    %cst_50 = arith.constant dense<0.000000e+00> : vector<8x16xf32>
    %101 = tpu.matmul %99, %100, %cst_50 {dimension_numbers = #tpu.dot_dimension_numbers<[1], [0], [0], [1], [0, 0, 1, 1], [], []>} : vector<8x32xf32>, vector<32x16xf32>, vector<8x16xf32> -> vector<8x16xf32>
    %102 = tpu.iota {dimensions = array<i32: 1>} : vector<1x16xi32>
    %c8_i32 = arith.constant 8 : i32
    %103 = vector.broadcast %c8_i32 : i32 to vector<1x16xi32>
    %104 = arith.remsi %102, %103 : vector<1x16xi32>
    %c0_i32_51 = arith.constant 0 : i32
    %105 = vector.broadcast %c0_i32_51 : i32 to vector<1x16xi32>
    %106 = arith.cmpi eq, %104, %105 : vector<1x16xi32>
    %c7_i32 = arith.constant 7 : i32
    %107 = vector.broadcast %c7_i32 : i32 to vector<1x16xi32>
    %108 = arith.cmpi eq, %104, %107 : vector<1x16xi32>
    %c0_52 = arith.constant 0 : index
    %c1_53 = arith.constant 1 : index
    %109 = vector.load %arg13[%c0_52, %c1_53] : memref<8x66xf32, #tpu.memory_space<vmem>>, vector<8x16xf32>
    tpu.vector_store %arg13[%c0_52, %c1_53], %101 {strides = array<i32>} : memref<8x66xf32, #tpu.memory_space<vmem>>, vector<8x16xf32>,
    %c0_54 = arith.constant 0 : index
    %c0_55 = arith.constant 0 : index
    %110 = vector.load %arg13[%c0_54, %c0_55] : memref<8x66xf32, #tpu.memory_space<vmem>>, vector<8x16xf32>
    %cst_56 = arith.constant 0.000000e+00 : f32
    %111 = vector.shape_cast %106 : vector<1x16xi1> to vector<1x16xi1>
    %112 = vector.broadcast %111 : vector<1x16xi1> to vector<8x16xi1>
    %113 = vector.broadcast %cst_56 : f32 to vector<8x16xf32>
    %114 = arith.select %112, %113, %110 : vector<8x16xi1>, vector<8x16xf32>
    %c0_57 = arith.constant 0 : index
    %c2_58 = arith.constant 2 : index
    %115 = vector.load %arg13[%c0_57, %c2_58] : memref<8x66xf32, #tpu.memory_space<vmem>>, vector<8x16xf32>
    %cst_59 = arith.constant 0.000000e+00 : f32
    %116 = vector.shape_cast %108 : vector<1x16xi1> to vector<1x16xi1>
    %117 = vector.broadcast %116 : vector<1x16xi1> to vector<8x16xi1>
    %118 = vector.broadcast %cst_59 : f32 to vector<8x16xf32>
    %119 = arith.select %117, %118, %115 : vector<8x16xi1>, vector<8x16xf32>
    %c0_60 = arith.constant 0 : index
    %c0_61 = arith.constant 0 : index
    %120 = vector.load %arg6[%c0_60, %c0_61] : memref<24x8xf32, #tpu.memory_space<vmem>>, vector<24x8xf32>
    %121 = vector.extract_strided_slice %120 {offsets = [0, 0], sizes = [8, 8], strides = [1, 1]} : vector<24x8xf32> to vector<8x8xf32>
    %cst_62 = arith.constant dense<0.000000e+00> : vector<8x16xf32>
    %122 = tpu.matmul %121, %114, %cst_62 {dimension_numbers = #tpu.dot_dimension_numbers<[1], [0], [0], [1], [0, 0, 1, 1], [], []>} : vector<8x8xf32>, vector<8x16xf32>, vector<8x16xf32> -> vector<8x16xf32>
    %123 = vector.extract_strided_slice %120 {offsets = [8, 0], sizes = [8, 8], strides = [1, 1]} : vector<24x8xf32> to vector<8x8xf32>
    %cst_63 = arith.constant dense<0.000000e+00> : vector<8x16xf32>
    %124 = tpu.matmul %123, %101, %cst_63 {dimension_numbers = #tpu.dot_dimension_numbers<[1], [0], [0], [1], [0, 0, 1, 1], [], []>} : vector<8x8xf32>, vector<8x16xf32>, vector<8x16xf32> -> vector<8x16xf32>
    %125 = arith.addf %122, %124 : vector<8x16xf32>
    %126 = vector.extract_strided_slice %120 {offsets = [16, 0], sizes = [8, 8], strides = [1, 1]} : vector<24x8xf32> to vector<8x8xf32>
    %cst_64 = arith.constant dense<0.000000e+00> : vector<8x16xf32>
    %127 = tpu.matmul %126, %119, %cst_64 {dimension_numbers = #tpu.dot_dimension_numbers<[1], [0], [0], [1], [0, 0, 1, 1], [], []>} : vector<8x8xf32>, vector<8x16xf32>, vector<8x16xf32> -> vector<8x16xf32>
    %128 = arith.addf %125, %127 : vector<8x16xf32>
    %c0_65 = arith.constant 0 : index
    %c0_66 = arith.constant 0 : index
    %129 = vector.load %arg7[%c0_65, %c0_66] : memref<8x1xf32, #tpu.memory_space<vmem>>, vector<8x1xf32>
    %130 = vector.broadcast %129 : vector<8x1xf32> to vector<8x16xf32>
    %131 = arith.addf %128, %130 : vector<8x16xf32>
    %cst_67 = arith.constant 0.000000e+00 : f32
    %132 = vector.broadcast %cst_67 : f32 to vector<8x16xf32>
    %133 = arith.maximumf %131, %132 : vector<8x16xf32>
    %c0_68 = arith.constant 0 : index
    %c1_69 = arith.constant 1 : index
    %134 = vector.load %arg13[%c0_68, %c1_69] : memref<8x66xf32, #tpu.memory_space<vmem>>, vector<8x16xf32>
    tpu.vector_store %arg13[%c0_68, %c1_69], %133 {strides = array<i32>} : memref<8x66xf32, #tpu.memory_space<vmem>>, vector<8x16xf32>,
    %c0_70 = arith.constant 0 : index
    %c0_71 = arith.constant 0 : index
    %135 = vector.load %arg13[%c0_70, %c0_71] : memref<8x66xf32, #tpu.memory_space<vmem>>, vector<8x16xf32>
    %cst_72 = arith.constant 0.000000e+00 : f32
    %136 = vector.shape_cast %106 : vector<1x16xi1> to vector<1x16xi1>
    %137 = vector.broadcast %136 : vector<1x16xi1> to vector<8x16xi1>
    %138 = vector.broadcast %cst_72 : f32 to vector<8x16xf32>
    %139 = arith.select %137, %138, %135 : vector<8x16xi1>, vector<8x16xf32>
    %c0_73 = arith.constant 0 : index
    %c2_74 = arith.constant 2 : index
    %140 = vector.load %arg13[%c0_73, %c2_74] : memref<8x66xf32, #tpu.memory_space<vmem>>, vector<8x16xf32>
    %cst_75 = arith.constant 0.000000e+00 : f32
    %141 = vector.shape_cast %108 : vector<1x16xi1> to vector<1x16xi1>
    %142 = vector.broadcast %141 : vector<1x16xi1> to vector<8x16xi1>
    %143 = vector.broadcast %cst_75 : f32 to vector<8x16xf32>
    %144 = arith.select %142, %143, %140 : vector<8x16xi1>, vector<8x16xf32>
    %145 = arith.maximumf %139, %133 : vector<8x16xf32>
    %146 = arith.maximumf %145, %144 : vector<8x16xf32>
    %147 = vector.extract_strided_slice %7 {offsets = [0, 0], sizes = [16, 8], strides = [1, 1]} : vector<64x32xf32> to vector<16x8xf32>
    %cst_76 = arith.constant dense<0.000000e+00> : vector<8x8xf32>
    %148 = tpu.matmul %146, %147, %cst_76 {dimension_numbers = #tpu.dot_dimension_numbers<[1], [0], [0], [1], [0, 0, 1, 1], [], []>} : vector<8x16xf32>, vector<16x8xf32>, vector<8x8xf32> -> vector<8x8xf32>
    %149 = tpu.iota {dimensions = array<i32: 0>} : vector<8x2xi32>
    %150 = tpu.iota {dimensions = array<i32: 1>} : vector<8x2xi32>
    %c0_77 = arith.constant 0 : index
    %c0_78 = arith.constant 0 : index
    %151 = vector.load %arg9[%c0_77, %c0_78] : memref<2048x1xf32, #tpu.memory_space<vmem>>, vector<2048x1xf32>
    %c4_i32 = arith.constant 4 : i32
    %152 = vector.broadcast %c4_i32 : i32 to vector<8x2xi32>
    %153 = arith.muli %150, %152 : vector<8x2xi32>
    %c0_i32_79 = arith.constant 0 : i32
    %154 = vector.broadcast %c0_i32_79 : i32 to vector<8x2xi32>
    %155 = arith.addi %153, %154 : vector<8x2xi32>
    %156 = arith.cmpi eq, %149, %155 : vector<8x2xi32>
    %cst_80 = arith.constant 1.000000e+00 : f32
    %cst_81 = arith.constant 0.000000e+00 : f32
    %157 = vector.broadcast %cst_80 : f32 to vector<8x2xf32>
    %158 = vector.broadcast %cst_81 : f32 to vector<8x2xf32>
    %159 = arith.select %156, %157, %158 : vector<8x2xi1>, vector<8x2xf32>
    %cst_82 = arith.constant dense<0.000000e+00> : vector<8x2xf32>
    %160 = tpu.matmul %148, %159, %cst_82 {dimension_numbers = #tpu.dot_dimension_numbers<[1], [0], [0], [1], [0, 0, 1, 1], [], []>} : vector<8x8xf32>, vector<8x2xf32>, vector<8x2xf32> -> vector<8x2xf32>
    %c0_83 = arith.constant 0 : index
    %c0_84 = arith.constant 0 : index
    %161 = vector.load %arg8[%c0_83, %c0_84] : memref<2048x32xbf16, #tpu.memory_space<vmem>>, vector<2048x8xbf16>
    %162 = arith.truncf %160 : vector<8x2xf32> to vector<8x2xbf16>
    %cst_85 = arith.constant dense<0.000000e+00> : vector<2048x2xf32>
    %163 = tpu.matmul %161, %162, %cst_85 {dimension_numbers = #tpu.dot_dimension_numbers<[1], [0], [0], [1], [0, 0, 1, 1], [], []>} : vector<2048x8xbf16>, vector<8x2xbf16>, vector<2048x2xf32> -> vector<2048x2xf32>
    %164 = vector.broadcast %151 : vector<2048x1xf32> to vector<2048x2xf32>
    %165 = arith.addf %164, %163 : vector<2048x2xf32>
    %c4_i32_86 = arith.constant 4 : i32
    %166 = vector.broadcast %c4_i32_86 : i32 to vector<8x2xi32>
    %167 = arith.muli %150, %166 : vector<8x2xi32>
    %c1_i32 = arith.constant 1 : i32
    %168 = vector.broadcast %c1_i32 : i32 to vector<8x2xi32>
    %169 = arith.addi %167, %168 : vector<8x2xi32>
    %170 = arith.cmpi eq, %149, %169 : vector<8x2xi32>
    %cst_87 = arith.constant 1.000000e+00 : f32
    %cst_88 = arith.constant 0.000000e+00 : f32
    %171 = vector.broadcast %cst_87 : f32 to vector<8x2xf32>
    %172 = vector.broadcast %cst_88 : f32 to vector<8x2xf32>
    %173 = arith.select %170, %171, %172 : vector<8x2xi1>, vector<8x2xf32>
    %cst_89 = arith.constant dense<0.000000e+00> : vector<8x2xf32>
    %174 = tpu.matmul %148, %173, %cst_89 {dimension_numbers = #tpu.dot_dimension_numbers<[1], [0], [0], [1], [0, 0, 1, 1], [], []>} : vector<8x8xf32>, vector<8x2xf32>, vector<8x2xf32> -> vector<8x2xf32>
    %c0_90 = arith.constant 0 : index
    %c8 = arith.constant 8 : index
    %175 = vector.load %arg8[%c0_90, %c8] : memref<2048x32xbf16, #tpu.memory_space<vmem>>, vector<2048x8xbf16>
    %176 = arith.truncf %174 : vector<8x2xf32> to vector<8x2xbf16>
    %cst_91 = arith.constant dense<0.000000e+00> : vector<2048x2xf32>
    %177 = tpu.matmul %175, %176, %cst_91 {dimension_numbers = #tpu.dot_dimension_numbers<[1], [0], [0], [1], [0, 0, 1, 1], [], []>} : vector<2048x8xbf16>, vector<8x2xbf16>, vector<2048x2xf32> -> vector<2048x2xf32>
    %178 = arith.addf %165, %177 : vector<2048x2xf32>
    %c4_i32_92 = arith.constant 4 : i32
    %179 = vector.broadcast %c4_i32_92 : i32 to vector<8x2xi32>
    %180 = arith.muli %150, %179 : vector<8x2xi32>
    %c2_i32_93 = arith.constant 2 : i32
    %181 = vector.broadcast %c2_i32_93 : i32 to vector<8x2xi32>
    %182 = arith.addi %180, %181 : vector<8x2xi32>
    %183 = arith.cmpi eq, %149, %182 : vector<8x2xi32>
    %cst_94 = arith.constant 1.000000e+00 : f32
    %cst_95 = arith.constant 0.000000e+00 : f32
    %184 = vector.broadcast %cst_94 : f32 to vector<8x2xf32>
    %185 = vector.broadcast %cst_95 : f32 to vector<8x2xf32>
    %186 = arith.select %183, %184, %185 : vector<8x2xi1>, vector<8x2xf32>
    %cst_96 = arith.constant dense<0.000000e+00> : vector<8x2xf32>
    %187 = tpu.matmul %148, %186, %cst_96 {dimension_numbers = #tpu.dot_dimension_numbers<[1], [0], [0], [1], [0, 0, 1, 1], [], []>} : vector<8x8xf32>, vector<8x2xf32>, vector<8x2xf32> -> vector<8x2xf32>
    %c0_97 = arith.constant 0 : index
    %c16 = arith.constant 16 : index
    %188 = vector.load %arg8[%c0_97, %c16] : memref<2048x32xbf16, #tpu.memory_space<vmem>>, vector<2048x8xbf16>
    %189 = arith.truncf %187 : vector<8x2xf32> to vector<8x2xbf16>
    %cst_98 = arith.constant dense<0.000000e+00> : vector<2048x2xf32>
    %190 = tpu.matmul %188, %189, %cst_98 {dimension_numbers = #tpu.dot_dimension_numbers<[1], [0], [0], [1], [0, 0, 1, 1], [], []>} : vector<2048x8xbf16>, vector<8x2xbf16>, vector<2048x2xf32> -> vector<2048x2xf32>
    %191 = arith.addf %178, %190 : vector<2048x2xf32>
    %c4_i32_99 = arith.constant 4 : i32
    %192 = vector.broadcast %c4_i32_99 : i32 to vector<8x2xi32>
    %193 = arith.muli %150, %192 : vector<8x2xi32>
    %c3_i32 = arith.constant 3 : i32
    %194 = vector.broadcast %c3_i32 : i32 to vector<8x2xi32>
    %195 = arith.addi %193, %194 : vector<8x2xi32>
    %196 = arith.cmpi eq, %149, %195 : vector<8x2xi32>
    %cst_100 = arith.constant 1.000000e+00 : f32
    %cst_101 = arith.constant 0.000000e+00 : f32
    %197 = vector.broadcast %cst_100 : f32 to vector<8x2xf32>
    %198 = vector.broadcast %cst_101 : f32 to vector<8x2xf32>
    %199 = arith.select %196, %197, %198 : vector<8x2xi1>, vector<8x2xf32>
    %cst_102 = arith.constant dense<0.000000e+00> : vector<8x2xf32>
    %200 = tpu.matmul %148, %199, %cst_102 {dimension_numbers = #tpu.dot_dimension_numbers<[1], [0], [0], [1], [0, 0, 1, 1], [], []>} : vector<8x8xf32>, vector<8x2xf32>, vector<8x2xf32> -> vector<8x2xf32>
    %c0_103 = arith.constant 0 : index
    %c24 = arith.constant 24 : index
    %201 = vector.load %arg8[%c0_103, %c24] : memref<2048x32xbf16, #tpu.memory_space<vmem>>, vector<2048x8xbf16>
    %202 = arith.truncf %200 : vector<8x2xf32> to vector<8x2xbf16>
    %cst_104 = arith.constant dense<0.000000e+00> : vector<2048x2xf32>
    %203 = tpu.matmul %201, %202, %cst_104 {dimension_numbers = #tpu.dot_dimension_numbers<[1], [0], [0], [1], [0, 0, 1, 1], [], []>} : vector<2048x8xbf16>, vector<8x2xbf16>, vector<2048x2xf32> -> vector<2048x2xf32>
    %204 = arith.addf %191, %203 : vector<2048x2xf32>
    %c0_105 = arith.constant 0 : index
    %c0_106 = arith.constant 0 : index
    %205 = vector.load %arg10[%c0_105, %c0_106] : memref<64x2048xbf16, #tpu.memory_space<vmem>>, vector<64x2048xbf16>
    %206 = arith.truncf %204 : vector<2048x2xf32> to vector<2048x2xbf16>
    %cst_107 = arith.constant dense<0.000000e+00> : vector<64x2xf32>
    %207 = tpu.matmul %205, %206, %cst_107 {dimension_numbers = #tpu.dot_dimension_numbers<[1], [0], [0], [1], [0, 0, 1, 1], [], []>} : vector<64x2048xbf16>, vector<2048x2xbf16>, vector<64x2xf32> -> vector<64x2xf32>
    %c0_108 = arith.constant 0 : index
    %c0_109 = arith.constant 0 : index
    %208 = vector.load %arg11[%c0_108, %c0_109] : memref<64x1xf32, #tpu.memory_space<vmem>>, vector<64x1xf32>
    %209 = vector.broadcast %208 : vector<64x1xf32> to vector<64x2xf32>
    %210 = arith.addf %207, %209 : vector<64x2xf32>
    %c0_110 = arith.constant 0 : index
    %c0_111 = arith.constant 0 : index
    %211 = vector.load %arg12[%c0_110, %c0_111] : memref<64x2xf32, #tpu.memory_space<vmem>>, vector<64x2xf32>
    tpu.vector_store %arg12[%c0_110, %c0_111], %210 {strides = array<i32>} : memref<64x2xf32, #tpu.memory_space<vmem>>, vector<64x2xf32>,
    return
  }
  func.func @transform_0(%arg0: i32) -> (i32, i32) {
    %c0_i32 = arith.constant 0 : i32
    %c0_i32_0 = arith.constant 0 : i32
    return %c0_i32, %arg0 : i32, i32
  }
  func.func @transform_1(%arg0: i32) -> (i32, i32) {
    %c0_i32 = arith.constant 0 : i32
    %c0_i32_0 = arith.constant 0 : i32
    %c0_i32_1 = arith.constant 0 : i32
    return %c0_i32, %c0_i32_0 : i32, i32
  }
  func.func @transform_2(%arg0: i32) -> (i32, i32) {
    %c0_i32 = arith.constant 0 : i32
    %c0_i32_0 = arith.constant 0 : i32
    %c0_i32_1 = arith.constant 0 : i32
    return %c0_i32, %c0_i32_0 : i32, i32
  }
  func.func @transform_3(%arg0: i32) -> (i32, i32) {
    %c0_i32 = arith.constant 0 : i32
    %c0_i32_0 = arith.constant 0 : i32
    %c0_i32_1 = arith.constant 0 : i32
    return %c0_i32, %c0_i32_0 : i32, i32
  }
  func.func @transform_4(%arg0: i32) -> (i32, i32) {
    %c0_i32 = arith.constant 0 : i32
    %c0_i32_0 = arith.constant 0 : i32
    %c0_i32_1 = arith.constant 0 : i32
    return %c0_i32, %c0_i32_0 : i32, i32
  }
  func.func @transform_5(%arg0: i32) -> (i32, i32) {
    %c0_i32 = arith.constant 0 : i32
    %c0_i32_0 = arith.constant 0 : i32
    %c0_i32_1 = arith.constant 0 : i32
    return %c0_i32, %c0_i32_0 : i32, i32
  }
  func.func @transform_6(%arg0: i32) -> (i32, i32) {
    %c0_i32 = arith.constant 0 : i32
    %c0_i32_0 = arith.constant 0 : i32
    %c0_i32_1 = arith.constant 0 : i32
    return %c0_i32, %c0_i32_0 : i32, i32
  }
  func.func @transform_7(%arg0: i32) -> (i32, i32) {
    %c0_i32 = arith.constant 0 : i32
    %c0_i32_0 = arith.constant 0 : i32
    %c0_i32_1 = arith.constant 0 : i32
    return %c0_i32, %c0_i32_0 : i32, i32
  }
  func.func @transform_8(%arg0: i32) -> (i32, i32) {
    %c0_i32 = arith.constant 0 : i32
    %c0_i32_0 = arith.constant 0 : i32
    %c0_i32_1 = arith.constant 0 : i32
    return %c0_i32, %c0_i32_0 : i32, i32
  }
  func.func @transform_9(%arg0: i32) -> (i32, i32) {
    %c0_i32 = arith.constant 0 : i32
    %c0_i32_0 = arith.constant 0 : i32
    %c0_i32_1 = arith.constant 0 : i32
    return %c0_i32, %c0_i32_0 : i32, i32
  }
  func.func @transform_10(%arg0: i32) -> (i32, i32) {
    %c0_i32 = arith.constant 0 : i32
    %c0_i32_0 = arith.constant 0 : i32
    %c0_i32_1 = arith.constant 0 : i32
    return %c0_i32, %c0_i32_0 : i32, i32
  }
  func.func @transform_11(%arg0: i32) -> (i32, i32) {
    %c0_i32 = arith.constant 0 : i32
    %c0_i32_0 = arith.constant 0 : i32
    return %c0_i32, %arg0 : i32, i32
  }
}

</mosaic_0001>

<llo_original>
// kernel: alexnet1d_forward.1
$region0: #{alexnet1d_forward.1}
  #allocation0 [shape = 'u32[]', space=smem, size = 0x4, offset = 0x4, fixed_abs, tag = 'smem constant byte address 0x4 - core index']
  #allocation1 [shape = 'u32[144,128]{1,0:T(1,128)}', space=vmem, size = 0x12000, scoped, tag = 'internal scratch']
  #allocation2 [shape = 'f32[8,66]{1,0:T(8,128)}', space=vmem, size = 0x1000, scoped, tag = 'scratch operand']
  %s0 = inlined_call_operand.vmem [shape: f32[2,64], index: 0, kind: input, shape index: {}]
  %s1 = inlined_call_operand.vmem [shape: f32[24,2], index: 1, kind: input, shape index: {}]
  %s2 = inlined_call_operand.vmem [shape: f32[8,1], index: 2, kind: input, shape index: {}]
  %s3 = inlined_call_operand.vmem [shape: f32[24,8], index: 3, kind: input, shape index: {}]
  %s4 = inlined_call_operand.vmem [shape: f32[8,1], index: 4, kind: input, shape index: {}]
  %s5 = inlined_call_operand.vmem [shape: f32[24,8], index: 5, kind: input, shape index: {}]
  %s6 = inlined_call_operand.vmem [shape: f32[8,1], index: 6, kind: input, shape index: {}]
  %s7 = inlined_call_operand.vmem [shape: bf16[2048,32], index: 7, kind: input, shape index: {}]
  %s8 = inlined_call_operand.vmem [shape: f32[2048,1], index: 8, kind: input, shape index: {}]
  %s9 = inlined_call_operand.vmem [shape: bf16[64,2048], index: 9, kind: input, shape index: {}]
  %s10 = inlined_call_operand.vmem [shape: f32[64,1], index: 10, kind: input, shape index: {}]
  %s11 = inlined_call_operand.vmem [shape: f32[64,2], index: 11, kind: output, shape index: {}]
  %s12 = sld [smem:[#allocation0]]
  $region54: #{alexnet1d_forward.1} parent=0
    _
  %s14 = ssub.s32 1, %s12
  %s15 = scalar_select 0, %s14, %s12
  // Predicated region
  $region2: #{alexnet1d_forward.1} parent=0 // pred_check
    _
  $region3: #{alexnet1d_forward.1} parent=0 // pred_check_branch
    %17 = sbr.rel (0) target = $region5
  $region4: #{alexnet1d_forward.1} parent=0 // pred_region
    _
  $region5: #{alexnet1d_forward.1} parent=0 // pred_fallthru
    _
  // Predicated region
  $region6: #{alexnet1d_forward.1} parent=0 // pred_check
    _
  $region7: #{alexnet1d_forward.1} parent=0 // pred_check_branch
    %19 = sbr.rel (0) target = $region9
  $region8: #{alexnet1d_forward.1} parent=0 // pred_region
    _
  $region9: #{alexnet1d_forward.1} parent=0 // pred_fallthru
    _
  // Predicated region
  $region10: #{alexnet1d_forward.1} parent=0 // pred_check
    _
  $region11: #{alexnet1d_forward.1} parent=0 // pred_check_branch
    %21 = sbr.rel (0) target = $region13
  $region12: #{alexnet1d_forward.1} parent=0 // pred_region
    _
  $region13: #{alexnet1d_forward.1} parent=0 // pred_fallthru
    _
  // Predicated region
  $region14: #{alexnet1d_forward.1} parent=0 // pred_check
    _
  $region15: #{alexnet1d_forward.1} parent=0 // pred_check_branch
    %23 = sbr.rel (0) target = $region17
  $region16: #{alexnet1d_forward.1} parent=0 // pred_region
    _
  $region17: #{alexnet1d_forward.1} parent=0 // pred_fallthru
    _
  // Predicated region
  $region18: #{alexnet1d_forward.1} parent=0 // pred_check
    _
  $region19: #{alexnet1d_forward.1} parent=0 // pred_check_branch
    %25 = sbr.rel (0) target = $region21
  $region20: #{alexnet1d_forward.1} parent=0 // pred_region
    _
  $region21: #{alexnet1d_forward.1} parent=0 // pred_fallthru
    _
  // Predicated region
  $region22: #{alexnet1d_forward.1} parent=0 // pred_check
    _
  $region23: #{alexnet1d_forward.1} parent=0 // pred_check_branch
    %27 = sbr.rel (0) target = $region25
  $region24: #{alexnet1d_forward.1} parent=0 // pred_region
    _
  $region25: #{alexnet1d_forward.1} parent=0 // pred_fallthru
    _
  // Predicated region
  $region26: #{alexnet1d_forward.1} parent=0 // pred_check
    _
  $region27: #{alexnet1d_forward.1} parent=0 // pred_check_branch
    %29 = sbr.rel (0) target = $region29
  $region28: #{alexnet1d_forward.1} parent=0 // pred_region
    _
  $region29: #{alexnet1d_forward.1} parent=0 // pred_fallthru
    _
  // Predicated region
  $region30: #{alexnet1d_forward.1} parent=0 // pred_check
    _
  $region31: #{alexnet1d_forward.1} parent=0 // pred_check_branch
    %31 = sbr.rel (0) target = $region33
  $region32: #{alexnet1d_forward.1} parent=0 // pred_region
    _
  $region33: #{alexnet1d_forward.1} parent=0 // pred_fallthru
    _
  // Predicated region
  $region34: #{alexnet1d_forward.1} parent=0 // pred_check
    _
  $region35: #{alexnet1d_forward.1} parent=0 // pred_check_branch
    %33 = sbr.rel (0) target = $region37
  $region36: #{alexnet1d_forward.1} parent=0 // pred_region
    _
  $region37: #{alexnet1d_forward.1} parent=0 // pred_fallthru
    _
  // Predicated region
  $region38: #{alexnet1d_forward.1} parent=0 // pred_check
    _
  $region39: #{alexnet1d_forward.1} parent=0 // pred_check_branch
    %35 = sbr.rel (0) target = $region41
  $region40: #{alexnet1d_forward.1} parent=0 // pred_region
    _
  $region41: #{alexnet1d_forward.1} parent=0 // pred_fallthru
    _
  // Predicated region
  $region42: #{alexnet1d_forward.1} parent=0 // pred_check
    _
  $region43: #{alexnet1d_forward.1} parent=0 // pred_check_branch
    %37 = sbr.rel (0) target = $region45
  $region44: #{alexnet1d_forward.1} parent=0 // pred_region
    _
  $region45: #{alexnet1d_forward.1} parent=0 // pred_fallthru
    _
  %v39 = vlaneseq
  %v40 = vshrl.u32 %v39, 7
  %v41 = vadd.s32 %v40, 8
  %v42 = vadd.s32 %v40, 16
  %v43 = vadd.s32 %v40, 24
  %v44 = vadd.s32 %v40, 32
  %v45 = vadd.s32 %v40, 40
  %v46 = vadd.s32 %v40, 48
  %v47 = vadd.s32 %v40, 56
  %v48 = vlaneseq
  %v49 = vand.u32 %v48, 127
  %v50 = vmul.u32 %v49, 2
  %vm51 = vcmp.eq.s32.totalorder %v40, %v50
  %vm52 = vcmp.eq.s32.totalorder %v41, %v50
  %vm53 = vcmp.eq.s32.totalorder %v42, %v50
  %vm54 = vcmp.eq.s32.totalorder %v43, %v50
  %vm55 = vcmp.eq.s32.totalorder %v44, %v50
  %vm56 = vcmp.eq.s32.totalorder %v45, %v50
  %vm57 = vcmp.eq.s32.totalorder %v46, %v50
  %vm58 = vcmp.eq.s32.totalorder %v47, %v50
  %v59 = vsel %vm51, 1.0, 0.0
  %v60 = vsel %vm52, 1.0, 0.0
  %v61 = vsel %vm53, 1.0, 0.0
  %v62 = vsel %vm54, 1.0, 0.0
  %v63 = vsel %vm55, 1.0, 0.0
  %v64 = vsel %vm56, 1.0, 0.0
  %v65 = vsel %vm57, 1.0, 0.0
  %v66 = vsel %vm58, 1.0, 0.0
  %v67 = vld [vmem:[%s0] sm:$0x3]
  %vm68 = vcmp.lt.s32.totalorder %v49, 0
  %v69 = vsub.s32 0, %v49
  %v70 = vsel %vm68, %v69, %v49
  %v71 = vshrl.u32 %v70, 5
  %v72 = vand.u32 %v70, 31
  %v73 = vsub.s32 0, %v72
  %v74 = vsel %vm68, %v73, %v72
  %vm75 = vcmp.eq.s32.totalorder %v74, 0
  %vm76 = vcmp.eq.s32.totalorder %v74, 31
  %78 = vrot.lane.b32.xlu0 %v67, 1
  %v79 = vpop.permute.xlu0 %78
  %vm81 = vcmask 525320
  %82 = vst.msk [vmem:[#allocation2] sm:$0x3] %vm81, %v79
  %v83 = vld [vmem:[#allocation2] sm:$0x3]
  %v84 = vsel %vm75, 1, 0
  %vm85 = vcmp.eq.s32.totalorder %v84, 1
  %v86 = vsel %vm85, 0.0, %v83
  %v87 = vsel %vm76, 1, 0
  %vm88 = vcmp.eq.s32.totalorder %v87, 1
  %90 = vrot.lane.b32.xlu0 %v83, 126
  %v91 = vpop.permute.xlu0 %90
  %v93 = vsel %vm88, 0.0, %v91
  %v94 = vld [vmem:[%s1] sm:$0xff]
  %v95 = vld [vmem:[%s1 + $0x8] sm:$0xff]
  %v96 = vld [vmem:[%s1 + $0x10] sm:$0xff]
  %vm97 = vcmask 15360
  %v99 = vsel %vm97, %v95, 0
  %vm101 = vcmask 1041408
  %v102 = vsel %vm101, %v67, 0
  %104 = vmatprep.subr.mxu0 0.0
  %105 = vmatpush1.msra.mxu0 %v102
  %106 = vmatprep.subr.mxu0 0.0
  %107 = vmatpush1.msra.mxu0 0.0
  %108 = vmatprep.subr.mxu0 0.0
  %109 = vmatpush1.msra.mxu0 0.0
  %110 = vmatprep.subr.mxu0 0.0
  %111 = vmatpush1.msra.mxu0 0.0
  %112 = vmatprep.subr.mxu0 0.0
  %113 = vmatpush1.msra.mxu0 0.0
  %114 = vmatprep.subr.mxu0 0.0
  %115 = vmatpush1.msra.mxu0 0.0
  %116 = vmatprep.subr.mxu0 0.0
  %117 = vmatpush1.msra.mxu0 0.0
  %118 = vmatprep.subr.mxu0 0.0
  %119 = vmatpush1.msra.mxu0 0.0
  %120 = vmatprep.subr.mxu0 0.0
  %121 = vmatpush1.msra.mxu0 0.0
  %122 = vmatprep.subr.mxu0 0.0
  %123 = vmatpush1.msra.mxu0 0.0
  %124 = vmatprep.subr.mxu0 0.0
  %125 = vmatpush1.msra.mxu0 0.0
  %126 = vmatprep.subr.mxu0 0.0
  %127 = vmatpush1.msra.mxu0 0.0
  %128 = vmatprep.subr.mxu0 0.0
  %129 = vmatpush1.msra.mxu0 0.0
  %130 = vmatprep.subr.mxu0 0.0
  %131 = vmatpush1.msra.mxu0 0.0
  %132 = vmatprep.subr.mxu0 0.0
  %133 = vmatpush1.msra.mxu0 0.0
  %134 = vmatprep.subr.mxu0 0.0
  %135 = vmatpush1.msra.mxu0 0.0
  %136 = vmatprep.subr.mxu0 0.0
  %137 = vmatpush1.msra.mxu0 0.0
  %138 = vmatprep.subr.mxu0 0.0
  %139 = vmatpush1.msra.mxu0 0.0
  %140 = vmatprep.subr.mxu0 0.0
  %141 = vmatpush1.msra.mxu0 0.0
  %142 = vmatprep.subr.mxu0 0.0
  %143 = vmatpush1.msra.mxu0 0.0
  %144 = vmatprep.subr.mxu0 0.0
  %145 = vmatpush1.msra.mxu0 0.0
  %146 = vmatprep.subr.mxu0 0.0
  %147 = vmatpush1.msra.mxu0 0.0
  %148 = vmatprep.subr.mxu0 0.0
  %149 = vmatpush1.msra.mxu0 0.0
  %150 = vmatprep.subr.mxu0 0.0
  %151 = vmatpush1.msra.mxu0 0.0
  %152 = vmatprep.subr.mxu0 0.0
  %153 = vmatpush1.msra.mxu0 0.0
  %154 = vmatprep.subr.mxu0 0.0
  %155 = vmatpush1.msra.mxu0 0.0
  %156 = vmatprep.subr.mxu0 0.0
  %157 = vmatpush1.msra.mxu0 0.0
  %158 = vmatprep.subr.mxu0 0.0
  %159 = vmatpush1.msra.mxu0 0.0
  %160 = vmatprep.subr.mxu0 0.0
  %161 = vmatpush1.msra.mxu0 0.0
  %162 = vmatprep.subr.mxu0 0.0
  %163 = vmatpush1.msra.mxu0 0.0
  %164 = vmatprep.subr.mxu0 0.0
  %165 = vmatpush1.msra.mxu0 0.0
  %166 = vmatprep.subr.mxu0 0.0
  %167 = vmatpush1.msra.mxu0 0.0
  %168 = vmatprep.mubr.f32.mxu0 0.0
  %169 = vmatmul.mubr.f32.gmra.mrb[0].mxu0 %v99
  %v170 = vpop.f32.mrb[0].mxu0
  %v171 = vadd.f32 0.0, %v170
  %v172 = vpop.f32.mrb[0].mxu0
  %173 = vdwg.mxu0
  %v175 = vsel %vm97, %v94, 0
  %v178 = vsel %vm101, %v86, 0
  %180 = vmatprep.subr.mxu0 0.0
  %181 = vmatpush1.msra.mxu0 %v178
  %182 = vmatprep.subr.mxu0 0.0
  %183 = vmatpush1.msra.mxu0 0.0
  %184 = vmatprep.subr.mxu0 0.0
  %185 = vmatpush1.msra.mxu0 0.0
  %186 = vmatprep.subr.mxu0 0.0
  %187 = vmatpush1.msra.mxu0 0.0
  %188 = vmatprep.subr.mxu0 0.0
  %189 = vmatpush1.msra.mxu0 0.0
  %190 = vmatprep.subr.mxu0 0.0
  %191 = vmatpush1.msra.mxu0 0.0
  %192 = vmatprep.subr.mxu0 0.0
  %193 = vmatpush1.msra.mxu0 0.0
  %194 = vmatprep.subr.mxu0 0.0
  %195 = vmatpush1.msra.mxu0 0.0
  %196 = vmatprep.subr.mxu0 0.0
  %197 = vmatpush1.msra.mxu0 0.0
  %198 = vmatprep.subr.mxu0 0.0
  %199 = vmatpush1.msra.mxu0 0.0
  %200 = vmatprep.subr.mxu0 0.0
  %201 = vmatpush1.msra.mxu0 0.0
  %202 = vmatprep.subr.mxu0 0.0
  %203 = vmatpush1.msra.mxu0 0.0
  %204 = vmatprep.subr.mxu0 0.0
  %205 = vmatpush1.msra.mxu0 0.0
  %206 = vmatprep.subr.mxu0 0.0
  %207 = vmatpush1.msra.mxu0 0.0
  %208 = vmatprep.subr.mxu0 0.0
  %209 = vmatpush1.msra.mxu0 0.0
  %210 = vmatprep.subr.mxu0 0.0
  %211 = vmatpush1.msra.mxu0 0.0
  %212 = vmatprep.subr.mxu0 0.0
  %213 = vmatpush1.msra.mxu0 0.0
  %214 = vmatprep.subr.mxu0 0.0
  %215 = vmatpush1.msra.mxu0 0.0
  %216 = vmatprep.subr.mxu0 0.0
  %217 = vmatpush1.msra.mxu0 0.0
  %218 = vmatprep.subr.mxu0 0.0
  %219 = vmatpush1.msra.mxu0 0.0
  %220 = vmatprep.subr.mxu0 0.0
  %221 = vmatpush1.msra.mxu0 0.0
  %222 = vmatprep.subr.mxu0 0.0
  %223 = vmatpush1.msra.mxu0 0.0
  %224 = vmatprep.subr.mxu0 0.0
  %225 = vmatpush1.msra.mxu0 0.0
  %226 = vmatprep.subr.mxu0 0.0
  %227 = vmatpush1.msra.mxu0 0.0
  %228 = vmatprep.subr.mxu0 0.0
  %229 = vmatpush1.msra.mxu0 0.0
  %230 = vmatprep.subr.mxu0 0.0
  %231 = vmatpush1.msra.mxu0 0.0
  %232 = vmatprep.subr.mxu0 0.0
  %233 = vmatpush1.msra.mxu0 0.0
  %234 = vmatprep.subr.mxu0 0.0
  %235 = vmatpush1.msra.mxu0 0.0
  %236 = vmatprep.subr.mxu0 0.0
  %237 = vmatpush1.msra.mxu0 0.0
  %238 = vmatprep.subr.mxu0 0.0
  %239 = vmatpush1.msra.mxu0 0.0
  %240 = vmatprep.subr.mxu0 0.0
  %241 = vmatpush1.msra.mxu0 0.0
  %242 = vmatprep.subr.mxu0 0.0
  %243 = vmatpush1.msra.mxu0 0.0
  %244 = vmatprep.mubr.f32.mxu0 0.0
  %245 = vmatmul.mubr.f32.gmra.mrb[0].mxu0 %v175
  %v246 = vpop.f32.mrb[0].mxu0
  %v247 = vadd.f32 %v171, %v246
  %v248 = vpop.f32.mrb[0].mxu0
  %249 = vdwg.mxu0
  %v251 = vsel %vm97, %v96, 0
  %v254 = vsel %vm101, %v93, 0
  %256 = vmatprep.subr.mxu0 0.0
  %257 = vmatpush1.msra.mxu0 %v254
  %258 = vmatprep.subr.mxu0 0.0
  %259 = vmatpush1.msra.mxu0 0.0
  %260 = vmatprep.subr.mxu0 0.0
  %261 = vmatpush1.msra.mxu0 0.0
  %262 = vmatprep.subr.mxu0 0.0
  %263 = vmatpush1.msra.mxu0 0.0
  %264 = vmatprep.subr.mxu0 0.0
  %265 = vmatpush1.msra.mxu0 0.0
  %266 = vmatprep.subr.mxu0 0.0
  %267 = vmatpush1.msra.mxu0 0.0
  %268 = vmatprep.subr.mxu0 0.0
  %269 = vmatpush1.msra.mxu0 0.0
  %270 = vmatprep.subr.mxu0 0.0
  %271 = vmatpush1.msra.mxu0 0.0
  %272 = vmatprep.subr.mxu0 0.0
  %273 = vmatpush1.msra.mxu0 0.0
  %274 = vmatprep.subr.mxu0 0.0
  %275 = vmatpush1.msra.mxu0 0.0
  %276 = vmatprep.subr.mxu0 0.0
  %277 = vmatpush1.msra.mxu0 0.0
  %278 = vmatprep.subr.mxu0 0.0
  %279 = vmatpush1.msra.mxu0 0.0
  %280 = vmatprep.subr.mxu0 0.0
  %281 = vmatpush1.msra.mxu0 0.0
  %282 = vmatprep.subr.mxu0 0.0
  %283 = vmatpush1.msra.mxu0 0.0
  %284 = vmatprep.subr.mxu0 0.0
  %285 = vmatpush1.msra.mxu0 0.0
  %286 = vmatprep.subr.mxu0 0.0
  %287 = vmatpush1.msra.mxu0 0.0
  %288 = vmatprep.subr.mxu0 0.0
  %289 = vmatpush1.msra.mxu0 0.0
  %290 = vmatprep.subr.mxu0 0.0
  %291 = vmatpush1.msra.mxu0 0.0
  %292 = vmatprep.subr.mxu0 0.0
  %293 = vmatpush1.msra.mxu0 0.0
  %294 = vmatprep.subr.mxu0 0.0
  %295 = vmatpush1.msra.mxu0 0.0
  %296 = vmatprep.subr.mxu0 0.0
  %297 = vmatpush1.msra.mxu0 0.0
  %298 = vmatprep.subr.mxu0 0.0
  %299 = vmatpush1.msra.mxu0 0.0
  %300 = vmatprep.subr.mxu0 0.0
  %301 = vmatpush1.msra.mxu0 0.0
  %302 = vmatprep.subr.mxu0 0.0
  %303 = vmatpush1.msra.mxu0 0.0
  %304 = vmatprep.subr.mxu0 0.0
  %305 = vmatpush1.msra.mxu0 0.0
  %306 = vmatprep.subr.mxu0 0.0
  %307 = vmatpush1.msra.mxu0 0.0
  %308 = vmatprep.subr.mxu0 0.0
  %309 = vmatpush1.msra.mxu0 0.0
  %310 = vmatprep.subr.mxu0 0.0
  %311 = vmatpush1.msra.mxu0 0.0
  %312 = vmatprep.subr.mxu0 0.0
  %313 = vmatpush1.msra.mxu0 0.0
  %314 = vmatprep.subr.mxu0 0.0
  %315 = vmatpush1.msra.mxu0 0.0
  %316 = vmatprep.subr.mxu0 0.0
  %317 = vmatpush1.msra.mxu0 0.0
  %318 = vmatprep.subr.mxu0 0.0
  %319 = vmatpush1.msra.mxu0 0.0
  %320 = vmatprep.mubr.f32.mxu0 0.0
  %321 = vmatmul.mubr.f32.gmra.mrb[0].mxu0 %v251
  %v322 = vpop.f32.mrb[0].mxu0
  %v323 = vadd.f32 0.0, %v322
  %v324 = vpop.f32.mrb[0].mxu0
  %325 = vdwg.mxu0
  %v326 = vadd.f32 %v247, %v323
  %v327 = vld [vmem:[%s2] sm:$0xff]
  %329 = vset.pattern.permute.xlu0 0
  %330 = vperm.xlu0 %329, %v327
  %v331 = vpop.permute.xlu0 %330
  %v333 = vadd.f32 %v326, %v331
  %v334 = vmax.f32 %v333, 0.0
  %336 = vrot.lane.b32.xlu0 %v334, 1
  %v337 = vpop.permute.xlu0 %336
  %vm339 = vcmask 531464
  %340 = vst.msk [vmem:[#allocation2] sm:$0xff] %vm339, %v337
  %v341 = vld [vmem:[#allocation2] sm:$0xff]
  %v342 = vsel %vm85, 0.0, %v341
  %344 = vrot.lane.b32.xlu0 %v341, 126
  %v345 = vpop.permute.xlu0 %344
  %v347 = vsel %vm88, 0.0, %v345
  %v348 = vmax.f32 %v342, %v334
  %v349 = vmax.f32 %v348, %v347
  %vm350 = vcmask 523264
  %v352 = vsel %vm350, %v349, 0
  %354 = vmatprep.subr.mxu0 0.0
  %355 = vmatpush1.msra.mxu0 %v59
  %356 = vmatprep.subr.mxu0 0.0
  %357 = vmatpush1.msra.mxu0 %v60
  %358 = vmatprep.subr.mxu0 0.0
  %359 = vmatpush1.msra.mxu0 %v61
  %360 = vmatprep.subr.mxu0 0.0
  %361 = vmatpush1.msra.mxu0 %v62
  %362 = vmatprep.subr.mxu0 0.0
  %363 = vmatpush1.msra.mxu0 %v63
  %364 = vmatprep.subr.mxu0 0.0
  %365 = vmatpush1.msra.mxu0 %v64
  %366 = vmatprep.subr.mxu0 0.0
  %367 = vmatpush1.msra.mxu0 %v65
  %368 = vmatprep.subr.mxu0 0.0
  %369 = vmatpush1.msra.mxu0 %v66
  %370 = vmatprep.subr.mxu0 0.0
  %371 = vmatpush1.msra.mxu0 0.0
  %372 = vmatprep.subr.mxu0 0.0
  %373 = vmatpush1.msra.mxu0 0.0
  %374 = vmatprep.subr.mxu0 0.0
  %375 = vmatpush1.msra.mxu0 0.0
  %376 = vmatprep.subr.mxu0 0.0
  %377 = vmatpush1.msra.mxu0 0.0
  %378 = vmatprep.subr.mxu0 0.0
  %379 = vmatpush1.msra.mxu0 0.0
  %380 = vmatprep.subr.mxu0 0.0
  %381 = vmatpush1.msra.mxu0 0.0
  %382 = vmatprep.subr.mxu0 0.0
  %383 = vmatpush1.msra.mxu0 0.0
  %384 = vmatprep.subr.mxu0 0.0
  %385 = vmatpush1.msra.mxu0 0.0
  %386 = vmatprep.subr.mxu0 0.0
  %387 = vmatpush1.msra.mxu0 0.0
  %388 = vmatprep.subr.mxu0 0.0
  %389 = vmatpush1.msra.mxu0 0.0
  %390 = vmatprep.subr.mxu0 0.0
  %391 = vmatpush1.msra.mxu0 0.0
  %392 = vmatprep.subr.mxu0 0.0
  %393 = vmatpush1.msra.mxu0 0.0
  %394 = vmatprep.subr.mxu0 0.0
  %395 = vmatpush1.msra.mxu0 0.0
  %396 = vmatprep.subr.mxu0 0.0
  %397 = vmatpush1.msra.mxu0 0.0
  %398 = vmatprep.subr.mxu0 0.0
  %399 = vmatpush1.msra.mxu0 0.0
  %400 = vmatprep.subr.mxu0 0.0
  %401 = vmatpush1.msra.mxu0 0.0
  %402 = vmatprep.subr.mxu0 0.0
  %403 = vmatpush1.msra.mxu0 0.0
  %404 = vmatprep.subr.mxu0 0.0
  %405 = vmatpush1.msra.mxu0 0.0
  %406 = vmatprep.subr.mxu0 0.0
  %407 = vmatpush1.msra.mxu0 0.0
  %408 = vmatprep.subr.mxu0 0.0
  %409 = vmatpush1.msra.mxu0 0.0
  %410 = vmatprep.subr.mxu0 0.0
  %411 = vmatpush1.msra.mxu0 0.0
  %412 = vmatprep.subr.mxu0 0.0
  %413 = vmatpush1.msra.mxu0 0.0
  %414 = vmatprep.subr.mxu0 0.0
  %415 = vmatpush1.msra.mxu0 0.0
  %416 = vmatprep.subr.mxu0 0.0
  %417 = vmatpush1.msra.mxu0 0.0
  %418 = vmatprep.mubr.f32.mxu0 0.0
  %419 = vmatmul.mubr.f32.gmra.mrb[0].mxu0 %v352
  %v420 = vpop.f32.mrb[0].mxu0
  %v421 = vadd.f32 0.0, %v420
  %v422 = vpop.f32.mrb[0].mxu0
  %423 = vdwg.mxu0
  %vm424 = vcmp.lt.s32.totalorder %v49, 0
  %v425 = vsub.s32 0, %v49
  %v426 = vsel %vm424, %v425, %v49
  %v427 = vshrl.u32 %v426, 4
  %v428 = vand.u32 %v426, 15
  %v429 = vsub.s32 0, %v428
  %v430 = vsel %vm424, %v429, %v428
  %vm431 = vcmp.eq.s32.totalorder %v430, 0
  %vm432 = vcmp.eq.s32.totalorder %v430, 15
  %434 = vrot.lane.b32.xlu0 %v421, 1
  %v435 = vpop.permute.xlu0 %434
  %vm437 = vcmask 269320
  %438 = vst.msk [vmem:[#allocation2] sm:$0xff] %vm437, %v435
  %v439 = vld [vmem:[#allocation2] sm:$0xff]
  %v440 = vsel %vm431, 1, 0
  %vm441 = vcmp.eq.s32.totalorder %v440, 1
  %v442 = vsel %vm441, 0.0, %v439
  %v443 = vsel %vm432, 1, 0
  %vm444 = vcmp.eq.s32.totalorder %v443, 1
  %446 = vrot.lane.b32.xlu0 %v439, 126
  %v447 = vpop.permute.xlu0 %446
  %v449 = vsel %vm444, 0.0, %v447
  %v450 = vld [vmem:[%s3] sm:$0xff]
  %v451 = vld [vmem:[%s3 + $0x8] sm:$0xff]
  %v452 = vld [vmem:[%s3 + $0x10] sm:$0xff]
  %vm453 = vcmask 64512
  %v455 = vsel %vm453, %v451, 0
  %457 = vmatprep.subr.mxu0 0.0
  %458 = vmatpush1.msra.mxu0 %v421
  %459 = vmatprep.subr.mxu0 0.0
  %460 = vmatpush1.msra.mxu0 0.0
  %461 = vmatprep.subr.mxu0 0.0
  %462 = vmatpush1.msra.mxu0 0.0
  %463 = vmatprep.subr.mxu0 0.0
  %464 = vmatpush1.msra.mxu0 0.0
  %465 = vmatprep.subr.mxu0 0.0
  %466 = vmatpush1.msra.mxu0 0.0
  %467 = vmatprep.subr.mxu0 0.0
  %468 = vmatpush1.msra.mxu0 0.0
  %469 = vmatprep.subr.mxu0 0.0
  %470 = vmatpush1.msra.mxu0 0.0
  %471 = vmatprep.subr.mxu0 0.0
  %472 = vmatpush1.msra.mxu0 0.0
  %473 = vmatprep.subr.mxu0 0.0
  %474 = vmatpush1.msra.mxu0 0.0
  %475 = vmatprep.subr.mxu0 0.0
  %476 = vmatpush1.msra.mxu0 0.0
  %477 = vmatprep.subr.mxu0 0.0
  %478 = vmatpush1.msra.mxu0 0.0
  %479 = vmatprep.subr.mxu0 0.0
  %480 = vmatpush1.msra.mxu0 0.0
  %481 = vmatprep.subr.mxu0 0.0
  %482 = vmatpush1.msra.mxu0 0.0
  %483 = vmatprep.subr.mxu0 0.0
  %484 = vmatpush1.msra.mxu0 0.0
  %485 = vmatprep.subr.mxu0 0.0
  %486 = vmatpush1.msra.mxu0 0.0
  %487 = vmatprep.subr.mxu0 0.0
  %488 = vmatpush1.msra.mxu0 0.0
  %489 = vmatprep.subr.mxu0 0.0
  %490 = vmatpush1.msra.mxu0 0.0
  %491 = vmatprep.subr.mxu0 0.0
  %492 = vmatpush1.msra.mxu0 0.0
  %493 = vmatprep.subr.mxu0 0.0
  %494 = vmatpush1.msra.mxu0 0.0
  %495 = vmatprep.subr.mxu0 0.0
  %496 = vmatpush1.msra.mxu0 0.0
  %497 = vmatprep.subr.mxu0 0.0
  %498 = vmatpush1.msra.mxu0 0.0
  %499 = vmatprep.subr.mxu0 0.0
  %500 = vmatpush1.msra.mxu0 0.0
  %501 = vmatprep.subr.mxu0 0.0
  %502 = vmatpush1.msra.mxu0 0.0
  %503 = vmatprep.subr.mxu0 0.0
  %504 = vmatpush1.msra.mxu0 0.0
  %505 = vmatprep.subr.mxu0 0.0
  %506 = vmatpush1.msra.mxu0 0.0
  %507 = vmatprep.subr.mxu0 0.0
  %508 = vmatpush1.msra.mxu0 0.0
  %509 = vmatprep.subr.mxu0 0.0
  %510 = vmatpush1.msra.mxu0 0.0
  %511 = vmatprep.subr.mxu0 0.0
  %512 = vmatpush1.msra.mxu0 0.0
  %513 = vmatprep.subr.mxu0 0.0
  %514 = vmatpush1.msra.mxu0 0.0
  %515 = vmatprep.subr.mxu0 0.0
  %516 = vmatpush1.msra.mxu0 0.0
  %517 = vmatprep.subr.mxu0 0.0
  %518 = vmatpush1.msra.mxu0 0.0
  %519 = vmatprep.subr.mxu0 0.0
  %520 = vmatpush1.msra.mxu0 0.0
  %521 = vmatprep.mubr.f32.mxu0 0.0
  %522 = vmatmul.mubr.f32.gmra.mrb[0].mxu0 %v455
  %v523 = vpop.f32.mrb[0].mxu0
  %v524 = vadd.f32 0.0, %v523
  %v525 = vpop.f32.mrb[0].mxu0
  %526 = vdwg.mxu0
  %v528 = vsel %vm453, %v450, 0
  %530 = vmatprep.subr.mxu0 0.0
  %531 = vmatpush1.msra.mxu0 %v442
  %532 = vmatprep.subr.mxu0 0.0
  %533 = vmatpush1.msra.mxu0 0.0
  %534 = vmatprep.subr.mxu0 0.0
  %535 = vmatpush1.msra.mxu0 0.0
  %536 = vmatprep.subr.mxu0 0.0
  %537 = vmatpush1.msra.mxu0 0.0
  %538 = vmatprep.subr.mxu0 0.0
  %539 = vmatpush1.msra.mxu0 0.0
  %540 = vmatprep.subr.mxu0 0.0
  %541 = vmatpush1.msra.mxu0 0.0
  %542 = vmatprep.subr.mxu0 0.0
  %543 = vmatpush1.msra.mxu0 0.0
  %544 = vmatprep.subr.mxu0 0.0
  %545 = vmatpush1.msra.mxu0 0.0
  %546 = vmatprep.subr.mxu0 0.0
  %547 = vmatpush1.msra.mxu0 0.0
  %548 = vmatprep.subr.mxu0 0.0
  %549 = vmatpush1.msra.mxu0 0.0
  %550 = vmatprep.subr.mxu0 0.0
  %551 = vmatpush1.msra.mxu0 0.0
  %552 = vmatprep.subr.mxu0 0.0
  %553 = vmatpush1.msra.mxu0 0.0
  %554 = vmatprep.subr.mxu0 0.0
  %555 = vmatpush1.msra.mxu0 0.0
  %556 = vmatprep.subr.mxu0 0.0
  %557 = vmatpush1.msra.mxu0 0.0
  %558 = vmatprep.subr.mxu0 0.0
  %559 = vmatpush1.msra.mxu0 0.0
  %560 = vmatprep.subr.mxu0 0.0
  %561 = vmatpush1.msra.mxu0 0.0
  %562 = vmatprep.subr.mxu0 0.0
  %563 = vmatpush1.msra.mxu0 0.0
  %564 = vmatprep.subr.mxu0 0.0
  %565 = vmatpush1.msra.mxu0 0.0
  %566 = vmatprep.subr.mxu0 0.0
  %567 = vmatpush1.msra.mxu0 0.0
  %568 = vmatprep.subr.mxu0 0.0
  %569 = vmatpush1.msra.mxu0 0.0
  %570 = vmatprep.subr.mxu0 0.0
  %571 = vmatpush1.msra.mxu0 0.0
  %572 = vmatprep.subr.mxu0 0.0
  %573 = vmatpush1.msra.mxu0 0.0
  %574 = vmatprep.subr.mxu0 0.0
  %575 = vmatpush1.msra.mxu0 0.0
  %576 = vmatprep.subr.mxu0 0.0
  %577 = vmatpush1.msra.mxu0 0.0
  %578 = vmatprep.subr.mxu0 0.0
  %579 = vmatpush1.msra.mxu0 0.0
  %580 = vmatprep.subr.mxu0 0.0
  %581 = vmatpush1.msra.mxu0 0.0
  %582 = vmatprep.subr.mxu0 0.0
  %583 = vmatpush1.msra.mxu0 0.0
  %584 = vmatprep.subr.mxu0 0.0
  %585 = vmatpush1.msra.mxu0 0.0
  %586 = vmatprep.subr.mxu0 0.0
  %587 = vmatpush1.msra.mxu0 0.0
  %588 = vmatprep.subr.mxu0 0.0
  %589 = vmatpush1.msra.mxu0 0.0
  %590 = vmatprep.subr.mxu0 0.0
  %591 = vmatpush1.msra.mxu0 0.0
  %592 = vmatprep.subr.mxu0 0.0
  %593 = vmatpush1.msra.mxu0 0.0
  %594 = vmatprep.mubr.f32.mxu0 0.0
  %595 = vmatmul.mubr.f32.gmra.mrb[0].mxu0 %v528
  %v596 = vpop.f32.mrb[0].mxu0
  %v597 = vadd.f32 %v524, %v596
  %v598 = vpop.f32.mrb[0].mxu0
  %599 = vdwg.mxu0
  %v601 = vsel %vm453, %v452, 0
  %603 = vmatprep.subr.mxu0 0.0
  %604 = vmatpush1.msra.mxu0 %v449
  %605 = vmatprep.subr.mxu0 0.0
  %606 = vmatpush1.msra.mxu0 0.0
  %607 = vmatprep.subr.mxu0 0.0
  %608 = vmatpush1.msra.mxu0 0.0
  %609 = vmatprep.subr.mxu0 0.0
  %610 = vmatpush1.msra.mxu0 0.0
  %611 = vmatprep.subr.mxu0 0.0
  %612 = vmatpush1.msra.mxu0 0.0
  %613 = vmatprep.subr.mxu0 0.0
  %614 = vmatpush1.msra.mxu0 0.0
  %615 = vmatprep.subr.mxu0 0.0
  %616 = vmatpush1.msra.mxu0 0.0
  %617 = vmatprep.subr.mxu0 0.0
  %618 = vmatpush1.msra.mxu0 0.0
  %619 = vmatprep.subr.mxu0 0.0
  %620 = vmatpush1.msra.mxu0 0.0
  %621 = vmatprep.subr.mxu0 0.0
  %622 = vmatpush1.msra.mxu0 0.0
  %623 = vmatprep.subr.mxu0 0.0
  %624 = vmatpush1.msra.mxu0 0.0
  %625 = vmatprep.subr.mxu0 0.0
  %626 = vmatpush1.msra.mxu0 0.0
  %627 = vmatprep.subr.mxu0 0.0
  %628 = vmatpush1.msra.mxu0 0.0
  %629 = vmatprep.subr.mxu0 0.0
  %630 = vmatpush1.msra.mxu0 0.0
  %631 = vmatprep.subr.mxu0 0.0
  %632 = vmatpush1.msra.mxu0 0.0
  %633 = vmatprep.subr.mxu0 0.0
  %634 = vmatpush1.msra.mxu0 0.0
  %635 = vmatprep.subr.mxu0 0.0
  %636 = vmatpush1.msra.mxu0 0.0
  %637 = vmatprep.subr.mxu0 0.0
  %638 = vmatpush1.msra.mxu0 0.0
  %639 = vmatprep.subr.mxu0 0.0
  %640 = vmatpush1.msra.mxu0 0.0
  %641 = vmatprep.subr.mxu0 0.0
  %642 = vmatpush1.msra.mxu0 0.0
  %643 = vmatprep.subr.mxu0 0.0
  %644 = vmatpush1.msra.mxu0 0.0
  %645 = vmatprep.subr.mxu0 0.0
  %646 = vmatpush1.msra.mxu0 0.0
  %647 = vmatprep.subr.mxu0 0.0
  %648 = vmatpush1.msra.mxu0 0.0
  %649 = vmatprep.subr.mxu0 0.0
  %650 = vmatpush1.msra.mxu0 0.0
  %651 = vmatprep.subr.mxu0 0.0
  %652 = vmatpush1.msra.mxu0 0.0
  %653 = vmatprep.subr.mxu0 0.0
  %654 = vmatpush1.msra.mxu0 0.0
  %655 = vmatprep.subr.mxu0 0.0
  %656 = vmatpush1.msra.mxu0 0.0
  %657 = vmatprep.subr.mxu0 0.0
  %658 = vmatpush1.msra.mxu0 0.0
  %659 = vmatprep.subr.mxu0 0.0
  %660 = vmatpush1.msra.mxu0 0.0
  %661 = vmatprep.subr.mxu0 0.0
  %662 = vmatpush1.msra.mxu0 0.0
  %663 = vmatprep.subr.mxu0 0.0
  %664 = vmatpush1.msra.mxu0 0.0
  %665 = vmatprep.subr.mxu0 0.0
  %666 = vmatpush1.msra.mxu0 0.0
  %667 = vmatprep.mubr.f32.mxu0 0.0
  %668 = vmatmul.mubr.f32.gmra.mrb[0].mxu0 %v601
  %v669 = vpop.f32.mrb[0].mxu0
  %v670 = vadd.f32 0.0, %v669
  %v671 = vpop.f32.mrb[0].mxu0
  %672 = vdwg.mxu0
  %v673 = vadd.f32 %v597, %v670
  %v674 = vld [vmem:[%s4] sm:$0xff]
  %676 = vset.pattern.permute.xlu0 0
  %677 = vperm.xlu0 %676, %v674
  %v678 = vpop.permute.xlu0 %677
  %v680 = vadd.f32 %v673, %v678
  %v681 = vmax.f32 %v680, 0.0
  %683 = vrot.lane.b32.xlu0 %v681, 1
  %v684 = vpop.permute.xlu0 %683
  %686 = vst.msk [vmem:[#allocation2] sm:$0xff] %vm437, %v684
  %v687 = vld [vmem:[#allocation2] sm:$0xff]
  %v688 = vsel %vm441, 0.0, %v687
  %690 = vrot.lane.b32.xlu0 %v687, 126
  %v691 = vpop.permute.xlu0 %690
  %v693 = vsel %vm444, 0.0, %v691
  %v694 = vmax.f32 %v688, %v681
  %v695 = vmax.f32 %v694, %v693
  %vm696 = vcmask 261120
  %v698 = vsel %vm696, %v695, 0
  %700 = vmatprep.subr.mxu0 0.0
  %701 = vmatpush1.msra.mxu0 %v59
  %702 = vmatprep.subr.mxu0 0.0
  %703 = vmatpush1.msra.mxu0 %v60
  %704 = vmatprep.subr.mxu0 0.0
  %705 = vmatpush1.msra.mxu0 %v61
  %706 = vmatprep.subr.mxu0 0.0
  %707 = vmatpush1.msra.mxu0 %v62
  %708 = vmatprep.subr.mxu0 0.0
  %709 = vmatpush1.msra.mxu0 0.0
  %710 = vmatprep.subr.mxu0 0.0
  %711 = vmatpush1.msra.mxu0 0.0
  %712 = vmatprep.subr.mxu0 0.0
  %713 = vmatpush1.msra.mxu0 0.0
  %714 = vmatprep.subr.mxu0 0.0
  %715 = vmatpush1.msra.mxu0 0.0
  %716 = vmatprep.subr.mxu0 0.0
  %717 = vmatpush1.msra.mxu0 0.0
  %718 = vmatprep.subr.mxu0 0.0
  %719 = vmatpush1.msra.mxu0 0.0
  %720 = vmatprep.subr.mxu0 0.0
  %721 = vmatpush1.msra.mxu0 0.0
  %722 = vmatprep.subr.mxu0 0.0
  %723 = vmatpush1.msra.mxu0 0.0
  %724 = vmatprep.subr.mxu0 0.0
  %725 = vmatpush1.msra.mxu0 0.0
  %726 = vmatprep.subr.mxu0 0.0
  %727 = vmatpush1.msra.mxu0 0.0
  %728 = vmatprep.subr.mxu0 0.0
  %729 = vmatpush1.msra.mxu0 0.0
  %730 = vmatprep.subr.mxu0 0.0
  %731 = vmatpush1.msra.mxu0 0.0
  %732 = vmatprep.subr.mxu0 0.0
  %733 = vmatpush1.msra.mxu0 0.0
  %734 = vmatprep.subr.mxu0 0.0
  %735 = vmatpush1.msra.mxu0 0.0
  %736 = vmatprep.subr.mxu0 0.0
  %737 = vmatpush1.msra.mxu0 0.0
  %738 = vmatprep.subr.mxu0 0.0
  %739 = vmatpush1.msra.mxu0 0.0
  %740 = vmatprep.subr.mxu0 0.0
  %741 = vmatpush1.msra.mxu0 0.0
  %742 = vmatprep.subr.mxu0 0.0
  %743 = vmatpush1.msra.mxu0 0.0
  %744 = vmatprep.subr.mxu0 0.0
  %745 = vmatpush1.msra.mxu0 0.0
  %746 = vmatprep.subr.mxu0 0.0
  %747 = vmatpush1.msra.mxu0 0.0
  %748 = vmatprep.subr.mxu0 0.0
  %749 = vmatpush1.msra.mxu0 0.0
  %750 = vmatprep.subr.mxu0 0.0
  %751 = vmatpush1.msra.mxu0 0.0
  %752 = vmatprep.subr.mxu0 0.0
  %753 = vmatpush1.msra.mxu0 0.0
  %754 = vmatprep.subr.mxu0 0.0
  %755 = vmatpush1.msra.mxu0 0.0
  %756 = vmatprep.subr.mxu0 0.0
  %757 = vmatpush1.msra.mxu0 0.0
  %758 = vmatprep.subr.mxu0 0.0
  %759 = vmatpush1.msra.mxu0 0.0
  %760 = vmatprep.subr.mxu0 0.0
  %761 = vmatpush1.msra.mxu0 0.0
  %762 = vmatprep.subr.mxu0 0.0
  %763 = vmatpush1.msra.mxu0 0.0
  %764 = vmatprep.mubr.f32.mxu0 0.0
  %765 = vmatmul.mubr.f32.gmra.mrb[0].mxu0 %v698
  %v766 = vpop.f32.mrb[0].mxu0
  %v767 = vadd.f32 0.0, %v766
  %v768 = vpop.f32.mrb[0].mxu0
  %769 = vdwg.mxu0
  %vm770 = vcmp.lt.s32.totalorder %v49, 0
  %v771 = vsub.s32 0, %v49
  %v772 = vsel %vm770, %v771, %v49
  %v773 = vshrl.u32 %v772, 3
  %v774 = vand.u32 %v772, 7
  %v775 = vsub.s32 0, %v774
  %v776 = vsel %vm770, %v775, %v774
  %vm777 = vcmp.eq.s32.totalorder %v776, 0
  %vm778 = vcmp.eq.s32.totalorder %v776, 7
  %780 = vrot.lane.b32.xlu0 %v767, 1
  %v781 = vpop.permute.xlu0 %780
  %vm783 = vcmask 138248
  %784 = vst.msk [vmem:[#allocation2] sm:$0xff] %vm783, %v781
  %v785 = vld [vmem:[#allocation2] sm:$0xff]
  %v786 = vsel %vm777, 1, 0
  %vm787 = vcmp.eq.s32.totalorder %v786, 1
  %v788 = vsel %vm787, 0.0, %v785
  %v789 = vsel %vm778, 1, 0
  %vm790 = vcmp.eq.s32.totalorder %v789, 1
  %792 = vrot.lane.b32.xlu0 %v785, 126
  %v793 = vpop.permute.xlu0 %792
  %v795 = vsel %vm790, 0.0, %v793
  %v796 = vld [vmem:[%s5] sm:$0xff]
  %v797 = vld [vmem:[%s5 + $0x8] sm:$0xff]
  %v798 = vld [vmem:[%s5 + $0x10] sm:$0xff]
  %v800 = vsel %vm453, %v797, 0
  %802 = vmatprep.subr.mxu0 0.0
  %803 = vmatpush1.msra.mxu0 %v767
  %804 = vmatprep.subr.mxu0 0.0
  %805 = vmatpush1.msra.mxu0 0.0
  %806 = vmatprep.subr.mxu0 0.0
  %807 = vmatpush1.msra.mxu0 0.0
  %808 = vmatprep.subr.mxu0 0.0
  %809 = vmatpush1.msra.mxu0 0.0
  %810 = vmatprep.subr.mxu0 0.0
  %811 = vmatpush1.msra.mxu0 0.0
  %812 = vmatprep.subr.mxu0 0.0
  %813 = vmatpush1.msra.mxu0 0.0
  %814 = vmatprep.subr.mxu0 0.0
  %815 = vmatpush1.msra.mxu0 0.0
  %816 = vmatprep.subr.mxu0 0.0
  %817 = vmatpush1.msra.mxu0 0.0
  %818 = vmatprep.subr.mxu0 0.0
  %819 = vmatpush1.msra.mxu0 0.0
  %820 = vmatprep.subr.mxu0 0.0
  %821 = vmatpush1.msra.mxu0 0.0
  %822 = vmatprep.subr.mxu0 0.0
  %823 = vmatpush1.msra.mxu0 0.0
  %824 = vmatprep.subr.mxu0 0.0
  %825 = vmatpush1.msra.mxu0 0.0
  %826 = vmatprep.subr.mxu0 0.0
  %827 = vmatpush1.msra.mxu0 0.0
  %828 = vmatprep.subr.mxu0 0.0
  %829 = vmatpush1.msra.mxu0 0.0
  %830 = vmatprep.subr.mxu0 0.0
  %831 = vmatpush1.msra.mxu0 0.0
  %832 = vmatprep.subr.mxu0 0.0
  %833 = vmatpush1.msra.mxu0 0.0
  %834 = vmatprep.subr.mxu0 0.0
  %835 = vmatpush1.msra.mxu0 0.0
  %836 = vmatprep.subr.mxu0 0.0
  %837 = vmatpush1.msra.mxu0 0.0
  %838 = vmatprep.subr.mxu0 0.0
  %839 = vmatpush1.msra.mxu0 0.0
  %840 = vmatprep.subr.mxu0 0.0
  %841 = vmatpush1.msra.mxu0 0.0
  %842 = vmatprep.subr.mxu0 0.0
  %843 = vmatpush1.msra.mxu0 0.0
  %844 = vmatprep.subr.mxu0 0.0
  %845 = vmatpush1.msra.mxu0 0.0
  %846 = vmatprep.subr.mxu0 0.0
  %847 = vmatpush1.msra.mxu0 0.0
  %848 = vmatprep.subr.mxu0 0.0
  %849 = vmatpush1.msra.mxu0 0.0
  %850 = vmatprep.subr.mxu0 0.0
  %851 = vmatpush1.msra.mxu0 0.0
  %852 = vmatprep.subr.mxu0 0.0
  %853 = vmatpush1.msra.mxu0 0.0
  %854 = vmatprep.subr.mxu0 0.0
  %855 = vmatpush1.msra.mxu0 0.0
  %856 = vmatprep.subr.mxu0 0.0
  %857 = vmatpush1.msra.mxu0 0.0
  %858 = vmatprep.subr.mxu0 0.0
  %859 = vmatpush1.msra.mxu0 0.0
  %860 = vmatprep.subr.mxu0 0.0
  %861 = vmatpush1.msra.mxu0 0.0
  %862 = vmatprep.subr.mxu0 0.0
  %863 = vmatpush1.msra.mxu0 0.0
  %864 = vmatprep.subr.mxu0 0.0
  %865 = vmatpush1.msra.mxu0 0.0
  %866 = vmatprep.mubr.f32.mxu0 0.0
  %867 = vmatmul.mubr.f32.gmra.mrb[0].mxu0 %v800
  %v868 = vpop.f32.mrb[0].mxu0
  %v869 = vadd.f32 0.0, %v868
  %v870 = vpop.f32.mrb[0].mxu0
  %871 = vdwg.mxu0
  %v873 = vsel %vm453, %v796, 0
  %875 = vmatprep.subr.mxu0 0.0
  %876 = vmatpush1.msra.mxu0 %v788
  %877 = vmatprep.subr.mxu0 0.0
  %878 = vmatpush1.msra.mxu0 0.0
  %879 = vmatprep.subr.mxu0 0.0
  %880 = vmatpush1.msra.mxu0 0.0
  %881 = vmatprep.subr.mxu0 0.0
  %882 = vmatpush1.msra.mxu0 0.0
  %883 = vmatprep.subr.mxu0 0.0
  %884 = vmatpush1.msra.mxu0 0.0
  %885 = vmatprep.subr.mxu0 0.0
  %886 = vmatpush1.msra.mxu0 0.0
  %887 = vmatprep.subr.mxu0 0.0
  %888 = vmatpush1.msra.mxu0 0.0
  %889 = vmatprep.subr.mxu0 0.0
  %890 = vmatpush1.msra.mxu0 0.0
  %891 = vmatprep.subr.mxu0 0.0
  %892 = vmatpush1.msra.mxu0 0.0
  %893 = vmatprep.subr.mxu0 0.0
  %894 = vmatpush1.msra.mxu0 0.0
  %895 = vmatprep.subr.mxu0 0.0
  %896 = vmatpush1.msra.mxu0 0.0
  %897 = vmatprep.subr.mxu0 0.0
  %898 = vmatpush1.msra.mxu0 0.0
  %899 = vmatprep.subr.mxu0 0.0
  %900 = vmatpush1.msra.mxu0 0.0
  %901 = vmatprep.subr.mxu0 0.0
  %902 = vmatpush1.msra.mxu0 0.0
  %903 = vmatprep.subr.mxu0 0.0
  %904 = vmatpush1.msra.mxu0 0.0
  %905 = vmatprep.subr.mxu0 0.0
  %906 = vmatpush1.msra.mxu0 0.0
  %907 = vmatprep.subr.mxu0 0.0
  %908 = vmatpush1.msra.mxu0 0.0
  %909 = vmatprep.subr.mxu0 0.0
  %910 = vmatpush1.msra.mxu0 0.0
  %911 = vmatprep.subr.mxu0 0.0
  %912 = vmatpush1.msra.mxu0 0.0
  %913 = vmatprep.subr.mxu0 0.0
  %914 = vmatpush1.msra.mxu0 0.0
  %915 = vmatprep.subr.mxu0 0.0
  %916 = vmatpush1.msra.mxu0 0.0
  %917 = vmatprep.subr.mxu0 0.0
  %918 = vmatpush1.msra.mxu0 0.0
  %919 = vmatprep.subr.mxu0 0.0
  %920 = vmatpush1.msra.mxu0 0.0
  %921 = vmatprep.subr.mxu0 0.0
  %922 = vmatpush1.msra.mxu0 0.0
  %923 = vmatprep.subr.mxu0 0.0
  %924 = vmatpush1.msra.mxu0 0.0
  %925 = vmatprep.subr.mxu0 0.0
  %926 = vmatpush1.msra.mxu0 0.0
  %927 = vmatprep.subr.mxu0 0.0
  %928 = vmatpush1.msra.mxu0 0.0
  %929 = vmatprep.subr.mxu0 0.0
  %930 = vmatpush1.msra.mxu0 0.0
  %931 = vmatprep.subr.mxu0 0.0
  %932 = vmatpush1.msra.mxu0 0.0
  %933 = vmatprep.subr.mxu0 0.0
  %934 = vmatpush1.msra.mxu0 0.0
  %935 = vmatprep.subr.mxu0 0.0
  %936 = vmatpush1.msra.mxu0 0.0
  %937 = vmatprep.subr.mxu0 0.0
  %938 = vmatpush1.msra.mxu0 0.0
  %939 = vmatprep.mubr.f32.mxu0 0.0
  %940 = vmatmul.mubr.f32.gmra.mrb[0].mxu0 %v873
  %v941 = vpop.f32.mrb[0].mxu0
  %v942 = vadd.f32 %v869, %v941
  %v943 = vpop.f32.mrb[0].mxu0
  %944 = vdwg.mxu0
  %v946 = vsel %vm453, %v798, 0
  %948 = vmatprep.subr.mxu0 0.0
  %949 = vmatpush1.msra.mxu0 %v795
  %950 = vmatprep.subr.mxu0 0.0
  %951 = vmatpush1.msra.mxu0 0.0
  %952 = vmatprep.subr.mxu0 0.0
  %953 = vmatpush1.msra.mxu0 0.0
  %954 = vmatprep.subr.mxu0 0.0
  %955 = vmatpush1.msra.mxu0 0.0
  %956 = vmatprep.subr.mxu0 0.0
  %957 = vmatpush1.msra.mxu0 0.0
  %958 = vmatprep.subr.mxu0 0.0
  %959 = vmatpush1.msra.mxu0 0.0
  %960 = vmatprep.subr.mxu0 0.0
  %961 = vmatpush1.msra.mxu0 0.0
  %962 = vmatprep.subr.mxu0 0.0
  %963 = vmatpush1.msra.mxu0 0.0
  %964 = vmatprep.subr.mxu0 0.0
  %965 = vmatpush1.msra.mxu0 0.0
  %966 = vmatprep.subr.mxu0 0.0
  %967 = vmatpush1.msra.mxu0 0.0
  %968 = vmatprep.subr.mxu0 0.0
  %969 = vmatpush1.msra.mxu0 0.0
  %970 = vmatprep.subr.mxu0 0.0
  %971 = vmatpush1.msra.mxu0 0.0
  %972 = vmatprep.subr.mxu0 0.0
  %973 = vmatpush1.msra.mxu0 0.0
  %974 = vmatprep.subr.mxu0 0.0
  %975 = vmatpush1.msra.mxu0 0.0
  %976 = vmatprep.subr.mxu0 0.0
  %977 = vmatpush1.msra.mxu0 0.0
  %978 = vmatprep.subr.mxu0 0.0
  %979 = vmatpush1.msra.mxu0 0.0
  %980 = vmatprep.subr.mxu0 0.0
  %981 = vmatpush1.msra.mxu0 0.0
  %982 = vmatprep.subr.mxu0 0.0
  %983 = vmatpush1.msra.mxu0 0.0
  %984 = vmatprep.subr.mxu0 0.0
  %985 = vmatpush1.msra.mxu0 0.0
  %986 = vmatprep.subr.mxu0 0.0
  %987 = vmatpush1.msra.mxu0 0.0
  %988 = vmatprep.subr.mxu0 0.0
  %989 = vmatpush1.msra.mxu0 0.0
  %990 = vmatprep.subr.mxu0 0.0
  %991 = vmatpush1.msra.mxu0 0.0
  %992 = vmatprep.subr.mxu0 0.0
  %993 = vmatpush1.msra.mxu0 0.0
  %994 = vmatprep.subr.mxu0 0.0
  %995 = vmatpush1.msra.mxu0 0.0
  %996 = vmatprep.subr.mxu0 0.0
  %997 = vmatpush1.msra.mxu0 0.0
  %998 = vmatprep.subr.mxu0 0.0
  %999 = vmatpush1.msra.mxu0 0.0
  %1000 = vmatprep.subr.mxu0 0.0
  %1001 = vmatpush1.msra.mxu0 0.0
  %1002 = vmatprep.subr.mxu0 0.0
  %1003 = vmatpush1.msra.mxu0 0.0
  %1004 = vmatprep.subr.mxu0 0.0
  %1005 = vmatpush1.msra.mxu0 0.0
  %1006 = vmatprep.subr.mxu0 0.0
  %1007 = vmatpush1.msra.mxu0 0.0
  %1008 = vmatprep.subr.mxu0 0.0
  %1009 = vmatpush1.msra.mxu0 0.0
  %1010 = vmatprep.subr.mxu0 0.0
  %1011 = vmatpush1.msra.mxu0 0.0
  %1012 = vmatprep.mubr.f32.mxu0 0.0
  %1013 = vmatmul.mubr.f32.gmra.mrb[0].mxu0 %v946
  %v1014 = vpop.f32.mrb[0].mxu0
  %v1015 = vadd.f32 0.0, %v1014
  %v1016 = vpop.f32.mrb[0].mxu0
  %1017 = vdwg.mxu0
  %v1018 = vadd.f32 %v942, %v1015
  %v1019 = vld [vmem:[%s6] sm:$0xff]
  %1021 = vset.pattern.permute.xlu0 0
  %1022 = vperm.xlu0 %1021, %v1019
  %v1023 = vpop.permute.xlu0 %1022
  %v1025 = vadd.f32 %v1018, %v1023
  %v1026 = vmax.f32 %v1025, 0.0
  %1028 = vrot.lane.b32.xlu0 %v1026, 1
  %v1029 = vpop.permute.xlu0 %1028
  %1031 = vst.msk [vmem:[#allocation2] sm:$0xff] %vm783, %v1029
  %v1032 = vld [vmem:[#allocation2] sm:$0xff]
  %v1033 = vsel %vm787, 0.0, %v1032
  %1035 = vrot.lane.b32.xlu0 %v1032, 126
  %v1036 = vpop.permute.xlu0 %1035
  %v1038 = vsel %vm790, 0.0, %v1036
  %v1039 = vmax.f32 %v1033, %v1026
  %v1040 = vmax.f32 %v1039, %v1038
  %vm1041 = vcmask 130048
  %v1043 = vsel %vm1041, %v1040, 0
  %1045 = vmatprep.subr.mxu0 0.0
  %1046 = vmatpush1.msra.mxu0 %v59
  %1047 = vmatprep.subr.mxu0 0.0
  %1048 = vmatpush1.msra.mxu0 %v60
  %1049 = vmatprep.subr.mxu0 0.0
  %1050 = vmatpush1.msra.mxu0 0.0
  %1051 = vmatprep.subr.mxu0 0.0
  %1052 = vmatpush1.msra.mxu0 0.0
  %1053 = vmatprep.subr.mxu0 0.0
  %1054 = vmatpush1.msra.mxu0 0.0
  %1055 = vmatprep.subr.mxu0 0.0
  %1056 = vmatpush1.msra.mxu0 0.0
  %1057 = vmatprep.subr.mxu0 0.0
  %1058 = vmatpush1.msra.mxu0 0.0
  %1059 = vmatprep.subr.mxu0 0.0
  %1060 = vmatpush1.msra.mxu0 0.0
  %1061 = vmatprep.subr.mxu0 0.0
  %1062 = vmatpush1.msra.mxu0 0.0
  %1063 = vmatprep.subr.mxu0 0.0
  %1064 = vmatpush1.msra.mxu0 0.0
  %1065 = vmatprep.subr.mxu0 0.0
  %1066 = vmatpush1.msra.mxu0 0.0
  %1067 = vmatprep.subr.mxu0 0.0
  %1068 = vmatpush1.msra.mxu0 0.0
  %1069 = vmatprep.subr.mxu0 0.0
  %1070 = vmatpush1.msra.mxu0 0.0
  %1071 = vmatprep.subr.mxu0 0.0
  %1072 = vmatpush1.msra.mxu0 0.0
  %1073 = vmatprep.subr.mxu0 0.0
  %1074 = vmatpush1.msra.mxu0 0.0
  %1075 = vmatprep.subr.mxu0 0.0
  %1076 = vmatpush1.msra.mxu0 0.0
  %1077 = vmatprep.subr.mxu0 0.0
  %1078 = vmatpush1.msra.mxu0 0.0
  %1079 = vmatprep.subr.mxu0 0.0
  %1080 = vmatpush1.msra.mxu0 0.0
  %1081 = vmatprep.subr.mxu0 0.0
  %1082 = vmatpush1.msra.mxu0 0.0
  %1083 = vmatprep.subr.mxu0 0.0
  %1084 = vmatpush1.msra.mxu0 0.0
  %1085 = vmatprep.subr.mxu0 0.0
  %1086 = vmatpush1.msra.mxu0 0.0
  %1087 = vmatprep.subr.mxu0 0.0
  %1088 = vmatpush1.msra.mxu0 0.0
  %1089 = vmatprep.subr.mxu0 0.0
  %1090 = vmatpush1.msra.mxu0 0.0
  %1091 = vmatprep.subr.mxu0 0.0
  %1092 = vmatpush1.msra.mxu0 0.0
  %1093 = vmatprep.subr.mxu0 0.0
  %1094 = vmatpush1.msra.mxu0 0.0
  %1095 = vmatprep.subr.mxu0 0.0
  %1096 = vmatpush1.msra.mxu0 0.0
  %1097 = vmatprep.subr.mxu0 0.0
  %1098 = vmatpush1.msra.mxu0 0.0
  %1099 = vmatprep.subr.mxu0 0.0
  %1100 = vmatpush1.msra.mxu0 0.0
  %1101 = vmatprep.subr.mxu0 0.0
  %1102 = vmatpush1.msra.mxu0 0.0
  %1103 = vmatprep.subr.mxu0 0.0
  %1104 = vmatpush1.msra.mxu0 0.0
  %1105 = vmatprep.subr.mxu0 0.0
  %1106 = vmatpush1.msra.mxu0 0.0
  %1107 = vmatprep.subr.mxu0 0.0
  %1108 = vmatpush1.msra.mxu0 0.0
  %1109 = vmatprep.mubr.f32.mxu0 0.0
  %1110 = vmatmul.mubr.f32.gmra.mrb[0].mxu0 %v1043
  %v1111 = vpop.f32.mrb[0].mxu0
  %v1112 = vadd.f32 0.0, %v1111
  %v1113 = vpop.f32.mrb[0].mxu0
  %1114 = vdwg.mxu0
  %v1115 = vld [vmem:[%s8] sm:$0xff]
  %v1116 = vld [vmem:[%s8 + $0x8] sm:$0xff]
  %v1117 = vld [vmem:[%s8 + $0x10] sm:$0xff]
  %v1118 = vld [vmem:[%s8 + $0x18] sm:$0xff]
  %v1119 = vld [vmem:[%s8 + $0x20] sm:$0xff]
  %v1120 = vld [vmem:[%s8 + $0x28] sm:$0xff]
  %v1121 = vld [vmem:[%s8 + $0x30] sm:$0xff]
  %v1122 = vld [vmem:[%s8 + $0x38] sm:$0xff]
  %v1123 = vld [vmem:[%s8 + $0x40] sm:$0xff]
  %v1124 = vld [vmem:[%s8 + $0x48] sm:$0xff]
  %v1125 = vld [vmem:[%s8 + $0x50] sm:$0xff]
  %v1126 = vld [vmem:[%s8 + $0x58] sm:$0xff]
  %v1127 = vld [vmem:[%s8 + $0x60] sm:$0xff]
  %v1128 = vld [vmem:[%s8 + $0x68] sm:$0xff]
  %v1129 = vld [vmem:[%s8 + $0x70] sm:$0xff]
  %v1130 = vld [vmem:[%s8 + $0x78] sm:$0xff]
  %v1131 = vld [vmem:[%s8 + $0x80] sm:$0xff]
  %v1132 = vld [vmem:[%s8 + $0x88] sm:$0xff]
  %v1133 = vld [vmem:[%s8 + $0x90] sm:$0xff]
  %v1134 = vld [vmem:[%s8 + $0x98] sm:$0xff]
  %v1135 = vld [vmem:[%s8 + $0xa0] sm:$0xff]
  %v1136 = vld [vmem:[%s8 + $0xa8] sm:$0xff]
  %v1137 = vld [vmem:[%s8 + $0xb0] sm:$0xff]
  %v1138 = vld [vmem:[%s8 + $0xb8] sm:$0xff]
  %v1139 = vld [vmem:[%s8 + $0xc0] sm:$0xff]
  %v1140 = vld [vmem:[%s8 + $0xc8] sm:$0xff]
  %v1141 = vld [vmem:[%s8 + $0xd0] sm:$0xff]
  %v1142 = vld [vmem:[%s8 + $0xd8] sm:$0xff]
  %v1143 = vld [vmem:[%s8 + $0xe0] sm:$0xff]
  %v1144 = vld [vmem:[%s8 + $0xe8] sm:$0xff]
  %v1145 = vld [vmem:[%s8 + $0xf0] sm:$0xff]
  %v1146 = vld [vmem:[%s8 + $0xf8] sm:$0xff]
  %v1147 = vld [vmem:[%s8 + $0x100] sm:$0xff]
  %v1148 = vld [vmem:[%s8 + $0x108] sm:$0xff]
  %v1149 = vld [vmem:[%s8 + $0x110] sm:$0xff]
  %v1150 = vld [vmem:[%s8 + $0x118] sm:$0xff]
  %v1151 = vld [vmem:[%s8 + $0x120] sm:$0xff]
  %v1152 = vld [vmem:[%s8 + $0x128] sm:$0xff]
  %v1153 = vld [vmem:[%s8 + $0x130] sm:$0xff]
  %v1154 = vld [vmem:[%s8 + $0x138] sm:$0xff]
  %v1155 = vld [vmem:[%s8 + $0x140] sm:$0xff]
  %v1156 = vld [vmem:[%s8 + $0x148] sm:$0xff]
  %v1157 = vld [vmem:[%s8 + $0x150] sm:$0xff]
  %v1158 = vld [vmem:[%s8 + $0x158] sm:$0xff]
  %v1159 = vld [vmem:[%s8 + $0x160] sm:$0xff]
  %v1160 = vld [vmem:[%s8 + $0x168] sm:$0xff]
  %v1161 = vld [vmem:[%s8 + $0x170] sm:$0xff]
  %v1162 = vld [vmem:[%s8 + $0x178] sm:$0xff]
  %v1163 = vld [vmem:[%s8 + $0x180] sm:$0xff]
  %v1164 = vld [vmem:[%s8 + $0x188] sm:$0xff]
  %v1165 = vld [vmem:[%s8 + $0x190] sm:$0xff]
  %v1166 = vld [vmem:[%s8 + $0x198] sm:$0xff]
  %v1167 = vld [vmem:[%s8 + $0x1a0] sm:$0xff]
  %v1168 = vld [vmem:[%s8 + $0x1a8] sm:$0xff]
  %v1169 = vld [vmem:[%s8 + $0x1b0] sm:$0xff]
  %v1170 = vld [vmem:[%s8 + $0x1b8] sm:$0xff]
  %v1171 = vld [vmem:[%s8 + $0x1c0] sm:$0xff]
  %v1172 = vld [vmem:[%s8 + $0x1c8] sm:$0xff]
  %v1173 = vld [vmem:[%s8 + $0x1d0] sm:$0xff]
  %v1174 = vld [vmem:[%s8 + $0x1d8] sm:$0xff]
  %v1175 = vld [vmem:[%s8 + $0x1e0] sm:$0xff]
  %v1176 = vld [vmem:[%s8 + $0x1e8] sm:$0xff]
  %v1177 = vld [vmem:[%s8 + $0x1f0] sm:$0xff]
  %v1178 = vld [vmem:[%s8 + $0x1f8] sm:$0xff]
  %v1179 = vld [vmem:[%s8 + $0x200] sm:$0xff]
  %v1180 = vld [vmem:[%s8 + $0x208] sm:$0xff]
  %v1181 = vld [vmem:[%s8 + $0x210] sm:$0xff]
  %v1182 = vld [vmem:[%s8 + $0x218] sm:$0xff]
  %v1183 = vld [vmem:[%s8 + $0x220] sm:$0xff]
  %v1184 = vld [vmem:[%s8 + $0x228] sm:$0xff]
  %v1185 = vld [vmem:[%s8 + $0x230] sm:$0xff]
  %v1186 = vld [vmem:[%s8 + $0x238] sm:$0xff]
  %v1187 = vld [vmem:[%s8 + $0x240] sm:$0xff]
  %v1188 = vld [vmem:[%s8 + $0x248] sm:$0xff]
  %v1189 = vld [vmem:[%s8 + $0x250] sm:$0xff]
  %v1190 = vld [vmem:[%s8 + $0x258] sm:$0xff]
  %v1191 = vld [vmem:[%s8 + $0x260] sm:$0xff]
  %v1192 = vld [vmem:[%s8 + $0x268] sm:$0xff]
  %v1193 = vld [vmem:[%s8 + $0x270] sm:$0xff]
  %v1194 = vld [vmem:[%s8 + $0x278] sm:$0xff]
  %v1195 = vld [vmem:[%s8 + $0x280] sm:$0xff]
  %v1196 = vld [vmem:[%s8 + $0x288] sm:$0xff]
  %v1197 = vld [vmem:[%s8 + $0x290] sm:$0xff]
  %v1198 = vld [vmem:[%s8 + $0x298] sm:$0xff]
  %v1199 = vld [vmem:[%s8 + $0x2a0] sm:$0xff]
  %v1200 = vld [vmem:[%s8 + $0x2a8] sm:$0xff]
  %v1201 = vld [vmem:[%s8 + $0x2b0] sm:$0xff]
  %v1202 = vld [vmem:[%s8 + $0x2b8] sm:$0xff]
  %v1203 = vld [vmem:[%s8 + $0x2c0] sm:$0xff]
  %v1204 = vld [vmem:[%s8 + $0x2c8] sm:$0xff]
  %v1205 = vld [vmem:[%s8 + $0x2d0] sm:$0xff]
  %v1206 = vld [vmem:[%s8 + $0x2d8] sm:$0xff]
  %v1207 = vld [vmem:[%s8 + $0x2e0] sm:$0xff]
  %v1208 = vld [vmem:[%s8 + $0x2e8] sm:$0xff]
  %v1209 = vld [vmem:[%s8 + $0x2f0] sm:$0xff]
  %v1210 = vld [vmem:[%s8 + $0x2f8] sm:$0xff]
  %v1211 = vld [vmem:[%s8 + $0x300] sm:$0xff]
  %v1212 = vld [vmem:[%s8 + $0x308] sm:$0xff]
  %v1213 = vld [vmem:[%s8 + $0x310] sm:$0xff]
  %v1214 = vld [vmem:[%s8 + $0x318] sm:$0xff]
  %v1215 = vld [vmem:[%s8 + $0x320] sm:$0xff]
  %v1216 = vld [vmem:[%s8 + $0x328] sm:$0xff]
  %v1217 = vld [vmem:[%s8 + $0x330] sm:$0xff]
  %v1218 = vld [vmem:[%s8 + $0x338] sm:$0xff]
  %v1219 = vld [vmem:[%s8 + $0x340] sm:$0xff]
  %v1220 = vld [vmem:[%s8 + $0x348] sm:$0xff]
  %v1221 = vld [vmem:[%s8 + $0x350] sm:$0xff]
  %v1222 = vld [vmem:[%s8 + $0x358] sm:$0xff]
  %v1223 = vld [vmem:[%s8 + $0x360] sm:$0xff]
  %v1224 = vld [vmem:[%s8 + $0x368] sm:$0xff]
  %v1225 = vld [vmem:[%s8 + $0x370] sm:$0xff]
  %v1226 = vld [vmem:[%s8 + $0x378] sm:$0xff]
  %v1227 = vld [vmem:[%s8 + $0x380] sm:$0xff]
  %v1228 = vld [vmem:[%s8 + $0x388] sm:$0xff]
  %v1229 = vld [vmem:[%s8 + $0x390] sm:$0xff]
  %v1230 = vld [vmem:[%s8 + $0x398] sm:$0xff]
  %v1231 = vld [vmem:[%s8 + $0x3a0] sm:$0xff]
  %v1232 = vld [vmem:[%s8 + $0x3a8] sm:$0xff]
  %v1233 = vld [vmem:[%s8 + $0x3b0] sm:$0xff]
  %v1234 = vld [vmem:[%s8 + $0x3b8] sm:$0xff]
  %v1235 = vld [vmem:[%s8 + $0x3c0] sm:$0xff]
  %v1236 = vld [vmem:[%s8 + $0x3c8] sm:$0xff]
  %v1237 = vld [vmem:[%s8 + $0x3d0] sm:$0xff]
  %v1238 = vld [vmem:[%s8 + $0x3d8] sm:$0xff]
  %v1239 = vld [vmem:[%s8 + $0x3e0] sm:$0xff]
  %v1240 = vld [vmem:[%s8 + $0x3e8] sm:$0xff]
  %v1241 = vld [vmem:[%s8 + $0x3f0] sm:$0xff]
  %v1242 = vld [vmem:[%s8 + $0x3f8] sm:$0xff]
  %v1243 = vld [vmem:[%s8 + $0x400] sm:$0xff]
  %v1244 = vld [vmem:[%s8 + $0x408] sm:$0xff]
  %v1245 = vld [vmem:[%s8 + $0x410] sm:$0xff]
  %v1246 = vld [vmem:[%s8 + $0x418] sm:$0xff]
  %v1247 = vld [vmem:[%s8 + $0x420] sm:$0xff]
  %v1248 = vld [vmem:[%s8 + $0x428] sm:$0xff]
  %v1249 = vld [vmem:[%s8 + $0x430] sm:$0xff]
  %v1250 = vld [vmem:[%s8 + $0x438] sm:$0xff]
  %v1251 = vld [vmem:[%s8 + $0x440] sm:$0xff]
  %v1252 = vld [vmem:[%s8 + $0x448] sm:$0xff]
  %v1253 = vld [vmem:[%s8 + $0x450] sm:$0xff]
  %v1254 = vld [vmem:[%s8 + $0x458] sm:$0xff]
  %v1255 = vld [vmem:[%s8 + $0x460] sm:$0xff]
  %v1256 = vld [vmem:[%s8 + $0x468] sm:$0xff]
  %v1257 = vld [vmem:[%s8 + $0x470] sm:$0xff]
  %v1258 = vld [vmem:[%s8 + $0x478] sm:$0xff]
  %v1259 = vld [vmem:[%s8 + $0x480] sm:$0xff]
  %v1260 = vld [vmem:[%s8 + $0x488] sm:$0xff]
  %v1261 = vld [vmem:[%s8 + $0x490] sm:$0xff]
  %v1262 = vld [vmem:[%s8 + $0x498] sm:$0xff]
  %v1263 = vld [vmem:[%s8 + $0x4a0] sm:$0xff]
  %v1264 = vld [vmem:[%s8 + $0x4a8] sm:$0xff]
  %v1265 = vld [vmem:[%s8 + $0x4b0] sm:$0xff]
  %v1266 = vld [vmem:[%s8 + $0x4b8] sm:$0xff]
  %v1267 = vld [vmem:[%s8 + $0x4c0] sm:$0xff]
  %v1268 = vld [vmem:[%s8 + $0x4c8] sm:$0xff]
  %v1269 = vld [vmem:[%s8 + $0x4d0] sm:$0xff]
  %v1270 = vld [vmem:[%s8 + $0x4d8] sm:$0xff]
  %v1271 = vld [vmem:[%s8 + $0x4e0] sm:$0xff]
  %v1272 = vld [vmem:[%s8 + $0x4e8] sm:$0xff]
  %v1273 = vld [vmem:[%s8 + $0x4f0] sm:$0xff]
  %v1274 = vld [vmem:[%s8 + $0x4f8] sm:$0xff]
  %v1275 = vld [vmem:[%s8 + $0x500] sm:$0xff]
  %v1276 = vld [vmem:[%s8 + $0x508] sm:$0xff]
  %v1277 = vld [vmem:[%s8 + $0x510] sm:$0xff]
  %v1278 = vld [vmem:[%s8 + $0x518] sm:$0xff]
  %v1279 = vld [vmem:[%s8 + $0x520] sm:$0xff]
  %v1280 = vld [vmem:[%s8 + $0x528] sm:$0xff]
  %v1281 = vld [vmem:[%s8 + $0x530] sm:$0xff]
  %v1282 = vld [vmem:[%s8 + $0x538] sm:$0xff]
  %v1283 = vld [vmem:[%s8 + $0x540] sm:$0xff]
  %v1284 = vld [vmem:[%s8 + $0x548] sm:$0xff]
  %v1285 = vld [vmem:[%s8 + $0x550] sm:$0xff]
  %v1286 = vld [vmem:[%s8 + $0x558] sm:$0xff]
  %v1287 = vld [vmem:[%s8 + $0x560] sm:$0xff]
  %v1288 = vld [vmem:[%s8 + $0x568] sm:$0xff]
  %v1289 = vld [vmem:[%s8 + $0x570] sm:$0xff]
  %v1290 = vld [vmem:[%s8 + $0x578] sm:$0xff]
  %v1291 = vld [vmem:[%s8 + $0x580] sm:$0xff]
  %v1292 = vld [vmem:[%s8 + $0x588] sm:$0xff]
  %v1293 = vld [vmem:[%s8 + $0x590] sm:$0xff]
  %v1294 = vld [vmem:[%s8 + $0x598] sm:$0xff]
  %v1295 = vld [vmem:[%s8 + $0x5a0] sm:$0xff]
  %v1296 = vld [vmem:[%s8 + $0x5a8] sm:$0xff]
  %v1297 = vld [vmem:[%s8 + $0x5b0] sm:$0xff]
  %v1298 = vld [vmem:[%s8 + $0x5b8] sm:$0xff]
  %v1299 = vld [vmem:[%s8 + $0x5c0] sm:$0xff]
  %v1300 = vld [vmem:[%s8 + $0x5c8] sm:$0xff]
  %v1301 = vld [vmem:[%s8 + $0x5d0] sm:$0xff]
  %v1302 = vld [vmem:[%s8 + $0x5d8] sm:$0xff]
  %v1303 = vld [vmem:[%s8 + $0x5e0] sm:$0xff]
  %v1304 = vld [vmem:[%s8 + $0x5e8] sm:$0xff]
  %v1305 = vld [vmem:[%s8 + $0x5f0] sm:$0xff]
  %v1306 = vld [vmem:[%s8 + $0x5f8] sm:$0xff]
  %v1307 = vld [vmem:[%s8 + $0x600] sm:$0xff]
  %v1308 = vld [vmem:[%s8 + $0x608] sm:$0xff]
  %v1309 = vld [vmem:[%s8 + $0x610] sm:$0xff]
  %v1310 = vld [vmem:[%s8 + $0x618] sm:$0xff]
  %v1311 = vld [vmem:[%s8 + $0x620] sm:$0xff]
  %v1312 = vld [vmem:[%s8 + $0x628] sm:$0xff]
  %v1313 = vld [vmem:[%s8 + $0x630] sm:$0xff]
  %v1314 = vld [vmem:[%s8 + $0x638] sm:$0xff]
  %v1315 = vld [vmem:[%s8 + $0x640] sm:$0xff]
  %v1316 = vld [vmem:[%s8 + $0x648] sm:$0xff]
  %v1317 = vld [vmem:[%s8 + $0x650] sm:$0xff]
  %v1318 = vld [vmem:[%s8 + $0x658] sm:$0xff]
  %v1319 = vld [vmem:[%s8 + $0x660] sm:$0xff]
  %v1320 = vld [vmem:[%s8 + $0x668] sm:$0xff]
  %v1321 = vld [vmem:[%s8 + $0x670] sm:$0xff]
  %v1322 = vld [vmem:[%s8 + $0x678] sm:$0xff]
  %v1323 = vld [vmem:[%s8 + $0x680] sm:$0xff]
  %v1324 = vld [vmem:[%s8 + $0x688] sm:$0xff]
  %v1325 = vld [vmem:[%s8 + $0x690] sm:$0xff]
  %v1326 = vld [vmem:[%s8 + $0x698] sm:$0xff]
  %v1327 = vld [vmem:[%s8 + $0x6a0] sm:$0xff]
  %v1328 = vld [vmem:[%s8 + $0x6a8] sm:$0xff]
  %v1329 = vld [vmem:[%s8 + $0x6b0] sm:$0xff]
  %v1330 = vld [vmem:[%s8 + $0x6b8] sm:$0xff]
  %v1331 = vld [vmem:[%s8 + $0x6c0] sm:$0xff]
  %v1332 = vld [vmem:[%s8 + $0x6c8] sm:$0xff]
  %v1333 = vld [vmem:[%s8 + $0x6d0] sm:$0xff]
  %v1334 = vld [vmem:[%s8 + $0x6d8] sm:$0xff]
  %v1335 = vld [vmem:[%s8 + $0x6e0] sm:$0xff]
  %v1336 = vld [vmem:[%s8 + $0x6e8] sm:$0xff]
  %v1337 = vld [vmem:[%s8 + $0x6f0] sm:$0xff]
  %v1338 = vld [vmem:[%s8 + $0x6f8] sm:$0xff]
  %v1339 = vld [vmem:[%s8 + $0x700] sm:$0xff]
  %v1340 = vld [vmem:[%s8 + $0x708] sm:$0xff]
  %v1341 = vld [vmem:[%s8 + $0x710] sm:$0xff]
  %v1342 = vld [vmem:[%s8 + $0x718] sm:$0xff]
  %v1343 = vld [vmem:[%s8 + $0x720] sm:$0xff]
  %v1344 = vld [vmem:[%s8 + $0x728] sm:$0xff]
  %v1345 = vld [vmem:[%s8 + $0x730] sm:$0xff]
  %v1346 = vld [vmem:[%s8 + $0x738] sm:$0xff]
  %v1347 = vld [vmem:[%s8 + $0x740] sm:$0xff]
  %v1348 = vld [vmem:[%s8 + $0x748] sm:$0xff]
  %v1349 = vld [vmem:[%s8 + $0x750] sm:$0xff]
  %v1350 = vld [vmem:[%s8 + $0x758] sm:$0xff]
  %v1351 = vld [vmem:[%s8 + $0x760] sm:$0xff]
  %v1352 = vld [vmem:[%s8 + $0x768] sm:$0xff]
  %v1353 = vld [vmem:[%s8 + $0x770] sm:$0xff]
  %v1354 = vld [vmem:[%s8 + $0x778] sm:$0xff]
  %v1355 = vld [vmem:[%s8 + $0x780] sm:$0xff]
  %v1356 = vld [vmem:[%s8 + $0x788] sm:$0xff]
  %v1357 = vld [vmem:[%s8 + $0x790] sm:$0xff]
  %v1358 = vld [vmem:[%s8 + $0x798] sm:$0xff]
  %v1359 = vld [vmem:[%s8 + $0x7a0] sm:$0xff]
  %v1360 = vld [vmem:[%s8 + $0x7a8] sm:$0xff]
  %v1361 = vld [vmem:[%s8 + $0x7b0] sm:$0xff]
  %v1362 = vld [vmem:[%s8 + $0x7b8] sm:$0xff]
  %v1363 = vld [vmem:[%s8 + $0x7c0] sm:$0xff]
  %v1364 = vld [vmem:[%s8 + $0x7c8] sm:$0xff]
  %v1365 = vld [vmem:[%s8 + $0x7d0] sm:$0xff]
  %v1366 = vld [vmem:[%s8 + $0x7d8] sm:$0xff]
  %v1367 = vld [vmem:[%s8 + $0x7e0] sm:$0xff]
  %v1368 = vld [vmem:[%s8 + $0x7e8] sm:$0xff]
  %v1369 = vld [vmem:[%s8 + $0x7f0] sm:$0xff]
  %v1370 = vld [vmem:[%s8 + $0x7f8] sm:$0xff]
  %v1371 = vmul.u32 %v49, 4
  %vm1372 = vcmp.eq.s32.totalorder %v40, %v1371
  %v1373 = vsel %vm1372, 1.0, 0.0
  %v1375 = vsel %vm453, %v1112, 0
  %1377 = vmatprep.subr.mxu0 0.0
  %1378 = vmatpush1.msra.mxu0 %v1373
  %1379 = vmatprep.subr.mxu0 0.0
  %1380 = vmatpush1.msra.mxu0 0.0
  %1381 = vmatprep.subr.mxu0 0.0
  %1382 = vmatpush1.msra.mxu0 0.0
  %1383 = vmatprep.subr.mxu0 0.0
  %1384 = vmatpush1.msra.mxu0 0.0
  %1385 = vmatprep.subr.mxu0 0.0
  %1386 = vmatpush1.msra.mxu0 0.0
  %1387 = vmatprep.subr.mxu0 0.0
  %1388 = vmatpush1.msra.mxu0 0.0
  %1389 = vmatprep.subr.mxu0 0.0
  %1390 = vmatpush1.msra.mxu0 0.0
  %1391 = vmatprep.subr.mxu0 0.0
  %1392 = vmatpush1.msra.mxu0 0.0
  %1393 = vmatprep.subr.mxu0 0.0
  %1394 = vmatpush1.msra.mxu0 0.0
  %1395 = vmatprep.subr.mxu0 0.0
  %1396 = vmatpush1.msra.mxu0 0.0
  %1397 = vmatprep.subr.mxu0 0.0
  %1398 = vmatpush1.msra.mxu0 0.0
  %1399 = vmatprep.subr.mxu0 0.0
  %1400 = vmatpush1.msra.mxu0 0.0
  %1401 = vmatprep.subr.mxu0 0.0
  %1402 = vmatpush1.msra.mxu0 0.0
  %1403 = vmatprep.subr.mxu0 0.0
  %1404 = vmatpush1.msra.mxu0 0.0
  %1405 = vmatprep.subr.mxu0 0.0
  %1406 = vmatpush1.msra.mxu0 0.0
  %1407 = vmatprep.subr.mxu0 0.0
  %1408 = vmatpush1.msra.mxu0 0.0
  %1409 = vmatprep.subr.mxu0 0.0
  %1410 = vmatpush1.msra.mxu0 0.0
  %1411 = vmatprep.subr.mxu0 0.0
  %1412 = vmatpush1.msra.mxu0 0.0
  %1413 = vmatprep.subr.mxu0 0.0
  %1414 = vmatpush1.msra.mxu0 0.0
  %1415 = vmatprep.subr.mxu0 0.0
  %1416 = vmatpush1.msra.mxu0 0.0
  %1417 = vmatprep.subr.mxu0 0.0
  %1418 = vmatpush1.msra.mxu0 0.0
  %1419 = vmatprep.subr.mxu0 0.0
  %1420 = vmatpush1.msra.mxu0 0.0
  %1421 = vmatprep.subr.mxu0 0.0
  %1422 = vmatpush1.msra.mxu0 0.0
  %1423 = vmatprep.subr.mxu0 0.0
  %1424 = vmatpush1.msra.mxu0 0.0
  %1425 = vmatprep.subr.mxu0 0.0
  %1426 = vmatpush1.msra.mxu0 0.0
  %1427 = vmatprep.subr.mxu0 0.0
  %1428 = vmatpush1.msra.mxu0 0.0
  %1429 = vmatprep.subr.mxu0 0.0
  %1430 = vmatpush1.msra.mxu0 0.0
  %1431 = vmatprep.subr.mxu0 0.0
  %1432 = vmatpush1.msra.mxu0 0.0
  %1433 = vmatprep.subr.mxu0 0.0
  %1434 = vmatpush1.msra.mxu0 0.0
  %1435 = vmatprep.subr.mxu0 0.0
  %1436 = vmatpush1.msra.mxu0 0.0
  %1437 = vmatprep.subr.mxu0 0.0
  %1438 = vmatpush1.msra.mxu0 0.0
  %1439 = vmatprep.subr.mxu0 0.0
  %1440 = vmatpush1.msra.mxu0 0.0
  %1441 = vmatprep.mubr.f32.mxu0 0.0
  %1442 = vmatmul.mubr.f32.gmra.mrb[0].mxu0 %v1375
  %v1443 = vpop.f32.mrb[0].mxu0
  %v1444 = vadd.f32 0.0, %v1443
  %v1445 = vpop.f32.mrb[0].mxu0
  %1446 = vdwg.mxu0
  %v1447 = vld [vmem:[%s7] sm:$0xf]
  %v1448 = vld [vmem:[%s7 + $0x4] sm:$0xf]
  %v1449 = vld [vmem:[%s7 + $0x8] sm:$0xf]
  %v1450 = vld [vmem:[%s7 + $0xc] sm:$0xf]
  %v1451 = vld [vmem:[%s7 + $0x10] sm:$0xf]
  %v1452 = vld [vmem:[%s7 + $0x14] sm:$0xf]
  %v1453 = vld [vmem:[%s7 + $0x18] sm:$0xf]
  %v1454 = vld [vmem:[%s7 + $0x1c] sm:$0xf]
  %v1455 = vld [vmem:[%s7 + $0x20] sm:$0xf]
  %v1456 = vld [vmem:[%s7 + $0x24] sm:$0xf]
  %v1457 = vld [vmem:[%s7 + $0x28] sm:$0xf]
  %v1458 = vld [vmem:[%s7 + $0x2c] sm:$0xf]
  %v1459 = vld [vmem:[%s7 + $0x30] sm:$0xf]
  %v1460 = vld [vmem:[%s7 + $0x34] sm:$0xf]
  %v1461 = vld [vmem:[%s7 + $0x38] sm:$0xf]
  %v1462 = vld [vmem:[%s7 + $0x3c] sm:$0xf]
  %v1463 = vld [vmem:[%s7 + $0x40] sm:$0xf]
  %v1464 = vld [vmem:[%s7 + $0x44] sm:$0xf]
  %v1465 = vld [vmem:[%s7 + $0x48] sm:$0xf]
  %v1466 = vld [vmem:[%s7 + $0x4c] sm:$0xf]
  %v1467 = vld [vmem:[%s7 + $0x50] sm:$0xf]
  %v1468 = vld [vmem:[%s7 + $0x54] sm:$0xf]
  %v1469 = vld [vmem:[%s7 + $0x58] sm:$0xf]
  %v1470 = vld [vmem:[%s7 + $0x5c] sm:$0xf]
  %v1471 = vld [vmem:[%s7 + $0x60] sm:$0xf]
  %v1472 = vld [vmem:[%s7 + $0x64] sm:$0xf]
  %v1473 = vld [vmem:[%s7 + $0x68] sm:$0xf]
  %v1474 = vld [vmem:[%s7 + $0x6c] sm:$0xf]
  %v1475 = vld [vmem:[%s7 + $0x70] sm:$0xf]
  %v1476 = vld [vmem:[%s7 + $0x74] sm:$0xf]
  %v1477 = vld [vmem:[%s7 + $0x78] sm:$0xf]
  %v1478 = vld [vmem:[%s7 + $0x7c] sm:$0xf]
  %v1479 = vld [vmem:[%s7 + $0x80] sm:$0xf]
  %v1480 = vld [vmem:[%s7 + $0x84] sm:$0xf]
  %v1481 = vld [vmem:[%s7 + $0x88] sm:$0xf]
  %v1482 = vld [vmem:[%s7 + $0x8c] sm:$0xf]
  %v1483 = vld [vmem:[%s7 + $0x90] sm:$0xf]
  %v1484 = vld [vmem:[%s7 + $0x94] sm:$0xf]
  %v1485 = vld [vmem:[%s7 + $0x98] sm:$0xf]
  %v1486 = vld [vmem:[%s7 + $0x9c] sm:$0xf]
  %v1487 = vld [vmem:[%s7 + $0xa0] sm:$0xf]
  %v1488 = vld [vmem:[%s7 + $0xa4] sm:$0xf]
  %v1489 = vld [vmem:[%s7 + $0xa8] sm:$0xf]
  %v1490 = vld [vmem:[%s7 + $0xac] sm:$0xf]
  %v1491 = vld [vmem:[%s7 + $0xb0] sm:$0xf]
  %v1492 = vld [vmem:[%s7 + $0xb4] sm:$0xf]
  %v1493 = vld [vmem:[%s7 + $0xb8] sm:$0xf]
  %v1494 = vld [vmem:[%s7 + $0xbc] sm:$0xf]
  %v1495 = vld [vmem:[%s7 + $0xc0] sm:$0xf]
  %v1496 = vld [vmem:[%s7 + $0xc4] sm:$0xf]
  %v1497 = vld [vmem:[%s7 + $0xc8] sm:$0xf]
  %v1498 = vld [vmem:[%s7 + $0xcc] sm:$0xf]
  %v1499 = vld [vmem:[%s7 + $0xd0] sm:$0xf]
  %v1500 = vld [vmem:[%s7 + $0xd4] sm:$0xf]
  %v1501 = vld [vmem:[%s7 + $0xd8] sm:$0xf]
  %v1502 = vld [vmem:[%s7 + $0xdc] sm:$0xf]
  %v1503 = vld [vmem:[%s7 + $0xe0] sm:$0xf]
  %v1504 = vld [vmem:[%s7 + $0xe4] sm:$0xf]
  %v1505 = vld [vmem:[%s7 + $0xe8] sm:$0xf]
  %v1506 = vld [vmem:[%s7 + $0xec] sm:$0xf]
  %v1507 = vld [vmem:[%s7 + $0xf0] sm:$0xf]
  %v1508 = vld [vmem:[%s7 + $0xf4] sm:$0xf]
  %v1509 = vld [vmem:[%s7 + $0xf8] sm:$0xf]
  %v1510 = vld [vmem:[%s7 + $0xfc] sm:$0xf]
  %v1511 = vld [vmem:[%s7 + $0x100] sm:$0xf]
  %v1512 = vld [vmem:[%s7 + $0x104] sm:$0xf]
  %v1513 = vld [vmem:[%s7 + $0x108] sm:$0xf]
  %v1514 = vld [vmem:[%s7 + $0x10c] sm:$0xf]
  %v1515 = vld [vmem:[%s7 + $0x110] sm:$0xf]
  %v1516 = vld [vmem:[%s7 + $0x114] sm:$0xf]
  %v1517 = vld [vmem:[%s7 + $0x118] sm:$0xf]
  %v1518 = vld [vmem:[%s7 + $0x11c] sm:$0xf]
  %v1519 = vld [vmem:[%s7 + $0x120] sm:$0xf]
  %v1520 = vld [vmem:[%s7 + $0x124] sm:$0xf]
  %v1521 = vld [vmem:[%s7 + $0x128] sm:$0xf]
  %v1522 = vld [vmem:[%s7 + $0x12c] sm:$0xf]
  %v1523 = vld [vmem:[%s7 + $0x130] sm:$0xf]
  %v1524 = vld [vmem:[%s7 + $0x134] sm:$0xf]
  %v1525 = vld [vmem:[%s7 + $0x138] sm:$0xf]
  %v1526 = vld [vmem:[%s7 + $0x13c] sm:$0xf]
  %v1527 = vld [vmem:[%s7 + $0x140] sm:$0xf]
  %v1528 = vld [vmem:[%s7 + $0x144] sm:$0xf]
  %v1529 = vld [vmem:[%s7 + $0x148] sm:$0xf]
  %v1530 = vld [vmem:[%s7 + $0x14c] sm:$0xf]
  %v1531 = vld [vmem:[%s7 + $0x150] sm:$0xf]
  %v1532 = vld [vmem:[%s7 + $0x154] sm:$0xf]
  %v1533 = vld [vmem:[%s7 + $0x158] sm:$0xf]
  %v1534 = vld [vmem:[%s7 + $0x15c] sm:$0xf]
  %v1535 = vld [vmem:[%s7 + $0x160] sm:$0xf]
  %v1536 = vld [vmem:[%s7 + $0x164] sm:$0xf]
  %v1537 = vld [vmem:[%s7 + $0x168] sm:$0xf]
  %v1538 = vld [vmem:[%s7 + $0x16c] sm:$0xf]
  %v1539 = vld [vmem:[%s7 + $0x170] sm:$0xf]
  %v1540 = vld [vmem:[%s7 + $0x174] sm:$0xf]
  %v1541 = vld [vmem:[%s7 + $0x178] sm:$0xf]
  %v1542 = vld [vmem:[%s7 + $0x17c] sm:$0xf]
  %v1543 = vld [vmem:[%s7 + $0x180] sm:$0xf]
  %v1544 = vld [vmem:[%s7 + $0x184] sm:$0xf]
  %v1545 = vld [vmem:[%s7 + $0x188] sm:$0xf]
  %v1546 = vld [vmem:[%s7 + $0x18c] sm:$0xf]
  %v1547 = vld [vmem:[%s7 + $0x190] sm:$0xf]
  %v1548 = vld [vmem:[%s7 + $0x194] sm:$0xf]
  %v1549 = vld [vmem:[%s7 + $0x198] sm:$0xf]
  %v1550 = vld [vmem:[%s7 + $0x19c] sm:$0xf]
  %v1551 = vld [vmem:[%s7 + $0x1a0] sm:$0xf]
  %v1552 = vld [vmem:[%s7 + $0x1a4] sm:$0xf]
  %v1553 = vld [vmem:[%s7 + $0x1a8] sm:$0xf]
  %v1554 = vld [vmem:[%s7 + $0x1ac] sm:$0xf]
  %v1555 = vld [vmem:[%s7 + $0x1b0] sm:$0xf]
  %v1556 = vld [vmem:[%s7 + $0x1b4] sm:$0xf]
  %v1557 = vld [vmem:[%s7 + $0x1b8] sm:$0xf]
  %v1558 = vld [vmem:[%s7 + $0x1bc] sm:$0xf]
  %v1559 = vld [vmem:[%s7 + $0x1c0] sm:$0xf]
  %v1560 = vld [vmem:[%s7 + $0x1c4] sm:$0xf]
  %v1561 = vld [vmem:[%s7 + $0x1c8] sm:$0xf]
  %v1562 = vld [vmem:[%s7 + $0x1cc] sm:$0xf]
  %v1563 = vld [vmem:[%s7 + $0x1d0] sm:$0xf]
  %v1564 = vld [vmem:[%s7 + $0x1d4] sm:$0xf]
  %v1565 = vld [vmem:[%s7 + $0x1d8] sm:$0xf]
  %v1566 = vld [vmem:[%s7 + $0x1dc] sm:$0xf]
  %v1567 = vld [vmem:[%s7 + $0x1e0] sm:$0xf]
  %v1568 = vld [vmem:[%s7 + $0x1e4] sm:$0xf]
  %v1569 = vld [vmem:[%s7 + $0x1e8] sm:$0xf]
  %v1570 = vld [vmem:[%s7 + $0x1ec] sm:$0xf]
  %v1571 = vld [vmem:[%s7 + $0x1f0] sm:$0xf]
  %v1572 = vld [vmem:[%s7 + $0x1f4] sm:$0xf]
  %v1573 = vld [vmem:[%s7 + $0x1f8] sm:$0xf]
  %v1574 = vld [vmem:[%s7 + $0x1fc] sm:$0xf]
  %v1575 = vld [vmem:[%s7 + $0x200] sm:$0xf]
  %v1576 = vld [vmem:[%s7 + $0x204] sm:$0xf]
  %v1577 = vld [vmem:[%s7 + $0x208] sm:$0xf]
  %v1578 = vld [vmem:[%s7 + $0x20c] sm:$0xf]
  %v1579 = vld [vmem:[%s7 + $0x210] sm:$0xf]
  %v1580 = vld [vmem:[%s7 + $0x214] sm:$0xf]
  %v1581 = vld [vmem:[%s7 + $0x218] sm:$0xf]
  %v1582 = vld [vmem:[%s7 + $0x21c] sm:$0xf]
  %v1583 = vld [vmem:[%s7 + $0x220] sm:$0xf]
  %v1584 = vld [vmem:[%s7 + $0x224] sm:$0xf]
  %v1585 = vld [vmem:[%s7 + $0x228] sm:$0xf]
  %v1586 = vld [vmem:[%s7 + $0x22c] sm:$0xf]
  %v1587 = vld [vmem:[%s7 + $0x230] sm:$0xf]
  %v1588 = vld [vmem:[%s7 + $0x234] sm:$0xf]
  %v1589 = vld [vmem:[%s7 + $0x238] sm:$0xf]
  %v1590 = vld [vmem:[%s7 + $0x23c] sm:$0xf]
  %v1591 = vld [vmem:[%s7 + $0x240] sm:$0xf]
  %v1592 = vld [vmem:[%s7 + $0x244] sm:$0xf]
  %v1593 = vld [vmem:[%s7 + $0x248] sm:$0xf]
  %v1594 = vld [vmem:[%s7 + $0x24c] sm:$0xf]
  %v1595 = vld [vmem:[%s7 + $0x250] sm:$0xf]
  %v1596 = vld [vmem:[%s7 + $0x254] sm:$0xf]
  %v1597 = vld [vmem:[%s7 + $0x258] sm:$0xf]
  %v1598 = vld [vmem:[%s7 + $0x25c] sm:$0xf]
  %v1599 = vld [vmem:[%s7 + $0x260] sm:$0xf]
  %v1600 = vld [vmem:[%s7 + $0x264] sm:$0xf]
  %v1601 = vld [vmem:[%s7 + $0x268] sm:$0xf]
  %v1602 = vld [vmem:[%s7 + $0x26c] sm:$0xf]
  %v1603 = vld [vmem:[%s7 + $0x270] sm:$0xf]
  %v1604 = vld [vmem:[%s7 + $0x274] sm:$0xf]
  %v1605 = vld [vmem:[%s7 + $0x278] sm:$0xf]
  %v1606 = vld [vmem:[%s7 + $0x27c] sm:$0xf]
  %v1607 = vld [vmem:[%s7 + $0x280] sm:$0xf]
  %v1608 = vld [vmem:[%s7 + $0x284] sm:$0xf]
  %v1609 = vld [vmem:[%s7 + $0x288] sm:$0xf]
  %v1610 = vld [vmem:[%s7 + $0x28c] sm:$0xf]
  %v1611 = vld [vmem:[%s7 + $0x290] sm:$0xf]
  %v1612 = vld [vmem:[%s7 + $0x294] sm:$0xf]
  %v1613 = vld [vmem:[%s7 + $0x298] sm:$0xf]
  %v1614 = vld [vmem:[%s7 + $0x29c] sm:$0xf]
  %v1615 = vld [vmem:[%s7 + $0x2a0] sm:$0xf]
  %v1616 = vld [vmem:[%s7 + $0x2a4] sm:$0xf]
  %v1617 = vld [vmem:[%s7 + $0x2a8] sm:$0xf]
  %v1618 = vld [vmem:[%s7 + $0x2ac] sm:$0xf]
  %v1619 = vld [vmem:[%s7 + $0x2b0] sm:$0xf]
  %v1620 = vld [vmem:[%s7 + $0x2b4] sm:$0xf]
  %v1621 = vld [vmem:[%s7 + $0x2b8] sm:$0xf]
  %v1622 = vld [vmem:[%s7 + $0x2bc] sm:$0xf]
  %v1623 = vld [vmem:[%s7 + $0x2c0] sm:$0xf]
  %v1624 = vld [vmem:[%s7 + $0x2c4] sm:$0xf]
  %v1625 = vld [vmem:[%s7 + $0x2c8] sm:$0xf]
  %v1626 = vld [vmem:[%s7 + $0x2cc] sm:$0xf]
  %v1627 = vld [vmem:[%s7 + $0x2d0] sm:$0xf]
  %v1628 = vld [vmem:[%s7 + $0x2d4] sm:$0xf]
  %v1629 = vld [vmem:[%s7 + $0x2d8] sm:$0xf]
  %v1630 = vld [vmem:[%s7 + $0x2dc] sm:$0xf]
  %v1631 = vld [vmem:[%s7 + $0x2e0] sm:$0xf]
  %v1632 = vld [vmem:[%s7 + $0x2e4] sm:$0xf]
  %v1633 = vld [vmem:[%s7 + $0x2e8] sm:$0xf]
  %v1634 = vld [vmem:[%s7 + $0x2ec] sm:$0xf]
  %v1635 = vld [vmem:[%s7 + $0x2f0] sm:$0xf]
  %v1636 = vld [vmem:[%s7 + $0x2f4] sm:$0xf]
  %v1637 = vld [vmem:[%s7 + $0x2f8] sm:$0xf]
  %v1638 = vld [vmem:[%s7 + $0x2fc] sm:$0xf]
  %v1639 = vld [vmem:[%s7 + $0x300] sm:$0xf]
  %v1640 = vld [vmem:[%s7 + $0x304] sm:$0xf]
  %v1641 = vld [vmem:[%s7 + $0x308] sm:$0xf]
  %v1642 = vld [vmem:[%s7 + $0x30c] sm:$0xf]
  %v1643 = vld [vmem:[%s7 + $0x310] sm:$0xf]
  %v1644 = vld [vmem:[%s7 + $0x314] sm:$0xf]
  %v1645 = vld [vmem:[%s7 + $0x318] sm:$0xf]
  %v1646 = vld [vmem:[%s7 + $0x31c] sm:$0xf]
  %v1647 = vld [vmem:[%s7 + $0x320] sm:$0xf]
  %v1648 = vld [vmem:[%s7 + $0x324] sm:$0xf]
  %v1649 = vld [vmem:[%s7 + $0x328] sm:$0xf]
  %v1650 = vld [vmem:[%s7 + $0x32c] sm:$0xf]
  %v1651 = vld [vmem:[%s7 + $0x330] sm:$0xf]
  %v1652 = vld [vmem:[%s7 + $0x334] sm:$0xf]
  %v1653 = vld [vmem:[%s7 + $0x338] sm:$0xf]
  %v1654 = vld [vmem:[%s7 + $0x33c] sm:$0xf]
  %v1655 = vld [vmem:[%s7 + $0x340] sm:$0xf]
  %v1656 = vld [vmem:[%s7 + $0x344] sm:$0xf]
  %v1657 = vld [vmem:[%s7 + $0x348] sm:$0xf]
  %v1658 = vld [vmem:[%s7 + $0x34c] sm:$0xf]
  %v1659 = vld [vmem:[%s7 + $0x350] sm:$0xf]
  %v1660 = vld [vmem:[%s7 + $0x354] sm:$0xf]
  %v1661 = vld [vmem:[%s7 + $0x358] sm:$0xf]
  %v1662 = vld [vmem:[%s7 + $0x35c] sm:$0xf]
  %v1663 = vld [vmem:[%s7 + $0x360] sm:$0xf]
  %v1664 = vld [vmem:[%s7 + $0x364] sm:$0xf]
  %v1665 = vld [vmem:[%s7 + $0x368] sm:$0xf]
  %v1666 = vld [vmem:[%s7 + $0x36c] sm:$0xf]
  %v1667 = vld [vmem:[%s7 + $0x370] sm:$0xf]
  %v1668 = vld [vmem:[%s7 + $0x374] sm:$0xf]
  %v1669 = vld [vmem:[%s7 + $0x378] sm:$0xf]
  %v1670 = vld [vmem:[%s7 + $0x37c] sm:$0xf]
  %v1671 = vld [vmem:[%s7 + $0x380] sm:$0xf]
  %v1672 = vld [vmem:[%s7 + $0x384] sm:$0xf]
  %v1673 = vld [vmem:[%s7 + $0x388] sm:$0xf]
  %v1674 = vld [vmem:[%s7 + $0x38c] sm:$0xf]
  %v1675 = vld [vmem:[%s7 + $0x390] sm:$0xf]
  %v1676 = vld [vmem:[%s7 + $0x394] sm:$0xf]
  %v1677 = vld [vmem:[%s7 + $0x398] sm:$0xf]
  %v1678 = vld [vmem:[%s7 + $0x39c] sm:$0xf]
  %v1679 = vld [vmem:[%s7 + $0x3a0] sm:$0xf]
  %v1680 = vld [vmem:[%s7 + $0x3a4] sm:$0xf]
  %v1681 = vld [vmem:[%s7 + $0x3a8] sm:$0xf]
  %v1682 = vld [vmem:[%s7 + $0x3ac] sm:$0xf]
  %v1683 = vld [vmem:[%s7 + $0x3b0] sm:$0xf]
  %v1684 = vld [vmem:[%s7 + $0x3b4] sm:$0xf]
  %v1685 = vld [vmem:[%s7 + $0x3b8] sm:$0xf]
  %v1686 = vld [vmem:[%s7 + $0x3bc] sm:$0xf]
  %v1687 = vld [vmem:[%s7 + $0x3c0] sm:$0xf]
  %v1688 = vld [vmem:[%s7 + $0x3c4] sm:$0xf]
  %v1689 = vld [vmem:[%s7 + $0x3c8] sm:$0xf]
  %v1690 = vld [vmem:[%s7 + $0x3cc] sm:$0xf]
  %v1691 = vld [vmem:[%s7 + $0x3d0] sm:$0xf]
  %v1692 = vld [vmem:[%s7 + $0x3d4] sm:$0xf]
  %v1693 = vld [vmem:[%s7 + $0x3d8] sm:$0xf]
  %v1694 = vld [vmem:[%s7 + $0x3dc] sm:$0xf]
  %v1695 = vld [vmem:[%s7 + $0x3e0] sm:$0xf]
  %v1696 = vld [vmem:[%s7 + $0x3e4] sm:$0xf]
  %v1697 = vld [vmem:[%s7 + $0x3e8] sm:$0xf]
  %v1698 = vld [vmem:[%s7 + $0x3ec] sm:$0xf]
  %v1699 = vld [vmem:[%s7 + $0x3f0] sm:$0xf]
  %v1700 = vld [vmem:[%s7 + $0x3f4] sm:$0xf]
  %v1701 = vld [vmem:[%s7 + $0x3f8] sm:$0xf]
  %v1702 = vld [vmem:[%s7 + $0x3fc] sm:$0xf]
  %v1703 = vpack.c.bf16 %v1444, %v1444
  %v1960 = vunpack.c.l.b16 %v1447
  %v1961 = vunpack.c.l.b16 %v1448
  %v1962 = vunpack.c.l.b16 %v1449
  %v1963 = vunpack.c.l.b16 %v1450
  %v1964 = vunpack.c.l.b16 %v1451
  %v1965 = vunpack.c.l.b16 %v1452
  %v1966 = vunpack.c.l.b16 %v1453
  %v1967 = vunpack.c.l.b16 %v1454
  %v1968 = vunpack.c.l.b16 %v1455
  %v1969 = vunpack.c.l.b16 %v1456
  %v1970 = vunpack.c.l.b16 %v1457
  %v1971 = vunpack.c.l.b16 %v1458
  %v1972 = vunpack.c.l.b16 %v1459
  %v1973 = vunpack.c.l.b16 %v1460
  %v1974 = vunpack.c.l.b16 %v1461
  %v1975 = vunpack.c.l.b16 %v1462
  %v1976 = vunpack.c.l.b16 %v1463
  %v1977 = vunpack.c.l.b16 %v1464
  %v1978 = vunpack.c.l.b16 %v1465
  %v1979 = vunpack.c.l.b16 %v1466
  %v1980 = vunpack.c.l.b16 %v1467
  %v1981 = vunpack.c.l.b16 %v1468
  %v1982 = vunpack.c.l.b16 %v1469
  %v1983 = vunpack.c.l.b16 %v1470
  %v1984 = vunpack.c.l.b16 %v1471
  %v1985 = vunpack.c.l.b16 %v1472
  %v1986 = vunpack.c.l.b16 %v1473
  %v1987 = vunpack.c.l.b16 %v1474
  %v1988 = vunpack.c.l.b16 %v1475
  %v1989 = vunpack.c.l.b16 %v1476
  %v1990 = vunpack.c.l.b16 %v1477
  %v1991 = vunpack.c.l.b16 %v1478
  %v1992 = vunpack.c.l.b16 %v1479
  %v1993 = vunpack.c.l.b16 %v1480
  %v1994 = vunpack.c.l.b16 %v1481
  %v1995 = vunpack.c.l.b16 %v1482
  %v1996 = vunpack.c.l.b16 %v1483
  %v1997 = vunpack.c.l.b16 %v1484
  %v1998 = vunpack.c.l.b16 %v1485
  %v1999 = vunpack.c.l.b16 %v1486
  %v2000 = vunpack.c.l.b16 %v1487
  %v2001 = vunpack.c.l.b16 %v1488
  %v2002 = vunpack.c.l.b16 %v1489
  %v2003 = vunpack.c.l.b16 %v1490
  %v2004 = vunpack.c.l.b16 %v1491
  %v2005 = vunpack.c.l.b16 %v1492
  %v2006 = vunpack.c.l.b16 %v1493
  %v2007 = vunpack.c.l.b16 %v1494
  %v2008 = vunpack.c.l.b16 %v1495
  %v2009 = vunpack.c.l.b16 %v1496
  %v2010 = vunpack.c.l.b16 %v1497
  %v2011 = vunpack.c.l.b16 %v1498
  %v2012 = vunpack.c.l.b16 %v1499
  %v2013 = vunpack.c.l.b16 %v1500
  %v2014 = vunpack.c.l.b16 %v1501
  %v2015 = vunpack.c.l.b16 %v1502
  %v2016 = vunpack.c.l.b16 %v1503
  %v2017 = vunpack.c.l.b16 %v1504
  %v2018 = vunpack.c.l.b16 %v1505
  %v2019 = vunpack.c.l.b16 %v1506
  %v2020 = vunpack.c.l.b16 %v1507
  %v2021 = vunpack.c.l.b16 %v1508
  %v2022 = vunpack.c.l.b16 %v1509
  %v2023 = vunpack.c.l.b16 %v1510
  %v2024 = vunpack.c.l.b16 %v1511
  %v2025 = vunpack.c.l.b16 %v1512
  %v2026 = vunpack.c.l.b16 %v1513
  %v2027 = vunpack.c.l.b16 %v1514
  %v2028 = vunpack.c.l.b16 %v1515
  %v2029 = vunpack.c.l.b16 %v1516
  %v2030 = vunpack.c.l.b16 %v1517
  %v2031 = vunpack.c.l.b16 %v1518
  %v2032 = vunpack.c.l.b16 %v1519
  %v2033 = vunpack.c.l.b16 %v1520
  %v2034 = vunpack.c.l.b16 %v1521
  %v2035 = vunpack.c.l.b16 %v1522
  %v2036 = vunpack.c.l.b16 %v1523
  %v2037 = vunpack.c.l.b16 %v1524
  %v2038 = vunpack.c.l.b16 %v1525
  %v2039 = vunpack.c.l.b16 %v1526
  %v2040 = vunpack.c.l.b16 %v1527
  %v2041 = vunpack.c.l.b16 %v1528
  %v2042 = vunpack.c.l.b16 %v1529
  %v2043 = vunpack.c.l.b16 %v1530
  %v2044 = vunpack.c.l.b16 %v1531
  %v2045 = vunpack.c.l.b16 %v1532
  %v2046 = vunpack.c.l.b16 %v1533
  %v2047 = vunpack.c.l.b16 %v1534
  %v2048 = vunpack.c.l.b16 %v1535
  %v2049 = vunpack.c.l.b16 %v1536
  %v2050 = vunpack.c.l.b16 %v1537
  %v2051 = vunpack.c.l.b16 %v1538
  %v2052 = vunpack.c.l.b16 %v1539
  %v2053 = vunpack.c.l.b16 %v1540
  %v2054 = vunpack.c.l.b16 %v1541
  %v2055 = vunpack.c.l.b16 %v1542
  %v2056 = vunpack.c.l.b16 %v1543
  %v2057 = vunpack.c.l.b16 %v1544
  %v2058 = vunpack.c.l.b16 %v1545
  %v2059 = vunpack.c.l.b16 %v1546
  %v2060 = vunpack.c.l.b16 %v1547
  %v2061 = vunpack.c.l.b16 %v1548
  %v2062 = vunpack.c.l.b16 %v1549
  %v2063 = vunpack.c.l.b16 %v1550
  %v2064 = vunpack.c.l.b16 %v1551
  %v2065 = vunpack.c.l.b16 %v1552
  %v2066 = vunpack.c.l.b16 %v1553
  %v2067 = vunpack.c.l.b16 %v1554
  %v2068 = vunpack.c.l.b16 %v1555
  %v2069 = vunpack.c.l.b16 %v1556
  %v2070 = vunpack.c.l.b16 %v1557
  %v2071 = vunpack.c.l.b16 %v1558
  %v2072 = vunpack.c.l.b16 %v1559
  %v2073 = vunpack.c.l.b16 %v1560
  %v2074 = vunpack.c.l.b16 %v1561
  %v2075 = vunpack.c.l.b16 %v1562
  %v2076 = vunpack.c.l.b16 %v1563
  %v2077 = vunpack.c.l.b16 %v1564
  %v2078 = vunpack.c.l.b16 %v1565
  %v2079 = vunpack.c.l.b16 %v1566
  %v2080 = vunpack.c.l.b16 %v1567
  %v2081 = vunpack.c.l.b16 %v1568
  %v2082 = vunpack.c.l.b16 %v1569
  %v2083 = vunpack.c.l.b16 %v1570
  %v2084 = vunpack.c.l.b16 %v1571
  %v2085 = vunpack.c.l.b16 %v1572
  %v2086 = vunpack.c.l.b16 %v1573
  %v2087 = vunpack.c.l.b16 %v1574
  %v2088 = vunpack.c.l.b16 %v1575
  %v2089 = vunpack.c.l.b16 %v1576
  %v2090 = vunpack.c.l.b16 %v1577
  %v2091 = vunpack.c.l.b16 %v1578
  %v2092 = vunpack.c.l.b16 %v1579
  %v2093 = vunpack.c.l.b16 %v1580
  %v2094 = vunpack.c.l.b16 %v1581
  %v2095 = vunpack.c.l.b16 %v1582
  %v2096 = vunpack.c.l.b16 %v1583
  %v2097 = vunpack.c.l.b16 %v1584
  %v2098 = vunpack.c.l.b16 %v1585
  %v2099 = vunpack.c.l.b16 %v1586
  %v2100 = vunpack.c.l.b16 %v1587
  %v2101 = vunpack.c.l.b16 %v1588
  %v2102 = vunpack.c.l.b16 %v1589
  %v2103 = vunpack.c.l.b16 %v1590
  %v2104 = vunpack.c.l.b16 %v1591
  %v2105 = vunpack.c.l.b16 %v1592
  %v2106 = vunpack.c.l.b16 %v1593
  %v2107 = vunpack.c.l.b16 %v1594
  %v2108 = vunpack.c.l.b16 %v1595
  %v2109 = vunpack.c.l.b16 %v1596
  %v2110 = vunpack.c.l.b16 %v1597
  %v2111 = vunpack.c.l.b16 %v1598
  %v2112 = vunpack.c.l.b16 %v1599
  %v2113 = vunpack.c.l.b16 %v1600
  %v2114 = vunpack.c.l.b16 %v1601
  %v2115 = vunpack.c.l.b16 %v1602
  %v2116 = vunpack.c.l.b16 %v1603
  %v2117 = vunpack.c.l.b16 %v1604
  %v2118 = vunpack.c.l.b16 %v1605
  %v2119 = vunpack.c.l.b16 %v1606
  %v2120 = vunpack.c.l.b16 %v1607
  %v2121 = vunpack.c.l.b16 %v1608
  %v2122 = vunpack.c.l.b16 %v1609
  %v2123 = vunpack.c.l.b16 %v1610
  %v2124 = vunpack.c.l.b16 %v1611
  %v2125 = vunpack.c.l.b16 %v1612
  %v2126 = vunpack.c.l.b16 %v1613
  %v2127 = vunpack.c.l.b16 %v1614
  %v2128 = vunpack.c.l.b16 %v1615
  %v2129 = vunpack.c.l.b16 %v1616
  %v2130 = vunpack.c.l.b16 %v1617
  %v2131 = vunpack.c.l.b16 %v1618
  %v2132 = vunpack.c.l.b16 %v1619
  %v2133 = vunpack.c.l.b16 %v1620
  %v2134 = vunpack.c.l.b16 %v1621
  %v2135 = vunpack.c.l.b16 %v1622
  %v2136 = vunpack.c.l.b16 %v1623
  %v2137 = vunpack.c.l.b16 %v1624
  %v2138 = vunpack.c.l.b16 %v1625
  %v2139 = vunpack.c.l.b16 %v1626
  %v2140 = vunpack.c.l.b16 %v1627
  %v2141 = vunpack.c.l.b16 %v1628
  %v2142 = vunpack.c.l.b16 %v1629
  %v2143 = vunpack.c.l.b16 %v1630
  %v2144 = vunpack.c.l.b16 %v1631
  %v2145 = vunpack.c.l.b16 %v1632
  %v2146 = vunpack.c.l.b16 %v1633
  %v2147 = vunpack.c.l.b16 %v1634
  %v2148 = vunpack.c.l.b16 %v1635
  %v2149 = vunpack.c.l.b16 %v1636
  %v2150 = vunpack.c.l.b16 %v1637
  %v2151 = vunpack.c.l.b16 %v1638
  %v2152 = vunpack.c.l.b16 %v1639
  %v2153 = vunpack.c.l.b16 %v1640
  %v2154 = vunpack.c.l.b16 %v1641
  %v2155 = vunpack.c.l.b16 %v1642
  %v2156 = vunpack.c.l.b16 %v1643
  %v2157 = vunpack.c.l.b16 %v1644
  %v2158 = vunpack.c.l.b16 %v1645
  %v2159 = vunpack.c.l.b16 %v1646
  %v2160 = vunpack.c.l.b16 %v1647
  %v2161 = vunpack.c.l.b16 %v1648
  %v2162 = vunpack.c.l.b16 %v1649
  %v2163 = vunpack.c.l.b16 %v1650
  %v2164 = vunpack.c.l.b16 %v1651
  %v2165 = vunpack.c.l.b16 %v1652
  %v2166 = vunpack.c.l.b16 %v1653
  %v2167 = vunpack.c.l.b16 %v1654
  %v2168 = vunpack.c.l.b16 %v1655
  %v2169 = vunpack.c.l.b16 %v1656
  %v2170 = vunpack.c.l.b16 %v1657
  %v2171 = vunpack.c.l.b16 %v1658
  %v2172 = vunpack.c.l.b16 %v1659
  %v2173 = vunpack.c.l.b16 %v1660
  %v2174 = vunpack.c.l.b16 %v1661
  %v2175 = vunpack.c.l.b16 %v1662
  %v2176 = vunpack.c.l.b16 %v1663
  %v2177 = vunpack.c.l.b16 %v1664
  %v2178 = vunpack.c.l.b16 %v1665
  %v2179 = vunpack.c.l.b16 %v1666
  %v2180 = vunpack.c.l.b16 %v1667
  %v2181 = vunpack.c.l.b16 %v1668
  %v2182 = vunpack.c.l.b16 %v1669
  %v2183 = vunpack.c.l.b16 %v1670
  %v2184 = vunpack.c.l.b16 %v1671
  %v2185 = vunpack.c.l.b16 %v1672
  %v2186 = vunpack.c.l.b16 %v1673
  %v2187 = vunpack.c.l.b16 %v1674
  %v2188 = vunpack.c.l.b16 %v1675
  %v2189 = vunpack.c.l.b16 %v1676
  %v2190 = vunpack.c.l.b16 %v1677
  %v2191 = vunpack.c.l.b16 %v1678
  %v2192 = vunpack.c.l.b16 %v1679
  %v2193 = vunpack.c.l.b16 %v1680
  %v2194 = vunpack.c.l.b16 %v1681
  %v2195 = vunpack.c.l.b16 %v1682
  %v2196 = vunpack.c.l.b16 %v1683
  %v2197 = vunpack.c.l.b16 %v1684
  %v2198 = vunpack.c.l.b16 %v1685
  %v2199 = vunpack.c.l.b16 %v1686
  %v2200 = vunpack.c.l.b16 %v1687
  %v2201 = vunpack.c.l.b16 %v1688
  %v2202 = vunpack.c.l.b16 %v1689
  %v2203 = vunpack.c.l.b16 %v1690
  %v2204 = vunpack.c.l.b16 %v1691
  %v2205 = vunpack.c.l.b16 %v1692
  %v2206 = vunpack.c.l.b16 %v1693
  %v2207 = vunpack.c.l.b16 %v1694
  %v2208 = vunpack.c.l.b16 %v1695
  %v2209 = vunpack.c.l.b16 %v1696
  %v2210 = vunpack.c.l.b16 %v1697
  %v2211 = vunpack.c.l.b16 %v1698
  %v2212 = vunpack.c.l.b16 %v1699
  %v2213 = vunpack.c.l.b16 %v1700
  %v2214 = vunpack.c.l.b16 %v1701
  %v2215 = vunpack.c.l.b16 %v1702
  %v2216 = vpack.c.b16 %v1961, %v1960
  %v2217 = vpack.c.b16 %v1963, %v1962
  %v2218 = vpack.c.b16 %v1965, %v1964
  %v2219 = vpack.c.b16 %v1967, %v1966
  %v2220 = vpack.c.b16 %v1969, %v1968
  %v2221 = vpack.c.b16 %v1971, %v1970
  %v2222 = vpack.c.b16 %v1973, %v1972
  %v2223 = vpack.c.b16 %v1975, %v1974
  %v2224 = vpack.c.b16 %v1977, %v1976
  %v2225 = vpack.c.b16 %v1979, %v1978
  %v2226 = vpack.c.b16 %v1981, %v1980
  %v2227 = vpack.c.b16 %v1983, %v1982
  %v2228 = vpack.c.b16 %v1985, %v1984
  %v2229 = vpack.c.b16 %v1987, %v1986
  %v2230 = vpack.c.b16 %v1989, %v1988
  %v2231 = vpack.c.b16 %v1991, %v1990
  %v2232 = vpack.c.b16 %v1993, %v1992
  %v2233 = vpack.c.b16 %v1995, %v1994
  %v2234 = vpack.c.b16 %v1997, %v1996
  %v2235 = vpack.c.b16 %v1999, %v1998
  %v2236 = vpack.c.b16 %v2001, %v2000
  %v2237 = vpack.c.b16 %v2003, %v2002
  %v2238 = vpack.c.b16 %v2005, %v2004
  %v2239 = vpack.c.b16 %v2007, %v2006
  %v2240 = vpack.c.b16 %v2009, %v2008
  %v2241 = vpack.c.b16 %v2011, %v2010
  %v2242 = vpack.c.b16 %v2013, %v2012
  %v2243 = vpack.c.b16 %v2015, %v2014
  %v2244 = vpack.c.b16 %v2017, %v2016
  %v2245 = vpack.c.b16 %v2019, %v2018
  %v2246 = vpack.c.b16 %v2021, %v2020
  %v2247 = vpack.c.b16 %v2023, %v2022
  %v2248 = vpack.c.b16 %v2025, %v2024
  %v2249 = vpack.c.b16 %v2027, %v2026
  %v2250 = vpack.c.b16 %v2029, %v2028
  %v2251 = vpack.c.b16 %v2031, %v2030
  %v2252 = vpack.c.b16 %v2033, %v2032
  %v2253 = vpack.c.b16 %v2035, %v2034
  %v2254 = vpack.c.b16 %v2037, %v2036
  %v2255 = vpack.c.b16 %v2039, %v2038
  %v2256 = vpack.c.b16 %v2041, %v2040
  %v2257 = vpack.c.b16 %v2043, %v2042
  %v2258 = vpack.c.b16 %v2045, %v2044
  %v2259 = vpack.c.b16 %v2047, %v2046
  %v2260 = vpack.c.b16 %v2049, %v2048
  %v2261 = vpack.c.b16 %v2051, %v2050
  %v2262 = vpack.c.b16 %v2053, %v2052
  %v2263 = vpack.c.b16 %v2055, %v2054
  %v2264 = vpack.c.b16 %v2057, %v2056
  %v2265 = vpack.c.b16 %v2059, %v2058
  %v2266 = vpack.c.b16 %v2061, %v2060
  %v2267 = vpack.c.b16 %v2063, %v2062
  %v2268 = vpack.c.b16 %v2065, %v2064
  %v2269 = vpack.c.b16 %v2067, %v2066
  %v2270 = vpack.c.b16 %v2069, %v2068
  %v2271 = vpack.c.b16 %v2071, %v2070
  %v2272 = vpack.c.b16 %v2073, %v2072
  %v2273 = vpack.c.b16 %v2075, %v2074
  %v2274 = vpack.c.b16 %v2077, %v2076
  %v2275 = vpack.c.b16 %v2079, %v2078
  %v2276 = vpack.c.b16 %v2081, %v2080
  %v2277 = vpack.c.b16 %v2083, %v2082
  %v2278 = vpack.c.b16 %v2085, %v2084
  %v2279 = vpack.c.b16 %v2087, %v2086
  %v2280 = vpack.c.b16 %v2089, %v2088
  %v2281 = vpack.c.b16 %v2091, %v2090
  %v2282 = vpack.c.b16 %v2093, %v2092
  %v2283 = vpack.c.b16 %v2095, %v2094
  %v2284 = vpack.c.b16 %v2097, %v2096
  %v2285 = vpack.c.b16 %v2099, %v2098
  %v2286 = vpack.c.b16 %v2101, %v2100
  %v2287 = vpack.c.b16 %v2103, %v2102
  %v2288 = vpack.c.b16 %v2105, %v2104
  %v2289 = vpack.c.b16 %v2107, %v2106
  %v2290 = vpack.c.b16 %v2109, %v2108
  %v2291 = vpack.c.b16 %v2111, %v2110
  %v2292 = vpack.c.b16 %v2113, %v2112
  %v2293 = vpack.c.b16 %v2115, %v2114
  %v2294 = vpack.c.b16 %v2117, %v2116
  %v2295 = vpack.c.b16 %v2119, %v2118
  %v2296 = vpack.c.b16 %v2121, %v2120
  %v2297 = vpack.c.b16 %v2123, %v2122
  %v2298 = vpack.c.b16 %v2125, %v2124
  %v2299 = vpack.c.b16 %v2127, %v2126
  %v2300 = vpack.c.b16 %v2129, %v2128
  %v2301 = vpack.c.b16 %v2131, %v2130
  %v2302 = vpack.c.b16 %v2133, %v2132
  %v2303 = vpack.c.b16 %v2135, %v2134
  %v2304 = vpack.c.b16 %v2137, %v2136
  %v2305 = vpack.c.b16 %v2139, %v2138
  %v2306 = vpack.c.b16 %v2141, %v2140
  %v2307 = vpack.c.b16 %v2143, %v2142
  %v2308 = vpack.c.b16 %v2145, %v2144
  %v2309 = vpack.c.b16 %v2147, %v2146
  %v2310 = vpack.c.b16 %v2149, %v2148
  %v2311 = vpack.c.b16 %v2151, %v2150
  %v2312 = vpack.c.b16 %v2153, %v2152
  %v2313 = vpack.c.b16 %v2155, %v2154
  %v2314 = vpack.c.b16 %v2157, %v2156
  %v2315 = vpack.c.b16 %v2159, %v2158
  %v2316 = vpack.c.b16 %v2161, %v2160
  %v2317 = vpack.c.b16 %v2163, %v2162
  %v2318 = vpack.c.b16 %v2165, %v2164
  %v2319 = vpack.c.b16 %v2167, %v2166
  %v2320 = vpack.c.b16 %v2169, %v2168
  %v2321 = vpack.c.b16 %v2171, %v2170
  %v2322 = vpack.c.b16 %v2173, %v2172
  %v2323 = vpack.c.b16 %v2175, %v2174
  %v2324 = vpack.c.b16 %v2177, %v2176
  %v2325 = vpack.c.b16 %v2179, %v2178
  %v2326 = vpack.c.b16 %v2181, %v2180
  %v2327 = vpack.c.b16 %v2183, %v2182
  %v2328 = vpack.c.b16 %v2185, %v2184
  %v2329 = vpack.c.b16 %v2187, %v2186
  %v2330 = vpack.c.b16 %v2189, %v2188
  %v2331 = vpack.c.b16 %v2191, %v2190
  %v2332 = vpack.c.b16 %v2193, %v2192
  %v2333 = vpack.c.b16 %v2195, %v2194
  %v2334 = vpack.c.b16 %v2197, %v2196
  %v2335 = vpack.c.b16 %v2199, %v2198
  %v2336 = vpack.c.b16 %v2201, %v2200
  %v2337 = vpack.c.b16 %v2203, %v2202
  %v2338 = vpack.c.b16 %v2205, %v2204
  %v2339 = vpack.c.b16 %v2207, %v2206
  %v2340 = vpack.c.b16 %v2209, %v2208
  %v2341 = vpack.c.b16 %v2211, %v2210
  %v2342 = vpack.c.b16 %v2213, %v2212
  %v2343 = vpack.c.b16 %v2215, %v2214
  %v2345 = vsel %vm453, %v2216, 0
  %v2348 = vsel %vm453, %v2217, 0
  %v2351 = vsel %vm453, %v2218, 0
  %v2354 = vsel %vm453, %v2219, 0
  %v2357 = vsel %vm453, %v2220, 0
  %v2360 = vsel %vm453, %v2221, 0
  %v2363 = vsel %vm453, %v2222, 0
  %v2366 = vsel %vm453, %v2223, 0
  %v2369 = vsel %vm453, %v2224, 0
  %v2372 = vsel %vm453, %v2225, 0
  %v2375 = vsel %vm453, %v2226, 0
  %v2378 = vsel %vm453, %v2227, 0
  %v2381 = vsel %vm453, %v2228, 0
  %v2384 = vsel %vm453, %v2229, 0
  %v2387 = vsel %vm453, %v2230, 0
  %v2390 = vsel %vm453, %v2231, 0
  %v2393 = vsel %vm453, %v2232, 0
  %v2396 = vsel %vm453, %v2233, 0
  %v2399 = vsel %vm453, %v2234, 0
  %v2402 = vsel %vm453, %v2235, 0
  %v2405 = vsel %vm453, %v2236, 0
  %v2408 = vsel %vm453, %v2237, 0
  %v2411 = vsel %vm453, %v2238, 0
  %v2414 = vsel %vm453, %v2239, 0
  %v2417 = vsel %vm453, %v2240, 0
  %v2420 = vsel %vm453, %v2241, 0
  %v2423 = vsel %vm453, %v2242, 0
  %v2426 = vsel %vm453, %v2243, 0
  %v2429 = vsel %vm453, %v2244, 0
  %v2432 = vsel %vm453, %v2245, 0
  %v2435 = vsel %vm453, %v2246, 0
  %v2438 = vsel %vm453, %v2247, 0
  %v2441 = vsel %vm453, %v2248, 0
  %v2444 = vsel %vm453, %v2249, 0
  %v2447 = vsel %vm453, %v2250, 0
  %v2450 = vsel %vm453, %v2251, 0
  %v2453 = vsel %vm453, %v2252, 0
  %v2456 = vsel %vm453, %v2253, 0
  %v2459 = vsel %vm453, %v2254, 0
  %v2462 = vsel %vm453, %v2255, 0
  %v2465 = vsel %vm453, %v2256, 0
  %v2468 = vsel %vm453, %v2257, 0
  %v2471 = vsel %vm453, %v2258, 0
  %v2474 = vsel %vm453, %v2259, 0
  %v2477 = vsel %vm453, %v2260, 0
  %v2480 = vsel %vm453, %v2261, 0
  %v2483 = vsel %vm453, %v2262, 0
  %v2486 = vsel %vm453, %v2263, 0
  %v2489 = vsel %vm453, %v2264, 0
  %v2492 = vsel %vm453, %v2265, 0
  %v2495 = vsel %vm453, %v2266, 0
  %v2498 = vsel %vm453, %v2267, 0
  %v2501 = vsel %vm453, %v2268, 0
  %v2504 = vsel %vm453, %v2269, 0
  %v2507 = vsel %vm453, %v2270, 0
  %v2510 = vsel %vm453, %v2271, 0
  %v2513 = vsel %vm453, %v2272, 0
  %v2516 = vsel %vm453, %v2273, 0
  %v2519 = vsel %vm453, %v2274, 0
  %v2522 = vsel %vm453, %v2275, 0
  %v2525 = vsel %vm453, %v2276, 0
  %v2528 = vsel %vm453, %v2277, 0
  %v2531 = vsel %vm453, %v2278, 0
  %v2534 = vsel %vm453, %v2279, 0
  %v2537 = vsel %vm453, %v2280, 0
  %v2540 = vsel %vm453, %v2281, 0
  %v2543 = vsel %vm453, %v2282, 0
  %v2546 = vsel %vm453, %v2283, 0
  %v2549 = vsel %vm453, %v2284, 0
  %v2552 = vsel %vm453, %v2285, 0
  %v2555 = vsel %vm453, %v2286, 0
  %v2558 = vsel %vm453, %v2287, 0
  %v2561 = vsel %vm453, %v2288, 0
  %v2564 = vsel %vm453, %v2289, 0
  %v2567 = vsel %vm453, %v2290, 0
  %v2570 = vsel %vm453, %v2291, 0
  %v2573 = vsel %vm453, %v2292, 0
  %v2576 = vsel %vm453, %v2293, 0
  %v2579 = vsel %vm453, %v2294, 0
  %v2582 = vsel %vm453, %v2295, 0
  %v2585 = vsel %vm453, %v2296, 0
  %v2588 = vsel %vm453, %v2297, 0
  %v2591 = vsel %vm453, %v2298, 0
  %v2594 = vsel %vm453, %v2299, 0
  %v2597 = vsel %vm453, %v2300, 0
  %v2600 = vsel %vm453, %v2301, 0
  %v2603 = vsel %vm453, %v2302, 0
  %v2606 = vsel %vm453, %v2303, 0
  %v2609 = vsel %vm453, %v2304, 0
  %v2612 = vsel %vm453, %v2305, 0
  %v2615 = vsel %vm453, %v2306, 0
  %v2618 = vsel %vm453, %v2307, 0
  %v2621 = vsel %vm453, %v2308, 0
  %v2624 = vsel %vm453, %v2309, 0
  %v2627 = vsel %vm453, %v2310, 0
  %v2630 = vsel %vm453, %v2311, 0
  %v2633 = vsel %vm453, %v2312, 0
  %v2636 = vsel %vm453, %v2313, 0
  %v2639 = vsel %vm453, %v2314, 0
  %v2642 = vsel %vm453, %v2315, 0
  %v2645 = vsel %vm453, %v2316, 0
  %v2648 = vsel %vm453, %v2317, 0
  %v2651 = vsel %vm453, %v2318, 0
  %v2654 = vsel %vm453, %v2319, 0
  %v2657 = vsel %vm453, %v2320, 0
  %v2660 = vsel %vm453, %v2321, 0
  %v2663 = vsel %vm453, %v2322, 0
  %v2666 = vsel %vm453, %v2323, 0
  %v2669 = vsel %vm453, %v2324, 0
  %v2672 = vsel %vm453, %v2325, 0
  %v2675 = vsel %vm453, %v2326, 0
  %v2678 = vsel %vm453, %v2327, 0
  %v2681 = vsel %vm453, %v2328, 0
  %v2684 = vsel %vm453, %v2329, 0
  %v2687 = vsel %vm453, %v2330, 0
  %v2690 = vsel %vm453, %v2331, 0
  %v2693 = vsel %vm453, %v2332, 0
  %v2696 = vsel %vm453, %v2333, 0
  %v2699 = vsel %vm453, %v2334, 0
  %v2702 = vsel %vm453, %v2335, 0
  %v2705 = vsel %vm453, %v2336, 0
  %v2708 = vsel %vm453, %v2337, 0
  %v2711 = vsel %vm453, %v2338, 0
  %v2714 = vsel %vm453, %v2339, 0
  %v2717 = vsel %vm453, %v2340, 0
  %v2720 = vsel %vm453, %v2341, 0
  %v2723 = vsel %vm453, %v2342, 0
  %v2726 = vsel %vm453, %v2343, 0
  %vm2728 = vcmask 1043456
  %v2730 = vsel %vm2728, %v1703, 0
  %2732 = vmatprep.subr.bf16.mxu0 0
  %2733 = vmatpush1.bf16.msra.mxu0 %v2730
  %2734 = vmatprep.subr.bf16.mxu0 0
  %2735 = vmatpush1.bf16.msra.mxu0 0
  %2736 = vmatprep.subr.bf16.mxu0 0
  %2737 = vmatpush1.bf16.msra.mxu0 0
  %2738 = vmatprep.subr.bf16.mxu0 0
  %2739 = vmatpush1.bf16.msra.mxu0 0
  %2740 = vmatprep.subr.bf16.mxu0 0
  %2741 = vmatpush1.bf16.msra.mxu0 0
  %2742 = vmatprep.subr.bf16.mxu0 0
  %2743 = vmatpush1.bf16.msra.mxu0 0
  %2744 = vmatprep.subr.bf16.mxu0 0
  %2745 = vmatpush1.bf16.msra.mxu0 0
  %2746 = vmatprep.subr.bf16.mxu0 0
  %2747 = vmatpush1.bf16.msra.mxu0 0
  %2748 = vmatprep.subr.bf16.mxu0 0
  %2749 = vmatpush1.bf16.msra.mxu0 0
  %2750 = vmatprep.subr.bf16.mxu0 0
  %2751 = vmatpush1.bf16.msra.mxu0 0
  %2752 = vmatprep.subr.bf16.mxu0 0
  %2753 = vmatpush1.bf16.msra.mxu0 0
  %2754 = vmatprep.subr.bf16.mxu0 0
  %2755 = vmatpush1.bf16.msra.mxu0 0
  %2756 = vmatprep.subr.bf16.mxu0 0
  %2757 = vmatpush1.bf16.msra.mxu0 0
  %2758 = vmatprep.subr.bf16.mxu0 0
  %2759 = vmatpush1.bf16.msra.mxu0 0
  %2760 = vmatprep.subr.bf16.mxu0 0
  %2761 = vmatpush1.bf16.msra.mxu0 0
  %2762 = vmatprep.subr.bf16.mxu0 0
  %2763 = vmatpush1.bf16.msra.mxu0 0
  %2764 = vmatprep.mubr.bf16.mxu0 0
  %2765 = vmatmul.mubr.bf16.gmra.mrb[0].mxu0 %v2345
  %v2766 = vpop.f32.mrb[0].mxu0
  %v2767 = vadd.f32 0.0, %v2766
  %v2768 = vpop.f32.mrb[0].mxu0
  %v2769 = vpop.f32.mrb[0].mxu0
  %v2770 = vadd.f32 0.0, %v2769
  %v2771 = vpop.f32.mrb[0].mxu0
  %2772 = vmatprep.mubr.bf16.mxu0 0
  %2773 = vmatmul.mubr.bf16.gmra.mrb[0].mxu0 %v2348
  %v2774 = vpop.f32.mrb[0].mxu0
  %v2775 = vadd.f32 0.0, %v2774
  %v2776 = vpop.f32.mrb[0].mxu0
  %v2777 = vpop.f32.mrb[0].mxu0
  %v2778 = vadd.f32 0.0, %v2777
  %v2779 = vpop.f32.mrb[0].mxu0
  %2780 = vmatprep.mubr.bf16.mxu0 0
  %2781 = vmatmul.mubr.bf16.gmra.mrb[0].mxu0 %v2351
  %v2782 = vpop.f32.mrb[0].mxu0
  %v2783 = vadd.f32 0.0, %v2782
  %v2784 = vpop.f32.mrb[0].mxu0
  %v2785 = vpop.f32.mrb[0].mxu0
  %v2786 = vadd.f32 0.0, %v2785
  %v2787 = vpop.f32.mrb[0].mxu0
  %2788 = vmatprep.mubr.bf16.mxu0 0
  %2789 = vmatmul.mubr.bf16.gmra.mrb[0].mxu0 %v2354
  %v2790 = vpop.f32.mrb[0].mxu0
  %v2791 = vadd.f32 0.0, %v2790
  %v2792 = vpop.f32.mrb[0].mxu0
  %v2793 = vpop.f32.mrb[0].mxu0
  %v2794 = vadd.f32 0.0, %v2793
  %v2795 = vpop.f32.mrb[0].mxu0
  %2796 = vmatprep.mubr.bf16.mxu0 0
  %2797 = vmatmul.mubr.bf16.gmra.mrb[0].mxu0 %v2357
  %v2798 = vpop.f32.mrb[0].mxu0
  %v2799 = vadd.f32 0.0, %v2798
  %v2800 = vpop.f32.mrb[0].mxu0
  %v2801 = vpop.f32.mrb[0].mxu0
  %v2802 = vadd.f32 0.0, %v2801
  %v2803 = vpop.f32.mrb[0].mxu0
  %2804 = vmatprep.mubr.bf16.mxu0 0
  %2805 = vmatmul.mubr.bf16.gmra.mrb[0].mxu0 %v2360
  %v2806 = vpop.f32.mrb[0].mxu0
  %v2807 = vadd.f32 0.0, %v2806
  %v2808 = vpop.f32.mrb[0].mxu0
  %v2809 = vpop.f32.mrb[0].mxu0
  %v2810 = vadd.f32 0.0, %v2809
  %v2811 = vpop.f32.mrb[0].mxu0
  %2812 = vmatprep.mubr.bf16.mxu0 0
  %2813 = vmatmul.mubr.bf16.gmra.mrb[0].mxu0 %v2363
  %v2814 = vpop.f32.mrb[0].mxu0
  %v2815 = vadd.f32 0.0, %v2814
  %v2816 = vpop.f32.mrb[0].mxu0
  %v2817 = vpop.f32.mrb[0].mxu0
  %v2818 = vadd.f32 0.0, %v2817
  %v2819 = vpop.f32.mrb[0].mxu0
  %2820 = vmatprep.mubr.bf16.mxu0 0
  %2821 = vmatmul.mubr.bf16.gmra.mrb[0].mxu0 %v2366
  %v2822 = vpop.f32.mrb[0].mxu0
  %v2823 = vadd.f32 0.0, %v2822
  %v2824 = vpop.f32.mrb[0].mxu0
  %v2825 = vpop.f32.mrb[0].mxu0
  %v2826 = vadd.f32 0.0, %v2825
  %v2827 = vpop.f32.mrb[0].mxu0
  %2828 = vmatprep.mubr.bf16.mxu0 0
  %2829 = vmatmul.mubr.bf16.gmra.mrb[0].mxu0 %v2369
  %v2830 = vpop.f32.mrb[0].mxu0
  %v2831 = vadd.f32 0.0, %v2830
  %v2832 = vpop.f32.mrb[0].mxu0
  %v2833 = vpop.f32.mrb[0].mxu0
  %v2834 = vadd.f32 0.0, %v2833
  %v2835 = vpop.f32.mrb[0].mxu0
  %2836 = vmatprep.mubr.bf16.mxu0 0
  %2837 = vmatmul.mubr.bf16.gmra.mrb[0].mxu0 %v2372
  %v2838 = vpop.f32.mrb[0].mxu0
  %v2839 = vadd.f32 0.0, %v2838
  %v2840 = vpop.f32.mrb[0].mxu0
  %v2841 = vpop.f32.mrb[0].mxu0
  %v2842 = vadd.f32 0.0, %v2841
  %v2843 = vpop.f32.mrb[0].mxu0
  %2844 = vmatprep.mubr.bf16.mxu0 0
  %2845 = vmatmul.mubr.bf16.gmra.mrb[0].mxu0 %v2375
  %v2846 = vpop.f32.mrb[0].mxu0
  %v2847 = vadd.f32 0.0, %v2846
  %v2848 = vpop.f32.mrb[0].mxu0
  %v2849 = vpop.f32.mrb[0].mxu0
  %v2850 = vadd.f32 0.0, %v2849
  %v2851 = vpop.f32.mrb[0].mxu0
  %2852 = vmatprep.mubr.bf16.mxu0 0
  %2853 = vmatmul.mubr.bf16.gmra.mrb[0].mxu0 %v2378
  %v2854 = vpop.f32.mrb[0].mxu0
  %v2855 = vadd.f32 0.0, %v2854
  %v2856 = vpop.f32.mrb[0].mxu0
  %v2857 = vpop.f32.mrb[0].mxu0
  %v2858 = vadd.f32 0.0, %v2857
  %v2859 = vpop.f32.mrb[0].mxu0
  %2860 = vmatprep.mubr.bf16.mxu0 0
  %2861 = vmatmul.mubr.bf16.gmra.mrb[0].mxu0 %v2381
  %v2862 = vpop.f32.mrb[0].mxu0
  %v2863 = vadd.f32 0.0, %v2862
  %v2864 = vpop.f32.mrb[0].mxu0
  %v2865 = vpop.f32.mrb[0].mxu0
  %v2866 = vadd.f32 0.0, %v2865
  %v2867 = vpop.f32.mrb[0].mxu0
  %2868 = vmatprep.mubr.bf16.mxu0 0
  %2869 = vmatmul.mubr.bf16.gmra.mrb[0].mxu0 %v2384
  %v2870 = vpop.f32.mrb[0].mxu0
  %v2871 = vadd.f32 0.0, %v2870
  %v2872 = vpop.f32.mrb[0].mxu0
  %v2873 = vpop.f32.mrb[0].mxu0
  %v2874 = vadd.f32 0.0, %v2873
  %v2875 = vpop.f32.mrb[0].mxu0
  %2876 = vmatprep.mubr.bf16.mxu0 0
  %2877 = vmatmul.mubr.bf16.gmra.mrb[0].mxu0 %v2387
  %v2878 = vpop.f32.mrb[0].mxu0
  %v2879 = vadd.f32 0.0, %v2878
  %v2880 = vpop.f32.mrb[0].mxu0
  %v2881 = vpop.f32.mrb[0].mxu0
  %v2882 = vadd.f32 0.0, %v2881
  %v2883 = vpop.f32.mrb[0].mxu0
  %2884 = vmatprep.mubr.bf16.mxu0 0
  %2885 = vmatmul.mubr.bf16.gmra.mrb[0].mxu0 %v2390
  %v2886 = vpop.f32.mrb[0].mxu0
  %v2887 = vadd.f32 0.0, %v2886
  %v2888 = vpop.f32.mrb[0].mxu0
  %v2889 = vpop.f32.mrb[0].mxu0
  %v2890 = vadd.f32 0.0, %v2889
  %v2891 = vpop.f32.mrb[0].mxu0
  %2892 = vmatprep.mubr.bf16.mxu0 0
  %2893 = vmatmul.mubr.bf16.gmra.mrb[0].mxu0 %v2393
  %v2894 = vpop.f32.mrb[0].mxu0
  %v2895 = vadd.f32 0.0, %v2894
  %v2896 = vpop.f32.mrb[0].mxu0
  %v2897 = vpop.f32.mrb[0].mxu0
  %v2898 = vadd.f32 0.0, %v2897
  %v2899 = vpop.f32.mrb[0].mxu0
  %2900 = vmatprep.mubr.bf16.mxu0 0
  %2901 = vmatmul.mubr.bf16.gmra.mrb[0].mxu0 %v2396
  %v2902 = vpop.f32.mrb[0].mxu0
  %v2903 = vadd.f32 0.0, %v2902
  %v2904 = vpop.f32.mrb[0].mxu0
  %v2905 = vpop.f32.mrb[0].mxu0
  %v2906 = vadd.f32 0.0, %v2905
  %v2907 = vpop.f32.mrb[0].mxu0
  %2908 = vmatprep.mubr.bf16.mxu0 0
  %2909 = vmatmul.mubr.bf16.gmra.mrb[0].mxu0 %v2399
  %v2910 = vpop.f32.mrb[0].mxu0
  %v2911 = vadd.f32 0.0, %v2910
  %v2912 = vpop.f32.mrb[0].mxu0
  %v2913 = vpop.f32.mrb[0].mxu0
  %v2914 = vadd.f32 0.0, %v2913
  %v2915 = vpop.f32.mrb[0].mxu0
  %2916 = vmatprep.mubr.bf16.mxu0 0
  %2917 = vmatmul.mubr.bf16.gmra.mrb[0].mxu0 %v2402
  %v2918 = vpop.f32.mrb[0].mxu0
  %v2919 = vadd.f32 0.0, %v2918
  %v2920 = vpop.f32.mrb[0].mxu0
  %v2921 = vpop.f32.mrb[0].mxu0
  %v2922 = vadd.f32 0.0, %v2921
  %v2923 = vpop.f32.mrb[0].mxu0
  %2924 = vmatprep.mubr.bf16.mxu0 0
  %2925 = vmatmul.mubr.bf16.gmra.mrb[0].mxu0 %v2405
  %v2926 = vpop.f32.mrb[0].mxu0
  %v2927 = vadd.f32 0.0, %v2926
  %v2928 = vpop.f32.mrb[0].mxu0
  %v2929 = vpop.f32.mrb[0].mxu0
  %v2930 = vadd.f32 0.0, %v2929
  %v2931 = vpop.f32.mrb[0].mxu0
  %2932 = vmatprep.mubr.bf16.mxu0 0
  %2933 = vmatmul.mubr.bf16.gmra.mrb[0].mxu0 %v2408
  %v2934 = vpop.f32.mrb[0].mxu0
  %v2935 = vadd.f32 0.0, %v2934
  %v2936 = vpop.f32.mrb[0].mxu0
  %v2937 = vpop.f32.mrb[0].mxu0
  %v2938 = vadd.f32 0.0, %v2937
  %v2939 = vpop.f32.mrb[0].mxu0
  %2940 = vmatprep.mubr.bf16.mxu0 0
  %2941 = vmatmul.mubr.bf16.gmra.mrb[0].mxu0 %v2411
  %v2942 = vpop.f32.mrb[0].mxu0
  %v2943 = vadd.f32 0.0, %v2942
  %v2944 = vpop.f32.mrb[0].mxu0
  %v2945 = vpop.f32.mrb[0].mxu0
  %v2946 = vadd.f32 0.0, %v2945
  %v2947 = vpop.f32.mrb[0].mxu0
  %2948 = vmatprep.mubr.bf16.mxu0 0
  %2949 = vmatmul.mubr.bf16.gmra.mrb[0].mxu0 %v2414
  %v2950 = vpop.f32.mrb[0].mxu0
  %v2951 = vadd.f32 0.0, %v2950
  %v2952 = vpop.f32.mrb[0].mxu0
  %v2953 = vpop.f32.mrb[0].mxu0
  %v2954 = vadd.f32 0.0, %v2953
  %v2955 = vpop.f32.mrb[0].mxu0
  %2956 = vmatprep.mubr.bf16.mxu0 0
  %2957 = vmatmul.mubr.bf16.gmra.mrb[0].mxu0 %v2417
  %v2958 = vpop.f32.mrb[0].mxu0
  %v2959 = vadd.f32 0.0, %v2958
  %v2960 = vpop.f32.mrb[0].mxu0
  %v2961 = vpop.f32.mrb[0].mxu0
  %v2962 = vadd.f32 0.0, %v2961
  %v2963 = vpop.f32.mrb[0].mxu0
  %2964 = vmatprep.mubr.bf16.mxu0 0
  %2965 = vmatmul.mubr.bf16.gmra.mrb[0].mxu0 %v2420
  %v2966 = vpop.f32.mrb[0].mxu0
  %v2967 = vadd.f32 0.0, %v2966
  %v2968 = vpop.f32.mrb[0].mxu0
  %v2969 = vpop.f32.mrb[0].mxu0
  %v2970 = vadd.f32 0.0, %v2969
  %v2971 = vpop.f32.mrb[0].mxu0
  %2972 = vmatprep.mubr.bf16.mxu0 0
  %2973 = vmatmul.mubr.bf16.gmra.mrb[0].mxu0 %v2423
  %v2974 = vpop.f32.mrb[0].mxu0
  %v2975 = vadd.f32 0.0, %v2974
  %v2976 = vpop.f32.mrb[0].mxu0
  %v2977 = vpop.f32.mrb[0].mxu0
  %v2978 = vadd.f32 0.0, %v2977
  %v2979 = vpop.f32.mrb[0].mxu0
  %2980 = vmatprep.mubr.bf16.mxu0 0
  %2981 = vmatmul.mubr.bf16.gmra.mrb[0].mxu0 %v2426
  %v2982 = vpop.f32.mrb[0].mxu0
  %v2983 = vadd.f32 0.0, %v2982
  %v2984 = vpop.f32.mrb[0].mxu0
  %v2985 = vpop.f32.mrb[0].mxu0
  %v2986 = vadd.f32 0.0, %v2985
  %v2987 = vpop.f32.mrb[0].mxu0
  %2988 = vmatprep.mubr.bf16.mxu0 0
  %2989 = vmatmul.mubr.bf16.gmra.mrb[0].mxu0 %v2429
  %v2990 = vpop.f32.mrb[0].mxu0
  %v2991 = vadd.f32 0.0, %v2990
  %v2992 = vpop.f32.mrb[0].mxu0
  %v2993 = vpop.f32.mrb[0].mxu0
  %v2994 = vadd.f32 0.0, %v2993
  %v2995 = vpop.f32.mrb[0].mxu0
  %2996 = vmatprep.mubr.bf16.mxu0 0
  %2997 = vmatmul.mubr.bf16.gmra.mrb[0].mxu0 %v2432
  %v2998 = vpop.f32.mrb[0].mxu0
  %v2999 = vadd.f32 0.0, %v2998
  %v3000 = vpop.f32.mrb[0].mxu0
  %v3001 = vpop.f32.mrb[0].mxu0
  %v3002 = vadd.f32 0.0, %v3001
  %v3003 = vpop.f32.mrb[0].mxu0
  %3004 = vmatprep.mubr.bf16.mxu0 0
  %3005 = vmatmul.mubr.bf16.gmra.mrb[0].mxu0 %v2435
  %v3006 = vpop.f32.mrb[0].mxu0
  %v3007 = vadd.f32 0.0, %v3006
  %v3008 = vpop.f32.mrb[0].mxu0
  %v3009 = vpop.f32.mrb[0].mxu0
  %v3010 = vadd.f32 0.0, %v3009
  %v3011 = vpop.f32.mrb[0].mxu0
  %3012 = vmatprep.mubr.bf16.mxu0 0
  %3013 = vmatmul.mubr.bf16.gmra.mrb[0].mxu0 %v2438
  %v3014 = vpop.f32.mrb[0].mxu0
  %v3015 = vadd.f32 0.0, %v3014
  %v3016 = vpop.f32.mrb[0].mxu0
  %v3017 = vpop.f32.mrb[0].mxu0
  %v3018 = vadd.f32 0.0, %v3017
  %v3019 = vpop.f32.mrb[0].mxu0
  %3020 = vmatprep.mubr.bf16.mxu0 0
  %3021 = vmatmul.mubr.bf16.gmra.mrb[0].mxu0 %v2441
  %v3022 = vpop.f32.mrb[0].mxu0
  %v3023 = vadd.f32 0.0, %v3022
  %v3024 = vpop.f32.mrb[0].mxu0
  %v3025 = vpop.f32.mrb[0].mxu0
  %v3026 = vadd.f32 0.0, %v3025
  %v3027 = vpop.f32.mrb[0].mxu0
  %3028 = vmatprep.mubr.bf16.mxu0 0
  %3029 = vmatmul.mubr.bf16.gmra.mrb[0].mxu0 %v2444
  %v3030 = vpop.f32.mrb[0].mxu0
  %v3031 = vadd.f32 0.0, %v3030
  %v3032 = vpop.f32.mrb[0].mxu0
  %v3033 = vpop.f32.mrb[0].mxu0
  %v3034 = vadd.f32 0.0, %v3033
  %v3035 = vpop.f32.mrb[0].mxu0
  %3036 = vmatprep.mubr.bf16.mxu0 0
  %3037 = vmatmul.mubr.bf16.gmra.mrb[0].mxu0 %v2447
  %v3038 = vpop.f32.mrb[0].mxu0
  %v3039 = vadd.f32 0.0, %v3038
  %v3040 = vpop.f32.mrb[0].mxu0
  %v3041 = vpop.f32.mrb[0].mxu0
  %v3042 = vadd.f32 0.0, %v3041
  %v3043 = vpop.f32.mrb[0].mxu0
  %3044 = vmatprep.mubr.bf16.mxu0 0
  %3045 = vmatmul.mubr.bf16.gmra.mrb[0].mxu0 %v2450
  %v3046 = vpop.f32.mrb[0].mxu0
  %v3047 = vadd.f32 0.0, %v3046
  %v3048 = vpop.f32.mrb[0].mxu0
  %v3049 = vpop.f32.mrb[0].mxu0
  %v3050 = vadd.f32 0.0, %v3049
  %v3051 = vpop.f32.mrb[0].mxu0
  %3052 = vmatprep.mubr.bf16.mxu0 0
  %3053 = vmatmul.mubr.bf16.gmra.mrb[0].mxu0 %v2453
  %v3054 = vpop.f32.mrb[0].mxu0
  %v3055 = vadd.f32 0.0, %v3054
  %v3056 = vpop.f32.mrb[0].mxu0
  %v3057 = vpop.f32.mrb[0].mxu0
  %v3058 = vadd.f32 0.0, %v3057
  %v3059 = vpop.f32.mrb[0].mxu0
  %3060 = vmatprep.mubr.bf16.mxu0 0
  %3061 = vmatmul.mubr.bf16.gmra.mrb[0].mxu0 %v2456
  %v3062 = vpop.f32.mrb[0].mxu0
  %v3063 = vadd.f32 0.0, %v3062
  %v3064 = vpop.f32.mrb[0].mxu0
  %v3065 = vpop.f32.mrb[0].mxu0
  %v3066 = vadd.f32 0.0, %v3065
  %v3067 = vpop.f32.mrb[0].mxu0
  %3068 = vmatprep.mubr.bf16.mxu0 0
  %3069 = vmatmul.mubr.bf16.gmra.mrb[0].mxu0 %v2459
  %v3070 = vpop.f32.mrb[0].mxu0
  %v3071 = vadd.f32 0.0, %v3070
  %v3072 = vpop.f32.mrb[0].mxu0
  %v3073 = vpop.f32.mrb[0].mxu0
  %v3074 = vadd.f32 0.0, %v3073
  %v3075 = vpop.f32.mrb[0].mxu0
  %3076 = vmatprep.mubr.bf16.mxu0 0
  %3077 = vmatmul.mubr.bf16.gmra.mrb[0].mxu0 %v2462
  %v3078 = vpop.f32.mrb[0].mxu0
  %v3079 = vadd.f32 0.0, %v3078
  %v3080 = vpop.f32.mrb[0].mxu0
  %v3081 = vpop.f32.mrb[0].mxu0
  %v3082 = vadd.f32 0.0, %v3081
  %v3083 = vpop.f32.mrb[0].mxu0
  %3084 = vmatprep.mubr.bf16.mxu0 0
  %3085 = vmatmul.mubr.bf16.gmra.mrb[0].mxu0 %v2465
  %v3086 = vpop.f32.mrb[0].mxu0
  %v3087 = vadd.f32 0.0, %v3086
  %v3088 = vpop.f32.mrb[0].mxu0
  %v3089 = vpop.f32.mrb[0].mxu0
  %v3090 = vadd.f32 0.0, %v3089
  %v3091 = vpop.f32.mrb[0].mxu0
  %3092 = vmatprep.mubr.bf16.mxu0 0
  %3093 = vmatmul.mubr.bf16.gmra.mrb[0].mxu0 %v2468
  %v3094 = vpop.f32.mrb[0].mxu0
  %v3095 = vadd.f32 0.0, %v3094
  %v3096 = vpop.f32.mrb[0].mxu0
  %v3097 = vpop.f32.mrb[0].mxu0
  %v3098 = vadd.f32 0.0, %v3097
  %v3099 = vpop.f32.mrb[0].mxu0
  %3100 = vmatprep.mubr.bf16.mxu0 0
  %3101 = vmatmul.mubr.bf16.gmra.mrb[0].mxu0 %v2471
  %v3102 = vpop.f32.mrb[0].mxu0
  %v3103 = vadd.f32 0.0, %v3102
  %v3104 = vpop.f32.mrb[0].mxu0
  %v3105 = vpop.f32.mrb[0].mxu0
  %v3106 = vadd.f32 0.0, %v3105
  %v3107 = vpop.f32.mrb[0].mxu0
  %3108 = vmatprep.mubr.bf16.mxu0 0
  %3109 = vmatmul.mubr.bf16.gmra.mrb[0].mxu0 %v2474
  %v3110 = vpop.f32.mrb[0].mxu0
  %v3111 = vadd.f32 0.0, %v3110
  %v3112 = vpop.f32.mrb[0].mxu0
  %v3113 = vpop.f32.mrb[0].mxu0
  %v3114 = vadd.f32 0.0, %v3113
  %v3115 = vpop.f32.mrb[0].mxu0
  %3116 = vmatprep.mubr.bf16.mxu0 0
  %3117 = vmatmul.mubr.bf16.gmra.mrb[0].mxu0 %v2477
  %v3118 = vpop.f32.mrb[0].mxu0
  %v3119 = vadd.f32 0.0, %v3118
  %v3120 = vpop.f32.mrb[0].mxu0
  %v3121 = vpop.f32.mrb[0].mxu0
  %v3122 = vadd.f32 0.0, %v3121
  %v3123 = vpop.f32.mrb[0].mxu0
  %3124 = vmatprep.mubr.bf16.mxu0 0
  %3125 = vmatmul.mubr.bf16.gmra.mrb[0].mxu0 %v2480
  %v3126 = vpop.f32.mrb[0].mxu0
  %v3127 = vadd.f32 0.0, %v3126
  %v3128 = vpop.f32.mrb[0].mxu0
  %v3129 = vpop.f32.mrb[0].mxu0
  %v3130 = vadd.f32 0.0, %v3129
  %v3131 = vpop.f32.mrb[0].mxu0
  %3132 = vmatprep.mubr.bf16.mxu0 0
  %3133 = vmatmul.mubr.bf16.gmra.mrb[0].mxu0 %v2483
  %v3134 = vpop.f32.mrb[0].mxu0
  %v3135 = vadd.f32 0.0, %v3134
  %v3136 = vpop.f32.mrb[0].mxu0
  %v3137 = vpop.f32.mrb[0].mxu0
  %v3138 = vadd.f32 0.0, %v3137
  %v3139 = vpop.f32.mrb[0].mxu0
  %3140 = vmatprep.mubr.bf16.mxu0 0
  %3141 = vmatmul.mubr.bf16.gmra.mrb[0].mxu0 %v2486
  %v3142 = vpop.f32.mrb[0].mxu0
  %v3143 = vadd.f32 0.0, %v3142
  %v3144 = vpop.f32.mrb[0].mxu0
  %v3145 = vpop.f32.mrb[0].mxu0
  %v3146 = vadd.f32 0.0, %v3145
  %v3147 = vpop.f32.mrb[0].mxu0
  %3148 = vmatprep.mubr.bf16.mxu0 0
  %3149 = vmatmul.mubr.bf16.gmra.mrb[0].mxu0 %v2489
  %v3150 = vpop.f32.mrb[0].mxu0
  %v3151 = vadd.f32 0.0, %v3150
  %v3152 = vpop.f32.mrb[0].mxu0
  %v3153 = vpop.f32.mrb[0].mxu0
  %v3154 = vadd.f32 0.0, %v3153
  %v3155 = vpop.f32.mrb[0].mxu0
  %3156 = vmatprep.mubr.bf16.mxu0 0
  %3157 = vmatmul.mubr.bf16.gmra.mrb[0].mxu0 %v2492
  %v3158 = vpop.f32.mrb[0].mxu0
  %v3159 = vadd.f32 0.0, %v3158
  %v3160 = vpop.f32.mrb[0].mxu0
  %v3161 = vpop.f32.mrb[0].mxu0
  %v3162 = vadd.f32 0.0, %v3161
  %v3163 = vpop.f32.mrb[0].mxu0
  %3164 = vmatprep.mubr.bf16.mxu0 0
  %3165 = vmatmul.mubr.bf16.gmra.mrb[0].mxu0 %v2495
  %v3166 = vpop.f32.mrb[0].mxu0
  %v3167 = vadd.f32 0.0, %v3166
  %v3168 = vpop.f32.mrb[0].mxu0
  %v3169 = vpop.f32.mrb[0].mxu0
  %v3170 = vadd.f32 0.0, %v3169
  %v3171 = vpop.f32.mrb[0].mxu0
  %3172 = vmatprep.mubr.bf16.mxu0 0
  %3173 = vmatmul.mubr.bf16.gmra.mrb[0].mxu0 %v2498
  %v3174 = vpop.f32.mrb[0].mxu0
  %v3175 = vadd.f32 0.0, %v3174
  %v3176 = vpop.f32.mrb[0].mxu0
  %v3177 = vpop.f32.mrb[0].mxu0
  %v3178 = vadd.f32 0.0, %v3177
  %v3179 = vpop.f32.mrb[0].mxu0
  %3180 = vmatprep.mubr.bf16.mxu0 0
  %3181 = vmatmul.mubr.bf16.gmra.mrb[0].mxu0 %v2501
  %v3182 = vpop.f32.mrb[0].mxu0
  %v3183 = vadd.f32 0.0, %v3182
  %v3184 = vpop.f32.mrb[0].mxu0
  %v3185 = vpop.f32.mrb[0].mxu0
  %v3186 = vadd.f32 0.0, %v3185
  %v3187 = vpop.f32.mrb[0].mxu0
  %3188 = vmatprep.mubr.bf16.mxu0 0
  %3189 = vmatmul.mubr.bf16.gmra.mrb[0].mxu0 %v2504
  %v3190 = vpop.f32.mrb[0].mxu0
  %v3191 = vadd.f32 0.0, %v3190
  %v3192 = vpop.f32.mrb[0].mxu0
  %v3193 = vpop.f32.mrb[0].mxu0
  %v3194 = vadd.f32 0.0, %v3193
  %v3195 = vpop.f32.mrb[0].mxu0
  %3196 = vmatprep.mubr.bf16.mxu0 0
  %3197 = vmatmul.mubr.bf16.gmra.mrb[0].mxu0 %v2507
  %v3198 = vpop.f32.mrb[0].mxu0
  %v3199 = vadd.f32 0.0, %v3198
  %v3200 = vpop.f32.mrb[0].mxu0
  %v3201 = vpop.f32.mrb[0].mxu0
  %v3202 = vadd.f32 0.0, %v3201
  %v3203 = vpop.f32.mrb[0].mxu0
  %3204 = vmatprep.mubr.bf16.mxu0 0
  %3205 = vmatmul.mubr.bf16.gmra.mrb[0].mxu0 %v2510
  %v3206 = vpop.f32.mrb[0].mxu0
  %v3207 = vadd.f32 0.0, %v3206
  %v3208 = vpop.f32.mrb[0].mxu0
  %v3209 = vpop.f32.mrb[0].mxu0
  %v3210 = vadd.f32 0.0, %v3209
  %v3211 = vpop.f32.mrb[0].mxu0
  %3212 = vmatprep.mubr.bf16.mxu0 0
  %3213 = vmatmul.mubr.bf16.gmra.mrb[0].mxu0 %v2513
  %v3214 = vpop.f32.mrb[0].mxu0
  %v3215 = vadd.f32 0.0, %v3214
  %v3216 = vpop.f32.mrb[0].mxu0
  %v3217 = vpop.f32.mrb[0].mxu0
  %v3218 = vadd.f32 0.0, %v3217
  %v3219 = vpop.f32.mrb[0].mxu0
  %3220 = vmatprep.mubr.bf16.mxu0 0
  %3221 = vmatmul.mubr.bf16.gmra.mrb[0].mxu0 %v2516
  %v3222 = vpop.f32.mrb[0].mxu0
  %v3223 = vadd.f32 0.0, %v3222
  %v3224 = vpop.f32.mrb[0].mxu0
  %v3225 = vpop.f32.mrb[0].mxu0
  %v3226 = vadd.f32 0.0, %v3225
  %v3227 = vpop.f32.mrb[0].mxu0
  %3228 = vmatprep.mubr.bf16.mxu0 0
  %3229 = vmatmul.mubr.bf16.gmra.mrb[0].mxu0 %v2519
  %v3230 = vpop.f32.mrb[0].mxu0
  %v3231 = vadd.f32 0.0, %v3230
  %v3232 = vpop.f32.mrb[0].mxu0
  %v3233 = vpop.f32.mrb[0].mxu0
  %v3234 = vadd.f32 0.0, %v3233
  %v3235 = vpop.f32.mrb[0].mxu0
  %3236 = vmatprep.mubr.bf16.mxu0 0
  %3237 = vmatmul.mubr.bf16.gmra.mrb[0].mxu0 %v2522
  %v3238 = vpop.f32.mrb[0].mxu0
  %v3239 = vadd.f32 0.0, %v3238
  %v3240 = vpop.f32.mrb[0].mxu0
  %v3241 = vpop.f32.mrb[0].mxu0
  %v3242 = vadd.f32 0.0, %v3241
  %v3243 = vpop.f32.mrb[0].mxu0
  %3244 = vmatprep.mubr.bf16.mxu0 0
  %3245 = vmatmul.mubr.bf16.gmra.mrb[0].mxu0 %v2525
  %v3246 = vpop.f32.mrb[0].mxu0
  %v3247 = vadd.f32 0.0, %v3246
  %v3248 = vpop.f32.mrb[0].mxu0
  %v3249 = vpop.f32.mrb[0].mxu0
  %v3250 = vadd.f32 0.0, %v3249
  %v3251 = vpop.f32.mrb[0].mxu0
  %3252 = vmatprep.mubr.bf16.mxu0 0
  %3253 = vmatmul.mubr.bf16.gmra.mrb[0].mxu0 %v2528
  %v3254 = vpop.f32.mrb[0].mxu0
  %v3255 = vadd.f32 0.0, %v3254
  %v3256 = vpop.f32.mrb[0].mxu0
  %v3257 = vpop.f32.mrb[0].mxu0
  %v3258 = vadd.f32 0.0, %v3257
  %v3259 = vpop.f32.mrb[0].mxu0
  %3260 = vmatprep.mubr.bf16.mxu0 0
  %3261 = vmatmul.mubr.bf16.gmra.mrb[0].mxu0 %v2531
  %v3262 = vpop.f32.mrb[0].mxu0
  %v3263 = vadd.f32 0.0, %v3262
  %v3264 = vpop.f32.mrb[0].mxu0
  %v3265 = vpop.f32.mrb[0].mxu0
  %v3266 = vadd.f32 0.0, %v3265
  %v3267 = vpop.f32.mrb[0].mxu0
  %3268 = vmatprep.mubr.bf16.mxu0 0
  %3269 = vmatmul.mubr.bf16.gmra.mrb[0].mxu0 %v2534
  %v3270 = vpop.f32.mrb[0].mxu0
  %v3271 = vadd.f32 0.0, %v3270
  %v3272 = vpop.f32.mrb[0].mxu0
  %v3273 = vpop.f32.mrb[0].mxu0
  %v3274 = vadd.f32 0.0, %v3273
  %v3275 = vpop.f32.mrb[0].mxu0
  %3276 = vmatprep.mubr.bf16.mxu0 0
  %3277 = vmatmul.mubr.bf16.gmra.mrb[0].mxu0 %v2537
  %v3278 = vpop.f32.mrb[0].mxu0
  %v3279 = vadd.f32 0.0, %v3278
  %v3280 = vpop.f32.mrb[0].mxu0
  %v3281 = vpop.f32.mrb[0].mxu0
  %v3282 = vadd.f32 0.0, %v3281
  %v3283 = vpop.f32.mrb[0].mxu0
  %3284 = vmatprep.mubr.bf16.mxu0 0
  %3285 = vmatmul.mubr.bf16.gmra.mrb[0].mxu0 %v2540
  %v3286 = vpop.f32.mrb[0].mxu0
  %v3287 = vadd.f32 0.0, %v3286
  %v3288 = vpop.f32.mrb[0].mxu0
  %v3289 = vpop.f32.mrb[0].mxu0
  %v3290 = vadd.f32 0.0, %v3289
  %v3291 = vpop.f32.mrb[0].mxu0
  %3292 = vmatprep.mubr.bf16.mxu0 0
  %3293 = vmatmul.mubr.bf16.gmra.mrb[0].mxu0 %v2543
  %v3294 = vpop.f32.mrb[0].mxu0
  %v3295 = vadd.f32 0.0, %v3294
  %v3296 = vpop.f32.mrb[0].mxu0
  %v3297 = vpop.f32.mrb[0].mxu0
  %v3298 = vadd.f32 0.0, %v3297
  %v3299 = vpop.f32.mrb[0].mxu0
  %3300 = vmatprep.mubr.bf16.mxu0 0
  %3301 = vmatmul.mubr.bf16.gmra.mrb[0].mxu0 %v2546
  %v3302 = vpop.f32.mrb[0].mxu0
  %v3303 = vadd.f32 0.0, %v3302
  %v3304 = vpop.f32.mrb[0].mxu0
  %v3305 = vpop.f32.mrb[0].mxu0
  %v3306 = vadd.f32 0.0, %v3305
  %v3307 = vpop.f32.mrb[0].mxu0
  %3308 = vmatprep.mubr.bf16.mxu0 0
  %3309 = vmatmul.mubr.bf16.gmra.mrb[0].mxu0 %v2549
  %v3310 = vpop.f32.mrb[0].mxu0
  %v3311 = vadd.f32 0.0, %v3310
  %v3312 = vpop.f32.mrb[0].mxu0
  %v3313 = vpop.f32.mrb[0].mxu0
  %v3314 = vadd.f32 0.0, %v3313
  %v3315 = vpop.f32.mrb[0].mxu0
  %3316 = vmatprep.mubr.bf16.mxu0 0
  %3317 = vmatmul.mubr.bf16.gmra.mrb[0].mxu0 %v2552
  %v3318 = vpop.f32.mrb[0].mxu0
  %v3319 = vadd.f32 0.0, %v3318
  %v3320 = vpop.f32.mrb[0].mxu0
  %v3321 = vpop.f32.mrb[0].mxu0
  %v3322 = vadd.f32 0.0, %v3321
  %v3323 = vpop.f32.mrb[0].mxu0
  %3324 = vmatprep.mubr.bf16.mxu0 0
  %3325 = vmatmul.mubr.bf16.gmra.mrb[0].mxu0 %v2555
  %v3326 = vpop.f32.mrb[0].mxu0
  %v3327 = vadd.f32 0.0, %v3326
  %v3328 = vpop.f32.mrb[0].mxu0
  %v3329 = vpop.f32.mrb[0].mxu0
  %v3330 = vadd.f32 0.0, %v3329
  %v3331 = vpop.f32.mrb[0].mxu0
  %3332 = vmatprep.mubr.bf16.mxu0 0
  %3333 = vmatmul.mubr.bf16.gmra.mrb[0].mxu0 %v2558
  %v3334 = vpop.f32.mrb[0].mxu0
  %v3335 = vadd.f32 0.0, %v3334
  %v3336 = vpop.f32.mrb[0].mxu0
  %v3337 = vpop.f32.mrb[0].mxu0
  %v3338 = vadd.f32 0.0, %v3337
  %v3339 = vpop.f32.mrb[0].mxu0
  %3340 = vmatprep.mubr.bf16.mxu0 0
  %3341 = vmatmul.mubr.bf16.gmra.mrb[0].mxu0 %v2561
  %v3342 = vpop.f32.mrb[0].mxu0
  %v3343 = vadd.f32 0.0, %v3342
  %v3344 = vpop.f32.mrb[0].mxu0
  %v3345 = vpop.f32.mrb[0].mxu0
  %v3346 = vadd.f32 0.0, %v3345
  %v3347 = vpop.f32.mrb[0].mxu0
  %3348 = vmatprep.mubr.bf16.mxu0 0
  %3349 = vmatmul.mubr.bf16.gmra.mrb[0].mxu0 %v2564
  %v3350 = vpop.f32.mrb[0].mxu0
  %v3351 = vadd.f32 0.0, %v3350
  %v3352 = vpop.f32.mrb[0].mxu0
  %v3353 = vpop.f32.mrb[0].mxu0
  %v3354 = vadd.f32 0.0, %v3353
  %v3355 = vpop.f32.mrb[0].mxu0
  %3356 = vmatprep.mubr.bf16.mxu0 0
  %3357 = vmatmul.mubr.bf16.gmra.mrb[0].mxu0 %v2567
  %v3358 = vpop.f32.mrb[0].mxu0
  %v3359 = vadd.f32 0.0, %v3358
  %v3360 = vpop.f32.mrb[0].mxu0
  %v3361 = vpop.f32.mrb[0].mxu0
  %v3362 = vadd.f32 0.0, %v3361
  %v3363 = vpop.f32.mrb[0].mxu0
  %3364 = vmatprep.mubr.bf16.mxu0 0
  %3365 = vmatmul.mubr.bf16.gmra.mrb[0].mxu0 %v2570
  %v3366 = vpop.f32.mrb[0].mxu0
  %v3367 = vadd.f32 0.0, %v3366
  %v3368 = vpop.f32.mrb[0].mxu0
  %v3369 = vpop.f32.mrb[0].mxu0
  %v3370 = vadd.f32 0.0, %v3369
  %v3371 = vpop.f32.mrb[0].mxu0
  %3372 = vmatprep.mubr.bf16.mxu0 0
  %3373 = vmatmul.mubr.bf16.gmra.mrb[0].mxu0 %v2573
  %v3374 = vpop.f32.mrb[0].mxu0
  %v3375 = vadd.f32 0.0, %v3374
  %v3376 = vpop.f32.mrb[0].mxu0
  %v3377 = vpop.f32.mrb[0].mxu0
  %v3378 = vadd.f32 0.0, %v3377
  %v3379 = vpop.f32.mrb[0].mxu0
  %3380 = vmatprep.mubr.bf16.mxu0 0
  %3381 = vmatmul.mubr.bf16.gmra.mrb[0].mxu0 %v2576
  %v3382 = vpop.f32.mrb[0].mxu0
  %v3383 = vadd.f32 0.0, %v3382
  %v3384 = vpop.f32.mrb[0].mxu0
  %v3385 = vpop.f32.mrb[0].mxu0
  %v3386 = vadd.f32 0.0, %v3385
  %v3387 = vpop.f32.mrb[0].mxu0
  %3388 = vmatprep.mubr.bf16.mxu0 0
  %3389 = vmatmul.mubr.bf16.gmra.mrb[0].mxu0 %v2579
  %v3390 = vpop.f32.mrb[0].mxu0
  %v3391 = vadd.f32 0.0, %v3390
  %v3392 = vpop.f32.mrb[0].mxu0
  %v3393 = vpop.f32.mrb[0].mxu0
  %v3394 = vadd.f32 0.0, %v3393
  %v3395 = vpop.f32.mrb[0].mxu0
  %3396 = vmatprep.mubr.bf16.mxu0 0
  %3397 = vmatmul.mubr.bf16.gmra.mrb[0].mxu0 %v2582
  %v3398 = vpop.f32.mrb[0].mxu0
  %v3399 = vadd.f32 0.0, %v3398
  %v3400 = vpop.f32.mrb[0].mxu0
  %v3401 = vpop.f32.mrb[0].mxu0
  %v3402 = vadd.f32 0.0, %v3401
  %v3403 = vpop.f32.mrb[0].mxu0
  %3404 = vmatprep.mubr.bf16.mxu0 0
  %3405 = vmatmul.mubr.bf16.gmra.mrb[0].mxu0 %v2585
  %v3406 = vpop.f32.mrb[0].mxu0
  %v3407 = vadd.f32 0.0, %v3406
  %v3408 = vpop.f32.mrb[0].mxu0
  %v3409 = vpop.f32.mrb[0].mxu0
  %v3410 = vadd.f32 0.0, %v3409
  %v3411 = vpop.f32.mrb[0].mxu0
  %3412 = vmatprep.mubr.bf16.mxu0 0
  %3413 = vmatmul.mubr.bf16.gmra.mrb[0].mxu0 %v2588
  %v3414 = vpop.f32.mrb[0].mxu0
  %v3415 = vadd.f32 0.0, %v3414
  %v3416 = vpop.f32.mrb[0].mxu0
  %v3417 = vpop.f32.mrb[0].mxu0
  %v3418 = vadd.f32 0.0, %v3417
  %v3419 = vpop.f32.mrb[0].mxu0
  %3420 = vmatprep.mubr.bf16.mxu0 0
  %3421 = vmatmul.mubr.bf16.gmra.mrb[0].mxu0 %v2591
  %v3422 = vpop.f32.mrb[0].mxu0
  %v3423 = vadd.f32 0.0, %v3422
  %v3424 = vpop.f32.mrb[0].mxu0
  %v3425 = vpop.f32.mrb[0].mxu0
  %v3426 = vadd.f32 0.0, %v3425
  %v3427 = vpop.f32.mrb[0].mxu0
  %3428 = vmatprep.mubr.bf16.mxu0 0
  %3429 = vmatmul.mubr.bf16.gmra.mrb[0].mxu0 %v2594
  %v3430 = vpop.f32.mrb[0].mxu0
  %v3431 = vadd.f32 0.0, %v3430
  %v3432 = vpop.f32.mrb[0].mxu0
  %v3433 = vpop.f32.mrb[0].mxu0
  %v3434 = vadd.f32 0.0, %v3433
  %v3435 = vpop.f32.mrb[0].mxu0
  %3436 = vmatprep.mubr.bf16.mxu0 0
  %3437 = vmatmul.mubr.bf16.gmra.mrb[0].mxu0 %v2597
  %v3438 = vpop.f32.mrb[0].mxu0
  %v3439 = vadd.f32 0.0, %v3438
  %v3440 = vpop.f32.mrb[0].mxu0
  %v3441 = vpop.f32.mrb[0].mxu0
  %v3442 = vadd.f32 0.0, %v3441
  %v3443 = vpop.f32.mrb[0].mxu0
  %3444 = vmatprep.mubr.bf16.mxu0 0
  %3445 = vmatmul.mubr.bf16.gmra.mrb[0].mxu0 %v2600
  %v3446 = vpop.f32.mrb[0].mxu0
  %v3447 = vadd.f32 0.0, %v3446
  %v3448 = vpop.f32.mrb[0].mxu0
  %v3449 = vpop.f32.mrb[0].mxu0
  %v3450 = vadd.f32 0.0, %v3449
  %v3451 = vpop.f32.mrb[0].mxu0
  %3452 = vmatprep.mubr.bf16.mxu0 0
  %3453 = vmatmul.mubr.bf16.gmra.mrb[0].mxu0 %v2603
  %v3454 = vpop.f32.mrb[0].mxu0
  %v3455 = vadd.f32 0.0, %v3454
  %v3456 = vpop.f32.mrb[0].mxu0
  %v3457 = vpop.f32.mrb[0].mxu0
  %v3458 = vadd.f32 0.0, %v3457
  %v3459 = vpop.f32.mrb[0].mxu0
  %3460 = vmatprep.mubr.bf16.mxu0 0
  %3461 = vmatmul.mubr.bf16.gmra.mrb[0].mxu0 %v2606
  %v3462 = vpop.f32.mrb[0].mxu0
  %v3463 = vadd.f32 0.0, %v3462
  %v3464 = vpop.f32.mrb[0].mxu0
  %v3465 = vpop.f32.mrb[0].mxu0
  %v3466 = vadd.f32 0.0, %v3465
  %v3467 = vpop.f32.mrb[0].mxu0
  %3468 = vmatprep.mubr.bf16.mxu0 0
  %3469 = vmatmul.mubr.bf16.gmra.mrb[0].mxu0 %v2609
  %v3470 = vpop.f32.mrb[0].mxu0
  %v3471 = vadd.f32 0.0, %v3470
  %v3472 = vpop.f32.mrb[0].mxu0
  %v3473 = vpop.f32.mrb[0].mxu0
  %v3474 = vadd.f32 0.0, %v3473
  %v3475 = vpop.f32.mrb[0].mxu0
  %3476 = vmatprep.mubr.bf16.mxu0 0
  %3477 = vmatmul.mubr.bf16.gmra.mrb[0].mxu0 %v2612
  %v3478 = vpop.f32.mrb[0].mxu0
  %v3479 = vadd.f32 0.0, %v3478
  %v3480 = vpop.f32.mrb[0].mxu0
  %v3481 = vpop.f32.mrb[0].mxu0
  %v3482 = vadd.f32 0.0, %v3481
  %v3483 = vpop.f32.mrb[0].mxu0
  %3484 = vmatprep.mubr.bf16.mxu0 0
  %3485 = vmatmul.mubr.bf16.gmra.mrb[0].mxu0 %v2615
  %v3486 = vpop.f32.mrb[0].mxu0
  %v3487 = vadd.f32 0.0, %v3486
  %v3488 = vpop.f32.mrb[0].mxu0
  %v3489 = vpop.f32.mrb[0].mxu0
  %v3490 = vadd.f32 0.0, %v3489
  %v3491 = vpop.f32.mrb[0].mxu0
  %3492 = vmatprep.mubr.bf16.mxu0 0
  %3493 = vmatmul.mubr.bf16.gmra.mrb[0].mxu0 %v2618
  %v3494 = vpop.f32.mrb[0].mxu0
  %v3495 = vadd.f32 0.0, %v3494
  %v3496 = vpop.f32.mrb[0].mxu0
  %v3497 = vpop.f32.mrb[0].mxu0
  %v3498 = vadd.f32 0.0, %v3497
  %v3499 = vpop.f32.mrb[0].mxu0
  %3500 = vmatprep.mubr.bf16.mxu0 0
  %3501 = vmatmul.mubr.bf16.gmra.mrb[0].mxu0 %v2621
  %v3502 = vpop.f32.mrb[0].mxu0
  %v3503 = vadd.f32 0.0, %v3502
  %v3504 = vpop.f32.mrb[0].mxu0
  %v3505 = vpop.f32.mrb[0].mxu0
  %v3506 = vadd.f32 0.0, %v3505
  %v3507 = vpop.f32.mrb[0].mxu0
  %3508 = vmatprep.mubr.bf16.mxu0 0
  %3509 = vmatmul.mubr.bf16.gmra.mrb[0].mxu0 %v2624
  %v3510 = vpop.f32.mrb[0].mxu0
  %v3511 = vadd.f32 0.0, %v3510
  %v3512 = vpop.f32.mrb[0].mxu0
  %v3513 = vpop.f32.mrb[0].mxu0
  %v3514 = vadd.f32 0.0, %v3513
  %v3515 = vpop.f32.mrb[0].mxu0
  %3516 = vmatprep.mubr.bf16.mxu0 0
  %3517 = vmatmul.mubr.bf16.gmra.mrb[0].mxu0 %v2627
  %v3518 = vpop.f32.mrb[0].mxu0
  %v3519 = vadd.f32 0.0, %v3518
  %v3520 = vpop.f32.mrb[0].mxu0
  %v3521 = vpop.f32.mrb[0].mxu0
  %v3522 = vadd.f32 0.0, %v3521
  %v3523 = vpop.f32.mrb[0].mxu0
  %3524 = vmatprep.mubr.bf16.mxu0 0
  %3525 = vmatmul.mubr.bf16.gmra.mrb[0].mxu0 %v2630
  %v3526 = vpop.f32.mrb[0].mxu0
  %v3527 = vadd.f32 0.0, %v3526
  %v3528 = vpop.f32.mrb[0].mxu0
  %v3529 = vpop.f32.mrb[0].mxu0
  %v3530 = vadd.f32 0.0, %v3529
  %v3531 = vpop.f32.mrb[0].mxu0
  %3532 = vmatprep.mubr.bf16.mxu0 0
  %3533 = vmatmul.mubr.bf16.gmra.mrb[0].mxu0 %v2633
  %v3534 = vpop.f32.mrb[0].mxu0
  %v3535 = vadd.f32 0.0, %v3534
  %v3536 = vpop.f32.mrb[0].mxu0
  %v3537 = vpop.f32.mrb[0].mxu0
  %v3538 = vadd.f32 0.0, %v3537
  %v3539 = vpop.f32.mrb[0].mxu0
  %3540 = vmatprep.mubr.bf16.mxu0 0
  %3541 = vmatmul.mubr.bf16.gmra.mrb[0].mxu0 %v2636
  %v3542 = vpop.f32.mrb[0].mxu0
  %v3543 = vadd.f32 0.0, %v3542
  %v3544 = vpop.f32.mrb[0].mxu0
  %v3545 = vpop.f32.mrb[0].mxu0
  %v3546 = vadd.f32 0.0, %v3545
  %v3547 = vpop.f32.mrb[0].mxu0
  %3548 = vmatprep.mubr.bf16.mxu0 0
  %3549 = vmatmul.mubr.bf16.gmra.mrb[0].mxu0 %v2639
  %v3550 = vpop.f32.mrb[0].mxu0
  %v3551 = vadd.f32 0.0, %v3550
  %v3552 = vpop.f32.mrb[0].mxu0
  %v3553 = vpop.f32.mrb[0].mxu0
  %v3554 = vadd.f32 0.0, %v3553
  %v3555 = vpop.f32.mrb[0].mxu0
  %3556 = vmatprep.mubr.bf16.mxu0 0
  %3557 = vmatmul.mubr.bf16.gmra.mrb[0].mxu0 %v2642
  %v3558 = vpop.f32.mrb[0].mxu0
  %v3559 = vadd.f32 0.0, %v3558
  %v3560 = vpop.f32.mrb[0].mxu0
  %v3561 = vpop.f32.mrb[0].mxu0
  %v3562 = vadd.f32 0.0, %v3561
  %v3563 = vpop.f32.mrb[0].mxu0
  %3564 = vmatprep.mubr.bf16.mxu0 0
  %3565 = vmatmul.mubr.bf16.gmra.mrb[0].mxu0 %v2645
  %v3566 = vpop.f32.mrb[0].mxu0
  %v3567 = vadd.f32 0.0, %v3566
  %v3568 = vpop.f32.mrb[0].mxu0
  %v3569 = vpop.f32.mrb[0].mxu0
  %v3570 = vadd.f32 0.0, %v3569
  %v3571 = vpop.f32.mrb[0].mxu0
  %3572 = vmatprep.mubr.bf16.mxu0 0
  %3573 = vmatmul.mubr.bf16.gmra.mrb[0].mxu0 %v2648
  %v3574 = vpop.f32.mrb[0].mxu0
  %v3575 = vadd.f32 0.0, %v3574
  %v3576 = vpop.f32.mrb[0].mxu0
  %v3577 = vpop.f32.mrb[0].mxu0
  %v3578 = vadd.f32 0.0, %v3577
  %v3579 = vpop.f32.mrb[0].mxu0
  %3580 = vmatprep.mubr.bf16.mxu0 0
  %3581 = vmatmul.mubr.bf16.gmra.mrb[0].mxu0 %v2651
  %v3582 = vpop.f32.mrb[0].mxu0
  %v3583 = vadd.f32 0.0, %v3582
  %v3584 = vpop.f32.mrb[0].mxu0
  %v3585 = vpop.f32.mrb[0].mxu0
  %v3586 = vadd.f32 0.0, %v3585
  %v3587 = vpop.f32.mrb[0].mxu0
  %3588 = vmatprep.mubr.bf16.mxu0 0
  %3589 = vmatmul.mubr.bf16.gmra.mrb[0].mxu0 %v2654
  %v3590 = vpop.f32.mrb[0].mxu0
  %v3591 = vadd.f32 0.0, %v3590
  %v3592 = vpop.f32.mrb[0].mxu0
  %v3593 = vpop.f32.mrb[0].mxu0
  %v3594 = vadd.f32 0.0, %v3593
  %v3595 = vpop.f32.mrb[0].mxu0
  %3596 = vmatprep.mubr.bf16.mxu0 0
  %3597 = vmatmul.mubr.bf16.gmra.mrb[0].mxu0 %v2657
  %v3598 = vpop.f32.mrb[0].mxu0
  %v3599 = vadd.f32 0.0, %v3598
  %v3600 = vpop.f32.mrb[0].mxu0
  %v3601 = vpop.f32.mrb[0].mxu0
  %v3602 = vadd.f32 0.0, %v3601
  %v3603 = vpop.f32.mrb[0].mxu0
  %3604 = vmatprep.mubr.bf16.mxu0 0
  %3605 = vmatmul.mubr.bf16.gmra.mrb[0].mxu0 %v2660
  %v3606 = vpop.f32.mrb[0].mxu0
  %v3607 = vadd.f32 0.0, %v3606
  %v3608 = vpop.f32.mrb[0].mxu0
  %v3609 = vpop.f32.mrb[0].mxu0
  %v3610 = vadd.f32 0.0, %v3609
  %v3611 = vpop.f32.mrb[0].mxu0
  %3612 = vmatprep.mubr.bf16.mxu0 0
  %3613 = vmatmul.mubr.bf16.gmra.mrb[0].mxu0 %v2663
  %v3614 = vpop.f32.mrb[0].mxu0
  %v3615 = vadd.f32 0.0, %v3614
  %v3616 = vpop.f32.mrb[0].mxu0
  %v3617 = vpop.f32.mrb[0].mxu0
  %v3618 = vadd.f32 0.0, %v3617
  %v3619 = vpop.f32.mrb[0].mxu0
  %3620 = vmatprep.mubr.bf16.mxu0 0
  %3621 = vmatmul.mubr.bf16.gmra.mrb[0].mxu0 %v2666
  %v3622 = vpop.f32.mrb[0].mxu0
  %v3623 = vadd.f32 0.0, %v3622
  %v3624 = vpop.f32.mrb[0].mxu0
  %v3625 = vpop.f32.mrb[0].mxu0
  %v3626 = vadd.f32 0.0, %v3625
  %v3627 = vpop.f32.mrb[0].mxu0
  %3628 = vmatprep.mubr.bf16.mxu0 0
  %3629 = vmatmul.mubr.bf16.gmra.mrb[0].mxu0 %v2669
  %v3630 = vpop.f32.mrb[0].mxu0
  %v3631 = vadd.f32 0.0, %v3630
  %v3632 = vpop.f32.mrb[0].mxu0
  %v3633 = vpop.f32.mrb[0].mxu0
  %v3634 = vadd.f32 0.0, %v3633
  %v3635 = vpop.f32.mrb[0].mxu0
  %3636 = vmatprep.mubr.bf16.mxu0 0
  %3637 = vmatmul.mubr.bf16.gmra.mrb[0].mxu0 %v2672
  %v3638 = vpop.f32.mrb[0].mxu0
  %v3639 = vadd.f32 0.0, %v3638
  %v3640 = vpop.f32.mrb[0].mxu0
  %v3641 = vpop.f32.mrb[0].mxu0
  %v3642 = vadd.f32 0.0, %v3641
  %v3643 = vpop.f32.mrb[0].mxu0
  %3644 = vmatprep.mubr.bf16.mxu0 0
  %3645 = vmatmul.mubr.bf16.gmra.mrb[0].mxu0 %v2675
  %v3646 = vpop.f32.mrb[0].mxu0
  %v3647 = vadd.f32 0.0, %v3646
  %v3648 = vpop.f32.mrb[0].mxu0
  %v3649 = vpop.f32.mrb[0].mxu0
  %v3650 = vadd.f32 0.0, %v3649
  %v3651 = vpop.f32.mrb[0].mxu0
  %3652 = vmatprep.mubr.bf16.mxu0 0
  %3653 = vmatmul.mubr.bf16.gmra.mrb[0].mxu0 %v2678
  %v3654 = vpop.f32.mrb[0].mxu0
  %v3655 = vadd.f32 0.0, %v3654
  %v3656 = vpop.f32.mrb[0].mxu0
  %v3657 = vpop.f32.mrb[0].mxu0
  %v3658 = vadd.f32 0.0, %v3657
  %v3659 = vpop.f32.mrb[0].mxu0
  %3660 = vmatprep.mubr.bf16.mxu0 0
  %3661 = vmatmul.mubr.bf16.gmra.mrb[0].mxu0 %v2681
  %v3662 = vpop.f32.mrb[0].mxu0
  %v3663 = vadd.f32 0.0, %v3662
  %v3664 = vpop.f32.mrb[0].mxu0
  %v3665 = vpop.f32.mrb[0].mxu0
  %v3666 = vadd.f32 0.0, %v3665
  %v3667 = vpop.f32.mrb[0].mxu0
  %3668 = vmatprep.mubr.bf16.mxu0 0
  %3669 = vmatmul.mubr.bf16.gmra.mrb[0].mxu0 %v2684
  %v3670 = vpop.f32.mrb[0].mxu0
  %v3671 = vadd.f32 0.0, %v3670
  %v3672 = vpop.f32.mrb[0].mxu0
  %v3673 = vpop.f32.mrb[0].mxu0
  %v3674 = vadd.f32 0.0, %v3673
  %v3675 = vpop.f32.mrb[0].mxu0
  %3676 = vmatprep.mubr.bf16.mxu0 0
  %3677 = vmatmul.mubr.bf16.gmra.mrb[0].mxu0 %v2687
  %v3678 = vpop.f32.mrb[0].mxu0
  %v3679 = vadd.f32 0.0, %v3678
  %v3680 = vpop.f32.mrb[0].mxu0
  %v3681 = vpop.f32.mrb[0].mxu0
  %v3682 = vadd.f32 0.0, %v3681
  %v3683 = vpop.f32.mrb[0].mxu0
  %3684 = vmatprep.mubr.bf16.mxu0 0
  %3685 = vmatmul.mubr.bf16.gmra.mrb[0].mxu0 %v2690
  %v3686 = vpop.f32.mrb[0].mxu0
  %v3687 = vadd.f32 0.0, %v3686
  %v3688 = vpop.f32.mrb[0].mxu0
  %v3689 = vpop.f32.mrb[0].mxu0
  %v3690 = vadd.f32 0.0, %v3689
  %v3691 = vpop.f32.mrb[0].mxu0
  %3692 = vmatprep.mubr.bf16.mxu0 0
  %3693 = vmatmul.mubr.bf16.gmra.mrb[0].mxu0 %v2693
  %v3694 = vpop.f32.mrb[0].mxu0
  %v3695 = vadd.f32 0.0, %v3694
  %v3696 = vpop.f32.mrb[0].mxu0
  %v3697 = vpop.f32.mrb[0].mxu0
  %v3698 = vadd.f32 0.0, %v3697
  %v3699 = vpop.f32.mrb[0].mxu0
  %3700 = vmatprep.mubr.bf16.mxu0 0
  %3701 = vmatmul.mubr.bf16.gmra.mrb[0].mxu0 %v2696
  %v3702 = vpop.f32.mrb[0].mxu0
  %v3703 = vadd.f32 0.0, %v3702
  %v3704 = vpop.f32.mrb[0].mxu0
  %v3705 = vpop.f32.mrb[0].mxu0
  %v3706 = vadd.f32 0.0, %v3705
  %v3707 = vpop.f32.mrb[0].mxu0
  %3708 = vmatprep.mubr.bf16.mxu0 0
  %3709 = vmatmul.mubr.bf16.gmra.mrb[0].mxu0 %v2699
  %v3710 = vpop.f32.mrb[0].mxu0
  %v3711 = vadd.f32 0.0, %v3710
  %v3712 = vpop.f32.mrb[0].mxu0
  %v3713 = vpop.f32.mrb[0].mxu0
  %v3714 = vadd.f32 0.0, %v3713
  %v3715 = vpop.f32.mrb[0].mxu0
  %3716 = vmatprep.mubr.bf16.mxu0 0
  %3717 = vmatmul.mubr.bf16.gmra.mrb[0].mxu0 %v2702
  %v3718 = vpop.f32.mrb[0].mxu0
  %v3719 = vadd.f32 0.0, %v3718
  %v3720 = vpop.f32.mrb[0].mxu0
  %v3721 = vpop.f32.mrb[0].mxu0
  %v3722 = vadd.f32 0.0, %v3721
  %v3723 = vpop.f32.mrb[0].mxu0
  %3724 = vmatprep.mubr.bf16.mxu0 0
  %3725 = vmatmul.mubr.bf16.gmra.mrb[0].mxu0 %v2705
  %v3726 = vpop.f32.mrb[0].mxu0
  %v3727 = vadd.f32 0.0, %v3726
  %v3728 = vpop.f32.mrb[0].mxu0
  %v3729 = vpop.f32.mrb[0].mxu0
  %v3730 = vadd.f32 0.0, %v3729
  %v3731 = vpop.f32.mrb[0].mxu0
  %3732 = vmatprep.mubr.bf16.mxu0 0
  %3733 = vmatmul.mubr.bf16.gmra.mrb[0].mxu0 %v2708
  %v3734 = vpop.f32.mrb[0].mxu0
  %v3735 = vadd.f32 0.0, %v3734
  %v3736 = vpop.f32.mrb[0].mxu0
  %v3737 = vpop.f32.mrb[0].mxu0
  %v3738 = vadd.f32 0.0, %v3737
  %v3739 = vpop.f32.mrb[0].mxu0
  %3740 = vmatprep.mubr.bf16.mxu0 0
  %3741 = vmatmul.mubr.bf16.gmra.mrb[0].mxu0 %v2711
  %v3742 = vpop.f32.mrb[0].mxu0
  %v3743 = vadd.f32 0.0, %v3742
  %v3744 = vpop.f32.mrb[0].mxu0
  %v3745 = vpop.f32.mrb[0].mxu0
  %v3746 = vadd.f32 0.0, %v3745
  %v3747 = vpop.f32.mrb[0].mxu0
  %3748 = vmatprep.mubr.bf16.mxu0 0
  %3749 = vmatmul.mubr.bf16.gmra.mrb[0].mxu0 %v2714
  %v3750 = vpop.f32.mrb[0].mxu0
  %v3751 = vadd.f32 0.0, %v3750
  %v3752 = vpop.f32.mrb[0].mxu0
  %v3753 = vpop.f32.mrb[0].mxu0
  %v3754 = vadd.f32 0.0, %v3753
  %v3755 = vpop.f32.mrb[0].mxu0
  %3756 = vmatprep.mubr.bf16.mxu0 0
  %3757 = vmatmul.mubr.bf16.gmra.mrb[0].mxu0 %v2717
  %v3758 = vpop.f32.mrb[0].mxu0
  %v3759 = vadd.f32 0.0, %v3758
  %v3760 = vpop.f32.mrb[0].mxu0
  %v3761 = vpop.f32.mrb[0].mxu0
  %v3762 = vadd.f32 0.0, %v3761
  %v3763 = vpop.f32.mrb[0].mxu0
  %3764 = vmatprep.mubr.bf16.mxu0 0
  %3765 = vmatmul.mubr.bf16.gmra.mrb[0].mxu0 %v2720
  %v3766 = vpop.f32.mrb[0].mxu0
  %v3767 = vadd.f32 0.0, %v3766
  %v3768 = vpop.f32.mrb[0].mxu0
  %v3769 = vpop.f32.mrb[0].mxu0
  %v3770 = vadd.f32 0.0, %v3769
  %v3771 = vpop.f32.mrb[0].mxu0
  %3772 = vmatprep.mubr.bf16.mxu0 0
  %3773 = vmatmul.mubr.bf16.gmra.mrb[0].mxu0 %v2723
  %v3774 = vpop.f32.mrb[0].mxu0
  %v3775 = vadd.f32 0.0, %v3774
  %v3776 = vpop.f32.mrb[0].mxu0
  %v3777 = vpop.f32.mrb[0].mxu0
  %v3778 = vadd.f32 0.0, %v3777
  %v3779 = vpop.f32.mrb[0].mxu0
  %3780 = vmatprep.mubr.bf16.mxu0 0
  %3781 = vmatmul.mubr.bf16.gmra.mrb[0].mxu0 %v2726
  %v3782 = vpop.f32.mrb[0].mxu0
  %v3783 = vadd.f32 0.0, %v3782
  %v3784 = vpop.f32.mrb[0].mxu0
  %v3785 = vpop.f32.mrb[0].mxu0
  %v3786 = vadd.f32 0.0, %v3785
  %v3787 = vpop.f32.mrb[0].mxu0
  %3788 = vdwg.mxu0
  %3790 = vset.pattern.permute.xlu0 0
  %3791 = vperm.xlu0 %3790, %v1115
  %v3792 = vpop.permute.xlu0 %3791
  %3795 = vset.pattern.permute.xlu0 0
  %3796 = vperm.xlu0 %3795, %v1116
  %v3797 = vpop.permute.xlu0 %3796
  %3800 = vset.pattern.permute.xlu0 0
  %3801 = vperm.xlu0 %3800, %v1117
  %v3802 = vpop.permute.xlu0 %3801
  %3805 = vset.pattern.permute.xlu0 0
  %3806 = vperm.xlu0 %3805, %v1118
  %v3807 = vpop.permute.xlu0 %3806
  %3810 = vset.pattern.permute.xlu0 0
  %3811 = vperm.xlu0 %3810, %v1119
  %v3812 = vpop.permute.xlu0 %3811
  %3815 = vset.pattern.permute.xlu0 0
  %3816 = vperm.xlu0 %3815, %v1120
  %v3817 = vpop.permute.xlu0 %3816
  %3820 = vset.pattern.permute.xlu0 0
  %3821 = vperm.xlu0 %3820, %v1121
  %v3822 = vpop.permute.xlu0 %3821
  %3825 = vset.pattern.permute.xlu0 0
  %3826 = vperm.xlu0 %3825, %v1122
  %v3827 = vpop.permute.xlu0 %3826
  %3830 = vset.pattern.permute.xlu0 0
  %3831 = vperm.xlu0 %3830, %v1123
  %v3832 = vpop.permute.xlu0 %3831
  %3835 = vset.pattern.permute.xlu0 0
  %3836 = vperm.xlu0 %3835, %v1124
  %v3837 = vpop.permute.xlu0 %3836
  %3840 = vset.pattern.permute.xlu0 0
  %3841 = vperm.xlu0 %3840, %v1125
  %v3842 = vpop.permute.xlu0 %3841
  %3845 = vset.pattern.permute.xlu0 0
  %3846 = vperm.xlu0 %3845, %v1126
  %v3847 = vpop.permute.xlu0 %3846
  %3850 = vset.pattern.permute.xlu0 0
  %3851 = vperm.xlu0 %3850, %v1127
  %v3852 = vpop.permute.xlu0 %3851
  %3855 = vset.pattern.permute.xlu0 0
  %3856 = vperm.xlu0 %3855, %v1128
  %v3857 = vpop.permute.xlu0 %3856
  %3860 = vset.pattern.permute.xlu0 0
  %3861 = vperm.xlu0 %3860, %v1129
  %v3862 = vpop.permute.xlu0 %3861
  %3865 = vset.pattern.permute.xlu0 0
  %3866 = vperm.xlu0 %3865, %v1130
  %v3867 = vpop.permute.xlu0 %3866
  %3870 = vset.pattern.permute.xlu0 0
  %3871 = vperm.xlu0 %3870, %v1131
  %v3872 = vpop.permute.xlu0 %3871
  %3875 = vset.pattern.permute.xlu0 0
  %3876 = vperm.xlu0 %3875, %v1132
  %v3877 = vpop.permute.xlu0 %3876
  %3880 = vset.pattern.permute.xlu0 0
  %3881 = vperm.xlu0 %3880, %v1133
  %v3882 = vpop.permute.xlu0 %3881
  %3885 = vset.pattern.permute.xlu0 0
  %3886 = vperm.xlu0 %3885, %v1134
  %v3887 = vpop.permute.xlu0 %3886
  %3890 = vset.pattern.permute.xlu0 0
  %3891 = vperm.xlu0 %3890, %v1135
  %v3892 = vpop.permute.xlu0 %3891
  %3895 = vset.pattern.permute.xlu0 0
  %3896 = vperm.xlu0 %3895, %v1136
  %v3897 = vpop.permute.xlu0 %3896
  %3900 = vset.pattern.permute.xlu0 0
  %3901 = vperm.xlu0 %3900, %v1137
  %v3902 = vpop.permute.xlu0 %3901
  %3905 = vset.pattern.permute.xlu0 0
  %3906 = vperm.xlu0 %3905, %v1138
  %v3907 = vpop.permute.xlu0 %3906
  %3910 = vset.pattern.permute.xlu0 0
  %3911 = vperm.xlu0 %3910, %v1139
  %v3912 = vpop.permute.xlu0 %3911
  %3915 = vset.pattern.permute.xlu0 0
  %3916 = vperm.xlu0 %3915, %v1140
  %v3917 = vpop.permute.xlu0 %3916
  %3920 = vset.pattern.permute.xlu0 0
  %3921 = vperm.xlu0 %3920, %v1141
  %v3922 = vpop.permute.xlu0 %3921
  %3925 = vset.pattern.permute.xlu0 0
  %3926 = vperm.xlu0 %3925, %v1142
  %v3927 = vpop.permute.xlu0 %3926
  %3930 = vset.pattern.permute.xlu0 0
  %3931 = vperm.xlu0 %3930, %v1143
  %v3932 = vpop.permute.xlu0 %3931
  %3935 = vset.pattern.permute.xlu0 0
  %3936 = vperm.xlu0 %3935, %v1144
  %v3937 = vpop.permute.xlu0 %3936
  %3940 = vset.pattern.permute.xlu0 0
  %3941 = vperm.xlu0 %3940, %v1145
  %v3942 = vpop.permute.xlu0 %3941
  %3945 = vset.pattern.permute.xlu0 0
  %3946 = vperm.xlu0 %3945, %v1146
  %v3947 = vpop.permute.xlu0 %3946
  %3950 = vset.pattern.permute.xlu0 0
  %3951 = vperm.xlu0 %3950, %v1147
  %v3952 = vpop.permute.xlu0 %3951
  %3955 = vset.pattern.permute.xlu0 0
  %3956 = vperm.xlu0 %3955, %v1148
  %v3957 = vpop.permute.xlu0 %3956
  %3960 = vset.pattern.permute.xlu0 0
  %3961 = vperm.xlu0 %3960, %v1149
  %v3962 = vpop.permute.xlu0 %3961
  %3965 = vset.pattern.permute.xlu0 0
  %3966 = vperm.xlu0 %3965, %v1150
  %v3967 = vpop.permute.xlu0 %3966
  %3970 = vset.pattern.permute.xlu0 0
  %3971 = vperm.xlu0 %3970, %v1151
  %v3972 = vpop.permute.xlu0 %3971
  %3975 = vset.pattern.permute.xlu0 0
  %3976 = vperm.xlu0 %3975, %v1152
  %v3977 = vpop.permute.xlu0 %3976
  %3980 = vset.pattern.permute.xlu0 0
  %3981 = vperm.xlu0 %3980, %v1153
  %v3982 = vpop.permute.xlu0 %3981
  %3985 = vset.pattern.permute.xlu0 0
  %3986 = vperm.xlu0 %3985, %v1154
  %v3987 = vpop.permute.xlu0 %3986
  %3990 = vset.pattern.permute.xlu0 0
  %3991 = vperm.xlu0 %3990, %v1155
  %v3992 = vpop.permute.xlu0 %3991
  %3995 = vset.pattern.permute.xlu0 0
  %3996 = vperm.xlu0 %3995, %v1156
  %v3997 = vpop.permute.xlu0 %3996
  %4000 = vset.pattern.permute.xlu0 0
  %4001 = vperm.xlu0 %4000, %v1157
  %v4002 = vpop.permute.xlu0 %4001
  %4005 = vset.pattern.permute.xlu0 0
  %4006 = vperm.xlu0 %4005, %v1158
  %v4007 = vpop.permute.xlu0 %4006
  %4010 = vset.pattern.permute.xlu0 0
  %4011 = vperm.xlu0 %4010, %v1159
  %v4012 = vpop.permute.xlu0 %4011
  %4015 = vset.pattern.permute.xlu0 0
  %4016 = vperm.xlu0 %4015, %v1160
  %v4017 = vpop.permute.xlu0 %4016
  %4020 = vset.pattern.permute.xlu0 0
  %4021 = vperm.xlu0 %4020, %v1161
  %v4022 = vpop.permute.xlu0 %4021
  %4025 = vset.pattern.permute.xlu0 0
  %4026 = vperm.xlu0 %4025, %v1162
  %v4027 = vpop.permute.xlu0 %4026
  %4030 = vset.pattern.permute.xlu0 0
  %4031 = vperm.xlu0 %4030, %v1163
  %v4032 = vpop.permute.xlu0 %4031
  %4035 = vset.pattern.permute.xlu0 0
  %4036 = vperm.xlu0 %4035, %v1164
  %v4037 = vpop.permute.xlu0 %4036
  %4040 = vset.pattern.permute.xlu0 0
  %4041 = vperm.xlu0 %4040, %v1165
  %v4042 = vpop.permute.xlu0 %4041
  %4045 = vset.pattern.permute.xlu0 0
  %4046 = vperm.xlu0 %4045, %v1166
  %v4047 = vpop.permute.xlu0 %4046
  %4050 = vset.pattern.permute.xlu0 0
  %4051 = vperm.xlu0 %4050, %v1167
  %v4052 = vpop.permute.xlu0 %4051
  %4055 = vset.pattern.permute.xlu0 0
  %4056 = vperm.xlu0 %4055, %v1168
  %v4057 = vpop.permute.xlu0 %4056
  %4060 = vset.pattern.permute.xlu0 0
  %4061 = vperm.xlu0 %4060, %v1169
  %v4062 = vpop.permute.xlu0 %4061
  %4065 = vset.pattern.permute.xlu0 0
  %4066 = vperm.xlu0 %4065, %v1170
  %v4067 = vpop.permute.xlu0 %4066
  %4070 = vset.pattern.permute.xlu0 0
  %4071 = vperm.xlu0 %4070, %v1171
  %v4072 = vpop.permute.xlu0 %4071
  %4075 = vset.pattern.permute.xlu0 0
  %4076 = vperm.xlu0 %4075, %v1172
  %v4077 = vpop.permute.xlu0 %4076
  %4080 = vset.pattern.permute.xlu0 0
  %4081 = vperm.xlu0 %4080, %v1173
  %v4082 = vpop.permute.xlu0 %4081
  %4085 = vset.pattern.permute.xlu0 0
  %4086 = vperm.xlu0 %4085, %v1174
  %v4087 = vpop.permute.xlu0 %4086
  %4090 = vset.pattern.permute.xlu0 0
  %4091 = vperm.xlu0 %4090, %v1175
  %v4092 = vpop.permute.xlu0 %4091
  %4095 = vset.pattern.permute.xlu0 0
  %4096 = vperm.xlu0 %4095, %v1176
  %v4097 = vpop.permute.xlu0 %4096
  %4100 = vset.pattern.permute.xlu0 0
  %4101 = vperm.xlu0 %4100, %v1177
  %v4102 = vpop.permute.xlu0 %4101
  %4105 = vset.pattern.permute.xlu0 0
  %4106 = vperm.xlu0 %4105, %v1178
  %v4107 = vpop.permute.xlu0 %4106
  %4110 = vset.pattern.permute.xlu0 0
  %4111 = vperm.xlu0 %4110, %v1179
  %v4112 = vpop.permute.xlu0 %4111
  %4115 = vset.pattern.permute.xlu0 0
  %4116 = vperm.xlu0 %4115, %v1180
  %v4117 = vpop.permute.xlu0 %4116
  %4120 = vset.pattern.permute.xlu0 0
  %4121 = vperm.xlu0 %4120, %v1181
  %v4122 = vpop.permute.xlu0 %4121
  %4125 = vset.pattern.permute.xlu0 0
  %4126 = vperm.xlu0 %4125, %v1182
  %v4127 = vpop.permute.xlu0 %4126
  %4130 = vset.pattern.permute.xlu0 0
  %4131 = vperm.xlu0 %4130, %v1183
  %v4132 = vpop.permute.xlu0 %4131
  %4135 = vset.pattern.permute.xlu0 0
  %4136 = vperm.xlu0 %4135, %v1184
  %v4137 = vpop.permute.xlu0 %4136
  %4140 = vset.pattern.permute.xlu0 0
  %4141 = vperm.xlu0 %4140, %v1185
  %v4142 = vpop.permute.xlu0 %4141
  %4145 = vset.pattern.permute.xlu0 0
  %4146 = vperm.xlu0 %4145, %v1186
  %v4147 = vpop.permute.xlu0 %4146
  %4150 = vset.pattern.permute.xlu0 0
  %4151 = vperm.xlu0 %4150, %v1187
  %v4152 = vpop.permute.xlu0 %4151
  %4155 = vset.pattern.permute.xlu0 0
  %4156 = vperm.xlu0 %4155, %v1188
  %v4157 = vpop.permute.xlu0 %4156
  %4160 = vset.pattern.permute.xlu0 0
  %4161 = vperm.xlu0 %4160, %v1189
  %v4162 = vpop.permute.xlu0 %4161
  %4165 = vset.pattern.permute.xlu0 0
  %4166 = vperm.xlu0 %4165, %v1190
  %v4167 = vpop.permute.xlu0 %4166
  %4170 = vset.pattern.permute.xlu0 0
  %4171 = vperm.xlu0 %4170, %v1191
  %v4172 = vpop.permute.xlu0 %4171
  %4175 = vset.pattern.permute.xlu0 0
  %4176 = vperm.xlu0 %4175, %v1192
  %v4177 = vpop.permute.xlu0 %4176
  %4180 = vset.pattern.permute.xlu0 0
  %4181 = vperm.xlu0 %4180, %v1193
  %v4182 = vpop.permute.xlu0 %4181
  %4185 = vset.pattern.permute.xlu0 0
  %4186 = vperm.xlu0 %4185, %v1194
  %v4187 = vpop.permute.xlu0 %4186
  %4190 = vset.pattern.permute.xlu0 0
  %4191 = vperm.xlu0 %4190, %v1195
  %v4192 = vpop.permute.xlu0 %4191
  %4195 = vset.pattern.permute.xlu0 0
  %4196 = vperm.xlu0 %4195, %v1196
  %v4197 = vpop.permute.xlu0 %4196
  %4200 = vset.pattern.permute.xlu0 0
  %4201 = vperm.xlu0 %4200, %v1197
  %v4202 = vpop.permute.xlu0 %4201
  %4205 = vset.pattern.permute.xlu0 0
  %4206 = vperm.xlu0 %4205, %v1198
  %v4207 = vpop.permute.xlu0 %4206
  %4210 = vset.pattern.permute.xlu0 0
  %4211 = vperm.xlu0 %4210, %v1199
  %v4212 = vpop.permute.xlu0 %4211
  %4215 = vset.pattern.permute.xlu0 0
  %4216 = vperm.xlu0 %4215, %v1200
  %v4217 = vpop.permute.xlu0 %4216
  %4220 = vset.pattern.permute.xlu0 0
  %4221 = vperm.xlu0 %4220, %v1201
  %v4222 = vpop.permute.xlu0 %4221
  %4225 = vset.pattern.permute.xlu0 0
  %4226 = vperm.xlu0 %4225, %v1202
  %v4227 = vpop.permute.xlu0 %4226
  %4230 = vset.pattern.permute.xlu0 0
  %4231 = vperm.xlu0 %4230, %v1203
  %v4232 = vpop.permute.xlu0 %4231
  %4235 = vset.pattern.permute.xlu0 0
  %4236 = vperm.xlu0 %4235, %v1204
  %v4237 = vpop.permute.xlu0 %4236
  %4240 = vset.pattern.permute.xlu0 0
  %4241 = vperm.xlu0 %4240, %v1205
  %v4242 = vpop.permute.xlu0 %4241
  %4245 = vset.pattern.permute.xlu0 0
  %4246 = vperm.xlu0 %4245, %v1206
  %v4247 = vpop.permute.xlu0 %4246
  %4250 = vset.pattern.permute.xlu0 0
  %4251 = vperm.xlu0 %4250, %v1207
  %v4252 = vpop.permute.xlu0 %4251
  %4255 = vset.pattern.permute.xlu0 0
  %4256 = vperm.xlu0 %4255, %v1208
  %v4257 = vpop.permute.xlu0 %4256
  %4260 = vset.pattern.permute.xlu0 0
  %4261 = vperm.xlu0 %4260, %v1209
  %v4262 = vpop.permute.xlu0 %4261
  %4265 = vset.pattern.permute.xlu0 0
  %4266 = vperm.xlu0 %4265, %v1210
  %v4267 = vpop.permute.xlu0 %4266
  %4270 = vset.pattern.permute.xlu0 0
  %4271 = vperm.xlu0 %4270, %v1211
  %v4272 = vpop.permute.xlu0 %4271
  %4275 = vset.pattern.permute.xlu0 0
  %4276 = vperm.xlu0 %4275, %v1212
  %v4277 = vpop.permute.xlu0 %4276
  %4280 = vset.pattern.permute.xlu0 0
  %4281 = vperm.xlu0 %4280, %v1213
  %v4282 = vpop.permute.xlu0 %4281
  %4285 = vset.pattern.permute.xlu0 0
  %4286 = vperm.xlu0 %4285, %v1214
  %v4287 = vpop.permute.xlu0 %4286
  %4290 = vset.pattern.permute.xlu0 0
  %4291 = vperm.xlu0 %4290, %v1215
  %v4292 = vpop.permute.xlu0 %4291
  %4295 = vset.pattern.permute.xlu0 0
  %4296 = vperm.xlu0 %4295, %v1216
  %v4297 = vpop.permute.xlu0 %4296
  %4300 = vset.pattern.permute.xlu0 0
  %4301 = vperm.xlu0 %4300, %v1217
  %v4302 = vpop.permute.xlu0 %4301
  %4305 = vset.pattern.permute.xlu0 0
  %4306 = vperm.xlu0 %4305, %v1218
  %v4307 = vpop.permute.xlu0 %4306
  %4310 = vset.pattern.permute.xlu0 0
  %4311 = vperm.xlu0 %4310, %v1219
  %v4312 = vpop.permute.xlu0 %4311
  %4315 = vset.pattern.permute.xlu0 0
  %4316 = vperm.xlu0 %4315, %v1220
  %v4317 = vpop.permute.xlu0 %4316
  %4320 = vset.pattern.permute.xlu0 0
  %4321 = vperm.xlu0 %4320, %v1221
  %v4322 = vpop.permute.xlu0 %4321
  %4325 = vset.pattern.permute.xlu0 0
  %4326 = vperm.xlu0 %4325, %v1222
  %v4327 = vpop.permute.xlu0 %4326
  %4330 = vset.pattern.permute.xlu0 0
  %4331 = vperm.xlu0 %4330, %v1223
  %v4332 = vpop.permute.xlu0 %4331
  %4335 = vset.pattern.permute.xlu0 0
  %4336 = vperm.xlu0 %4335, %v1224
  %v4337 = vpop.permute.xlu0 %4336
  %4340 = vset.pattern.permute.xlu0 0
  %4341 = vperm.xlu0 %4340, %v1225
  %v4342 = vpop.permute.xlu0 %4341
  %4345 = vset.pattern.permute.xlu0 0
  %4346 = vperm.xlu0 %4345, %v1226
  %v4347 = vpop.permute.xlu0 %4346
  %4350 = vset.pattern.permute.xlu0 0
  %4351 = vperm.xlu0 %4350, %v1227
  %v4352 = vpop.permute.xlu0 %4351
  %4355 = vset.pattern.permute.xlu0 0
  %4356 = vperm.xlu0 %4355, %v1228
  %v4357 = vpop.permute.xlu0 %4356
  %4360 = vset.pattern.permute.xlu0 0
  %4361 = vperm.xlu0 %4360, %v1229
  %v4362 = vpop.permute.xlu0 %4361
  %4365 = vset.pattern.permute.xlu0 0
  %4366 = vperm.xlu0 %4365, %v1230
  %v4367 = vpop.permute.xlu0 %4366
  %4370 = vset.pattern.permute.xlu0 0
  %4371 = vperm.xlu0 %4370, %v1231
  %v4372 = vpop.permute.xlu0 %4371
  %4375 = vset.pattern.permute.xlu0 0
  %4376 = vperm.xlu0 %4375, %v1232
  %v4377 = vpop.permute.xlu0 %4376
  %4380 = vset.pattern.permute.xlu0 0
  %4381 = vperm.xlu0 %4380, %v1233
  %v4382 = vpop.permute.xlu0 %4381
  %4385 = vset.pattern.permute.xlu0 0
  %4386 = vperm.xlu0 %4385, %v1234
  %v4387 = vpop.permute.xlu0 %4386
  %4390 = vset.pattern.permute.xlu0 0
  %4391 = vperm.xlu0 %4390, %v1235
  %v4392 = vpop.permute.xlu0 %4391
  %4395 = vset.pattern.permute.xlu0 0
  %4396 = vperm.xlu0 %4395, %v1236
  %v4397 = vpop.permute.xlu0 %4396
  %4400 = vset.pattern.permute.xlu0 0
  %4401 = vperm.xlu0 %4400, %v1237
  %v4402 = vpop.permute.xlu0 %4401
  %4405 = vset.pattern.permute.xlu0 0
  %4406 = vperm.xlu0 %4405, %v1238
  %v4407 = vpop.permute.xlu0 %4406
  %4410 = vset.pattern.permute.xlu0 0
  %4411 = vperm.xlu0 %4410, %v1239
  %v4412 = vpop.permute.xlu0 %4411
  %4415 = vset.pattern.permute.xlu0 0
  %4416 = vperm.xlu0 %4415, %v1240
  %v4417 = vpop.permute.xlu0 %4416
  %4420 = vset.pattern.permute.xlu0 0
  %4421 = vperm.xlu0 %4420, %v1241
  %v4422 = vpop.permute.xlu0 %4421
  %4425 = vset.pattern.permute.xlu0 0
  %4426 = vperm.xlu0 %4425, %v1242
  %v4427 = vpop.permute.xlu0 %4426
  %4430 = vset.pattern.permute.xlu0 0
  %4431 = vperm.xlu0 %4430, %v1243
  %v4432 = vpop.permute.xlu0 %4431
  %4435 = vset.pattern.permute.xlu0 0
  %4436 = vperm.xlu0 %4435, %v1244
  %v4437 = vpop.permute.xlu0 %4436
  %4440 = vset.pattern.permute.xlu0 0
  %4441 = vperm.xlu0 %4440, %v1245
  %v4442 = vpop.permute.xlu0 %4441
  %4445 = vset.pattern.permute.xlu0 0
  %4446 = vperm.xlu0 %4445, %v1246
  %v4447 = vpop.permute.xlu0 %4446
  %4450 = vset.pattern.permute.xlu0 0
  %4451 = vperm.xlu0 %4450, %v1247
  %v4452 = vpop.permute.xlu0 %4451
  %4455 = vset.pattern.permute.xlu0 0
  %4456 = vperm.xlu0 %4455, %v1248
  %v4457 = vpop.permute.xlu0 %4456
  %4460 = vset.pattern.permute.xlu0 0
  %4461 = vperm.xlu0 %4460, %v1249
  %v4462 = vpop.permute.xlu0 %4461
  %4465 = vset.pattern.permute.xlu0 0
  %4466 = vperm.xlu0 %4465, %v1250
  %v4467 = vpop.permute.xlu0 %4466
  %4470 = vset.pattern.permute.xlu0 0
  %4471 = vperm.xlu0 %4470, %v1251
  %v4472 = vpop.permute.xlu0 %4471
  %4475 = vset.pattern.permute.xlu0 0
  %4476 = vperm.xlu0 %4475, %v1252
  %v4477 = vpop.permute.xlu0 %4476
  %4480 = vset.pattern.permute.xlu0 0
  %4481 = vperm.xlu0 %4480, %v1253
  %v4482 = vpop.permute.xlu0 %4481
  %4485 = vset.pattern.permute.xlu0 0
  %4486 = vperm.xlu0 %4485, %v1254
  %v4487 = vpop.permute.xlu0 %4486
  %4490 = vset.pattern.permute.xlu0 0
  %4491 = vperm.xlu0 %4490, %v1255
  %v4492 = vpop.permute.xlu0 %4491
  %4495 = vset.pattern.permute.xlu0 0
  %4496 = vperm.xlu0 %4495, %v1256
  %v4497 = vpop.permute.xlu0 %4496
  %4500 = vset.pattern.permute.xlu0 0
  %4501 = vperm.xlu0 %4500, %v1257
  %v4502 = vpop.permute.xlu0 %4501
  %4505 = vset.pattern.permute.xlu0 0
  %4506 = vperm.xlu0 %4505, %v1258
  %v4507 = vpop.permute.xlu0 %4506
  %4510 = vset.pattern.permute.xlu0 0
  %4511 = vperm.xlu0 %4510, %v1259
  %v4512 = vpop.permute.xlu0 %4511
  %4515 = vset.pattern.permute.xlu0 0
  %4516 = vperm.xlu0 %4515, %v1260
  %v4517 = vpop.permute.xlu0 %4516
  %4520 = vset.pattern.permute.xlu0 0
  %4521 = vperm.xlu0 %4520, %v1261
  %v4522 = vpop.permute.xlu0 %4521
  %4525 = vset.pattern.permute.xlu0 0
  %4526 = vperm.xlu0 %4525, %v1262
  %v4527 = vpop.permute.xlu0 %4526
  %4530 = vset.pattern.permute.xlu0 0
  %4531 = vperm.xlu0 %4530, %v1263
  %v4532 = vpop.permute.xlu0 %4531
  %4535 = vset.pattern.permute.xlu0 0
  %4536 = vperm.xlu0 %4535, %v1264
  %v4537 = vpop.permute.xlu0 %4536
  %4540 = vset.pattern.permute.xlu0 0
  %4541 = vperm.xlu0 %4540, %v1265
  %v4542 = vpop.permute.xlu0 %4541
  %4545 = vset.pattern.permute.xlu0 0
  %4546 = vperm.xlu0 %4545, %v1266
  %v4547 = vpop.permute.xlu0 %4546
  %4550 = vset.pattern.permute.xlu0 0
  %4551 = vperm.xlu0 %4550, %v1267
  %v4552 = vpop.permute.xlu0 %4551
  %4555 = vset.pattern.permute.xlu0 0
  %4556 = vperm.xlu0 %4555, %v1268
  %v4557 = vpop.permute.xlu0 %4556
  %4560 = vset.pattern.permute.xlu0 0
  %4561 = vperm.xlu0 %4560, %v1269
  %v4562 = vpop.permute.xlu0 %4561
  %4565 = vset.pattern.permute.xlu0 0
  %4566 = vperm.xlu0 %4565, %v1270
  %v4567 = vpop.permute.xlu0 %4566
  %4570 = vset.pattern.permute.xlu0 0
  %4571 = vperm.xlu0 %4570, %v1271
  %v4572 = vpop.permute.xlu0 %4571
  %4575 = vset.pattern.permute.xlu0 0
  %4576 = vperm.xlu0 %4575, %v1272
  %v4577 = vpop.permute.xlu0 %4576
  %4580 = vset.pattern.permute.xlu0 0
  %4581 = vperm.xlu0 %4580, %v1273
  %v4582 = vpop.permute.xlu0 %4581
  %4585 = vset.pattern.permute.xlu0 0
  %4586 = vperm.xlu0 %4585, %v1274
  %v4587 = vpop.permute.xlu0 %4586
  %4590 = vset.pattern.permute.xlu0 0
  %4591 = vperm.xlu0 %4590, %v1275
  %v4592 = vpop.permute.xlu0 %4591
  %4595 = vset.pattern.permute.xlu0 0
  %4596 = vperm.xlu0 %4595, %v1276
  %v4597 = vpop.permute.xlu0 %4596
  %4600 = vset.pattern.permute.xlu0 0
  %4601 = vperm.xlu0 %4600, %v1277
  %v4602 = vpop.permute.xlu0 %4601
  %4605 = vset.pattern.permute.xlu0 0
  %4606 = vperm.xlu0 %4605, %v1278
  %v4607 = vpop.permute.xlu0 %4606
  %4610 = vset.pattern.permute.xlu0 0
  %4611 = vperm.xlu0 %4610, %v1279
  %v4612 = vpop.permute.xlu0 %4611
  %4615 = vset.pattern.permute.xlu0 0
  %4616 = vperm.xlu0 %4615, %v1280
  %v4617 = vpop.permute.xlu0 %4616
  %4620 = vset.pattern.permute.xlu0 0
  %4621 = vperm.xlu0 %4620, %v1281
  %v4622 = vpop.permute.xlu0 %4621
  %4625 = vset.pattern.permute.xlu0 0
  %4626 = vperm.xlu0 %4625, %v1282
  %v4627 = vpop.permute.xlu0 %4626
  %4630 = vset.pattern.permute.xlu0 0
  %4631 = vperm.xlu0 %4630, %v1283
  %v4632 = vpop.permute.xlu0 %4631
  %4635 = vset.pattern.permute.xlu0 0
  %4636 = vperm.xlu0 %4635, %v1284
  %v4637 = vpop.permute.xlu0 %4636
  %4640 = vset.pattern.permute.xlu0 0
  %4641 = vperm.xlu0 %4640, %v1285
  %v4642 = vpop.permute.xlu0 %4641
  %4645 = vset.pattern.permute.xlu0 0
  %4646 = vperm.xlu0 %4645, %v1286
  %v4647 = vpop.permute.xlu0 %4646
  %4650 = vset.pattern.permute.xlu0 0
  %4651 = vperm.xlu0 %4650, %v1287
  %v4652 = vpop.permute.xlu0 %4651
  %4655 = vset.pattern.permute.xlu0 0
  %4656 = vperm.xlu0 %4655, %v1288
  %v4657 = vpop.permute.xlu0 %4656
  %4660 = vset.pattern.permute.xlu0 0
  %4661 = vperm.xlu0 %4660, %v1289
  %v4662 = vpop.permute.xlu0 %4661
  %4665 = vset.pattern.permute.xlu0 0
  %4666 = vperm.xlu0 %4665, %v1290
  %v4667 = vpop.permute.xlu0 %4666
  %4670 = vset.pattern.permute.xlu0 0
  %4671 = vperm.xlu0 %4670, %v1291
  %v4672 = vpop.permute.xlu0 %4671
  %4675 = vset.pattern.permute.xlu0 0
  %4676 = vperm.xlu0 %4675, %v1292
  %v4677 = vpop.permute.xlu0 %4676
  %4680 = vset.pattern.permute.xlu0 0
  %4681 = vperm.xlu0 %4680, %v1293
  %v4682 = vpop.permute.xlu0 %4681
  %4685 = vset.pattern.permute.xlu0 0
  %4686 = vperm.xlu0 %4685, %v1294
  %v4687 = vpop.permute.xlu0 %4686
  %4690 = vset.pattern.permute.xlu0 0
  %4691 = vperm.xlu0 %4690, %v1295
  %v4692 = vpop.permute.xlu0 %4691
  %4695 = vset.pattern.permute.xlu0 0
  %4696 = vperm.xlu0 %4695, %v1296
  %v4697 = vpop.permute.xlu0 %4696
  %4700 = vset.pattern.permute.xlu0 0
  %4701 = vperm.xlu0 %4700, %v1297
  %v4702 = vpop.permute.xlu0 %4701
  %4705 = vset.pattern.permute.xlu0 0
  %4706 = vperm.xlu0 %4705, %v1298
  %v4707 = vpop.permute.xlu0 %4706
  %4710 = vset.pattern.permute.xlu0 0
  %4711 = vperm.xlu0 %4710, %v1299
  %v4712 = vpop.permute.xlu0 %4711
  %4715 = vset.pattern.permute.xlu0 0
  %4716 = vperm.xlu0 %4715, %v1300
  %v4717 = vpop.permute.xlu0 %4716
  %4720 = vset.pattern.permute.xlu0 0
  %4721 = vperm.xlu0 %4720, %v1301
  %v4722 = vpop.permute.xlu0 %4721
  %4725 = vset.pattern.permute.xlu0 0
  %4726 = vperm.xlu0 %4725, %v1302
  %v4727 = vpop.permute.xlu0 %4726
  %4730 = vset.pattern.permute.xlu0 0
  %4731 = vperm.xlu0 %4730, %v1303
  %v4732 = vpop.permute.xlu0 %4731
  %4735 = vset.pattern.permute.xlu0 0
  %4736 = vperm.xlu0 %4735, %v1304
  %v4737 = vpop.permute.xlu0 %4736
  %4740 = vset.pattern.permute.xlu0 0
  %4741 = vperm.xlu0 %4740, %v1305
  %v4742 = vpop.permute.xlu0 %4741
  %4745 = vset.pattern.permute.xlu0 0
  %4746 = vperm.xlu0 %4745, %v1306
  %v4747 = vpop.permute.xlu0 %4746
  %4750 = vset.pattern.permute.xlu0 0
  %4751 = vperm.xlu0 %4750, %v1307
  %v4752 = vpop.permute.xlu0 %4751
  %4755 = vset.pattern.permute.xlu0 0
  %4756 = vperm.xlu0 %4755, %v1308
  %v4757 = vpop.permute.xlu0 %4756
  %4760 = vset.pattern.permute.xlu0 0
  %4761 = vperm.xlu0 %4760, %v1309
  %v4762 = vpop.permute.xlu0 %4761
  %4765 = vset.pattern.permute.xlu0 0
  %4766 = vperm.xlu0 %4765, %v1310
  %v4767 = vpop.permute.xlu0 %4766
  %4770 = vset.pattern.permute.xlu0 0
  %4771 = vperm.xlu0 %4770, %v1311
  %v4772 = vpop.permute.xlu0 %4771
  %4775 = vset.pattern.permute.xlu0 0
  %4776 = vperm.xlu0 %4775, %v1312
  %v4777 = vpop.permute.xlu0 %4776
  %4780 = vset.pattern.permute.xlu0 0
  %4781 = vperm.xlu0 %4780, %v1313
  %v4782 = vpop.permute.xlu0 %4781
  %4785 = vset.pattern.permute.xlu0 0
  %4786 = vperm.xlu0 %4785, %v1314
  %v4787 = vpop.permute.xlu0 %4786
  %4790 = vset.pattern.permute.xlu0 0
  %4791 = vperm.xlu0 %4790, %v1315
  %v4792 = vpop.permute.xlu0 %4791
  %4795 = vset.pattern.permute.xlu0 0
  %4796 = vperm.xlu0 %4795, %v1316
  %v4797 = vpop.permute.xlu0 %4796
  %4800 = vset.pattern.permute.xlu0 0
  %4801 = vperm.xlu0 %4800, %v1317
  %v4802 = vpop.permute.xlu0 %4801
  %4805 = vset.pattern.permute.xlu0 0
  %4806 = vperm.xlu0 %4805, %v1318
  %v4807 = vpop.permute.xlu0 %4806
  %4810 = vset.pattern.permute.xlu0 0
  %4811 = vperm.xlu0 %4810, %v1319
  %v4812 = vpop.permute.xlu0 %4811
  %4815 = vset.pattern.permute.xlu0 0
  %4816 = vperm.xlu0 %4815, %v1320
  %v4817 = vpop.permute.xlu0 %4816
  %4820 = vset.pattern.permute.xlu0 0
  %4821 = vperm.xlu0 %4820, %v1321
  %v4822 = vpop.permute.xlu0 %4821
  %4825 = vset.pattern.permute.xlu0 0
  %4826 = vperm.xlu0 %4825, %v1322
  %v4827 = vpop.permute.xlu0 %4826
  %4830 = vset.pattern.permute.xlu0 0
  %4831 = vperm.xlu0 %4830, %v1323
  %v4832 = vpop.permute.xlu0 %4831
  %4835 = vset.pattern.permute.xlu0 0
  %4836 = vperm.xlu0 %4835, %v1324
  %v4837 = vpop.permute.xlu0 %4836
  %4840 = vset.pattern.permute.xlu0 0
  %4841 = vperm.xlu0 %4840, %v1325
  %v4842 = vpop.permute.xlu0 %4841
  %4845 = vset.pattern.permute.xlu0 0
  %4846 = vperm.xlu0 %4845, %v1326
  %v4847 = vpop.permute.xlu0 %4846
  %4850 = vset.pattern.permute.xlu0 0
  %4851 = vperm.xlu0 %4850, %v1327
  %v4852 = vpop.permute.xlu0 %4851
  %4855 = vset.pattern.permute.xlu0 0
  %4856 = vperm.xlu0 %4855, %v1328
  %v4857 = vpop.permute.xlu0 %4856
  %4860 = vset.pattern.permute.xlu0 0
  %4861 = vperm.xlu0 %4860, %v1329
  %v4862 = vpop.permute.xlu0 %4861
  %4865 = vset.pattern.permute.xlu0 0
  %4866 = vperm.xlu0 %4865, %v1330
  %v4867 = vpop.permute.xlu0 %4866
  %4870 = vset.pattern.permute.xlu0 0
  %4871 = vperm.xlu0 %4870, %v1331
  %v4872 = vpop.permute.xlu0 %4871
  %4875 = vset.pattern.permute.xlu0 0
  %4876 = vperm.xlu0 %4875, %v1332
  %v4877 = vpop.permute.xlu0 %4876
  %4880 = vset.pattern.permute.xlu0 0
  %4881 = vperm.xlu0 %4880, %v1333
  %v4882 = vpop.permute.xlu0 %4881
  %4885 = vset.pattern.permute.xlu0 0
  %4886 = vperm.xlu0 %4885, %v1334
  %v4887 = vpop.permute.xlu0 %4886
  %4890 = vset.pattern.permute.xlu0 0
  %4891 = vperm.xlu0 %4890, %v1335
  %v4892 = vpop.permute.xlu0 %4891
  %4895 = vset.pattern.permute.xlu0 0
  %4896 = vperm.xlu0 %4895, %v1336
  %v4897 = vpop.permute.xlu0 %4896
  %4900 = vset.pattern.permute.xlu0 0
  %4901 = vperm.xlu0 %4900, %v1337
  %v4902 = vpop.permute.xlu0 %4901
  %4905 = vset.pattern.permute.xlu0 0
  %4906 = vperm.xlu0 %4905, %v1338
  %v4907 = vpop.permute.xlu0 %4906
  %4910 = vset.pattern.permute.xlu0 0
  %4911 = vperm.xlu0 %4910, %v1339
  %v4912 = vpop.permute.xlu0 %4911
  %4915 = vset.pattern.permute.xlu0 0
  %4916 = vperm.xlu0 %4915, %v1340
  %v4917 = vpop.permute.xlu0 %4916
  %4920 = vset.pattern.permute.xlu0 0
  %4921 = vperm.xlu0 %4920, %v1341
  %v4922 = vpop.permute.xlu0 %4921
  %4925 = vset.pattern.permute.xlu0 0
  %4926 = vperm.xlu0 %4925, %v1342
  %v4927 = vpop.permute.xlu0 %4926
  %4930 = vset.pattern.permute.xlu0 0
  %4931 = vperm.xlu0 %4930, %v1343
  %v4932 = vpop.permute.xlu0 %4931
  %4935 = vset.pattern.permute.xlu0 0
  %4936 = vperm.xlu0 %4935, %v1344
  %v4937 = vpop.permute.xlu0 %4936
  %4940 = vset.pattern.permute.xlu0 0
  %4941 = vperm.xlu0 %4940, %v1345
  %v4942 = vpop.permute.xlu0 %4941
  %4945 = vset.pattern.permute.xlu0 0
  %4946 = vperm.xlu0 %4945, %v1346
  %v4947 = vpop.permute.xlu0 %4946
  %4950 = vset.pattern.permute.xlu0 0
  %4951 = vperm.xlu0 %4950, %v1347
  %v4952 = vpop.permute.xlu0 %4951
  %4955 = vset.pattern.permute.xlu0 0
  %4956 = vperm.xlu0 %4955, %v1348
  %v4957 = vpop.permute.xlu0 %4956
  %4960 = vset.pattern.permute.xlu0 0
  %4961 = vperm.xlu0 %4960, %v1349
  %v4962 = vpop.permute.xlu0 %4961
  %4965 = vset.pattern.permute.xlu0 0
  %4966 = vperm.xlu0 %4965, %v1350
  %v4967 = vpop.permute.xlu0 %4966
  %4970 = vset.pattern.permute.xlu0 0
  %4971 = vperm.xlu0 %4970, %v1351
  %v4972 = vpop.permute.xlu0 %4971
  %4975 = vset.pattern.permute.xlu0 0
  %4976 = vperm.xlu0 %4975, %v1352
  %v4977 = vpop.permute.xlu0 %4976
  %4980 = vset.pattern.permute.xlu0 0
  %4981 = vperm.xlu0 %4980, %v1353
  %v4982 = vpop.permute.xlu0 %4981
  %4985 = vset.pattern.permute.xlu0 0
  %4986 = vperm.xlu0 %4985, %v1354
  %v4987 = vpop.permute.xlu0 %4986
  %4990 = vset.pattern.permute.xlu0 0
  %4991 = vperm.xlu0 %4990, %v1355
  %v4992 = vpop.permute.xlu0 %4991
  %4995 = vset.pattern.permute.xlu0 0
  %4996 = vperm.xlu0 %4995, %v1356
  %v4997 = vpop.permute.xlu0 %4996
  %5000 = vset.pattern.permute.xlu0 0
  %5001 = vperm.xlu0 %5000, %v1357
  %v5002 = vpop.permute.xlu0 %5001
  %5005 = vset.pattern.permute.xlu0 0
  %5006 = vperm.xlu0 %5005, %v1358
  %v5007 = vpop.permute.xlu0 %5006
  %5010 = vset.pattern.permute.xlu0 0
  %5011 = vperm.xlu0 %5010, %v1359
  %v5012 = vpop.permute.xlu0 %5011
  %5015 = vset.pattern.permute.xlu0 0
  %5016 = vperm.xlu0 %5015, %v1360
  %v5017 = vpop.permute.xlu0 %5016
  %5020 = vset.pattern.permute.xlu0 0
  %5021 = vperm.xlu0 %5020, %v1361
  %v5022 = vpop.permute.xlu0 %5021
  %5025 = vset.pattern.permute.xlu0 0
  %5026 = vperm.xlu0 %5025, %v1362
  %v5027 = vpop.permute.xlu0 %5026
  %5030 = vset.pattern.permute.xlu0 0
  %5031 = vperm.xlu0 %5030, %v1363
  %v5032 = vpop.permute.xlu0 %5031
  %5035 = vset.pattern.permute.xlu0 0
  %5036 = vperm.xlu0 %5035, %v1364
  %v5037 = vpop.permute.xlu0 %5036
  %5040 = vset.pattern.permute.xlu0 0
  %5041 = vperm.xlu0 %5040, %v1365
  %v5042 = vpop.permute.xlu0 %5041
  %5045 = vset.pattern.permute.xlu0 0
  %5046 = vperm.xlu0 %5045, %v1366
  %v5047 = vpop.permute.xlu0 %5046
  %5050 = vset.pattern.permute.xlu0 0
  %5051 = vperm.xlu0 %5050, %v1367
  %v5052 = vpop.permute.xlu0 %5051
  %5055 = vset.pattern.permute.xlu0 0
  %5056 = vperm.xlu0 %5055, %v1368
  %v5057 = vpop.permute.xlu0 %5056
  %5060 = vset.pattern.permute.xlu0 0
  %5061 = vperm.xlu0 %5060, %v1369
  %v5062 = vpop.permute.xlu0 %5061
  %5065 = vset.pattern.permute.xlu0 0
  %5066 = vperm.xlu0 %5065, %v1370
  %v5067 = vpop.permute.xlu0 %5066
  %v5069 = vadd.f32 %v3792, %v2767
  %v5070 = vadd.f32 %v3797, %v2770
  %v5071 = vadd.f32 %v3802, %v2775
  %v5072 = vadd.f32 %v3807, %v2778
  %v5073 = vadd.f32 %v3812, %v2783
  %v5074 = vadd.f32 %v3817, %v2786
  %v5075 = vadd.f32 %v3822, %v2791
  %v5076 = vadd.f32 %v3827, %v2794
  %v5077 = vadd.f32 %v3832, %v2799
  %v5078 = vadd.f32 %v3837, %v2802
  %v5079 = vadd.f32 %v3842, %v2807
  %v5080 = vadd.f32 %v3847, %v2810
  %v5081 = vadd.f32 %v3852, %v2815
  %v5082 = vadd.f32 %v3857, %v2818
  %v5083 = vadd.f32 %v3862, %v2823
  %v5084 = vadd.f32 %v3867, %v2826
  %v5085 = vadd.f32 %v3872, %v2831
  %v5086 = vadd.f32 %v3877, %v2834
  %v5087 = vadd.f32 %v3882, %v2839
  %v5088 = vadd.f32 %v3887, %v2842
  %v5089 = vadd.f32 %v3892, %v2847
  %v5090 = vadd.f32 %v3897, %v2850
  %v5091 = vadd.f32 %v3902, %v2855
  %v5092 = vadd.f32 %v3907, %v2858
  %v5093 = vadd.f32 %v3912, %v2863
  %v5094 = vadd.f32 %v3917, %v2866
  %v5095 = vadd.f32 %v3922, %v2871
  %v5096 = vadd.f32 %v3927, %v2874
  %v5097 = vadd.f32 %v3932, %v2879
  %v5098 = vadd.f32 %v3937, %v2882
  %v5099 = vadd.f32 %v3942, %v2887
  %v5100 = vadd.f32 %v3947, %v2890
  %v5101 = vadd.f32 %v3952, %v2895
  %v5102 = vadd.f32 %v3957, %v2898
  %v5103 = vadd.f32 %v3962, %v2903
  %v5104 = vadd.f32 %v3967, %v2906
  %v5105 = vadd.f32 %v3972, %v2911
  %v5106 = vadd.f32 %v3977, %v2914
  %v5107 = vadd.f32 %v3982, %v2919
  %v5108 = vadd.f32 %v3987, %v2922
  %v5109 = vadd.f32 %v3992, %v2927
  %v5110 = vadd.f32 %v3997, %v2930
  %v5111 = vadd.f32 %v4002, %v2935
  %v5112 = vadd.f32 %v4007, %v2938
  %v5113 = vadd.f32 %v4012, %v2943
  %v5114 = vadd.f32 %v4017, %v2946
  %v5115 = vadd.f32 %v4022, %v2951
  %v5116 = vadd.f32 %v4027, %v2954
  %v5117 = vadd.f32 %v4032, %v2959
  %v5118 = vadd.f32 %v4037, %v2962
  %v5119 = vadd.f32 %v4042, %v2967
  %v5120 = vadd.f32 %v4047, %v2970
  %v5121 = vadd.f32 %v4052, %v2975
  %v5122 = vadd.f32 %v4057, %v2978
  %v5123 = vadd.f32 %v4062, %v2983
  %v5124 = vadd.f32 %v4067, %v2986
  %v5125 = vadd.f32 %v4072, %v2991
  %v5126 = vadd.f32 %v4077, %v2994
  %v5127 = vadd.f32 %v4082, %v2999
  %v5128 = vadd.f32 %v4087, %v3002
  %v5129 = vadd.f32 %v4092, %v3007
  %v5130 = vadd.f32 %v4097, %v3010
  %v5131 = vadd.f32 %v4102, %v3015
  %v5132 = vadd.f32 %v4107, %v3018
  %v5133 = vadd.f32 %v4112, %v3023
  %v5134 = vadd.f32 %v4117, %v3026
  %v5135 = vadd.f32 %v4122, %v3031
  %v5136 = vadd.f32 %v4127, %v3034
  %v5137 = vadd.f32 %v4132, %v3039
  %v5138 = vadd.f32 %v4137, %v3042
  %v5139 = vadd.f32 %v4142, %v3047
  %v5140 = vadd.f32 %v4147, %v3050
  %v5141 = vadd.f32 %v4152, %v3055
  %v5142 = vadd.f32 %v4157, %v3058
  %v5143 = vadd.f32 %v4162, %v3063
  %v5144 = vadd.f32 %v4167, %v3066
  %v5145 = vadd.f32 %v4172, %v3071
  %v5146 = vadd.f32 %v4177, %v3074
  %v5147 = vadd.f32 %v4182, %v3079
  %v5148 = vadd.f32 %v4187, %v3082
  %v5149 = vadd.f32 %v4192, %v3087
  %v5150 = vadd.f32 %v4197, %v3090
  %v5151 = vadd.f32 %v4202, %v3095
  %v5152 = vadd.f32 %v4207, %v3098
  %v5153 = vadd.f32 %v4212, %v3103
  %v5154 = vadd.f32 %v4217, %v3106
  %v5155 = vadd.f32 %v4222, %v3111
  %v5156 = vadd.f32 %v4227, %v3114
  %v5157 = vadd.f32 %v4232, %v3119
  %v5158 = vadd.f32 %v4237, %v3122
  %v5159 = vadd.f32 %v4242, %v3127
  %v5160 = vadd.f32 %v4247, %v3130
  %v5161 = vadd.f32 %v4252, %v3135
  %v5162 = vadd.f32 %v4257, %v3138
  %v5163 = vadd.f32 %v4262, %v3143
  %v5164 = vadd.f32 %v4267, %v3146
  %v5165 = vadd.f32 %v4272, %v3151
  %v5166 = vadd.f32 %v4277, %v3154
  %v5167 = vadd.f32 %v4282, %v3159
  %v5168 = vadd.f32 %v4287, %v3162
  %v5169 = vadd.f32 %v4292, %v3167
  %v5170 = vadd.f32 %v4297, %v3170
  %v5171 = vadd.f32 %v4302, %v3175
  %v5172 = vadd.f32 %v4307, %v3178
  %v5173 = vadd.f32 %v4312, %v3183
  %v5174 = vadd.f32 %v4317, %v3186
  %v5175 = vadd.f32 %v4322, %v3191
  %v5176 = vadd.f32 %v4327, %v3194
  %v5177 = vadd.f32 %v4332, %v3199
  %v5178 = vadd.f32 %v4337, %v3202
  %v5179 = vadd.f32 %v4342, %v3207
  %v5180 = vadd.f32 %v4347, %v3210
  %v5181 = vadd.f32 %v4352, %v3215
  %v5182 = vadd.f32 %v4357, %v3218
  %v5183 = vadd.f32 %v4362, %v3223
  %v5184 = vadd.f32 %v4367, %v3226
  %v5185 = vadd.f32 %v4372, %v3231
  %v5186 = vadd.f32 %v4377, %v3234
  %v5187 = vadd.f32 %v4382, %v3239
  %v5188 = vadd.f32 %v4387, %v3242
  %v5189 = vadd.f32 %v4392, %v3247
  %v5190 = vadd.f32 %v4397, %v3250
  %v5191 = vadd.f32 %v4402, %v3255
  %v5192 = vadd.f32 %v4407, %v3258
  %v5193 = vadd.f32 %v4412, %v3263
  %v5194 = vadd.f32 %v4417, %v3266
  %v5195 = vadd.f32 %v4422, %v3271
  %v5196 = vadd.f32 %v4427, %v3274
  %v5197 = vadd.f32 %v4432, %v3279
  %v5198 = vadd.f32 %v4437, %v3282
  %v5199 = vadd.f32 %v4442, %v3287
  %v5200 = vadd.f32 %v4447, %v3290
  %v5201 = vadd.f32 %v4452, %v3295
  %v5202 = vadd.f32 %v4457, %v3298
  %v5203 = vadd.f32 %v4462, %v3303
  %v5204 = vadd.f32 %v4467, %v3306
  %v5205 = vadd.f32 %v4472, %v3311
  %v5206 = vadd.f32 %v4477, %v3314
  %v5207 = vadd.f32 %v4482, %v3319
  %v5208 = vadd.f32 %v4487, %v3322
  %v5209 = vadd.f32 %v4492, %v3327
  %v5210 = vadd.f32 %v4497, %v3330
  %v5211 = vadd.f32 %v4502, %v3335
  %v5212 = vadd.f32 %v4507, %v3338
  %v5213 = vadd.f32 %v4512, %v3343
  %v5214 = vadd.f32 %v4517, %v3346
  %v5215 = vadd.f32 %v4522, %v3351
  %v5216 = vadd.f32 %v4527, %v3354
  %v5217 = vadd.f32 %v4532, %v3359
  %v5218 = vadd.f32 %v4537, %v3362
  %v5219 = vadd.f32 %v4542, %v3367
  %v5220 = vadd.f32 %v4547, %v3370
  %v5221 = vadd.f32 %v4552, %v3375
  %v5222 = vadd.f32 %v4557, %v3378
  %v5223 = vadd.f32 %v4562, %v3383
  %v5224 = vadd.f32 %v4567, %v3386
  %v5225 = vadd.f32 %v4572, %v3391
  %v5226 = vadd.f32 %v4577, %v3394
  %v5227 = vadd.f32 %v4582, %v3399
  %v5228 = vadd.f32 %v4587, %v3402
  %v5229 = vadd.f32 %v4592, %v3407
  %v5230 = vadd.f32 %v4597, %v3410
  %v5231 = vadd.f32 %v4602, %v3415
  %v5232 = vadd.f32 %v4607, %v3418
  %v5233 = vadd.f32 %v4612, %v3423
  %v5234 = vadd.f32 %v4617, %v3426
  %v5235 = vadd.f32 %v4622, %v3431
  %v5236 = vadd.f32 %v4627, %v3434
  %v5237 = vadd.f32 %v4632, %v3439
  %v5238 = vadd.f32 %v4637, %v3442
  %v5239 = vadd.f32 %v4642, %v3447
  %v5240 = vadd.f32 %v4647, %v3450
  %v5241 = vadd.f32 %v4652, %v3455
  %v5242 = vadd.f32 %v4657, %v3458
  %v5243 = vadd.f32 %v4662, %v3463
  %v5244 = vadd.f32 %v4667, %v3466
  %v5245 = vadd.f32 %v4672, %v3471
  %v5246 = vadd.f32 %v4677, %v3474
  %v5247 = vadd.f32 %v4682, %v3479
  %v5248 = vadd.f32 %v4687, %v3482
  %v5249 = vadd.f32 %v4692, %v3487
  %v5250 = vadd.f32 %v4697, %v3490
  %v5251 = vadd.f32 %v4702, %v3495
  %v5252 = vadd.f32 %v4707, %v3498
  %v5253 = vadd.f32 %v4712, %v3503
  %v5254 = vadd.f32 %v4717, %v3506
  %v5255 = vadd.f32 %v4722, %v3511
  %v5256 = vadd.f32 %v4727, %v3514
  %v5257 = vadd.f32 %v4732, %v3519
  %v5258 = vadd.f32 %v4737, %v3522
  %v5259 = vadd.f32 %v4742, %v3527
  %v5260 = vadd.f32 %v4747, %v3530
  %v5261 = vadd.f32 %v4752, %v3535
  %v5262 = vadd.f32 %v4757, %v3538
  %v5263 = vadd.f32 %v4762, %v3543
  %v5264 = vadd.f32 %v4767, %v3546
  %v5265 = vadd.f32 %v4772, %v3551
  %v5266 = vadd.f32 %v4777, %v3554
  %v5267 = vadd.f32 %v4782, %v3559
  %v5268 = vadd.f32 %v4787, %v3562
  %v5269 = vadd.f32 %v4792, %v3567
  %v5270 = vadd.f32 %v4797, %v3570
  %v5271 = vadd.f32 %v4802, %v3575
  %v5272 = vadd.f32 %v4807, %v3578
  %v5273 = vadd.f32 %v4812, %v3583
  %v5274 = vadd.f32 %v4817, %v3586
  %v5275 = vadd.f32 %v4822, %v3591
  %v5276 = vadd.f32 %v4827, %v3594
  %v5277 = vadd.f32 %v4832, %v3599
  %v5278 = vadd.f32 %v4837, %v3602
  %v5279 = vadd.f32 %v4842, %v3607
  %v5280 = vadd.f32 %v4847, %v3610
  %v5281 = vadd.f32 %v4852, %v3615
  %v5282 = vadd.f32 %v4857, %v3618
  %v5283 = vadd.f32 %v4862, %v3623
  %v5284 = vadd.f32 %v4867, %v3626
  %v5285 = vadd.f32 %v4872, %v3631
  %v5286 = vadd.f32 %v4877, %v3634
  %v5287 = vadd.f32 %v4882, %v3639
  %v5288 = vadd.f32 %v4887, %v3642
  %v5289 = vadd.f32 %v4892, %v3647
  %v5290 = vadd.f32 %v4897, %v3650
  %v5291 = vadd.f32 %v4902, %v3655
  %v5292 = vadd.f32 %v4907, %v3658
  %v5293 = vadd.f32 %v4912, %v3663
  %v5294 = vadd.f32 %v4917, %v3666
  %v5295 = vadd.f32 %v4922, %v3671
  %v5296 = vadd.f32 %v4927, %v3674
  %v5297 = vadd.f32 %v4932, %v3679
  %v5298 = vadd.f32 %v4937, %v3682
  %v5299 = vadd.f32 %v4942, %v3687
  %v5300 = vadd.f32 %v4947, %v3690
  %v5301 = vadd.f32 %v4952, %v3695
  %v5302 = vadd.f32 %v4957, %v3698
  %v5303 = vadd.f32 %v4962, %v3703
  %v5304 = vadd.f32 %v4967, %v3706
  %v5305 = vadd.f32 %v4972, %v3711
  %v5306 = vadd.f32 %v4977, %v3714
  %v5307 = vadd.f32 %v4982, %v3719
  %v5308 = vadd.f32 %v4987, %v3722
  %v5309 = vadd.f32 %v4992, %v3727
  %v5310 = vadd.f32 %v4997, %v3730
  %v5311 = vadd.f32 %v5002, %v3735
  %v5312 = vadd.f32 %v5007, %v3738
  %v5313 = vadd.f32 %v5012, %v3743
  %v5314 = vadd.f32 %v5017, %v3746
  %v5315 = vadd.f32 %v5022, %v3751
  %v5316 = vadd.f32 %v5027, %v3754
  %v5317 = vadd.f32 %v5032, %v3759
  %v5318 = vadd.f32 %v5037, %v3762
  %v5319 = vadd.f32 %v5042, %v3767
  %v5320 = vadd.f32 %v5047, %v3770
  %v5321 = vadd.f32 %v5052, %v3775
  %v5322 = vadd.f32 %v5057, %v3778
  %v5323 = vadd.f32 %v5062, %v3783
  %v5324 = vadd.f32 %v5067, %v3786
  %v5325 = vadd.s32 %v1371, 1
  %vm5326 = vcmp.eq.s32.totalorder %v40, %v5325
  %v5327 = vsel %vm5326, 1.0, 0.0
  %5328 = vmatprep.subr.mxu0 0.0
  %5329 = vmatpush1.msra.mxu0 %v5327
  %5330 = vmatprep.subr.mxu0 0.0
  %5331 = vmatpush1.msra.mxu0 0.0
  %5332 = vmatprep.subr.mxu0 0.0
  %5333 = vmatpush1.msra.mxu0 0.0
  %5334 = vmatprep.subr.mxu0 0.0
  %5335 = vmatpush1.msra.mxu0 0.0
  %5336 = vmatprep.subr.mxu0 0.0
  %5337 = vmatpush1.msra.mxu0 0.0
  %5338 = vmatprep.subr.mxu0 0.0
  %5339 = vmatpush1.msra.mxu0 0.0
  %5340 = vmatprep.subr.mxu0 0.0
  %5341 = vmatpush1.msra.mxu0 0.0
  %5342 = vmatprep.subr.mxu0 0.0
  %5343 = vmatpush1.msra.mxu0 0.0
  %5344 = vmatprep.subr.mxu0 0.0
  %5345 = vmatpush1.msra.mxu0 0.0
  %5346 = vmatprep.subr.mxu0 0.0
  %5347 = vmatpush1.msra.mxu0 0.0
  %5348 = vmatprep.subr.mxu0 0.0
  %5349 = vmatpush1.msra.mxu0 0.0
  %5350 = vmatprep.subr.mxu0 0.0
  %5351 = vmatpush1.msra.mxu0 0.0
  %5352 = vmatprep.subr.mxu0 0.0
  %5353 = vmatpush1.msra.mxu0 0.0
  %5354 = vmatprep.subr.mxu0 0.0
  %5355 = vmatpush1.msra.mxu0 0.0
  %5356 = vmatprep.subr.mxu0 0.0
  %5357 = vmatpush1.msra.mxu0 0.0
  %5358 = vmatprep.subr.mxu0 0.0
  %5359 = vmatpush1.msra.mxu0 0.0
  %5360 = vmatprep.subr.mxu0 0.0
  %5361 = vmatpush1.msra.mxu0 0.0
  %5362 = vmatprep.subr.mxu0 0.0
  %5363 = vmatpush1.msra.mxu0 0.0
  %5364 = vmatprep.subr.mxu0 0.0
  %5365 = vmatpush1.msra.mxu0 0.0
  %5366 = vmatprep.subr.mxu0 0.0
  %5367 = vmatpush1.msra.mxu0 0.0
  %5368 = vmatprep.subr.mxu0 0.0
  %5369 = vmatpush1.msra.mxu0 0.0
  %5370 = vmatprep.subr.mxu0 0.0
  %5371 = vmatpush1.msra.mxu0 0.0
  %5372 = vmatprep.subr.mxu0 0.0
  %5373 = vmatpush1.msra.mxu0 0.0
  %5374 = vmatprep.subr.mxu0 0.0
  %5375 = vmatpush1.msra.mxu0 0.0
  %5376 = vmatprep.subr.mxu0 0.0
  %5377 = vmatpush1.msra.mxu0 0.0
  %5378 = vmatprep.subr.mxu0 0.0
  %5379 = vmatpush1.msra.mxu0 0.0
  %5380 = vmatprep.subr.mxu0 0.0
  %5381 = vmatpush1.msra.mxu0 0.0
  %5382 = vmatprep.subr.mxu0 0.0
  %5383 = vmatpush1.msra.mxu0 0.0
  %5384 = vmatprep.subr.mxu0 0.0
  %5385 = vmatpush1.msra.mxu0 0.0
  %5386 = vmatprep.subr.mxu0 0.0
  %5387 = vmatpush1.msra.mxu0 0.0
  %5388 = vmatprep.subr.mxu0 0.0
  %5389 = vmatpush1.msra.mxu0 0.0
  %5390 = vmatprep.subr.mxu0 0.0
  %5391 = vmatpush1.msra.mxu0 0.0
  %5392 = vmatprep.mubr.f32.mxu0 0.0
  %5393 = vmatmul.mubr.f32.gmra.mrb[0].mxu0 %v1375
  %v5394 = vpop.f32.mrb[0].mxu0
  %v5395 = vadd.f32 0.0, %v5394
  %v5396 = vpop.f32.mrb[0].mxu0
  %5397 = vdwg.mxu0
  %v5398 = vpack.c.bf16 %v5395, %v5395
  %5399 = vrot.lane.b32.xlu0 %v2216, 120
  %v5400 = vpop.permute.xlu0 %5399
  %5401 = vrot.lane.b32.xlu0 %v2217, 120
  %v5402 = vpop.permute.xlu0 %5401
  %5403 = vrot.lane.b32.xlu0 %v2218, 120
  %v5404 = vpop.permute.xlu0 %5403
  %5405 = vrot.lane.b32.xlu0 %v2219, 120
  %v5406 = vpop.permute.xlu0 %5405
  %5407 = vrot.lane.b32.xlu0 %v2220, 120
  %v5408 = vpop.permute.xlu0 %5407
  %5409 = vrot.lane.b32.xlu0 %v2221, 120
  %v5410 = vpop.permute.xlu0 %5409
  %5411 = vrot.lane.b32.xlu0 %v2222, 120
  %v5412 = vpop.permute.xlu0 %5411
  %5413 = vrot.lane.b32.xlu0 %v2223, 120
  %v5414 = vpop.permute.xlu0 %5413
  %5415 = vrot.lane.b32.xlu0 %v2224, 120
  %v5416 = vpop.permute.xlu0 %5415
  %5417 = vrot.lane.b32.xlu0 %v2225, 120
  %v5418 = vpop.permute.xlu0 %5417
  %5419 = vrot.lane.b32.xlu0 %v2226, 120
  %v5420 = vpop.permute.xlu0 %5419
  %5421 = vrot.lane.b32.xlu0 %v2227, 120
  %v5422 = vpop.permute.xlu0 %5421
  %5423 = vrot.lane.b32.xlu0 %v2228, 120
  %v5424 = vpop.permute.xlu0 %5423
  %5425 = vrot.lane.b32.xlu0 %v2229, 120
  %v5426 = vpop.permute.xlu0 %5425
  %5427 = vrot.lane.b32.xlu0 %v2230, 120
  %v5428 = vpop.permute.xlu0 %5427
  %5429 = vrot.lane.b32.xlu0 %v2231, 120
  %v5430 = vpop.permute.xlu0 %5429
  %5431 = vrot.lane.b32.xlu0 %v2232, 120
  %v5432 = vpop.permute.xlu0 %5431
  %5433 = vrot.lane.b32.xlu0 %v2233, 120
  %v5434 = vpop.permute.xlu0 %5433
  %5435 = vrot.lane.b32.xlu0 %v2234, 120
  %v5436 = vpop.permute.xlu0 %5435
  %5437 = vrot.lane.b32.xlu0 %v2235, 120
  %v5438 = vpop.permute.xlu0 %5437
  %5439 = vrot.lane.b32.xlu0 %v2236, 120
  %v5440 = vpop.permute.xlu0 %5439
  %5441 = vrot.lane.b32.xlu0 %v2237, 120
  %v5442 = vpop.permute.xlu0 %5441
  %5443 = vrot.lane.b32.xlu0 %v2238, 120
  %v5444 = vpop.permute.xlu0 %5443
  %5445 = vrot.lane.b32.xlu0 %v2239, 120
  %v5446 = vpop.permute.xlu0 %5445
  %5447 = vrot.lane.b32.xlu0 %v2240, 120
  %v5448 = vpop.permute.xlu0 %5447
  %5449 = vrot.lane.b32.xlu0 %v2241, 120
  %v5450 = vpop.permute.xlu0 %5449
  %5451 = vrot.lane.b32.xlu0 %v2242, 120
  %v5452 = vpop.permute.xlu0 %5451
  %5453 = vrot.lane.b32.xlu0 %v2243, 120
  %v5454 = vpop.permute.xlu0 %5453
  %5455 = vrot.lane.b32.xlu0 %v2244, 120
  %v5456 = vpop.permute.xlu0 %5455
  %5457 = vrot.lane.b32.xlu0 %v2245, 120
  %v5458 = vpop.permute.xlu0 %5457
  %5459 = vrot.lane.b32.xlu0 %v2246, 120
  %v5460 = vpop.permute.xlu0 %5459
  %5461 = vrot.lane.b32.xlu0 %v2247, 120
  %v5462 = vpop.permute.xlu0 %5461
  %5463 = vrot.lane.b32.xlu0 %v2248, 120
  %v5464 = vpop.permute.xlu0 %5463
  %5465 = vrot.lane.b32.xlu0 %v2249, 120
  %v5466 = vpop.permute.xlu0 %5465
  %5467 = vrot.lane.b32.xlu0 %v2250, 120
  %v5468 = vpop.permute.xlu0 %5467
  %5469 = vrot.lane.b32.xlu0 %v2251, 120
  %v5470 = vpop.permute.xlu0 %5469
  %5471 = vrot.lane.b32.xlu0 %v2252, 120
  %v5472 = vpop.permute.xlu0 %5471
  %5473 = vrot.lane.b32.xlu0 %v2253, 120
  %v5474 = vpop.permute.xlu0 %5473
  %5475 = vrot.lane.b32.xlu0 %v2254, 120
  %v5476 = vpop.permute.xlu0 %5475
  %5477 = vrot.lane.b32.xlu0 %v2255, 120
  %v5478 = vpop.permute.xlu0 %5477
  %5479 = vrot.lane.b32.xlu0 %v2256, 120
  %v5480 = vpop.permute.xlu0 %5479
  %5481 = vrot.lane.b32.xlu0 %v2257, 120
  %v5482 = vpop.permute.xlu0 %5481
  %5483 = vrot.lane.b32.xlu0 %v2258, 120
  %v5484 = vpop.permute.xlu0 %5483
  %5485 = vrot.lane.b32.xlu0 %v2259, 120
  %v5486 = vpop.permute.xlu0 %5485
  %5487 = vrot.lane.b32.xlu0 %v2260, 120
  %v5488 = vpop.permute.xlu0 %5487
  %5489 = vrot.lane.b32.xlu0 %v2261, 120
  %v5490 = vpop.permute.xlu0 %5489
  %5491 = vrot.lane.b32.xlu0 %v2262, 120
  %v5492 = vpop.permute.xlu0 %5491
  %5493 = vrot.lane.b32.xlu0 %v2263, 120
  %v5494 = vpop.permute.xlu0 %5493
  %5495 = vrot.lane.b32.xlu0 %v2264, 120
  %v5496 = vpop.permute.xlu0 %5495
  %5497 = vrot.lane.b32.xlu0 %v2265, 120
  %v5498 = vpop.permute.xlu0 %5497
  %5499 = vrot.lane.b32.xlu0 %v2266, 120
  %v5500 = vpop.permute.xlu0 %5499
  %5501 = vrot.lane.b32.xlu0 %v2267, 120
  %v5502 = vpop.permute.xlu0 %5501
  %5503 = vrot.lane.b32.xlu0 %v2268, 120
  %v5504 = vpop.permute.xlu0 %5503
  %5505 = vrot.lane.b32.xlu0 %v2269, 120
  %v5506 = vpop.permute.xlu0 %5505
  %5507 = vrot.lane.b32.xlu0 %v2270, 120
  %v5508 = vpop.permute.xlu0 %5507
  %5509 = vrot.lane.b32.xlu0 %v2271, 120
  %v5510 = vpop.permute.xlu0 %5509
  %5511 = vrot.lane.b32.xlu0 %v2272, 120
  %v5512 = vpop.permute.xlu0 %5511
  %5513 = vrot.lane.b32.xlu0 %v2273, 120
  %v5514 = vpop.permute.xlu0 %5513
  %5515 = vrot.lane.b32.xlu0 %v2274, 120
  %v5516 = vpop.permute.xlu0 %5515
  %5517 = vrot.lane.b32.xlu0 %v2275, 120
  %v5518 = vpop.permute.xlu0 %5517
  %5519 = vrot.lane.b32.xlu0 %v2276, 120
  %v5520 = vpop.permute.xlu0 %5519
  %5521 = vrot.lane.b32.xlu0 %v2277, 120
  %v5522 = vpop.permute.xlu0 %5521
  %5523 = vrot.lane.b32.xlu0 %v2278, 120
  %v5524 = vpop.permute.xlu0 %5523
  %5525 = vrot.lane.b32.xlu0 %v2279, 120
  %v5526 = vpop.permute.xlu0 %5525
  %5527 = vrot.lane.b32.xlu0 %v2280, 120
  %v5528 = vpop.permute.xlu0 %5527
  %5529 = vrot.lane.b32.xlu0 %v2281, 120
  %v5530 = vpop.permute.xlu0 %5529
  %5531 = vrot.lane.b32.xlu0 %v2282, 120
  %v5532 = vpop.permute.xlu0 %5531
  %5533 = vrot.lane.b32.xlu0 %v2283, 120
  %v5534 = vpop.permute.xlu0 %5533
  %5535 = vrot.lane.b32.xlu0 %v2284, 120
  %v5536 = vpop.permute.xlu0 %5535
  %5537 = vrot.lane.b32.xlu0 %v2285, 120
  %v5538 = vpop.permute.xlu0 %5537
  %5539 = vrot.lane.b32.xlu0 %v2286, 120
  %v5540 = vpop.permute.xlu0 %5539
  %5541 = vrot.lane.b32.xlu0 %v2287, 120
  %v5542 = vpop.permute.xlu0 %5541
  %5543 = vrot.lane.b32.xlu0 %v2288, 120
  %v5544 = vpop.permute.xlu0 %5543
  %5545 = vrot.lane.b32.xlu0 %v2289, 120
  %v5546 = vpop.permute.xlu0 %5545
  %5547 = vrot.lane.b32.xlu0 %v2290, 120
  %v5548 = vpop.permute.xlu0 %5547
  %5549 = vrot.lane.b32.xlu0 %v2291, 120
  %v5550 = vpop.permute.xlu0 %5549
  %5551 = vrot.lane.b32.xlu0 %v2292, 120
  %v5552 = vpop.permute.xlu0 %5551
  %5553 = vrot.lane.b32.xlu0 %v2293, 120
  %v5554 = vpop.permute.xlu0 %5553
  %5555 = vrot.lane.b32.xlu0 %v2294, 120
  %v5556 = vpop.permute.xlu0 %5555
  %5557 = vrot.lane.b32.xlu0 %v2295, 120
  %v5558 = vpop.permute.xlu0 %5557
  %5559 = vrot.lane.b32.xlu0 %v2296, 120
  %v5560 = vpop.permute.xlu0 %5559
  %5561 = vrot.lane.b32.xlu0 %v2297, 120
  %v5562 = vpop.permute.xlu0 %5561
  %5563 = vrot.lane.b32.xlu0 %v2298, 120
  %v5564 = vpop.permute.xlu0 %5563
  %5565 = vrot.lane.b32.xlu0 %v2299, 120
  %v5566 = vpop.permute.xlu0 %5565
  %5567 = vrot.lane.b32.xlu0 %v2300, 120
  %v5568 = vpop.permute.xlu0 %5567
  %5569 = vrot.lane.b32.xlu0 %v2301, 120
  %v5570 = vpop.permute.xlu0 %5569
  %5571 = vrot.lane.b32.xlu0 %v2302, 120
  %v5572 = vpop.permute.xlu0 %5571
  %5573 = vrot.lane.b32.xlu0 %v2303, 120
  %v5574 = vpop.permute.xlu0 %5573
  %5575 = vrot.lane.b32.xlu0 %v2304, 120
  %v5576 = vpop.permute.xlu0 %5575
  %5577 = vrot.lane.b32.xlu0 %v2305, 120
  %v5578 = vpop.permute.xlu0 %5577
  %5579 = vrot.lane.b32.xlu0 %v2306, 120
  %v5580 = vpop.permute.xlu0 %5579
  %5581 = vrot.lane.b32.xlu0 %v2307, 120
  %v5582 = vpop.permute.xlu0 %5581
  %5583 = vrot.lane.b32.xlu0 %v2308, 120
  %v5584 = vpop.permute.xlu0 %5583
  %5585 = vrot.lane.b32.xlu0 %v2309, 120
  %v5586 = vpop.permute.xlu0 %5585
  %5587 = vrot.lane.b32.xlu0 %v2310, 120
  %v5588 = vpop.permute.xlu0 %5587
  %5589 = vrot.lane.b32.xlu0 %v2311, 120
  %v5590 = vpop.permute.xlu0 %5589
  %5591 = vrot.lane.b32.xlu0 %v2312, 120
  %v5592 = vpop.permute.xlu0 %5591
  %5593 = vrot.lane.b32.xlu0 %v2313, 120
  %v5594 = vpop.permute.xlu0 %5593
  %5595 = vrot.lane.b32.xlu0 %v2314, 120
  %v5596 = vpop.permute.xlu0 %5595
  %5597 = vrot.lane.b32.xlu0 %v2315, 120
  %v5598 = vpop.permute.xlu0 %5597
  %5599 = vrot.lane.b32.xlu0 %v2316, 120
  %v5600 = vpop.permute.xlu0 %5599
  %5601 = vrot.lane.b32.xlu0 %v2317, 120
  %v5602 = vpop.permute.xlu0 %5601
  %5603 = vrot.lane.b32.xlu0 %v2318, 120
  %v5604 = vpop.permute.xlu0 %5603
  %5605 = vrot.lane.b32.xlu0 %v2319, 120
  %v5606 = vpop.permute.xlu0 %5605
  %5607 = vrot.lane.b32.xlu0 %v2320, 120
  %v5608 = vpop.permute.xlu0 %5607
  %5609 = vrot.lane.b32.xlu0 %v2321, 120
  %v5610 = vpop.permute.xlu0 %5609
  %5611 = vrot.lane.b32.xlu0 %v2322, 120
  %v5612 = vpop.permute.xlu0 %5611
  %5613 = vrot.lane.b32.xlu0 %v2323, 120
  %v5614 = vpop.permute.xlu0 %5613
  %5615 = vrot.lane.b32.xlu0 %v2324, 120
  %v5616 = vpop.permute.xlu0 %5615
  %5617 = vrot.lane.b32.xlu0 %v2325, 120
  %v5618 = vpop.permute.xlu0 %5617
  %5619 = vrot.lane.b32.xlu0 %v2326, 120
  %v5620 = vpop.permute.xlu0 %5619
  %5621 = vrot.lane.b32.xlu0 %v2327, 120
  %v5622 = vpop.permute.xlu0 %5621
  %5623 = vrot.lane.b32.xlu0 %v2328, 120
  %v5624 = vpop.permute.xlu0 %5623
  %5625 = vrot.lane.b32.xlu0 %v2329, 120
  %v5626 = vpop.permute.xlu0 %5625
  %5627 = vrot.lane.b32.xlu0 %v2330, 120
  %v5628 = vpop.permute.xlu0 %5627
  %5629 = vrot.lane.b32.xlu0 %v2331, 120
  %v5630 = vpop.permute.xlu0 %5629
  %5631 = vrot.lane.b32.xlu0 %v2332, 120
  %v5632 = vpop.permute.xlu0 %5631
  %5633 = vrot.lane.b32.xlu0 %v2333, 120
  %v5634 = vpop.permute.xlu0 %5633
  %5635 = vrot.lane.b32.xlu0 %v2334, 120
  %v5636 = vpop.permute.xlu0 %5635
  %5637 = vrot.lane.b32.xlu0 %v2335, 120
  %v5638 = vpop.permute.xlu0 %5637
  %5639 = vrot.lane.b32.xlu0 %v2336, 120
  %v5640 = vpop.permute.xlu0 %5639
  %5641 = vrot.lane.b32.xlu0 %v2337, 120
  %v5642 = vpop.permute.xlu0 %5641
  %5643 = vrot.lane.b32.xlu0 %v2338, 120
  %v5644 = vpop.permute.xlu0 %5643
  %5645 = vrot.lane.b32.xlu0 %v2339, 120
  %v5646 = vpop.permute.xlu0 %5645
  %5647 = vrot.lane.b32.xlu0 %v2340, 120
  %v5648 = vpop.permute.xlu0 %5647
  %5649 = vrot.lane.b32.xlu0 %v2341, 120
  %v5650 = vpop.permute.xlu0 %5649
  %5651 = vrot.lane.b32.xlu0 %v2342, 120
  %v5652 = vpop.permute.xlu0 %5651
  %5653 = vrot.lane.b32.xlu0 %v2343, 120
  %v5654 = vpop.permute.xlu0 %5653
  %v5656 = vsel %vm453, %v5400, 0
  %v5659 = vsel %vm453, %v5402, 0
  %v5662 = vsel %vm453, %v5404, 0
  %v5665 = vsel %vm453, %v5406, 0
  %v5668 = vsel %vm453, %v5408, 0
  %v5671 = vsel %vm453, %v5410, 0
  %v5674 = vsel %vm453, %v5412, 0
  %v5677 = vsel %vm453, %v5414, 0
  %v5680 = vsel %vm453, %v5416, 0
  %v5683 = vsel %vm453, %v5418, 0
  %v5686 = vsel %vm453, %v5420, 0
  %v5689 = vsel %vm453, %v5422, 0
  %v5692 = vsel %vm453, %v5424, 0
  %v5695 = vsel %vm453, %v5426, 0
  %v5698 = vsel %vm453, %v5428, 0
  %v5701 = vsel %vm453, %v5430, 0
  %v5704 = vsel %vm453, %v5432, 0
  %v5707 = vsel %vm453, %v5434, 0
  %v5710 = vsel %vm453, %v5436, 0
  %v5713 = vsel %vm453, %v5438, 0
  %v5716 = vsel %vm453, %v5440, 0
  %v5719 = vsel %vm453, %v5442, 0
  %v5722 = vsel %vm453, %v5444, 0
  %v5725 = vsel %vm453, %v5446, 0
  %v5728 = vsel %vm453, %v5448, 0
  %v5731 = vsel %vm453, %v5450, 0
  %v5734 = vsel %vm453, %v5452, 0
  %v5737 = vsel %vm453, %v5454, 0
  %v5740 = vsel %vm453, %v5456, 0
  %v5743 = vsel %vm453, %v5458, 0
  %v5746 = vsel %vm453, %v5460, 0
  %v5749 = vsel %vm453, %v5462, 0
  %v5752 = vsel %vm453, %v5464, 0
  %v5755 = vsel %vm453, %v5466, 0
  %v5758 = vsel %vm453, %v5468, 0
  %v5761 = vsel %vm453, %v5470, 0
  %v5764 = vsel %vm453, %v5472, 0
  %v5767 = vsel %vm453, %v5474, 0
  %v5770 = vsel %vm453, %v5476, 0
  %v5773 = vsel %vm453, %v5478, 0
  %v5776 = vsel %vm453, %v5480, 0
  %v5779 = vsel %vm453, %v5482, 0
  %v5782 = vsel %vm453, %v5484, 0
  %v5785 = vsel %vm453, %v5486, 0
  %v5788 = vsel %vm453, %v5488, 0
  %v5791 = vsel %vm453, %v5490, 0
  %v5794 = vsel %vm453, %v5492, 0
  %v5797 = vsel %vm453, %v5494, 0
  %v5800 = vsel %vm453, %v5496, 0
  %v5803 = vsel %vm453, %v5498, 0
  %v5806 = vsel %vm453, %v5500, 0
  %v5809 = vsel %vm453, %v5502, 0
  %v5812 = vsel %vm453, %v5504, 0
  %v5815 = vsel %vm453, %v5506, 0
  %v5818 = vsel %vm453, %v5508, 0
  %v5821 = vsel %vm453, %v5510, 0
  %v5824 = vsel %vm453, %v5512, 0
  %v5827 = vsel %vm453, %v5514, 0
  %v5830 = vsel %vm453, %v5516, 0
  %v5833 = vsel %vm453, %v5518, 0
  %v5836 = vsel %vm453, %v5520, 0
  %v5839 = vsel %vm453, %v5522, 0
  %v5842 = vsel %vm453, %v5524, 0
  %v5845 = vsel %vm453, %v5526, 0
  %v5848 = vsel %vm453, %v5528, 0
  %v5851 = vsel %vm453, %v5530, 0
  %v5854 = vsel %vm453, %v5532, 0
  %v5857 = vsel %vm453, %v5534, 0
  %v5860 = vsel %vm453, %v5536, 0
  %v5863 = vsel %vm453, %v5538, 0
  %v5866 = vsel %vm453, %v5540, 0
  %v5869 = vsel %vm453, %v5542, 0
  %v5872 = vsel %vm453, %v5544, 0
  %v5875 = vsel %vm453, %v5546, 0
  %v5878 = vsel %vm453, %v5548, 0
  %v5881 = vsel %vm453, %v5550, 0
  %v5884 = vsel %vm453, %v5552, 0
  %v5887 = vsel %vm453, %v5554, 0
  %v5890 = vsel %vm453, %v5556, 0
  %v5893 = vsel %vm453, %v5558, 0
  %v5896 = vsel %vm453, %v5560, 0
  %v5899 = vsel %vm453, %v5562, 0
  %v5902 = vsel %vm453, %v5564, 0
  %v5905 = vsel %vm453, %v5566, 0
  %v5908 = vsel %vm453, %v5568, 0
  %v5911 = vsel %vm453, %v5570, 0
  %v5914 = vsel %vm453, %v5572, 0
  %v5917 = vsel %vm453, %v5574, 0
  %v5920 = vsel %vm453, %v5576, 0
  %v5923 = vsel %vm453, %v5578, 0
  %v5926 = vsel %vm453, %v5580, 0
  %v5929 = vsel %vm453, %v5582, 0
  %v5932 = vsel %vm453, %v5584, 0
  %v5935 = vsel %vm453, %v5586, 0
  %v5938 = vsel %vm453, %v5588, 0
  %v5941 = vsel %vm453, %v5590, 0
  %v5944 = vsel %vm453, %v5592, 0
  %v5947 = vsel %vm453, %v5594, 0
  %v5950 = vsel %vm453, %v5596, 0
  %v5953 = vsel %vm453, %v5598, 0
  %v5956 = vsel %vm453, %v5600, 0
  %v5959 = vsel %vm453, %v5602, 0
  %v5962 = vsel %vm453, %v5604, 0
  %v5965 = vsel %vm453, %v5606, 0
  %v5968 = vsel %vm453, %v5608, 0
  %v5971 = vsel %vm453, %v5610, 0
  %v5974 = vsel %vm453, %v5612, 0
  %v5977 = vsel %vm453, %v5614, 0
  %v5980 = vsel %vm453, %v5616, 0
  %v5983 = vsel %vm453, %v5618, 0
  %v5986 = vsel %vm453, %v5620, 0
  %v5989 = vsel %vm453, %v5622, 0
  %v5992 = vsel %vm453, %v5624, 0
  %v5995 = vsel %vm453, %v5626, 0
  %v5998 = vsel %vm453, %v5628, 0
  %v6001 = vsel %vm453, %v5630, 0
  %v6004 = vsel %vm453, %v5632, 0
  %v6007 = vsel %vm453, %v5634, 0
  %v6010 = vsel %vm453, %v5636, 0
  %v6013 = vsel %vm453, %v5638, 0
  %v6016 = vsel %vm453, %v5640, 0
  %v6019 = vsel %vm453, %v5642, 0
  %v6022 = vsel %vm453, %v5644, 0
  %v6025 = vsel %vm453, %v5646, 0
  %v6028 = vsel %vm453, %v5648, 0
  %v6031 = vsel %vm453, %v5650, 0
  %v6034 = vsel %vm453, %v5652, 0
  %v6037 = vsel %vm453, %v5654, 0
  %v6040 = vsel %vm2728, %v5398, 0
  %6042 = vmatprep.subr.bf16.mxu0 0
  %6043 = vmatpush1.bf16.msra.mxu0 %v6040
  %6044 = vmatprep.subr.bf16.mxu0 0
  %6045 = vmatpush1.bf16.msra.mxu0 0
  %6046 = vmatprep.subr.bf16.mxu0 0
  %6047 = vmatpush1.bf16.msra.mxu0 0
  %6048 = vmatprep.subr.bf16.mxu0 0
  %6049 = vmatpush1.bf16.msra.mxu0 0
  %6050 = vmatprep.subr.bf16.mxu0 0
  %6051 = vmatpush1.bf16.msra.mxu0 0
  %6052 = vmatprep.subr.bf16.mxu0 0
  %6053 = vmatpush1.bf16.msra.mxu0 0
  %6054 = vmatprep.subr.bf16.mxu0 0
  %6055 = vmatpush1.bf16.msra.mxu0 0
  %6056 = vmatprep.subr.bf16.mxu0 0
  %6057 = vmatpush1.bf16.msra.mxu0 0
  %6058 = vmatprep.subr.bf16.mxu0 0
  %6059 = vmatpush1.bf16.msra.mxu0 0
  %6060 = vmatprep.subr.bf16.mxu0 0
  %6061 = vmatpush1.bf16.msra.mxu0 0
  %6062 = vmatprep.subr.bf16.mxu0 0
  %6063 = vmatpush1.bf16.msra.mxu0 0
  %6064 = vmatprep.subr.bf16.mxu0 0
  %6065 = vmatpush1.bf16.msra.mxu0 0
  %6066 = vmatprep.subr.bf16.mxu0 0
  %6067 = vmatpush1.bf16.msra.mxu0 0
  %6068 = vmatprep.subr.bf16.mxu0 0
  %6069 = vmatpush1.bf16.msra.mxu0 0
  %6070 = vmatprep.subr.bf16.mxu0 0
  %6071 = vmatpush1.bf16.msra.mxu0 0
  %6072 = vmatprep.subr.bf16.mxu0 0
  %6073 = vmatpush1.bf16.msra.mxu0 0
  %6074 = vmatprep.mubr.bf16.mxu0 0
  %6075 = vmatmul.mubr.bf16.gmra.mrb[0].mxu0 %v5656
  %v6076 = vpop.f32.mrb[0].mxu0
  %v6077 = vadd.f32 0.0, %v6076
  %v6078 = vpop.f32.mrb[0].mxu0
  %v6079 = vpop.f32.mrb[0].mxu0
  %v6080 = vadd.f32 0.0, %v6079
  %v6081 = vpop.f32.mrb[0].mxu0
  %6082 = vmatprep.mubr.bf16.mxu0 0
  %6083 = vmatmul.mubr.bf16.gmra.mrb[0].mxu0 %v5659
  %v6084 = vpop.f32.mrb[0].mxu0
  %v6085 = vadd.f32 0.0, %v6084
  %v6086 = vpop.f32.mrb[0].mxu0
  %v6087 = vpop.f32.mrb[0].mxu0
  %v6088 = vadd.f32 0.0, %v6087
  %v6089 = vpop.f32.mrb[0].mxu0
  %6090 = vmatprep.mubr.bf16.mxu0 0
  %6091 = vmatmul.mubr.bf16.gmra.mrb[0].mxu0 %v5662
  %v6092 = vpop.f32.mrb[0].mxu0
  %v6093 = vadd.f32 0.0, %v6092
  %v6094 = vpop.f32.mrb[0].mxu0
  %v6095 = vpop.f32.mrb[0].mxu0
  %v6096 = vadd.f32 0.0, %v6095
  %v6097 = vpop.f32.mrb[0].mxu0
  %6098 = vmatprep.mubr.bf16.mxu0 0
  %6099 = vmatmul.mubr.bf16.gmra.mrb[0].mxu0 %v5665
  %v6100 = vpop.f32.mrb[0].mxu0
  %v6101 = vadd.f32 0.0, %v6100
  %v6102 = vpop.f32.mrb[0].mxu0
  %v6103 = vpop.f32.mrb[0].mxu0
  %v6104 = vadd.f32 0.0, %v6103
  %v6105 = vpop.f32.mrb[0].mxu0
  %6106 = vmatprep.mubr.bf16.mxu0 0
  %6107 = vmatmul.mubr.bf16.gmra.mrb[0].mxu0 %v5668
  %v6108 = vpop.f32.mrb[0].mxu0
  %v6109 = vadd.f32 0.0, %v6108
  %v6110 = vpop.f32.mrb[0].mxu0
  %v6111 = vpop.f32.mrb[0].mxu0
  %v6112 = vadd.f32 0.0, %v6111
  %v6113 = vpop.f32.mrb[0].mxu0
  %6114 = vmatprep.mubr.bf16.mxu0 0
  %6115 = vmatmul.mubr.bf16.gmra.mrb[0].mxu0 %v5671
  %v6116 = vpop.f32.mrb[0].mxu0
  %v6117 = vadd.f32 0.0, %v6116
  %v6118 = vpop.f32.mrb[0].mxu0
  %v6119 = vpop.f32.mrb[0].mxu0
  %v6120 = vadd.f32 0.0, %v6119
  %v6121 = vpop.f32.mrb[0].mxu0
  %6122 = vmatprep.mubr.bf16.mxu0 0
  %6123 = vmatmul.mubr.bf16.gmra.mrb[0].mxu0 %v5674
  %v6124 = vpop.f32.mrb[0].mxu0
  %v6125 = vadd.f32 0.0, %v6124
  %v6126 = vpop.f32.mrb[0].mxu0
  %v6127 = vpop.f32.mrb[0].mxu0
  %v6128 = vadd.f32 0.0, %v6127
  %v6129 = vpop.f32.mrb[0].mxu0
  %6130 = vmatprep.mubr.bf16.mxu0 0
  %6131 = vmatmul.mubr.bf16.gmra.mrb[0].mxu0 %v5677
  %v6132 = vpop.f32.mrb[0].mxu0
  %v6133 = vadd.f32 0.0, %v6132
  %v6134 = vpop.f32.mrb[0].mxu0
  %v6135 = vpop.f32.mrb[0].mxu0
  %v6136 = vadd.f32 0.0, %v6135
  %v6137 = vpop.f32.mrb[0].mxu0
  %6138 = vmatprep.mubr.bf16.mxu0 0
  %6139 = vmatmul.mubr.bf16.gmra.mrb[0].mxu0 %v5680
  %v6140 = vpop.f32.mrb[0].mxu0
  %v6141 = vadd.f32 0.0, %v6140
  %v6142 = vpop.f32.mrb[0].mxu0
  %v6143 = vpop.f32.mrb[0].mxu0
  %v6144 = vadd.f32 0.0, %v6143
  %v6145 = vpop.f32.mrb[0].mxu0
  %6146 = vmatprep.mubr.bf16.mxu0 0
  %6147 = vmatmul.mubr.bf16.gmra.mrb[0].mxu0 %v5683
  %v6148 = vpop.f32.mrb[0].mxu0
  %v6149 = vadd.f32 0.0, %v6148
  %v6150 = vpop.f32.mrb[0].mxu0
  %v6151 = vpop.f32.mrb[0].mxu0
  %v6152 = vadd.f32 0.0, %v6151
  %v6153 = vpop.f32.mrb[0].mxu0
  %6154 = vmatprep.mubr.bf16.mxu0 0
  %6155 = vmatmul.mubr.bf16.gmra.mrb[0].mxu0 %v5686
  %v6156 = vpop.f32.mrb[0].mxu0
  %v6157 = vadd.f32 0.0, %v6156
  %v6158 = vpop.f32.mrb[0].mxu0
  %v6159 = vpop.f32.mrb[0].mxu0
  %v6160 = vadd.f32 0.0, %v6159
  %v6161 = vpop.f32.mrb[0].mxu0
  %6162 = vmatprep.mubr.bf16.mxu0 0
  %6163 = vmatmul.mubr.bf16.gmra.mrb[0].mxu0 %v5689
  %v6164 = vpop.f32.mrb[0].mxu0
  %v6165 = vadd.f32 0.0, %v6164
  %v6166 = vpop.f32.mrb[0].mxu0
  %v6167 = vpop.f32.mrb[0].mxu0
  %v6168 = vadd.f32 0.0, %v6167
  %v6169 = vpop.f32.mrb[0].mxu0
  %6170 = vmatprep.mubr.bf16.mxu0 0
  %6171 = vmatmul.mubr.bf16.gmra.mrb[0].mxu0 %v5692
  %v6172 = vpop.f32.mrb[0].mxu0
  %v6173 = vadd.f32 0.0, %v6172
  %v6174 = vpop.f32.mrb[0].mxu0
  %v6175 = vpop.f32.mrb[0].mxu0
  %v6176 = vadd.f32 0.0, %v6175
  %v6177 = vpop.f32.mrb[0].mxu0
  %6178 = vmatprep.mubr.bf16.mxu0 0
  %6179 = vmatmul.mubr.bf16.gmra.mrb[0].mxu0 %v5695
  %v6180 = vpop.f32.mrb[0].mxu0
  %v6181 = vadd.f32 0.0, %v6180
  %v6182 = vpop.f32.mrb[0].mxu0
  %v6183 = vpop.f32.mrb[0].mxu0
  %v6184 = vadd.f32 0.0, %v6183
  %v6185 = vpop.f32.mrb[0].mxu0
  %6186 = vmatprep.mubr.bf16.mxu0 0
  %6187 = vmatmul.mubr.bf16.gmra.mrb[0].mxu0 %v5698
  %v6188 = vpop.f32.mrb[0].mxu0
  %v6189 = vadd.f32 0.0, %v6188
  %v6190 = vpop.f32.mrb[0].mxu0
  %v6191 = vpop.f32.mrb[0].mxu0
  %v6192 = vadd.f32 0.0, %v6191
  %v6193 = vpop.f32.mrb[0].mxu0
  %6194 = vmatprep.mubr.bf16.mxu0 0
  %6195 = vmatmul.mubr.bf16.gmra.mrb[0].mxu0 %v5701
  %v6196 = vpop.f32.mrb[0].mxu0
  %v6197 = vadd.f32 0.0, %v6196
  %v6198 = vpop.f32.mrb[0].mxu0
  %v6199 = vpop.f32.mrb[0].mxu0
  %v6200 = vadd.f32 0.0, %v6199
  %v6201 = vpop.f32.mrb[0].mxu0
  %6202 = vmatprep.mubr.bf16.mxu0 0
  %6203 = vmatmul.mubr.bf16.gmra.mrb[0].mxu0 %v5704
  %v6204 = vpop.f32.mrb[0].mxu0
  %v6205 = vadd.f32 0.0, %v6204
  %v6206 = vpop.f32.mrb[0].mxu0
  %v6207 = vpop.f32.mrb[0].mxu0
  %v6208 = vadd.f32 0.0, %v6207
  %v6209 = vpop.f32.mrb[0].mxu0
  %6210 = vmatprep.mubr.bf16.mxu0 0
  %6211 = vmatmul.mubr.bf16.gmra.mrb[0].mxu0 %v5707
  %v6212 = vpop.f32.mrb[0].mxu0
  %v6213 = vadd.f32 0.0, %v6212
  %v6214 = vpop.f32.mrb[0].mxu0
  %v6215 = vpop.f32.mrb[0].mxu0
  %v6216 = vadd.f32 0.0, %v6215
  %v6217 = vpop.f32.mrb[0].mxu0
  %6218 = vmatprep.mubr.bf16.mxu0 0
  %6219 = vmatmul.mubr.bf16.gmra.mrb[0].mxu0 %v5710
  %v6220 = vpop.f32.mrb[0].mxu0
  %v6221 = vadd.f32 0.0, %v6220
  %v6222 = vpop.f32.mrb[0].mxu0
  %v6223 = vpop.f32.mrb[0].mxu0
  %v6224 = vadd.f32 0.0, %v6223
  %v6225 = vpop.f32.mrb[0].mxu0
  %6226 = vmatprep.mubr.bf16.mxu0 0
  %6227 = vmatmul.mubr.bf16.gmra.mrb[0].mxu0 %v5713
  %v6228 = vpop.f32.mrb[0].mxu0
  %v6229 = vadd.f32 0.0, %v6228
  %v6230 = vpop.f32.mrb[0].mxu0
  %v6231 = vpop.f32.mrb[0].mxu0
  %v6232 = vadd.f32 0.0, %v6231
  %v6233 = vpop.f32.mrb[0].mxu0
  %6234 = vmatprep.mubr.bf16.mxu0 0
  %6235 = vmatmul.mubr.bf16.gmra.mrb[0].mxu0 %v5716
  %v6236 = vpop.f32.mrb[0].mxu0
  %v6237 = vadd.f32 0.0, %v6236
  %v6238 = vpop.f32.mrb[0].mxu0
  %v6239 = vpop.f32.mrb[0].mxu0
  %v6240 = vadd.f32 0.0, %v6239
  %v6241 = vpop.f32.mrb[0].mxu0
  %6242 = vmatprep.mubr.bf16.mxu0 0
  %6243 = vmatmul.mubr.bf16.gmra.mrb[0].mxu0 %v5719
  %v6244 = vpop.f32.mrb[0].mxu0
  %v6245 = vadd.f32 0.0, %v6244
  %v6246 = vpop.f32.mrb[0].mxu0
  %v6247 = vpop.f32.mrb[0].mxu0
  %v6248 = vadd.f32 0.0, %v6247
  %v6249 = vpop.f32.mrb[0].mxu0
  %6250 = vmatprep.mubr.bf16.mxu0 0
  %6251 = vmatmul.mubr.bf16.gmra.mrb[0].mxu0 %v5722
  %v6252 = vpop.f32.mrb[0].mxu0
  %v6253 = vadd.f32 0.0, %v6252
  %v6254 = vpop.f32.mrb[0].mxu0
  %v6255 = vpop.f32.mrb[0].mxu0
  %v6256 = vadd.f32 0.0, %v6255
  %v6257 = vpop.f32.mrb[0].mxu0
  %6258 = vmatprep.mubr.bf16.mxu0 0
  %6259 = vmatmul.mubr.bf16.gmra.mrb[0].mxu0 %v5725
  %v6260 = vpop.f32.mrb[0].mxu0
  %v6261 = vadd.f32 0.0, %v6260
  %v6262 = vpop.f32.mrb[0].mxu0
  %v6263 = vpop.f32.mrb[0].mxu0
  %v6264 = vadd.f32 0.0, %v6263
  %v6265 = vpop.f32.mrb[0].mxu0
  %6266 = vmatprep.mubr.bf16.mxu0 0
  %6267 = vmatmul.mubr.bf16.gmra.mrb[0].mxu0 %v5728
  %v6268 = vpop.f32.mrb[0].mxu0
  %v6269 = vadd.f32 0.0, %v6268
  %v6270 = vpop.f32.mrb[0].mxu0
  %v6271 = vpop.f32.mrb[0].mxu0
  %v6272 = vadd.f32 0.0, %v6271
  %v6273 = vpop.f32.mrb[0].mxu0
  %6274 = vmatprep.mubr.bf16.mxu0 0
  %6275 = vmatmul.mubr.bf16.gmra.mrb[0].mxu0 %v5731
  %v6276 = vpop.f32.mrb[0].mxu0
  %v6277 = vadd.f32 0.0, %v6276
  %v6278 = vpop.f32.mrb[0].mxu0
  %v6279 = vpop.f32.mrb[0].mxu0
  %v6280 = vadd.f32 0.0, %v6279
  %v6281 = vpop.f32.mrb[0].mxu0
  %6282 = vmatprep.mubr.bf16.mxu0 0
  %6283 = vmatmul.mubr.bf16.gmra.mrb[0].mxu0 %v5734
  %v6284 = vpop.f32.mrb[0].mxu0
  %v6285 = vadd.f32 0.0, %v6284
  %v6286 = vpop.f32.mrb[0].mxu0
  %v6287 = vpop.f32.mrb[0].mxu0
  %v6288 = vadd.f32 0.0, %v6287
  %v6289 = vpop.f32.mrb[0].mxu0
  %6290 = vmatprep.mubr.bf16.mxu0 0
  %6291 = vmatmul.mubr.bf16.gmra.mrb[0].mxu0 %v5737
  %v6292 = vpop.f32.mrb[0].mxu0
  %v6293 = vadd.f32 0.0, %v6292
  %v6294 = vpop.f32.mrb[0].mxu0
  %v6295 = vpop.f32.mrb[0].mxu0
  %v6296 = vadd.f32 0.0, %v6295
  %v6297 = vpop.f32.mrb[0].mxu0
  %6298 = vmatprep.mubr.bf16.mxu0 0
  %6299 = vmatmul.mubr.bf16.gmra.mrb[0].mxu0 %v5740
  %v6300 = vpop.f32.mrb[0].mxu0
  %v6301 = vadd.f32 0.0, %v6300
  %v6302 = vpop.f32.mrb[0].mxu0
  %v6303 = vpop.f32.mrb[0].mxu0
  %v6304 = vadd.f32 0.0, %v6303
  %v6305 = vpop.f32.mrb[0].mxu0
  %6306 = vmatprep.mubr.bf16.mxu0 0
  %6307 = vmatmul.mubr.bf16.gmra.mrb[0].mxu0 %v5743
  %v6308 = vpop.f32.mrb[0].mxu0
  %v6309 = vadd.f32 0.0, %v6308
  %v6310 = vpop.f32.mrb[0].mxu0
  %v6311 = vpop.f32.mrb[0].mxu0
  %v6312 = vadd.f32 0.0, %v6311
  %v6313 = vpop.f32.mrb[0].mxu0
  %6314 = vmatprep.mubr.bf16.mxu0 0
  %6315 = vmatmul.mubr.bf16.gmra.mrb[0].mxu0 %v5746
  %v6316 = vpop.f32.mrb[0].mxu0
  %v6317 = vadd.f32 0.0, %v6316
  %v6318 = vpop.f32.mrb[0].mxu0
  %v6319 = vpop.f32.mrb[0].mxu0
  %v6320 = vadd.f32 0.0, %v6319
  %v6321 = vpop.f32.mrb[0].mxu0
  %6322 = vmatprep.mubr.bf16.mxu0 0
  %6323 = vmatmul.mubr.bf16.gmra.mrb[0].mxu0 %v5749
  %v6324 = vpop.f32.mrb[0].mxu0
  %v6325 = vadd.f32 0.0, %v6324
  %v6326 = vpop.f32.mrb[0].mxu0
  %v6327 = vpop.f32.mrb[0].mxu0
  %v6328 = vadd.f32 0.0, %v6327
  %v6329 = vpop.f32.mrb[0].mxu0
  %6330 = vmatprep.mubr.bf16.mxu0 0
  %6331 = vmatmul.mubr.bf16.gmra.mrb[0].mxu0 %v5752
  %v6332 = vpop.f32.mrb[0].mxu0
  %v6333 = vadd.f32 0.0, %v6332
  %v6334 = vpop.f32.mrb[0].mxu0
  %v6335 = vpop.f32.mrb[0].mxu0
  %v6336 = vadd.f32 0.0, %v6335
  %v6337 = vpop.f32.mrb[0].mxu0
  %6338 = vmatprep.mubr.bf16.mxu0 0
  %6339 = vmatmul.mubr.bf16.gmra.mrb[0].mxu0 %v5755
  %v6340 = vpop.f32.mrb[0].mxu0
  %v6341 = vadd.f32 0.0, %v6340
  %v6342 = vpop.f32.mrb[0].mxu0
  %v6343 = vpop.f32.mrb[0].mxu0
  %v6344 = vadd.f32 0.0, %v6343
  %v6345 = vpop.f32.mrb[0].mxu0
  %6346 = vmatprep.mubr.bf16.mxu0 0
  %6347 = vmatmul.mubr.bf16.gmra.mrb[0].mxu0 %v5758
  %v6348 = vpop.f32.mrb[0].mxu0
  %v6349 = vadd.f32 0.0, %v6348
  %v6350 = vpop.f32.mrb[0].mxu0
  %v6351 = vpop.f32.mrb[0].mxu0
  %v6352 = vadd.f32 0.0, %v6351
  %v6353 = vpop.f32.mrb[0].mxu0
  %6354 = vmatprep.mubr.bf16.mxu0 0
  %6355 = vmatmul.mubr.bf16.gmra.mrb[0].mxu0 %v5761
  %v6356 = vpop.f32.mrb[0].mxu0
  %v6357 = vadd.f32 0.0, %v6356
  %v6358 = vpop.f32.mrb[0].mxu0
  %v6359 = vpop.f32.mrb[0].mxu0
  %v6360 = vadd.f32 0.0, %v6359
  %v6361 = vpop.f32.mrb[0].mxu0
  %6362 = vmatprep.mubr.bf16.mxu0 0
  %6363 = vmatmul.mubr.bf16.gmra.mrb[0].mxu0 %v5764
  %v6364 = vpop.f32.mrb[0].mxu0
  %v6365 = vadd.f32 0.0, %v6364
  %v6366 = vpop.f32.mrb[0].mxu0
  %v6367 = vpop.f32.mrb[0].mxu0
  %v6368 = vadd.f32 0.0, %v6367
  %v6369 = vpop.f32.mrb[0].mxu0
  %6370 = vmatprep.mubr.bf16.mxu0 0
  %6371 = vmatmul.mubr.bf16.gmra.mrb[0].mxu0 %v5767
  %v6372 = vpop.f32.mrb[0].mxu0
  %v6373 = vadd.f32 0.0, %v6372
  %v6374 = vpop.f32.mrb[0].mxu0
  %v6375 = vpop.f32.mrb[0].mxu0
  %v6376 = vadd.f32 0.0, %v6375
  %v6377 = vpop.f32.mrb[0].mxu0
  %6378 = vmatprep.mubr.bf16.mxu0 0
  %6379 = vmatmul.mubr.bf16.gmra.mrb[0].mxu0 %v5770
  %v6380 = vpop.f32.mrb[0].mxu0
  %v6381 = vadd.f32 0.0, %v6380
  %v6382 = vpop.f32.mrb[0].mxu0
  %v6383 = vpop.f32.mrb[0].mxu0
  %v6384 = vadd.f32 0.0, %v6383
  %v6385 = vpop.f32.mrb[0].mxu0
  %6386 = vmatprep.mubr.bf16.mxu0 0
  %6387 = vmatmul.mubr.bf16.gmra.mrb[0].mxu0 %v5773
  %v6388 = vpop.f32.mrb[0].mxu0
  %v6389 = vadd.f32 0.0, %v6388
  %v6390 = vpop.f32.mrb[0].mxu0
  %v6391 = vpop.f32.mrb[0].mxu0
  %v6392 = vadd.f32 0.0, %v6391
  %v6393 = vpop.f32.mrb[0].mxu0
  %6394 = vmatprep.mubr.bf16.mxu0 0
  %6395 = vmatmul.mubr.bf16.gmra.mrb[0].mxu0 %v5776
  %v6396 = vpop.f32.mrb[0].mxu0
  %v6397 = vadd.f32 0.0, %v6396
  %v6398 = vpop.f32.mrb[0].mxu0
  %v6399 = vpop.f32.mrb[0].mxu0
  %v6400 = vadd.f32 0.0, %v6399
  %v6401 = vpop.f32.mrb[0].mxu0
  %6402 = vmatprep.mubr.bf16.mxu0 0
  %6403 = vmatmul.mubr.bf16.gmra.mrb[0].mxu0 %v5779
  %v6404 = vpop.f32.mrb[0].mxu0
  %v6405 = vadd.f32 0.0, %v6404
  %v6406 = vpop.f32.mrb[0].mxu0
  %v6407 = vpop.f32.mrb[0].mxu0
  %v6408 = vadd.f32 0.0, %v6407
  %v6409 = vpop.f32.mrb[0].mxu0
  %6410 = vmatprep.mubr.bf16.mxu0 0
  %6411 = vmatmul.mubr.bf16.gmra.mrb[0].mxu0 %v5782
  %v6412 = vpop.f32.mrb[0].mxu0
  %v6413 = vadd.f32 0.0, %v6412
  %v6414 = vpop.f32.mrb[0].mxu0
  %v6415 = vpop.f32.mrb[0].mxu0
  %v6416 = vadd.f32 0.0, %v6415
  %v6417 = vpop.f32.mrb[0].mxu0
  %6418 = vmatprep.mubr.bf16.mxu0 0
  %6419 = vmatmul.mubr.bf16.gmra.mrb[0].mxu0 %v5785
  %v6420 = vpop.f32.mrb[0].mxu0
  %v6421 = vadd.f32 0.0, %v6420
  %v6422 = vpop.f32.mrb[0].mxu0
  %v6423 = vpop.f32.mrb[0].mxu0
  %v6424 = vadd.f32 0.0, %v6423
  %v6425 = vpop.f32.mrb[0].mxu0
  %6426 = vmatprep.mubr.bf16.mxu0 0
  %6427 = vmatmul.mubr.bf16.gmra.mrb[0].mxu0 %v5788
  %v6428 = vpop.f32.mrb[0].mxu0
  %v6429 = vadd.f32 0.0, %v6428
  %v6430 = vpop.f32.mrb[0].mxu0
  %v6431 = vpop.f32.mrb[0].mxu0
  %v6432 = vadd.f32 0.0, %v6431
  %v6433 = vpop.f32.mrb[0].mxu0
  %6434 = vmatprep.mubr.bf16.mxu0 0
  %6435 = vmatmul.mubr.bf16.gmra.mrb[0].mxu0 %v5791
  %v6436 = vpop.f32.mrb[0].mxu0
  %v6437 = vadd.f32 0.0, %v6436
  %v6438 = vpop.f32.mrb[0].mxu0
  %v6439 = vpop.f32.mrb[0].mxu0
  %v6440 = vadd.f32 0.0, %v6439
  %v6441 = vpop.f32.mrb[0].mxu0
  %6442 = vmatprep.mubr.bf16.mxu0 0
  %6443 = vmatmul.mubr.bf16.gmra.mrb[0].mxu0 %v5794
  %v6444 = vpop.f32.mrb[0].mxu0
  %v6445 = vadd.f32 0.0, %v6444
  %v6446 = vpop.f32.mrb[0].mxu0
  %v6447 = vpop.f32.mrb[0].mxu0
  %v6448 = vadd.f32 0.0, %v6447
  %v6449 = vpop.f32.mrb[0].mxu0
  %6450 = vmatprep.mubr.bf16.mxu0 0
  %6451 = vmatmul.mubr.bf16.gmra.mrb[0].mxu0 %v5797
  %v6452 = vpop.f32.mrb[0].mxu0
  %v6453 = vadd.f32 0.0, %v6452
  %v6454 = vpop.f32.mrb[0].mxu0
  %v6455 = vpop.f32.mrb[0].mxu0
  %v6456 = vadd.f32 0.0, %v6455
  %v6457 = vpop.f32.mrb[0].mxu0
  %6458 = vmatprep.mubr.bf16.mxu0 0
  %6459 = vmatmul.mubr.bf16.gmra.mrb[0].mxu0 %v5800
  %v6460 = vpop.f32.mrb[0].mxu0
  %v6461 = vadd.f32 0.0, %v6460
  %v6462 = vpop.f32.mrb[0].mxu0
  %v6463 = vpop.f32.mrb[0].mxu0
  %v6464 = vadd.f32 0.0, %v6463
  %v6465 = vpop.f32.mrb[0].mxu0
  %6466 = vmatprep.mubr.bf16.mxu0 0
  %6467 = vmatmul.mubr.bf16.gmra.mrb[0].mxu0 %v5803
  %v6468 = vpop.f32.mrb[0].mxu0
  %v6469 = vadd.f32 0.0, %v6468
  %v6470 = vpop.f32.mrb[0].mxu0
  %v6471 = vpop.f32.mrb[0].mxu0
  %v6472 = vadd.f32 0.0, %v6471
  %v6473 = vpop.f32.mrb[0].mxu0
  %6474 = vmatprep.mubr.bf16.mxu0 0
  %6475 = vmatmul.mubr.bf16.gmra.mrb[0].mxu0 %v5806
  %v6476 = vpop.f32.mrb[0].mxu0
  %v6477 = vadd.f32 0.0, %v6476
  %v6478 = vpop.f32.mrb[0].mxu0
  %v6479 = vpop.f32.mrb[0].mxu0
  %v6480 = vadd.f32 0.0, %v6479
  %v6481 = vpop.f32.mrb[0].mxu0
  %6482 = vmatprep.mubr.bf16.mxu0 0
  %6483 = vmatmul.mubr.bf16.gmra.mrb[0].mxu0 %v5809
  %v6484 = vpop.f32.mrb[0].mxu0
  %v6485 = vadd.f32 0.0, %v6484
  %v6486 = vpop.f32.mrb[0].mxu0
  %v6487 = vpop.f32.mrb[0].mxu0
  %v6488 = vadd.f32 0.0, %v6487
  %v6489 = vpop.f32.mrb[0].mxu0
  %6490 = vmatprep.mubr.bf16.mxu0 0
  %6491 = vmatmul.mubr.bf16.gmra.mrb[0].mxu0 %v5812
  %v6492 = vpop.f32.mrb[0].mxu0
  %v6493 = vadd.f32 0.0, %v6492
  %v6494 = vpop.f32.mrb[0].mxu0
  %v6495 = vpop.f32.mrb[0].mxu0
  %v6496 = vadd.f32 0.0, %v6495
  %v6497 = vpop.f32.mrb[0].mxu0
  %6498 = vmatprep.mubr.bf16.mxu0 0
  %6499 = vmatmul.mubr.bf16.gmra.mrb[0].mxu0 %v5815
  %v6500 = vpop.f32.mrb[0].mxu0
  %v6501 = vadd.f32 0.0, %v6500
  %v6502 = vpop.f32.mrb[0].mxu0
  %v6503 = vpop.f32.mrb[0].mxu0
  %v6504 = vadd.f32 0.0, %v6503
  %v6505 = vpop.f32.mrb[0].mxu0
  %6506 = vmatprep.mubr.bf16.mxu0 0
  %6507 = vmatmul.mubr.bf16.gmra.mrb[0].mxu0 %v5818
  %v6508 = vpop.f32.mrb[0].mxu0
  %v6509 = vadd.f32 0.0, %v6508
  %v6510 = vpop.f32.mrb[0].mxu0
  %v6511 = vpop.f32.mrb[0].mxu0
  %v6512 = vadd.f32 0.0, %v6511
  %v6513 = vpop.f32.mrb[0].mxu0
  %6514 = vmatprep.mubr.bf16.mxu0 0
  %6515 = vmatmul.mubr.bf16.gmra.mrb[0].mxu0 %v5821
  %v6516 = vpop.f32.mrb[0].mxu0
  %v6517 = vadd.f32 0.0, %v6516
  %v6518 = vpop.f32.mrb[0].mxu0
  %v6519 = vpop.f32.mrb[0].mxu0
  %v6520 = vadd.f32 0.0, %v6519
  %v6521 = vpop.f32.mrb[0].mxu0
  %6522 = vmatprep.mubr.bf16.mxu0 0
  %6523 = vmatmul.mubr.bf16.gmra.mrb[0].mxu0 %v5824
  %v6524 = vpop.f32.mrb[0].mxu0
  %v6525 = vadd.f32 0.0, %v6524
  %v6526 = vpop.f32.mrb[0].mxu0
  %v6527 = vpop.f32.mrb[0].mxu0
  %v6528 = vadd.f32 0.0, %v6527
  %v6529 = vpop.f32.mrb[0].mxu0
  %6530 = vmatprep.mubr.bf16.mxu0 0
  %6531 = vmatmul.mubr.bf16.gmra.mrb[0].mxu0 %v5827
  %v6532 = vpop.f32.mrb[0].mxu0
  %v6533 = vadd.f32 0.0, %v6532
  %v6534 = vpop.f32.mrb[0].mxu0
  %v6535 = vpop.f32.mrb[0].mxu0
  %v6536 = vadd.f32 0.0, %v6535
  %v6537 = vpop.f32.mrb[0].mxu0
  %6538 = vmatprep.mubr.bf16.mxu0 0
  %6539 = vmatmul.mubr.bf16.gmra.mrb[0].mxu0 %v5830
  %v6540 = vpop.f32.mrb[0].mxu0
  %v6541 = vadd.f32 0.0, %v6540
  %v6542 = vpop.f32.mrb[0].mxu0
  %v6543 = vpop.f32.mrb[0].mxu0
  %v6544 = vadd.f32 0.0, %v6543
  %v6545 = vpop.f32.mrb[0].mxu0
  %6546 = vmatprep.mubr.bf16.mxu0 0
  %6547 = vmatmul.mubr.bf16.gmra.mrb[0].mxu0 %v5833
  %v6548 = vpop.f32.mrb[0].mxu0
  %v6549 = vadd.f32 0.0, %v6548
  %v6550 = vpop.f32.mrb[0].mxu0
  %v6551 = vpop.f32.mrb[0].mxu0
  %v6552 = vadd.f32 0.0, %v6551
  %v6553 = vpop.f32.mrb[0].mxu0
  %6554 = vmatprep.mubr.bf16.mxu0 0
  %6555 = vmatmul.mubr.bf16.gmra.mrb[0].mxu0 %v5836
  %v6556 = vpop.f32.mrb[0].mxu0
  %v6557 = vadd.f32 0.0, %v6556
  %v6558 = vpop.f32.mrb[0].mxu0
  %v6559 = vpop.f32.mrb[0].mxu0
  %v6560 = vadd.f32 0.0, %v6559
  %v6561 = vpop.f32.mrb[0].mxu0
  %6562 = vmatprep.mubr.bf16.mxu0 0
  %6563 = vmatmul.mubr.bf16.gmra.mrb[0].mxu0 %v5839
  %v6564 = vpop.f32.mrb[0].mxu0
  %v6565 = vadd.f32 0.0, %v6564
  %v6566 = vpop.f32.mrb[0].mxu0
  %v6567 = vpop.f32.mrb[0].mxu0
  %v6568 = vadd.f32 0.0, %v6567
  %v6569 = vpop.f32.mrb[0].mxu0
  %6570 = vmatprep.mubr.bf16.mxu0 0
  %6571 = vmatmul.mubr.bf16.gmra.mrb[0].mxu0 %v5842
  %v6572 = vpop.f32.mrb[0].mxu0
  %v6573 = vadd.f32 0.0, %v6572
  %v6574 = vpop.f32.mrb[0].mxu0
  %v6575 = vpop.f32.mrb[0].mxu0
  %v6576 = vadd.f32 0.0, %v6575
  %v6577 = vpop.f32.mrb[0].mxu0
  %6578 = vmatprep.mubr.bf16.mxu0 0
  %6579 = vmatmul.mubr.bf16.gmra.mrb[0].mxu0 %v5845
  %v6580 = vpop.f32.mrb[0].mxu0
  %v6581 = vadd.f32 0.0, %v6580
  %v6582 = vpop.f32.mrb[0].mxu0
  %v6583 = vpop.f32.mrb[0].mxu0
  %v6584 = vadd.f32 0.0, %v6583
  %v6585 = vpop.f32.mrb[0].mxu0
  %6586 = vmatprep.mubr.bf16.mxu0 0
  %6587 = vmatmul.mubr.bf16.gmra.mrb[0].mxu0 %v5848
  %v6588 = vpop.f32.mrb[0].mxu0
  %v6589 = vadd.f32 0.0, %v6588
  %v6590 = vpop.f32.mrb[0].mxu0
  %v6591 = vpop.f32.mrb[0].mxu0
  %v6592 = vadd.f32 0.0, %v6591
  %v6593 = vpop.f32.mrb[0].mxu0
  %6594 = vmatprep.mubr.bf16.mxu0 0
  %6595 = vmatmul.mubr.bf16.gmra.mrb[0].mxu0 %v5851
  %v6596 = vpop.f32.mrb[0].mxu0
  %v6597 = vadd.f32 0.0, %v6596
  %v6598 = vpop.f32.mrb[0].mxu0
  %v6599 = vpop.f32.mrb[0].mxu0
  %v6600 = vadd.f32 0.0, %v6599
  %v6601 = vpop.f32.mrb[0].mxu0
  %6602 = vmatprep.mubr.bf16.mxu0 0
  %6603 = vmatmul.mubr.bf16.gmra.mrb[0].mxu0 %v5854
  %v6604 = vpop.f32.mrb[0].mxu0
  %v6605 = vadd.f32 0.0, %v6604
  %v6606 = vpop.f32.mrb[0].mxu0
  %v6607 = vpop.f32.mrb[0].mxu0
  %v6608 = vadd.f32 0.0, %v6607
  %v6609 = vpop.f32.mrb[0].mxu0
  %6610 = vmatprep.mubr.bf16.mxu0 0
  %6611 = vmatmul.mubr.bf16.gmra.mrb[0].mxu0 %v5857
  %v6612 = vpop.f32.mrb[0].mxu0
  %v6613 = vadd.f32 0.0, %v6612
  %v6614 = vpop.f32.mrb[0].mxu0
  %v6615 = vpop.f32.mrb[0].mxu0
  %v6616 = vadd.f32 0.0, %v6615
  %v6617 = vpop.f32.mrb[0].mxu0
  %6618 = vmatprep.mubr.bf16.mxu0 0
  %6619 = vmatmul.mubr.bf16.gmra.mrb[0].mxu0 %v5860
  %v6620 = vpop.f32.mrb[0].mxu0
  %v6621 = vadd.f32 0.0, %v6620
  %v6622 = vpop.f32.mrb[0].mxu0
  %v6623 = vpop.f32.mrb[0].mxu0
  %v6624 = vadd.f32 0.0, %v6623
  %v6625 = vpop.f32.mrb[0].mxu0
  %6626 = vmatprep.mubr.bf16.mxu0 0
  %6627 = vmatmul.mubr.bf16.gmra.mrb[0].mxu0 %v5863
  %v6628 = vpop.f32.mrb[0].mxu0
  %v6629 = vadd.f32 0.0, %v6628
  %v6630 = vpop.f32.mrb[0].mxu0
  %v6631 = vpop.f32.mrb[0].mxu0
  %v6632 = vadd.f32 0.0, %v6631
  %v6633 = vpop.f32.mrb[0].mxu0
  %6634 = vmatprep.mubr.bf16.mxu0 0
  %6635 = vmatmul.mubr.bf16.gmra.mrb[0].mxu0 %v5866
  %v6636 = vpop.f32.mrb[0].mxu0
  %v6637 = vadd.f32 0.0, %v6636
  %v6638 = vpop.f32.mrb[0].mxu0
  %v6639 = vpop.f32.mrb[0].mxu0
  %v6640 = vadd.f32 0.0, %v6639
  %v6641 = vpop.f32.mrb[0].mxu0
  %6642 = vmatprep.mubr.bf16.mxu0 0
  %6643 = vmatmul.mubr.bf16.gmra.mrb[0].mxu0 %v5869
  %v6644 = vpop.f32.mrb[0].mxu0
  %v6645 = vadd.f32 0.0, %v6644
  %v6646 = vpop.f32.mrb[0].mxu0
  %v6647 = vpop.f32.mrb[0].mxu0
  %v6648 = vadd.f32 0.0, %v6647
  %v6649 = vpop.f32.mrb[0].mxu0
  %6650 = vmatprep.mubr.bf16.mxu0 0
  %6651 = vmatmul.mubr.bf16.gmra.mrb[0].mxu0 %v5872
  %v6652 = vpop.f32.mrb[0].mxu0
  %v6653 = vadd.f32 0.0, %v6652
  %v6654 = vpop.f32.mrb[0].mxu0
  %v6655 = vpop.f32.mrb[0].mxu0
  %v6656 = vadd.f32 0.0, %v6655
  %v6657 = vpop.f32.mrb[0].mxu0
  %6658 = vmatprep.mubr.bf16.mxu0 0
  %6659 = vmatmul.mubr.bf16.gmra.mrb[0].mxu0 %v5875
  %v6660 = vpop.f32.mrb[0].mxu0
  %v6661 = vadd.f32 0.0, %v6660
  %v6662 = vpop.f32.mrb[0].mxu0
  %v6663 = vpop.f32.mrb[0].mxu0
  %v6664 = vadd.f32 0.0, %v6663
  %v6665 = vpop.f32.mrb[0].mxu0
  %6666 = vmatprep.mubr.bf16.mxu0 0
  %6667 = vmatmul.mubr.bf16.gmra.mrb[0].mxu0 %v5878
  %v6668 = vpop.f32.mrb[0].mxu0
  %v6669 = vadd.f32 0.0, %v6668
  %v6670 = vpop.f32.mrb[0].mxu0
  %v6671 = vpop.f32.mrb[0].mxu0
  %v6672 = vadd.f32 0.0, %v6671
  %v6673 = vpop.f32.mrb[0].mxu0
  %6674 = vmatprep.mubr.bf16.mxu0 0
  %6675 = vmatmul.mubr.bf16.gmra.mrb[0].mxu0 %v5881
  %v6676 = vpop.f32.mrb[0].mxu0
  %v6677 = vadd.f32 0.0, %v6676
  %v6678 = vpop.f32.mrb[0].mxu0
  %v6679 = vpop.f32.mrb[0].mxu0
  %v6680 = vadd.f32 0.0, %v6679
  %v6681 = vpop.f32.mrb[0].mxu0
  %6682 = vmatprep.mubr.bf16.mxu0 0
  %6683 = vmatmul.mubr.bf16.gmra.mrb[0].mxu0 %v5884
  %v6684 = vpop.f32.mrb[0].mxu0
  %v6685 = vadd.f32 0.0, %v6684
  %v6686 = vpop.f32.mrb[0].mxu0
  %v6687 = vpop.f32.mrb[0].mxu0
  %v6688 = vadd.f32 0.0, %v6687
  %v6689 = vpop.f32.mrb[0].mxu0
  %6690 = vmatprep.mubr.bf16.mxu0 0
  %6691 = vmatmul.mubr.bf16.gmra.mrb[0].mxu0 %v5887
  %v6692 = vpop.f32.mrb[0].mxu0
  %v6693 = vadd.f32 0.0, %v6692
  %v6694 = vpop.f32.mrb[0].mxu0
  %v6695 = vpop.f32.mrb[0].mxu0
  %v6696 = vadd.f32 0.0, %v6695
  %v6697 = vpop.f32.mrb[0].mxu0
  %6698 = vmatprep.mubr.bf16.mxu0 0
  %6699 = vmatmul.mubr.bf16.gmra.mrb[0].mxu0 %v5890
  %v6700 = vpop.f32.mrb[0].mxu0
  %v6701 = vadd.f32 0.0, %v6700
  %v6702 = vpop.f32.mrb[0].mxu0
  %v6703 = vpop.f32.mrb[0].mxu0
  %v6704 = vadd.f32 0.0, %v6703
  %v6705 = vpop.f32.mrb[0].mxu0
  %6706 = vmatprep.mubr.bf16.mxu0 0
  %6707 = vmatmul.mubr.bf16.gmra.mrb[0].mxu0 %v5893
  %v6708 = vpop.f32.mrb[0].mxu0
  %v6709 = vadd.f32 0.0, %v6708
  %v6710 = vpop.f32.mrb[0].mxu0
  %v6711 = vpop.f32.mrb[0].mxu0
  %v6712 = vadd.f32 0.0, %v6711
  %v6713 = vpop.f32.mrb[0].mxu0
  %6714 = vmatprep.mubr.bf16.mxu0 0
  %6715 = vmatmul.mubr.bf16.gmra.mrb[0].mxu0 %v5896
  %v6716 = vpop.f32.mrb[0].mxu0
  %v6717 = vadd.f32 0.0, %v6716
  %v6718 = vpop.f32.mrb[0].mxu0
  %v6719 = vpop.f32.mrb[0].mxu0
  %v6720 = vadd.f32 0.0, %v6719
  %v6721 = vpop.f32.mrb[0].mxu0
  %6722 = vmatprep.mubr.bf16.mxu0 0
  %6723 = vmatmul.mubr.bf16.gmra.mrb[0].mxu0 %v5899
  %v6724 = vpop.f32.mrb[0].mxu0
  %v6725 = vadd.f32 0.0, %v6724
  %v6726 = vpop.f32.mrb[0].mxu0
  %v6727 = vpop.f32.mrb[0].mxu0
  %v6728 = vadd.f32 0.0, %v6727
  %v6729 = vpop.f32.mrb[0].mxu0
  %6730 = vmatprep.mubr.bf16.mxu0 0
  %6731 = vmatmul.mubr.bf16.gmra.mrb[0].mxu0 %v5902
  %v6732 = vpop.f32.mrb[0].mxu0
  %v6733 = vadd.f32 0.0, %v6732
  %v6734 = vpop.f32.mrb[0].mxu0
  %v6735 = vpop.f32.mrb[0].mxu0
  %v6736 = vadd.f32 0.0, %v6735
  %v6737 = vpop.f32.mrb[0].mxu0
  %6738 = vmatprep.mubr.bf16.mxu0 0
  %6739 = vmatmul.mubr.bf16.gmra.mrb[0].mxu0 %v5905
  %v6740 = vpop.f32.mrb[0].mxu0
  %v6741 = vadd.f32 0.0, %v6740
  %v6742 = vpop.f32.mrb[0].mxu0
  %v6743 = vpop.f32.mrb[0].mxu0
  %v6744 = vadd.f32 0.0, %v6743
  %v6745 = vpop.f32.mrb[0].mxu0
  %6746 = vmatprep.mubr.bf16.mxu0 0
  %6747 = vmatmul.mubr.bf16.gmra.mrb[0].mxu0 %v5908
  %v6748 = vpop.f32.mrb[0].mxu0
  %v6749 = vadd.f32 0.0, %v6748
  %v6750 = vpop.f32.mrb[0].mxu0
  %v6751 = vpop.f32.mrb[0].mxu0
  %v6752 = vadd.f32 0.0, %v6751
  %v6753 = vpop.f32.mrb[0].mxu0
  %6754 = vmatprep.mubr.bf16.mxu0 0
  %6755 = vmatmul.mubr.bf16.gmra.mrb[0].mxu0 %v5911
  %v6756 = vpop.f32.mrb[0].mxu0
  %v6757 = vadd.f32 0.0, %v6756
  %v6758 = vpop.f32.mrb[0].mxu0
  %v6759 = vpop.f32.mrb[0].mxu0
  %v6760 = vadd.f32 0.0, %v6759
  %v6761 = vpop.f32.mrb[0].mxu0
  %6762 = vmatprep.mubr.bf16.mxu0 0
  %6763 = vmatmul.mubr.bf16.gmra.mrb[0].mxu0 %v5914
  %v6764 = vpop.f32.mrb[0].mxu0
  %v6765 = vadd.f32 0.0, %v6764
  %v6766 = vpop.f32.mrb[0].mxu0
  %v6767 = vpop.f32.mrb[0].mxu0
  %v6768 = vadd.f32 0.0, %v6767
  %v6769 = vpop.f32.mrb[0].mxu0
  %6770 = vmatprep.mubr.bf16.mxu0 0
  %6771 = vmatmul.mubr.bf16.gmra.mrb[0].mxu0 %v5917
  %v6772 = vpop.f32.mrb[0].mxu0
  %v6773 = vadd.f32 0.0, %v6772
  %v6774 = vpop.f32.mrb[0].mxu0
  %v6775 = vpop.f32.mrb[0].mxu0
  %v6776 = vadd.f32 0.0, %v6775
  %v6777 = vpop.f32.mrb[0].mxu0
  %6778 = vmatprep.mubr.bf16.mxu0 0
  %6779 = vmatmul.mubr.bf16.gmra.mrb[0].mxu0 %v5920
  %v6780 = vpop.f32.mrb[0].mxu0
  %v6781 = vadd.f32 0.0, %v6780
  %v6782 = vpop.f32.mrb[0].mxu0
  %v6783 = vpop.f32.mrb[0].mxu0
  %v6784 = vadd.f32 0.0, %v6783
  %v6785 = vpop.f32.mrb[0].mxu0
  %6786 = vmatprep.mubr.bf16.mxu0 0
  %6787 = vmatmul.mubr.bf16.gmra.mrb[0].mxu0 %v5923
  %v6788 = vpop.f32.mrb[0].mxu0
  %v6789 = vadd.f32 0.0, %v6788
  %v6790 = vpop.f32.mrb[0].mxu0
  %v6791 = vpop.f32.mrb[0].mxu0
  %v6792 = vadd.f32 0.0, %v6791
  %v6793 = vpop.f32.mrb[0].mxu0
  %6794 = vmatprep.mubr.bf16.mxu0 0
  %6795 = vmatmul.mubr.bf16.gmra.mrb[0].mxu0 %v5926
  %v6796 = vpop.f32.mrb[0].mxu0
  %v6797 = vadd.f32 0.0, %v6796
  %v6798 = vpop.f32.mrb[0].mxu0
  %v6799 = vpop.f32.mrb[0].mxu0
  %v6800 = vadd.f32 0.0, %v6799
  %v6801 = vpop.f32.mrb[0].mxu0
  %6802 = vmatprep.mubr.bf16.mxu0 0
  %6803 = vmatmul.mubr.bf16.gmra.mrb[0].mxu0 %v5929
  %v6804 = vpop.f32.mrb[0].mxu0
  %v6805 = vadd.f32 0.0, %v6804
  %v6806 = vpop.f32.mrb[0].mxu0
  %v6807 = vpop.f32.mrb[0].mxu0
  %v6808 = vadd.f32 0.0, %v6807
  %v6809 = vpop.f32.mrb[0].mxu0
  %6810 = vmatprep.mubr.bf16.mxu0 0
  %6811 = vmatmul.mubr.bf16.gmra.mrb[0].mxu0 %v5932
  %v6812 = vpop.f32.mrb[0].mxu0
  %v6813 = vadd.f32 0.0, %v6812
  %v6814 = vpop.f32.mrb[0].mxu0
  %v6815 = vpop.f32.mrb[0].mxu0
  %v6816 = vadd.f32 0.0, %v6815
  %v6817 = vpop.f32.mrb[0].mxu0
  %6818 = vmatprep.mubr.bf16.mxu0 0
  %6819 = vmatmul.mubr.bf16.gmra.mrb[0].mxu0 %v5935
  %v6820 = vpop.f32.mrb[0].mxu0
  %v6821 = vadd.f32 0.0, %v6820
  %v6822 = vpop.f32.mrb[0].mxu0
  %v6823 = vpop.f32.mrb[0].mxu0
  %v6824 = vadd.f32 0.0, %v6823
  %v6825 = vpop.f32.mrb[0].mxu0
  %6826 = vmatprep.mubr.bf16.mxu0 0
  %6827 = vmatmul.mubr.bf16.gmra.mrb[0].mxu0 %v5938
  %v6828 = vpop.f32.mrb[0].mxu0
  %v6829 = vadd.f32 0.0, %v6828
  %v6830 = vpop.f32.mrb[0].mxu0
  %v6831 = vpop.f32.mrb[0].mxu0
  %v6832 = vadd.f32 0.0, %v6831
  %v6833 = vpop.f32.mrb[0].mxu0
  %6834 = vmatprep.mubr.bf16.mxu0 0
  %6835 = vmatmul.mubr.bf16.gmra.mrb[0].mxu0 %v5941
  %v6836 = vpop.f32.mrb[0].mxu0
  %v6837 = vadd.f32 0.0, %v6836
  %v6838 = vpop.f32.mrb[0].mxu0
  %v6839 = vpop.f32.mrb[0].mxu0
  %v6840 = vadd.f32 0.0, %v6839
  %v6841 = vpop.f32.mrb[0].mxu0
  %6842 = vmatprep.mubr.bf16.mxu0 0
  %6843 = vmatmul.mubr.bf16.gmra.mrb[0].mxu0 %v5944
  %v6844 = vpop.f32.mrb[0].mxu0
  %v6845 = vadd.f32 0.0, %v6844
  %v6846 = vpop.f32.mrb[0].mxu0
  %v6847 = vpop.f32.mrb[0].mxu0
  %v6848 = vadd.f32 0.0, %v6847
  %v6849 = vpop.f32.mrb[0].mxu0
  %6850 = vmatprep.mubr.bf16.mxu0 0
  %6851 = vmatmul.mubr.bf16.gmra.mrb[0].mxu0 %v5947
  %v6852 = vpop.f32.mrb[0].mxu0
  %v6853 = vadd.f32 0.0, %v6852
  %v6854 = vpop.f32.mrb[0].mxu0
  %v6855 = vpop.f32.mrb[0].mxu0
  %v6856 = vadd.f32 0.0, %v6855
  %v6857 = vpop.f32.mrb[0].mxu0
  %6858 = vmatprep.mubr.bf16.mxu0 0
  %6859 = vmatmul.mubr.bf16.gmra.mrb[0].mxu0 %v5950
  %v6860 = vpop.f32.mrb[0].mxu0
  %v6861 = vadd.f32 0.0, %v6860
  %v6862 = vpop.f32.mrb[0].mxu0
  %v6863 = vpop.f32.mrb[0].mxu0
  %v6864 = vadd.f32 0.0, %v6863
  %v6865 = vpop.f32.mrb[0].mxu0
  %6866 = vmatprep.mubr.bf16.mxu0 0
  %6867 = vmatmul.mubr.bf16.gmra.mrb[0].mxu0 %v5953
  %v6868 = vpop.f32.mrb[0].mxu0
  %v6869 = vadd.f32 0.0, %v6868
  %v6870 = vpop.f32.mrb[0].mxu0
  %v6871 = vpop.f32.mrb[0].mxu0
  %v6872 = vadd.f32 0.0, %v6871
  %v6873 = vpop.f32.mrb[0].mxu0
  %6874 = vmatprep.mubr.bf16.mxu0 0
  %6875 = vmatmul.mubr.bf16.gmra.mrb[0].mxu0 %v5956
  %v6876 = vpop.f32.mrb[0].mxu0
  %v6877 = vadd.f32 0.0, %v6876
  %v6878 = vpop.f32.mrb[0].mxu0
  %v6879 = vpop.f32.mrb[0].mxu0
  %v6880 = vadd.f32 0.0, %v6879
  %v6881 = vpop.f32.mrb[0].mxu0
  %6882 = vmatprep.mubr.bf16.mxu0 0
  %6883 = vmatmul.mubr.bf16.gmra.mrb[0].mxu0 %v5959
  %v6884 = vpop.f32.mrb[0].mxu0
  %v6885 = vadd.f32 0.0, %v6884
  %v6886 = vpop.f32.mrb[0].mxu0
  %v6887 = vpop.f32.mrb[0].mxu0
  %v6888 = vadd.f32 0.0, %v6887
  %v6889 = vpop.f32.mrb[0].mxu0
  %6890 = vmatprep.mubr.bf16.mxu0 0
  %6891 = vmatmul.mubr.bf16.gmra.mrb[0].mxu0 %v5962
  %v6892 = vpop.f32.mrb[0].mxu0
  %v6893 = vadd.f32 0.0, %v6892
  %v6894 = vpop.f32.mrb[0].mxu0
  %v6895 = vpop.f32.mrb[0].mxu0
  %v6896 = vadd.f32 0.0, %v6895
  %v6897 = vpop.f32.mrb[0].mxu0
  %6898 = vmatprep.mubr.bf16.mxu0 0
  %6899 = vmatmul.mubr.bf16.gmra.mrb[0].mxu0 %v5965
  %v6900 = vpop.f32.mrb[0].mxu0
  %v6901 = vadd.f32 0.0, %v6900
  %v6902 = vpop.f32.mrb[0].mxu0
  %v6903 = vpop.f32.mrb[0].mxu0
  %v6904 = vadd.f32 0.0, %v6903
  %v6905 = vpop.f32.mrb[0].mxu0
  %6906 = vmatprep.mubr.bf16.mxu0 0
  %6907 = vmatmul.mubr.bf16.gmra.mrb[0].mxu0 %v5968
  %v6908 = vpop.f32.mrb[0].mxu0
  %v6909 = vadd.f32 0.0, %v6908
  %v6910 = vpop.f32.mrb[0].mxu0
  %v6911 = vpop.f32.mrb[0].mxu0
  %v6912 = vadd.f32 0.0, %v6911
  %v6913 = vpop.f32.mrb[0].mxu0
  %6914 = vmatprep.mubr.bf16.mxu0 0
  %6915 = vmatmul.mubr.bf16.gmra.mrb[0].mxu0 %v5971
  %v6916 = vpop.f32.mrb[0].mxu0
  %v6917 = vadd.f32 0.0, %v6916
  %v6918 = vpop.f32.mrb[0].mxu0
  %v6919 = vpop.f32.mrb[0].mxu0
  %v6920 = vadd.f32 0.0, %v6919
  %v6921 = vpop.f32.mrb[0].mxu0
  %6922 = vmatprep.mubr.bf16.mxu0 0
  %6923 = vmatmul.mubr.bf16.gmra.mrb[0].mxu0 %v5974
  %v6924 = vpop.f32.mrb[0].mxu0
  %v6925 = vadd.f32 0.0, %v6924
  %v6926 = vpop.f32.mrb[0].mxu0
  %v6927 = vpop.f32.mrb[0].mxu0
  %v6928 = vadd.f32 0.0, %v6927
  %v6929 = vpop.f32.mrb[0].mxu0
  %6930 = vmatprep.mubr.bf16.mxu0 0
  %6931 = vmatmul.mubr.bf16.gmra.mrb[0].mxu0 %v5977
  %v6932 = vpop.f32.mrb[0].mxu0
  %v6933 = vadd.f32 0.0, %v6932
  %v6934 = vpop.f32.mrb[0].mxu0
  %v6935 = vpop.f32.mrb[0].mxu0
  %v6936 = vadd.f32 0.0, %v6935
  %v6937 = vpop.f32.mrb[0].mxu0
  %6938 = vmatprep.mubr.bf16.mxu0 0
  %6939 = vmatmul.mubr.bf16.gmra.mrb[0].mxu0 %v5980
  %v6940 = vpop.f32.mrb[0].mxu0
  %v6941 = vadd.f32 0.0, %v6940
  %v6942 = vpop.f32.mrb[0].mxu0
  %v6943 = vpop.f32.mrb[0].mxu0
  %v6944 = vadd.f32 0.0, %v6943
  %v6945 = vpop.f32.mrb[0].mxu0
  %6946 = vmatprep.mubr.bf16.mxu0 0
  %6947 = vmatmul.mubr.bf16.gmra.mrb[0].mxu0 %v5983
  %v6948 = vpop.f32.mrb[0].mxu0
  %v6949 = vadd.f32 0.0, %v6948
  %v6950 = vpop.f32.mrb[0].mxu0
  %v6951 = vpop.f32.mrb[0].mxu0
  %v6952 = vadd.f32 0.0, %v6951
  %v6953 = vpop.f32.mrb[0].mxu0
  %6954 = vmatprep.mubr.bf16.mxu0 0
  %6955 = vmatmul.mubr.bf16.gmra.mrb[0].mxu0 %v5986
  %v6956 = vpop.f32.mrb[0].mxu0
  %v6957 = vadd.f32 0.0, %v6956
  %v6958 = vpop.f32.mrb[0].mxu0
  %v6959 = vpop.f32.mrb[0].mxu0
  %v6960 = vadd.f32 0.0, %v6959
  %v6961 = vpop.f32.mrb[0].mxu0
  %6962 = vmatprep.mubr.bf16.mxu0 0
  %6963 = vmatmul.mubr.bf16.gmra.mrb[0].mxu0 %v5989
  %v6964 = vpop.f32.mrb[0].mxu0
  %v6965 = vadd.f32 0.0, %v6964
  %v6966 = vpop.f32.mrb[0].mxu0
  %v6967 = vpop.f32.mrb[0].mxu0
  %v6968 = vadd.f32 0.0, %v6967
  %v6969 = vpop.f32.mrb[0].mxu0
  %6970 = vmatprep.mubr.bf16.mxu0 0
  %6971 = vmatmul.mubr.bf16.gmra.mrb[0].mxu0 %v5992
  %v6972 = vpop.f32.mrb[0].mxu0
  %v6973 = vadd.f32 0.0, %v6972
  %v6974 = vpop.f32.mrb[0].mxu0
  %v6975 = vpop.f32.mrb[0].mxu0
  %v6976 = vadd.f32 0.0, %v6975
  %v6977 = vpop.f32.mrb[0].mxu0
  %6978 = vmatprep.mubr.bf16.mxu0 0
  %6979 = vmatmul.mubr.bf16.gmra.mrb[0].mxu0 %v5995
  %v6980 = vpop.f32.mrb[0].mxu0
  %v6981 = vadd.f32 0.0, %v6980
  %v6982 = vpop.f32.mrb[0].mxu0
  %v6983 = vpop.f32.mrb[0].mxu0
  %v6984 = vadd.f32 0.0, %v6983
  %v6985 = vpop.f32.mrb[0].mxu0
  %6986 = vmatprep.mubr.bf16.mxu0 0
  %6987 = vmatmul.mubr.bf16.gmra.mrb[0].mxu0 %v5998
  %v6988 = vpop.f32.mrb[0].mxu0
  %v6989 = vadd.f32 0.0, %v6988
  %v6990 = vpop.f32.mrb[0].mxu0
  %v6991 = vpop.f32.mrb[0].mxu0
  %v6992 = vadd.f32 0.0, %v6991
  %v6993 = vpop.f32.mrb[0].mxu0
  %6994 = vmatprep.mubr.bf16.mxu0 0
  %6995 = vmatmul.mubr.bf16.gmra.mrb[0].mxu0 %v6001
  %v6996 = vpop.f32.mrb[0].mxu0
  %v6997 = vadd.f32 0.0, %v6996
  %v6998 = vpop.f32.mrb[0].mxu0
  %v6999 = vpop.f32.mrb[0].mxu0
  %v7000 = vadd.f32 0.0, %v6999
  %v7001 = vpop.f32.mrb[0].mxu0
  %7002 = vmatprep.mubr.bf16.mxu0 0
  %7003 = vmatmul.mubr.bf16.gmra.mrb[0].mxu0 %v6004
  %v7004 = vpop.f32.mrb[0].mxu0
  %v7005 = vadd.f32 0.0, %v7004
  %v7006 = vpop.f32.mrb[0].mxu0
  %v7007 = vpop.f32.mrb[0].mxu0
  %v7008 = vadd.f32 0.0, %v7007
  %v7009 = vpop.f32.mrb[0].mxu0
  %7010 = vmatprep.mubr.bf16.mxu0 0
  %7011 = vmatmul.mubr.bf16.gmra.mrb[0].mxu0 %v6007
  %v7012 = vpop.f32.mrb[0].mxu0
  %v7013 = vadd.f32 0.0, %v7012
  %v7014 = vpop.f32.mrb[0].mxu0
  %v7015 = vpop.f32.mrb[0].mxu0
  %v7016 = vadd.f32 0.0, %v7015
  %v7017 = vpop.f32.mrb[0].mxu0
  %7018 = vmatprep.mubr.bf16.mxu0 0
  %7019 = vmatmul.mubr.bf16.gmra.mrb[0].mxu0 %v6010
  %v7020 = vpop.f32.mrb[0].mxu0
  %v7021 = vadd.f32 0.0, %v7020
  %v7022 = vpop.f32.mrb[0].mxu0
  %v7023 = vpop.f32.mrb[0].mxu0
  %v7024 = vadd.f32 0.0, %v7023
  %v7025 = vpop.f32.mrb[0].mxu0
  %7026 = vmatprep.mubr.bf16.mxu0 0
  %7027 = vmatmul.mubr.bf16.gmra.mrb[0].mxu0 %v6013
  %v7028 = vpop.f32.mrb[0].mxu0
  %v7029 = vadd.f32 0.0, %v7028
  %v7030 = vpop.f32.mrb[0].mxu0
  %v7031 = vpop.f32.mrb[0].mxu0
  %v7032 = vadd.f32 0.0, %v7031
  %v7033 = vpop.f32.mrb[0].mxu0
  %7034 = vmatprep.mubr.bf16.mxu0 0
  %7035 = vmatmul.mubr.bf16.gmra.mrb[0].mxu0 %v6016
  %v7036 = vpop.f32.mrb[0].mxu0
  %v7037 = vadd.f32 0.0, %v7036
  %v7038 = vpop.f32.mrb[0].mxu0
  %v7039 = vpop.f32.mrb[0].mxu0
  %v7040 = vadd.f32 0.0, %v7039
  %v7041 = vpop.f32.mrb[0].mxu0
  %7042 = vmatprep.mubr.bf16.mxu0 0
  %7043 = vmatmul.mubr.bf16.gmra.mrb[0].mxu0 %v6019
  %v7044 = vpop.f32.mrb[0].mxu0
  %v7045 = vadd.f32 0.0, %v7044
  %v7046 = vpop.f32.mrb[0].mxu0
  %v7047 = vpop.f32.mrb[0].mxu0
  %v7048 = vadd.f32 0.0, %v7047
  %v7049 = vpop.f32.mrb[0].mxu0
  %7050 = vmatprep.mubr.bf16.mxu0 0
  %7051 = vmatmul.mubr.bf16.gmra.mrb[0].mxu0 %v6022
  %v7052 = vpop.f32.mrb[0].mxu0
  %v7053 = vadd.f32 0.0, %v7052
  %v7054 = vpop.f32.mrb[0].mxu0
  %v7055 = vpop.f32.mrb[0].mxu0
  %v7056 = vadd.f32 0.0, %v7055
  %v7057 = vpop.f32.mrb[0].mxu0
  %7058 = vmatprep.mubr.bf16.mxu0 0
  %7059 = vmatmul.mubr.bf16.gmra.mrb[0].mxu0 %v6025
  %v7060 = vpop.f32.mrb[0].mxu0
  %v7061 = vadd.f32 0.0, %v7060
  %v7062 = vpop.f32.mrb[0].mxu0
  %v7063 = vpop.f32.mrb[0].mxu0
  %v7064 = vadd.f32 0.0, %v7063
  %v7065 = vpop.f32.mrb[0].mxu0
  %7066 = vmatprep.mubr.bf16.mxu0 0
  %7067 = vmatmul.mubr.bf16.gmra.mrb[0].mxu0 %v6028
  %v7068 = vpop.f32.mrb[0].mxu0
  %v7069 = vadd.f32 0.0, %v7068
  %v7070 = vpop.f32.mrb[0].mxu0
  %v7071 = vpop.f32.mrb[0].mxu0
  %v7072 = vadd.f32 0.0, %v7071
  %v7073 = vpop.f32.mrb[0].mxu0
  %7074 = vmatprep.mubr.bf16.mxu0 0
  %7075 = vmatmul.mubr.bf16.gmra.mrb[0].mxu0 %v6031
  %v7076 = vpop.f32.mrb[0].mxu0
  %v7077 = vadd.f32 0.0, %v7076
  %v7078 = vpop.f32.mrb[0].mxu0
  %v7079 = vpop.f32.mrb[0].mxu0
  %v7080 = vadd.f32 0.0, %v7079
  %v7081 = vpop.f32.mrb[0].mxu0
  %7082 = vmatprep.mubr.bf16.mxu0 0
  %7083 = vmatmul.mubr.bf16.gmra.mrb[0].mxu0 %v6034
  %v7084 = vpop.f32.mrb[0].mxu0
  %v7085 = vadd.f32 0.0, %v7084
  %v7086 = vpop.f32.mrb[0].mxu0
  %v7087 = vpop.f32.mrb[0].mxu0
  %v7088 = vadd.f32 0.0, %v7087
  %v7089 = vpop.f32.mrb[0].mxu0
  %7090 = vmatprep.mubr.bf16.mxu0 0
  %7091 = vmatmul.mubr.bf16.gmra.mrb[0].mxu0 %v6037
  %v7092 = vpop.f32.mrb[0].mxu0
  %v7093 = vadd.f32 0.0, %v7092
  %v7094 = vpop.f32.mrb[0].mxu0
  %v7095 = vpop.f32.mrb[0].mxu0
  %v7096 = vadd.f32 0.0, %v7095
  %v7097 = vpop.f32.mrb[0].mxu0
  %7098 = vdwg.mxu0
  %v7099 = vadd.f32 %v5069, %v6077
  %v7100 = vadd.f32 %v5070, %v6080
  %v7101 = vadd.f32 %v5071, %v6085
  %v7102 = vadd.f32 %v5072, %v6088
  %v7103 = vadd.f32 %v5073, %v6093
  %v7104 = vadd.f32 %v5074, %v6096
  %v7105 = vadd.f32 %v5075, %v6101
  %v7106 = vadd.f32 %v5076, %v6104
  %v7107 = vadd.f32 %v5077, %v6109
  %v7108 = vadd.f32 %v5078, %v6112
  %v7109 = vadd.f32 %v5079, %v6117
  %v7110 = vadd.f32 %v5080, %v6120
  %v7111 = vadd.f32 %v5081, %v6125
  %v7112 = vadd.f32 %v5082, %v6128
  %v7113 = vadd.f32 %v5083, %v6133
  %v7114 = vadd.f32 %v5084, %v6136
  %v7115 = vadd.f32 %v5085, %v6141
  %v7116 = vadd.f32 %v5086, %v6144
  %v7117 = vadd.f32 %v5087, %v6149
  %v7118 = vadd.f32 %v5088, %v6152
  %v7119 = vadd.f32 %v5089, %v6157
  %v7120 = vadd.f32 %v5090, %v6160
  %v7121 = vadd.f32 %v5091, %v6165
  %v7122 = vadd.f32 %v5092, %v6168
  %v7123 = vadd.f32 %v5093, %v6173
  %v7124 = vadd.f32 %v5094, %v6176
  %v7125 = vadd.f32 %v5095, %v6181
  %v7126 = vadd.f32 %v5096, %v6184
  %v7127 = vadd.f32 %v5097, %v6189
  %v7128 = vadd.f32 %v5098, %v6192
  %v7129 = vadd.f32 %v5099, %v6197
  %v7130 = vadd.f32 %v5100, %v6200
  %v7131 = vadd.f32 %v5101, %v6205
  %v7132 = vadd.f32 %v5102, %v6208
  %v7133 = vadd.f32 %v5103, %v6213
  %v7134 = vadd.f32 %v5104, %v6216
  %v7135 = vadd.f32 %v5105, %v6221
  %v7136 = vadd.f32 %v5106, %v6224
  %v7137 = vadd.f32 %v5107, %v6229
  %v7138 = vadd.f32 %v5108, %v6232
  %v7139 = vadd.f32 %v5109, %v6237
  %v7140 = vadd.f32 %v5110, %v6240
  %v7141 = vadd.f32 %v5111, %v6245
  %v7142 = vadd.f32 %v5112, %v6248
  %v7143 = vadd.f32 %v5113, %v6253
  %v7144 = vadd.f32 %v5114, %v6256
  %v7145 = vadd.f32 %v5115, %v6261
  %v7146 = vadd.f32 %v5116, %v6264
  %v7147 = vadd.f32 %v5117, %v6269
  %v7148 = vadd.f32 %v5118, %v6272
  %v7149 = vadd.f32 %v5119, %v6277
  %v7150 = vadd.f32 %v5120, %v6280
  %v7151 = vadd.f32 %v5121, %v6285
  %v7152 = vadd.f32 %v5122, %v6288
  %v7153 = vadd.f32 %v5123, %v6293
  %v7154 = vadd.f32 %v5124, %v6296
  %v7155 = vadd.f32 %v5125, %v6301
  %v7156 = vadd.f32 %v5126, %v6304
  %v7157 = vadd.f32 %v5127, %v6309
  %v7158 = vadd.f32 %v5128, %v6312
  %v7159 = vadd.f32 %v5129, %v6317
  %v7160 = vadd.f32 %v5130, %v6320
  %v7161 = vadd.f32 %v5131, %v6325
  %v7162 = vadd.f32 %v5132, %v6328
  %v7163 = vadd.f32 %v5133, %v6333
  %v7164 = vadd.f32 %v5134, %v6336
  %v7165 = vadd.f32 %v5135, %v6341
  %v7166 = vadd.f32 %v5136, %v6344
  %v7167 = vadd.f32 %v5137, %v6349
  %v7168 = vadd.f32 %v5138, %v6352
  %v7169 = vadd.f32 %v5139, %v6357
  %v7170 = vadd.f32 %v5140, %v6360
  %v7171 = vadd.f32 %v5141, %v6365
  %v7172 = vadd.f32 %v5142, %v6368
  %v7173 = vadd.f32 %v5143, %v6373
  %v7174 = vadd.f32 %v5144, %v6376
  %v7175 = vadd.f32 %v5145, %v6381
  %v7176 = vadd.f32 %v5146, %v6384
  %v7177 = vadd.f32 %v5147, %v6389
  %v7178 = vadd.f32 %v5148, %v6392
  %v7179 = vadd.f32 %v5149, %v6397
  %v7180 = vadd.f32 %v5150, %v6400
  %v7181 = vadd.f32 %v5151, %v6405
  %v7182 = vadd.f32 %v5152, %v6408
  %v7183 = vadd.f32 %v5153, %v6413
  %v7184 = vadd.f32 %v5154, %v6416
  %v7185 = vadd.f32 %v5155, %v6421
  %v7186 = vadd.f32 %v5156, %v6424
  %v7187 = vadd.f32 %v5157, %v6429
  %v7188 = vadd.f32 %v5158, %v6432
  %v7189 = vadd.f32 %v5159, %v6437
  %v7190 = vadd.f32 %v5160, %v6440
  %v7191 = vadd.f32 %v5161, %v6445
  %v7192 = vadd.f32 %v5162, %v6448
  %v7193 = vadd.f32 %v5163, %v6453
  %v7194 = vadd.f32 %v5164, %v6456
  %v7195 = vadd.f32 %v5165, %v6461
  %v7196 = vadd.f32 %v5166, %v6464
  %v7197 = vadd.f32 %v5167, %v6469
  %v7198 = vadd.f32 %v5168, %v6472
  %v7199 = vadd.f32 %v5169, %v6477
  %v7200 = vadd.f32 %v5170, %v6480
  %v7201 = vadd.f32 %v5171, %v6485
  %v7202 = vadd.f32 %v5172, %v6488
  %v7203 = vadd.f32 %v5173, %v6493
  %v7204 = vadd.f32 %v5174, %v6496
  %v7205 = vadd.f32 %v5175, %v6501
  %v7206 = vadd.f32 %v5176, %v6504
  %v7207 = vadd.f32 %v5177, %v6509
  %v7208 = vadd.f32 %v5178, %v6512
  %v7209 = vadd.f32 %v5179, %v6517
  %v7210 = vadd.f32 %v5180, %v6520
  %v7211 = vadd.f32 %v5181, %v6525
  %v7212 = vadd.f32 %v5182, %v6528
  %v7213 = vadd.f32 %v5183, %v6533
  %v7214 = vadd.f32 %v5184, %v6536
  %v7215 = vadd.f32 %v5185, %v6541
  %v7216 = vadd.f32 %v5186, %v6544
  %v7217 = vadd.f32 %v5187, %v6549
  %v7218 = vadd.f32 %v5188, %v6552
  %v7219 = vadd.f32 %v5189, %v6557
  %v7220 = vadd.f32 %v5190, %v6560
  %v7221 = vadd.f32 %v5191, %v6565
  %v7222 = vadd.f32 %v5192, %v6568
  %v7223 = vadd.f32 %v5193, %v6573
  %v7224 = vadd.f32 %v5194, %v6576
  %v7225 = vadd.f32 %v5195, %v6581
  %v7226 = vadd.f32 %v5196, %v6584
  %v7227 = vadd.f32 %v5197, %v6589
  %v7228 = vadd.f32 %v5198, %v6592
  %v7229 = vadd.f32 %v5199, %v6597
  %v7230 = vadd.f32 %v5200, %v6600
  %v7231 = vadd.f32 %v5201, %v6605
  %v7232 = vadd.f32 %v5202, %v6608
  %v7233 = vadd.f32 %v5203, %v6613
  %v7234 = vadd.f32 %v5204, %v6616
  %v7235 = vadd.f32 %v5205, %v6621
  %v7236 = vadd.f32 %v5206, %v6624
  %v7237 = vadd.f32 %v5207, %v6629
  %v7238 = vadd.f32 %v5208, %v6632
  %v7239 = vadd.f32 %v5209, %v6637
  %v7240 = vadd.f32 %v5210, %v6640
  %v7241 = vadd.f32 %v5211, %v6645
  %v7242 = vadd.f32 %v5212, %v6648
  %v7243 = vadd.f32 %v5213, %v6653
  %v7244 = vadd.f32 %v5214, %v6656
  %v7245 = vadd.f32 %v5215, %v6661
  %v7246 = vadd.f32 %v5216, %v6664
  %v7247 = vadd.f32 %v5217, %v6669
  %v7248 = vadd.f32 %v5218, %v6672
  %v7249 = vadd.f32 %v5219, %v6677
  %v7250 = vadd.f32 %v5220, %v6680
  %v7251 = vadd.f32 %v5221, %v6685
  %v7252 = vadd.f32 %v5222, %v6688
  %v7253 = vadd.f32 %v5223, %v6693
  %v7254 = vadd.f32 %v5224, %v6696
  %v7255 = vadd.f32 %v5225, %v6701
  %v7256 = vadd.f32 %v5226, %v6704
  %v7257 = vadd.f32 %v5227, %v6709
  %v7258 = vadd.f32 %v5228, %v6712
  %v7259 = vadd.f32 %v5229, %v6717
  %v7260 = vadd.f32 %v5230, %v6720
  %v7261 = vadd.f32 %v5231, %v6725
  %v7262 = vadd.f32 %v5232, %v6728
  %v7263 = vadd.f32 %v5233, %v6733
  %v7264 = vadd.f32 %v5234, %v6736
  %v7265 = vadd.f32 %v5235, %v6741
  %v7266 = vadd.f32 %v5236, %v6744
  %v7267 = vadd.f32 %v5237, %v6749
  %v7268 = vadd.f32 %v5238, %v6752
  %v7269 = vadd.f32 %v5239, %v6757
  %v7270 = vadd.f32 %v5240, %v6760
  %v7271 = vadd.f32 %v5241, %v6765
  %v7272 = vadd.f32 %v5242, %v6768
  %v7273 = vadd.f32 %v5243, %v6773
  %v7274 = vadd.f32 %v5244, %v6776
  %v7275 = vadd.f32 %v5245, %v6781
  %v7276 = vadd.f32 %v5246, %v6784
  %v7277 = vadd.f32 %v5247, %v6789
  %v7278 = vadd.f32 %v5248, %v6792
  %v7279 = vadd.f32 %v5249, %v6797
  %v7280 = vadd.f32 %v5250, %v6800
  %v7281 = vadd.f32 %v5251, %v6805
  %v7282 = vadd.f32 %v5252, %v6808
  %v7283 = vadd.f32 %v5253, %v6813
  %v7284 = vadd.f32 %v5254, %v6816
  %v7285 = vadd.f32 %v5255, %v6821
  %v7286 = vadd.f32 %v5256, %v6824
  %v7287 = vadd.f32 %v5257, %v6829
  %v7288 = vadd.f32 %v5258, %v6832
  %v7289 = vadd.f32 %v5259, %v6837
  %v7290 = vadd.f32 %v5260, %v6840
  %v7291 = vadd.f32 %v5261, %v6845
  %v7292 = vadd.f32 %v5262, %v6848
  %v7293 = vadd.f32 %v5263, %v6853
  %v7294 = vadd.f32 %v5264, %v6856
  %v7295 = vadd.f32 %v5265, %v6861
  %v7296 = vadd.f32 %v5266, %v6864
  %v7297 = vadd.f32 %v5267, %v6869
  %v7298 = vadd.f32 %v5268, %v6872
  %v7299 = vadd.f32 %v5269, %v6877
  %v7300 = vadd.f32 %v5270, %v6880
  %v7301 = vadd.f32 %v5271, %v6885
  %v7302 = vadd.f32 %v5272, %v6888
  %v7303 = vadd.f32 %v5273, %v6893
  %v7304 = vadd.f32 %v5274, %v6896
  %v7305 = vadd.f32 %v5275, %v6901
  %v7306 = vadd.f32 %v5276, %v6904
  %v7307 = vadd.f32 %v5277, %v6909
  %v7308 = vadd.f32 %v5278, %v6912
  %v7309 = vadd.f32 %v5279, %v6917
  %v7310 = vadd.f32 %v5280, %v6920
  %v7311 = vadd.f32 %v5281, %v6925
  %v7312 = vadd.f32 %v5282, %v6928
  %v7313 = vadd.f32 %v5283, %v6933
  %v7314 = vadd.f32 %v5284, %v6936
  %v7315 = vadd.f32 %v5285, %v6941
  %v7316 = vadd.f32 %v5286, %v6944
  %v7317 = vadd.f32 %v5287, %v6949
  %v7318 = vadd.f32 %v5288, %v6952
  %v7319 = vadd.f32 %v5289, %v6957
  %v7320 = vadd.f32 %v5290, %v6960
  %v7321 = vadd.f32 %v5291, %v6965
  %v7322 = vadd.f32 %v5292, %v6968
  %v7323 = vadd.f32 %v5293, %v6973
  %v7324 = vadd.f32 %v5294, %v6976
  %v7325 = vadd.f32 %v5295, %v6981
  %v7326 = vadd.f32 %v5296, %v6984
  %v7327 = vadd.f32 %v5297, %v6989
  %v7328 = vadd.f32 %v5298, %v6992
  %v7329 = vadd.f32 %v5299, %v6997
  %v7330 = vadd.f32 %v5300, %v7000
  %v7331 = vadd.f32 %v5301, %v7005
  %v7332 = vadd.f32 %v5302, %v7008
  %v7333 = vadd.f32 %v5303, %v7013
  %v7334 = vadd.f32 %v5304, %v7016
  %v7335 = vadd.f32 %v5305, %v7021
  %v7336 = vadd.f32 %v5306, %v7024
  %v7337 = vadd.f32 %v5307, %v7029
  %v7338 = vadd.f32 %v5308, %v7032
  %v7339 = vadd.f32 %v5309, %v7037
  %v7340 = vadd.f32 %v5310, %v7040
  %v7341 = vadd.f32 %v5311, %v7045
  %v7342 = vadd.f32 %v5312, %v7048
  %v7343 = vadd.f32 %v5313, %v7053
  %v7344 = vadd.f32 %v5314, %v7056
  %v7345 = vadd.f32 %v5315, %v7061
  %v7346 = vadd.f32 %v5316, %v7064
  %v7347 = vadd.f32 %v5317, %v7069
  %v7348 = vadd.f32 %v5318, %v7072
  %v7349 = vadd.f32 %v5319, %v7077
  %v7350 = vadd.f32 %v5320, %v7080
  %v7351 = vadd.f32 %v5321, %v7085
  %v7352 = vadd.f32 %v5322, %v7088
  %v7353 = vadd.f32 %v5323, %v7093
  %v7354 = vadd.f32 %v5324, %v7096
  %v7355 = vadd.s32 %v1371, 2
  %vm7356 = vcmp.eq.s32.totalorder %v40, %v7355
  %v7357 = vsel %vm7356, 1.0, 0.0
  %7358 = vmatprep.subr.mxu0 0.0
  %7359 = vmatpush1.msra.mxu0 %v7357
  %7360 = vmatprep.subr.mxu0 0.0
  %7361 = vmatpush1.msra.mxu0 0.0
  %7362 = vmatprep.subr.mxu0 0.0
  %7363 = vmatpush1.msra.mxu0 0.0
  %7364 = vmatprep.subr.mxu0 0.0
  %7365 = vmatpush1.msra.mxu0 0.0
  %7366 = vmatprep.subr.mxu0 0.0
  %7367 = vmatpush1.msra.mxu0 0.0
  %7368 = vmatprep.subr.mxu0 0.0
  %7369 = vmatpush1.msra.mxu0 0.0
  %7370 = vmatprep.subr.mxu0 0.0
  %7371 = vmatpush1.msra.mxu0 0.0
  %7372 = vmatprep.subr.mxu0 0.0
  %7373 = vmatpush1.msra.mxu0 0.0
  %7374 = vmatprep.subr.mxu0 0.0
  %7375 = vmatpush1.msra.mxu0 0.0
  %7376 = vmatprep.subr.mxu0 0.0
  %7377 = vmatpush1.msra.mxu0 0.0
  %7378 = vmatprep.subr.mxu0 0.0
  %7379 = vmatpush1.msra.mxu0 0.0
  %7380 = vmatprep.subr.mxu0 0.0
  %7381 = vmatpush1.msra.mxu0 0.0
  %7382 = vmatprep.subr.mxu0 0.0
  %7383 = vmatpush1.msra.mxu0 0.0
  %7384 = vmatprep.subr.mxu0 0.0
  %7385 = vmatpush1.msra.mxu0 0.0
  %7386 = vmatprep.subr.mxu0 0.0
  %7387 = vmatpush1.msra.mxu0 0.0
  %7388 = vmatprep.subr.mxu0 0.0
  %7389 = vmatpush1.msra.mxu0 0.0
  %7390 = vmatprep.subr.mxu0 0.0
  %7391 = vmatpush1.msra.mxu0 0.0
  %7392 = vmatprep.subr.mxu0 0.0
  %7393 = vmatpush1.msra.mxu0 0.0
  %7394 = vmatprep.subr.mxu0 0.0
  %7395 = vmatpush1.msra.mxu0 0.0
  %7396 = vmatprep.subr.mxu0 0.0
  %7397 = vmatpush1.msra.mxu0 0.0
  %7398 = vmatprep.subr.mxu0 0.0
  %7399 = vmatpush1.msra.mxu0 0.0
  %7400 = vmatprep.subr.mxu0 0.0
  %7401 = vmatpush1.msra.mxu0 0.0
  %7402 = vmatprep.subr.mxu0 0.0
  %7403 = vmatpush1.msra.mxu0 0.0
  %7404 = vmatprep.subr.mxu0 0.0
  %7405 = vmatpush1.msra.mxu0 0.0
  %7406 = vmatprep.subr.mxu0 0.0
  %7407 = vmatpush1.msra.mxu0 0.0
  %7408 = vmatprep.subr.mxu0 0.0
  %7409 = vmatpush1.msra.mxu0 0.0
  %7410 = vmatprep.subr.mxu0 0.0
  %7411 = vmatpush1.msra.mxu0 0.0
  %7412 = vmatprep.subr.mxu0 0.0
  %7413 = vmatpush1.msra.mxu0 0.0
  %7414 = vmatprep.subr.mxu0 0.0
  %7415 = vmatpush1.msra.mxu0 0.0
  %7416 = vmatprep.subr.mxu0 0.0
  %7417 = vmatpush1.msra.mxu0 0.0
  %7418 = vmatprep.subr.mxu0 0.0
  %7419 = vmatpush1.msra.mxu0 0.0
  %7420 = vmatprep.subr.mxu0 0.0
  %7421 = vmatpush1.msra.mxu0 0.0
  %7422 = vmatprep.mubr.f32.mxu0 0.0
  %7423 = vmatmul.mubr.f32.gmra.mrb[0].mxu0 %v1375
  %v7424 = vpop.f32.mrb[0].mxu0
  %v7425 = vadd.f32 0.0, %v7424
  %v7426 = vpop.f32.mrb[0].mxu0
  %7427 = vdwg.mxu0
  %v7428 = vpack.c.bf16 %v7425, %v7425
  %7429 = vrot.lane.b32.xlu0 %v2216, 112
  %v7430 = vpop.permute.xlu0 %7429
  %7431 = vrot.lane.b32.xlu0 %v2217, 112
  %v7432 = vpop.permute.xlu0 %7431
  %7433 = vrot.lane.b32.xlu0 %v2218, 112
  %v7434 = vpop.permute.xlu0 %7433
  %7435 = vrot.lane.b32.xlu0 %v2219, 112
  %v7436 = vpop.permute.xlu0 %7435
  %7437 = vrot.lane.b32.xlu0 %v2220, 112
  %v7438 = vpop.permute.xlu0 %7437
  %7439 = vrot.lane.b32.xlu0 %v2221, 112
  %v7440 = vpop.permute.xlu0 %7439
  %7441 = vrot.lane.b32.xlu0 %v2222, 112
  %v7442 = vpop.permute.xlu0 %7441
  %7443 = vrot.lane.b32.xlu0 %v2223, 112
  %v7444 = vpop.permute.xlu0 %7443
  %7445 = vrot.lane.b32.xlu0 %v2224, 112
  %v7446 = vpop.permute.xlu0 %7445
  %7447 = vrot.lane.b32.xlu0 %v2225, 112
  %v7448 = vpop.permute.xlu0 %7447
  %7449 = vrot.lane.b32.xlu0 %v2226, 112
  %v7450 = vpop.permute.xlu0 %7449
  %7451 = vrot.lane.b32.xlu0 %v2227, 112
  %v7452 = vpop.permute.xlu0 %7451
  %7453 = vrot.lane.b32.xlu0 %v2228, 112
  %v7454 = vpop.permute.xlu0 %7453
  %7455 = vrot.lane.b32.xlu0 %v2229, 112
  %v7456 = vpop.permute.xlu0 %7455
  %7457 = vrot.lane.b32.xlu0 %v2230, 112
  %v7458 = vpop.permute.xlu0 %7457
  %7459 = vrot.lane.b32.xlu0 %v2231, 112
  %v7460 = vpop.permute.xlu0 %7459
  %7461 = vrot.lane.b32.xlu0 %v2232, 112
  %v7462 = vpop.permute.xlu0 %7461
  %7463 = vrot.lane.b32.xlu0 %v2233, 112
  %v7464 = vpop.permute.xlu0 %7463
  %7465 = vrot.lane.b32.xlu0 %v2234, 112
  %v7466 = vpop.permute.xlu0 %7465
  %7467 = vrot.lane.b32.xlu0 %v2235, 112
  %v7468 = vpop.permute.xlu0 %7467
  %7469 = vrot.lane.b32.xlu0 %v2236, 112
  %v7470 = vpop.permute.xlu0 %7469
  %7471 = vrot.lane.b32.xlu0 %v2237, 112
  %v7472 = vpop.permute.xlu0 %7471
  %7473 = vrot.lane.b32.xlu0 %v2238, 112
  %v7474 = vpop.permute.xlu0 %7473
  %7475 = vrot.lane.b32.xlu0 %v2239, 112
  %v7476 = vpop.permute.xlu0 %7475
  %7477 = vrot.lane.b32.xlu0 %v2240, 112
  %v7478 = vpop.permute.xlu0 %7477
  %7479 = vrot.lane.b32.xlu0 %v2241, 112
  %v7480 = vpop.permute.xlu0 %7479
  %7481 = vrot.lane.b32.xlu0 %v2242, 112
  %v7482 = vpop.permute.xlu0 %7481
  %7483 = vrot.lane.b32.xlu0 %v2243, 112
  %v7484 = vpop.permute.xlu0 %7483
  %7485 = vrot.lane.b32.xlu0 %v2244, 112
  %v7486 = vpop.permute.xlu0 %7485
  %7487 = vrot.lane.b32.xlu0 %v2245, 112
  %v7488 = vpop.permute.xlu0 %7487
  %7489 = vrot.lane.b32.xlu0 %v2246, 112
  %v7490 = vpop.permute.xlu0 %7489
  %7491 = vrot.lane.b32.xlu0 %v2247, 112
  %v7492 = vpop.permute.xlu0 %7491
  %7493 = vrot.lane.b32.xlu0 %v2248, 112
  %v7494 = vpop.permute.xlu0 %7493
  %7495 = vrot.lane.b32.xlu0 %v2249, 112
  %v7496 = vpop.permute.xlu0 %7495
  %7497 = vrot.lane.b32.xlu0 %v2250, 112
  %v7498 = vpop.permute.xlu0 %7497
  %7499 = vrot.lane.b32.xlu0 %v2251, 112
  %v7500 = vpop.permute.xlu0 %7499
  %7501 = vrot.lane.b32.xlu0 %v2252, 112
  %v7502 = vpop.permute.xlu0 %7501
  %7503 = vrot.lane.b32.xlu0 %v2253, 112
  %v7504 = vpop.permute.xlu0 %7503
  %7505 = vrot.lane.b32.xlu0 %v2254, 112
  %v7506 = vpop.permute.xlu0 %7505
  %7507 = vrot.lane.b32.xlu0 %v2255, 112
  %v7508 = vpop.permute.xlu0 %7507
  %7509 = vrot.lane.b32.xlu0 %v2256, 112
  %v7510 = vpop.permute.xlu0 %7509
  %7511 = vrot.lane.b32.xlu0 %v2257, 112
  %v7512 = vpop.permute.xlu0 %7511
  %7513 = vrot.lane.b32.xlu0 %v2258, 112
  %v7514 = vpop.permute.xlu0 %7513
  %7515 = vrot.lane.b32.xlu0 %v2259, 112
  %v7516 = vpop.permute.xlu0 %7515
  %7517 = vrot.lane.b32.xlu0 %v2260, 112
  %v7518 = vpop.permute.xlu0 %7517
  %7519 = vrot.lane.b32.xlu0 %v2261, 112
  %v7520 = vpop.permute.xlu0 %7519
  %7521 = vrot.lane.b32.xlu0 %v2262, 112
  %v7522 = vpop.permute.xlu0 %7521
  %7523 = vrot.lane.b32.xlu0 %v2263, 112
  %v7524 = vpop.permute.xlu0 %7523
  %7525 = vrot.lane.b32.xlu0 %v2264, 112
  %v7526 = vpop.permute.xlu0 %7525
  %7527 = vrot.lane.b32.xlu0 %v2265, 112
  %v7528 = vpop.permute.xlu0 %7527
  %7529 = vrot.lane.b32.xlu0 %v2266, 112
  %v7530 = vpop.permute.xlu0 %7529
  %7531 = vrot.lane.b32.xlu0 %v2267, 112
  %v7532 = vpop.permute.xlu0 %7531
  %7533 = vrot.lane.b32.xlu0 %v2268, 112
  %v7534 = vpop.permute.xlu0 %7533
  %7535 = vrot.lane.b32.xlu0 %v2269, 112
  %v7536 = vpop.permute.xlu0 %7535
  %7537 = vrot.lane.b32.xlu0 %v2270, 112
  %v7538 = vpop.permute.xlu0 %7537
  %7539 = vrot.lane.b32.xlu0 %v2271, 112
  %v7540 = vpop.permute.xlu0 %7539
  %7541 = vrot.lane.b32.xlu0 %v2272, 112
  %v7542 = vpop.permute.xlu0 %7541
  %7543 = vrot.lane.b32.xlu0 %v2273, 112
  %v7544 = vpop.permute.xlu0 %7543
  %7545 = vrot.lane.b32.xlu0 %v2274, 112
  %v7546 = vpop.permute.xlu0 %7545
  %7547 = vrot.lane.b32.xlu0 %v2275, 112
  %v7548 = vpop.permute.xlu0 %7547
  %7549 = vrot.lane.b32.xlu0 %v2276, 112
  %v7550 = vpop.permute.xlu0 %7549
  %7551 = vrot.lane.b32.xlu0 %v2277, 112
  %v7552 = vpop.permute.xlu0 %7551
  %7553 = vrot.lane.b32.xlu0 %v2278, 112
  %v7554 = vpop.permute.xlu0 %7553
  %7555 = vrot.lane.b32.xlu0 %v2279, 112
  %v7556 = vpop.permute.xlu0 %7555
  %7557 = vrot.lane.b32.xlu0 %v2280, 112
  %v7558 = vpop.permute.xlu0 %7557
  %7559 = vrot.lane.b32.xlu0 %v2281, 112
  %v7560 = vpop.permute.xlu0 %7559
  %7561 = vrot.lane.b32.xlu0 %v2282, 112
  %v7562 = vpop.permute.xlu0 %7561
  %7563 = vrot.lane.b32.xlu0 %v2283, 112
  %v7564 = vpop.permute.xlu0 %7563
  %7565 = vrot.lane.b32.xlu0 %v2284, 112
  %v7566 = vpop.permute.xlu0 %7565
  %7567 = vrot.lane.b32.xlu0 %v2285, 112
  %v7568 = vpop.permute.xlu0 %7567
  %7569 = vrot.lane.b32.xlu0 %v2286, 112
  %v7570 = vpop.permute.xlu0 %7569
  %7571 = vrot.lane.b32.xlu0 %v2287, 112
  %v7572 = vpop.permute.xlu0 %7571
  %7573 = vrot.lane.b32.xlu0 %v2288, 112
  %v7574 = vpop.permute.xlu0 %7573
  %7575 = vrot.lane.b32.xlu0 %v2289, 112
  %v7576 = vpop.permute.xlu0 %7575
  %7577 = vrot.lane.b32.xlu0 %v2290, 112
  %v7578 = vpop.permute.xlu0 %7577
  %7579 = vrot.lane.b32.xlu0 %v2291, 112
  %v7580 = vpop.permute.xlu0 %7579
  %7581 = vrot.lane.b32.xlu0 %v2292, 112
  %v7582 = vpop.permute.xlu0 %7581
  %7583 = vrot.lane.b32.xlu0 %v2293, 112
  %v7584 = vpop.permute.xlu0 %7583
  %7585 = vrot.lane.b32.xlu0 %v2294, 112
  %v7586 = vpop.permute.xlu0 %7585
  %7587 = vrot.lane.b32.xlu0 %v2295, 112
  %v7588 = vpop.permute.xlu0 %7587
  %7589 = vrot.lane.b32.xlu0 %v2296, 112
  %v7590 = vpop.permute.xlu0 %7589
  %7591 = vrot.lane.b32.xlu0 %v2297, 112
  %v7592 = vpop.permute.xlu0 %7591
  %7593 = vrot.lane.b32.xlu0 %v2298, 112
  %v7594 = vpop.permute.xlu0 %7593
  %7595 = vrot.lane.b32.xlu0 %v2299, 112
  %v7596 = vpop.permute.xlu0 %7595
  %7597 = vrot.lane.b32.xlu0 %v2300, 112
  %v7598 = vpop.permute.xlu0 %7597
  %7599 = vrot.lane.b32.xlu0 %v2301, 112
  %v7600 = vpop.permute.xlu0 %7599
  %7601 = vrot.lane.b32.xlu0 %v2302, 112
  %v7602 = vpop.permute.xlu0 %7601
  %7603 = vrot.lane.b32.xlu0 %v2303, 112
  %v7604 = vpop.permute.xlu0 %7603
  %7605 = vrot.lane.b32.xlu0 %v2304, 112
  %v7606 = vpop.permute.xlu0 %7605
  %7607 = vrot.lane.b32.xlu0 %v2305, 112
  %v7608 = vpop.permute.xlu0 %7607
  %7609 = vrot.lane.b32.xlu0 %v2306, 112
  %v7610 = vpop.permute.xlu0 %7609
  %7611 = vrot.lane.b32.xlu0 %v2307, 112
  %v7612 = vpop.permute.xlu0 %7611
  %7613 = vrot.lane.b32.xlu0 %v2308, 112
  %v7614 = vpop.permute.xlu0 %7613
  %7615 = vrot.lane.b32.xlu0 %v2309, 112
  %v7616 = vpop.permute.xlu0 %7615
  %7617 = vrot.lane.b32.xlu0 %v2310, 112
  %v7618 = vpop.permute.xlu0 %7617
  %7619 = vrot.lane.b32.xlu0 %v2311, 112
  %v7620 = vpop.permute.xlu0 %7619
  %7621 = vrot.lane.b32.xlu0 %v2312, 112
  %v7622 = vpop.permute.xlu0 %7621
  %7623 = vrot.lane.b32.xlu0 %v2313, 112
  %v7624 = vpop.permute.xlu0 %7623
  %7625 = vrot.lane.b32.xlu0 %v2314, 112
  %v7626 = vpop.permute.xlu0 %7625
  %7627 = vrot.lane.b32.xlu0 %v2315, 112
  %v7628 = vpop.permute.xlu0 %7627
  %7629 = vrot.lane.b32.xlu0 %v2316, 112
  %v7630 = vpop.permute.xlu0 %7629
  %7631 = vrot.lane.b32.xlu0 %v2317, 112
  %v7632 = vpop.permute.xlu0 %7631
  %7633 = vrot.lane.b32.xlu0 %v2318, 112
  %v7634 = vpop.permute.xlu0 %7633
  %7635 = vrot.lane.b32.xlu0 %v2319, 112
  %v7636 = vpop.permute.xlu0 %7635
  %7637 = vrot.lane.b32.xlu0 %v2320, 112
  %v7638 = vpop.permute.xlu0 %7637
  %7639 = vrot.lane.b32.xlu0 %v2321, 112
  %v7640 = vpop.permute.xlu0 %7639
  %7641 = vrot.lane.b32.xlu0 %v2322, 112
  %v7642 = vpop.permute.xlu0 %7641
  %7643 = vrot.lane.b32.xlu0 %v2323, 112
  %v7644 = vpop.permute.xlu0 %7643
  %7645 = vrot.lane.b32.xlu0 %v2324, 112
  %v7646 = vpop.permute.xlu0 %7645
  %7647 = vrot.lane.b32.xlu0 %v2325, 112
  %v7648 = vpop.permute.xlu0 %7647
  %7649 = vrot.lane.b32.xlu0 %v2326, 112
  %v7650 = vpop.permute.xlu0 %7649
  %7651 = vrot.lane.b32.xlu0 %v2327, 112
  %v7652 = vpop.permute.xlu0 %7651
  %7653 = vrot.lane.b32.xlu0 %v2328, 112
  %v7654 = vpop.permute.xlu0 %7653
  %7655 = vrot.lane.b32.xlu0 %v2329, 112
  %v7656 = vpop.permute.xlu0 %7655
  %7657 = vrot.lane.b32.xlu0 %v2330, 112
  %v7658 = vpop.permute.xlu0 %7657
  %7659 = vrot.lane.b32.xlu0 %v2331, 112
  %v7660 = vpop.permute.xlu0 %7659
  %7661 = vrot.lane.b32.xlu0 %v2332, 112
  %v7662 = vpop.permute.xlu0 %7661
  %7663 = vrot.lane.b32.xlu0 %v2333, 112
  %v7664 = vpop.permute.xlu0 %7663
  %7665 = vrot.lane.b32.xlu0 %v2334, 112
  %v7666 = vpop.permute.xlu0 %7665
  %7667 = vrot.lane.b32.xlu0 %v2335, 112
  %v7668 = vpop.permute.xlu0 %7667
  %7669 = vrot.lane.b32.xlu0 %v2336, 112
  %v7670 = vpop.permute.xlu0 %7669
  %7671 = vrot.lane.b32.xlu0 %v2337, 112
  %v7672 = vpop.permute.xlu0 %7671
  %7673 = vrot.lane.b32.xlu0 %v2338, 112
  %v7674 = vpop.permute.xlu0 %7673
  %7675 = vrot.lane.b32.xlu0 %v2339, 112
  %v7676 = vpop.permute.xlu0 %7675
  %7677 = vrot.lane.b32.xlu0 %v2340, 112
  %v7678 = vpop.permute.xlu0 %7677
  %7679 = vrot.lane.b32.xlu0 %v2341, 112
  %v7680 = vpop.permute.xlu0 %7679
  %7681 = vrot.lane.b32.xlu0 %v2342, 112
  %v7682 = vpop.permute.xlu0 %7681
  %7683 = vrot.lane.b32.xlu0 %v2343, 112
  %v7684 = vpop.permute.xlu0 %7683
  %v7686 = vsel %vm453, %v7430, 0
  %v7689 = vsel %vm453, %v7432, 0
  %v7692 = vsel %vm453, %v7434, 0
  %v7695 = vsel %vm453, %v7436, 0
  %v7698 = vsel %vm453, %v7438, 0
  %v7701 = vsel %vm453, %v7440, 0
  %v7704 = vsel %vm453, %v7442, 0
  %v7707 = vsel %vm453, %v7444, 0
  %v7710 = vsel %vm453, %v7446, 0
  %v7713 = vsel %vm453, %v7448, 0
  %v7716 = vsel %vm453, %v7450, 0
  %v7719 = vsel %vm453, %v7452, 0
  %v7722 = vsel %vm453, %v7454, 0
  %v7725 = vsel %vm453, %v7456, 0
  %v7728 = vsel %vm453, %v7458, 0
  %v7731 = vsel %vm453, %v7460, 0
  %v7734 = vsel %vm453, %v7462, 0
  %v7737 = vsel %vm453, %v7464, 0
  %v7740 = vsel %vm453, %v7466, 0
  %v7743 = vsel %vm453, %v7468, 0
  %v7746 = vsel %vm453, %v7470, 0
  %v7749 = vsel %vm453, %v7472, 0
  %v7752 = vsel %vm453, %v7474, 0
  %v7755 = vsel %vm453, %v7476, 0
  %v7758 = vsel %vm453, %v7478, 0
  %v7761 = vsel %vm453, %v7480, 0
  %v7764 = vsel %vm453, %v7482, 0
  %v7767 = vsel %vm453, %v7484, 0
  %v7770 = vsel %vm453, %v7486, 0
  %v7773 = vsel %vm453, %v7488, 0
  %v7776 = vsel %vm453, %v7490, 0
  %v7779 = vsel %vm453, %v7492, 0
  %v7782 = vsel %vm453, %v7494, 0
  %v7785 = vsel %vm453, %v7496, 0
  %v7788 = vsel %vm453, %v7498, 0
  %v7791 = vsel %vm453, %v7500, 0
  %v7794 = vsel %vm453, %v7502, 0
  %v7797 = vsel %vm453, %v7504, 0
  %v7800 = vsel %vm453, %v7506, 0
  %v7803 = vsel %vm453, %v7508, 0
  %v7806 = vsel %vm453, %v7510, 0
  %v7809 = vsel %vm453, %v7512, 0
  %v7812 = vsel %vm453, %v7514, 0
  %v7815 = vsel %vm453, %v7516, 0
  %v7818 = vsel %vm453, %v7518, 0
  %v7821 = vsel %vm453, %v7520, 0
  %v7824 = vsel %vm453, %v7522, 0
  %v7827 = vsel %vm453, %v7524, 0
  %v7830 = vsel %vm453, %v7526, 0
  %v7833 = vsel %vm453, %v7528, 0
  %v7836 = vsel %vm453, %v7530, 0
  %v7839 = vsel %vm453, %v7532, 0
  %v7842 = vsel %vm453, %v7534, 0
  %v7845 = vsel %vm453, %v7536, 0
  %v7848 = vsel %vm453, %v7538, 0
  %v7851 = vsel %vm453, %v7540, 0
  %v7854 = vsel %vm453, %v7542, 0
  %v7857 = vsel %vm453, %v7544, 0
  %v7860 = vsel %vm453, %v7546, 0
  %v7863 = vsel %vm453, %v7548, 0
  %v7866 = vsel %vm453, %v7550, 0
  %v7869 = vsel %vm453, %v7552, 0
  %v7872 = vsel %vm453, %v7554, 0
  %v7875 = vsel %vm453, %v7556, 0
  %v7878 = vsel %vm453, %v7558, 0
  %v7881 = vsel %vm453, %v7560, 0
  %v7884 = vsel %vm453, %v7562, 0
  %v7887 = vsel %vm453, %v7564, 0
  %v7890 = vsel %vm453, %v7566, 0
  %v7893 = vsel %vm453, %v7568, 0
  %v7896 = vsel %vm453, %v7570, 0
  %v7899 = vsel %vm453, %v7572, 0
  %v7902 = vsel %vm453, %v7574, 0
  %v7905 = vsel %vm453, %v7576, 0
  %v7908 = vsel %vm453, %v7578, 0
  %v7911 = vsel %vm453, %v7580, 0
  %v7914 = vsel %vm453, %v7582, 0
  %v7917 = vsel %vm453, %v7584, 0
  %v7920 = vsel %vm453, %v7586, 0
  %v7923 = vsel %vm453, %v7588, 0
  %v7926 = vsel %vm453, %v7590, 0
  %v7929 = vsel %vm453, %v7592, 0
  %v7932 = vsel %vm453, %v7594, 0
  %v7935 = vsel %vm453, %v7596, 0
  %v7938 = vsel %vm453, %v7598, 0
  %v7941 = vsel %vm453, %v7600, 0
  %v7944 = vsel %vm453, %v7602, 0
  %v7947 = vsel %vm453, %v7604, 0
  %v7950 = vsel %vm453, %v7606, 0
  %v7953 = vsel %vm453, %v7608, 0
  %v7956 = vsel %vm453, %v7610, 0
  %v7959 = vsel %vm453, %v7612, 0
  %v7962 = vsel %vm453, %v7614, 0
  %v7965 = vsel %vm453, %v7616, 0
  %v7968 = vsel %vm453, %v7618, 0
  %v7971 = vsel %vm453, %v7620, 0
  %v7974 = vsel %vm453, %v7622, 0
  %v7977 = vsel %vm453, %v7624, 0
  %v7980 = vsel %vm453, %v7626, 0
  %v7983 = vsel %vm453, %v7628, 0
  %v7986 = vsel %vm453, %v7630, 0
  %v7989 = vsel %vm453, %v7632, 0
  %v7992 = vsel %vm453, %v7634, 0
  %v7995 = vsel %vm453, %v7636, 0
  %v7998 = vsel %vm453, %v7638, 0
  %v8001 = vsel %vm453, %v7640, 0
  %v8004 = vsel %vm453, %v7642, 0
  %v8007 = vsel %vm453, %v7644, 0
  %v8010 = vsel %vm453, %v7646, 0
  %v8013 = vsel %vm453, %v7648, 0
  %v8016 = vsel %vm453, %v7650, 0
  %v8019 = vsel %vm453, %v7652, 0
  %v8022 = vsel %vm453, %v7654, 0
  %v8025 = vsel %vm453, %v7656, 0
  %v8028 = vsel %vm453, %v7658, 0
  %v8031 = vsel %vm453, %v7660, 0
  %v8034 = vsel %vm453, %v7662, 0
  %v8037 = vsel %vm453, %v7664, 0
  %v8040 = vsel %vm453, %v7666, 0
  %v8043 = vsel %vm453, %v7668, 0
  %v8046 = vsel %vm453, %v7670, 0
  %v8049 = vsel %vm453, %v7672, 0
  %v8052 = vsel %vm453, %v7674, 0
  %v8055 = vsel %vm453, %v7676, 0
  %v8058 = vsel %vm453, %v7678, 0
  %v8061 = vsel %vm453, %v7680, 0
  %v8064 = vsel %vm453, %v7682, 0
  %v8067 = vsel %vm453, %v7684, 0
  %v8070 = vsel %vm2728, %v7428, 0
  %8072 = vmatprep.subr.bf16.mxu0 0
  %8073 = vmatpush1.bf16.msra.mxu0 %v8070
  %8074 = vmatprep.subr.bf16.mxu0 0
  %8075 = vmatpush1.bf16.msra.mxu0 0
  %8076 = vmatprep.subr.bf16.mxu0 0
  %8077 = vmatpush1.bf16.msra.mxu0 0
  %8078 = vmatprep.subr.bf16.mxu0 0
  %8079 = vmatpush1.bf16.msra.mxu0 0
  %8080 = vmatprep.subr.bf16.mxu0 0
  %8081 = vmatpush1.bf16.msra.mxu0 0
  %8082 = vmatprep.subr.bf16.mxu0 0
  %8083 = vmatpush1.bf16.msra.mxu0 0
  %8084 = vmatprep.subr.bf16.mxu0 0
  %8085 = vmatpush1.bf16.msra.mxu0 0
  %8086 = vmatprep.subr.bf16.mxu0 0
  %8087 = vmatpush1.bf16.msra.mxu0 0
  %8088 = vmatprep.subr.bf16.mxu0 0
  %8089 = vmatpush1.bf16.msra.mxu0 0
  %8090 = vmatprep.subr.bf16.mxu0 0
  %8091 = vmatpush1.bf16.msra.mxu0 0
  %8092 = vmatprep.subr.bf16.mxu0 0
  %8093 = vmatpush1.bf16.msra.mxu0 0
  %8094 = vmatprep.subr.bf16.mxu0 0
  %8095 = vmatpush1.bf16.msra.mxu0 0
  %8096 = vmatprep.subr.bf16.mxu0 0
  %8097 = vmatpush1.bf16.msra.mxu0 0
  %8098 = vmatprep.subr.bf16.mxu0 0
  %8099 = vmatpush1.bf16.msra.mxu0 0
  %8100 = vmatprep.subr.bf16.mxu0 0
  %8101 = vmatpush1.bf16.msra.mxu0 0
  %8102 = vmatprep.subr.bf16.mxu0 0
  %8103 = vmatpush1.bf16.msra.mxu0 0
  %8104 = vmatprep.mubr.bf16.mxu0 0
  %8105 = vmatmul.mubr.bf16.gmra.mrb[0].mxu0 %v7686
  %v8106 = vpop.f32.mrb[0].mxu0
  %v8107 = vadd.f32 0.0, %v8106
  %v8108 = vpop.f32.mrb[0].mxu0
  %v8109 = vpop.f32.mrb[0].mxu0
  %v8110 = vadd.f32 0.0, %v8109
  %v8111 = vpop.f32.mrb[0].mxu0
  %8112 = vmatprep.mubr.bf16.mxu0 0
  %8113 = vmatmul.mubr.bf16.gmra.mrb[0].mxu0 %v7689
  %v8114 = vpop.f32.mrb[0].mxu0
  %v8115 = vadd.f32 0.0, %v8114
  %v8116 = vpop.f32.mrb[0].mxu0
  %v8117 = vpop.f32.mrb[0].mxu0
  %v8118 = vadd.f32 0.0, %v8117
  %v8119 = vpop.f32.mrb[0].mxu0
  %8120 = vmatprep.mubr.bf16.mxu0 0
  %8121 = vmatmul.mubr.bf16.gmra.mrb[0].mxu0 %v7692
  %v8122 = vpop.f32.mrb[0].mxu0
  %v8123 = vadd.f32 0.0, %v8122
  %v8124 = vpop.f32.mrb[0].mxu0
  %v8125 = vpop.f32.mrb[0].mxu0
  %v8126 = vadd.f32 0.0, %v8125
  %v8127 = vpop.f32.mrb[0].mxu0
  %8128 = vmatprep.mubr.bf16.mxu0 0
  %8129 = vmatmul.mubr.bf16.gmra.mrb[0].mxu0 %v7695
  %v8130 = vpop.f32.mrb[0].mxu0
  %v8131 = vadd.f32 0.0, %v8130
  %v8132 = vpop.f32.mrb[0].mxu0
  %v8133 = vpop.f32.mrb[0].mxu0
  %v8134 = vadd.f32 0.0, %v8133
  %v8135 = vpop.f32.mrb[0].mxu0
  %8136 = vmatprep.mubr.bf16.mxu0 0
  %8137 = vmatmul.mubr.bf16.gmra.mrb[0].mxu0 %v7698
  %v8138 = vpop.f32.mrb[0].mxu0
  %v8139 = vadd.f32 0.0, %v8138
  %v8140 = vpop.f32.mrb[0].mxu0
  %v8141 = vpop.f32.mrb[0].mxu0
  %v8142 = vadd.f32 0.0, %v8141
  %v8143 = vpop.f32.mrb[0].mxu0
  %8144 = vmatprep.mubr.bf16.mxu0 0
  %8145 = vmatmul.mubr.bf16.gmra.mrb[0].mxu0 %v7701
  %v8146 = vpop.f32.mrb[0].mxu0
  %v8147 = vadd.f32 0.0, %v8146
  %v8148 = vpop.f32.mrb[0].mxu0
  %v8149 = vpop.f32.mrb[0].mxu0
  %v8150 = vadd.f32 0.0, %v8149
  %v8151 = vpop.f32.mrb[0].mxu0
  %8152 = vmatprep.mubr.bf16.mxu0 0
  %8153 = vmatmul.mubr.bf16.gmra.mrb[0].mxu0 %v7704
  %v8154 = vpop.f32.mrb[0].mxu0
  %v8155 = vadd.f32 0.0, %v8154
  %v8156 = vpop.f32.mrb[0].mxu0
  %v8157 = vpop.f32.mrb[0].mxu0
  %v8158 = vadd.f32 0.0, %v8157
  %v8159 = vpop.f32.mrb[0].mxu0
  %8160 = vmatprep.mubr.bf16.mxu0 0
  %8161 = vmatmul.mubr.bf16.gmra.mrb[0].mxu0 %v7707
  %v8162 = vpop.f32.mrb[0].mxu0
  %v8163 = vadd.f32 0.0, %v8162
  %v8164 = vpop.f32.mrb[0].mxu0
  %v8165 = vpop.f32.mrb[0].mxu0
  %v8166 = vadd.f32 0.0, %v8165
  %v8167 = vpop.f32.mrb[0].mxu0
  %8168 = vmatprep.mubr.bf16.mxu0 0
  %8169 = vmatmul.mubr.bf16.gmra.mrb[0].mxu0 %v7710
  %v8170 = vpop.f32.mrb[0].mxu0
  %v8171 = vadd.f32 0.0, %v8170
  %v8172 = vpop.f32.mrb[0].mxu0
  %v8173 = vpop.f32.mrb[0].mxu0
  %v8174 = vadd.f32 0.0, %v8173
  %v8175 = vpop.f32.mrb[0].mxu0
  %8176 = vmatprep.mubr.bf16.mxu0 0
  %8177 = vmatmul.mubr.bf16.gmra.mrb[0].mxu0 %v7713
  %v8178 = vpop.f32.mrb[0].mxu0
  %v8179 = vadd.f32 0.0, %v8178
  %v8180 = vpop.f32.mrb[0].mxu0
  %v8181 = vpop.f32.mrb[0].mxu0
  %v8182 = vadd.f32 0.0, %v8181
  %v8183 = vpop.f32.mrb[0].mxu0
  %8184 = vmatprep.mubr.bf16.mxu0 0
  %8185 = vmatmul.mubr.bf16.gmra.mrb[0].mxu0 %v7716
  %v8186 = vpop.f32.mrb[0].mxu0
  %v8187 = vadd.f32 0.0, %v8186
  %v8188 = vpop.f32.mrb[0].mxu0
  %v8189 = vpop.f32.mrb[0].mxu0
  %v8190 = vadd.f32 0.0, %v8189
  %v8191 = vpop.f32.mrb[0].mxu0
  %8192 = vmatprep.mubr.bf16.mxu0 0
  %8193 = vmatmul.mubr.bf16.gmra.mrb[0].mxu0 %v7719
  %v8194 = vpop.f32.mrb[0].mxu0
  %v8195 = vadd.f32 0.0, %v8194
  %v8196 = vpop.f32.mrb[0].mxu0
  %v8197 = vpop.f32.mrb[0].mxu0
  %v8198 = vadd.f32 0.0, %v8197
  %v8199 = vpop.f32.mrb[0].mxu0
  %8200 = vmatprep.mubr.bf16.mxu0 0
  %8201 = vmatmul.mubr.bf16.gmra.mrb[0].mxu0 %v7722
  %v8202 = vpop.f32.mrb[0].mxu0
  %v8203 = vadd.f32 0.0, %v8202
  %v8204 = vpop.f32.mrb[0].mxu0
  %v8205 = vpop.f32.mrb[0].mxu0
  %v8206 = vadd.f32 0.0, %v8205
  %v8207 = vpop.f32.mrb[0].mxu0
  %8208 = vmatprep.mubr.bf16.mxu0 0
  %8209 = vmatmul.mubr.bf16.gmra.mrb[0].mxu0 %v7725
  %v8210 = vpop.f32.mrb[0].mxu0
  %v8211 = vadd.f32 0.0, %v8210
  %v8212 = vpop.f32.mrb[0].mxu0
  %v8213 = vpop.f32.mrb[0].mxu0
  %v8214 = vadd.f32 0.0, %v8213
  %v8215 = vpop.f32.mrb[0].mxu0
  %8216 = vmatprep.mubr.bf16.mxu0 0
  %8217 = vmatmul.mubr.bf16.gmra.mrb[0].mxu0 %v7728
  %v8218 = vpop.f32.mrb[0].mxu0
  %v8219 = vadd.f32 0.0, %v8218
  %v8220 = vpop.f32.mrb[0].mxu0
  %v8221 = vpop.f32.mrb[0].mxu0
  %v8222 = vadd.f32 0.0, %v8221
  %v8223 = vpop.f32.mrb[0].mxu0
  %8224 = vmatprep.mubr.bf16.mxu0 0
  %8225 = vmatmul.mubr.bf16.gmra.mrb[0].mxu0 %v7731
  %v8226 = vpop.f32.mrb[0].mxu0
  %v8227 = vadd.f32 0.0, %v8226
  %v8228 = vpop.f32.mrb[0].mxu0
  %v8229 = vpop.f32.mrb[0].mxu0
  %v8230 = vadd.f32 0.0, %v8229
  %v8231 = vpop.f32.mrb[0].mxu0
  %8232 = vmatprep.mubr.bf16.mxu0 0
  %8233 = vmatmul.mubr.bf16.gmra.mrb[0].mxu0 %v7734
  %v8234 = vpop.f32.mrb[0].mxu0
  %v8235 = vadd.f32 0.0, %v8234
  %v8236 = vpop.f32.mrb[0].mxu0
  %v8237 = vpop.f32.mrb[0].mxu0
  %v8238 = vadd.f32 0.0, %v8237
  %v8239 = vpop.f32.mrb[0].mxu0
  %8240 = vmatprep.mubr.bf16.mxu0 0
  %8241 = vmatmul.mubr.bf16.gmra.mrb[0].mxu0 %v7737
  %v8242 = vpop.f32.mrb[0].mxu0
  %v8243 = vadd.f32 0.0, %v8242
  %v8244 = vpop.f32.mrb[0].mxu0
  %v8245 = vpop.f32.mrb[0].mxu0
  %v8246 = vadd.f32 0.0, %v8245
  %v8247 = vpop.f32.mrb[0].mxu0
  %8248 = vmatprep.mubr.bf16.mxu0 0
  %8249 = vmatmul.mubr.bf16.gmra.mrb[0].mxu0 %v7740
  %v8250 = vpop.f32.mrb[0].mxu0
  %v8251 = vadd.f32 0.0, %v8250
  %v8252 = vpop.f32.mrb[0].mxu0
  %v8253 = vpop.f32.mrb[0].mxu0
  %v8254 = vadd.f32 0.0, %v8253
  %v8255 = vpop.f32.mrb[0].mxu0
  %8256 = vmatprep.mubr.bf16.mxu0 0
  %8257 = vmatmul.mubr.bf16.gmra.mrb[0].mxu0 %v7743
  %v8258 = vpop.f32.mrb[0].mxu0
  %v8259 = vadd.f32 0.0, %v8258
  %v8260 = vpop.f32.mrb[0].mxu0
  %v8261 = vpop.f32.mrb[0].mxu0
  %v8262 = vadd.f32 0.0, %v8261
  %v8263 = vpop.f32.mrb[0].mxu0
  %8264 = vmatprep.mubr.bf16.mxu0 0
  %8265 = vmatmul.mubr.bf16.gmra.mrb[0].mxu0 %v7746
  %v8266 = vpop.f32.mrb[0].mxu0
  %v8267 = vadd.f32 0.0, %v8266
  %v8268 = vpop.f32.mrb[0].mxu0
  %v8269 = vpop.f32.mrb[0].mxu0
  %v8270 = vadd.f32 0.0, %v8269
  %v8271 = vpop.f32.mrb[0].mxu0
  %8272 = vmatprep.mubr.bf16.mxu0 0
  %8273 = vmatmul.mubr.bf16.gmra.mrb[0].mxu0 %v7749
  %v8274 = vpop.f32.mrb[0].mxu0
  %v8275 = vadd.f32 0.0, %v8274
  %v8276 = vpop.f32.mrb[0].mxu0
  %v8277 = vpop.f32.mrb[0].mxu0
  %v8278 = vadd.f32 0.0, %v8277
  %v8279 = vpop.f32.mrb[0].mxu0
  %8280 = vmatprep.mubr.bf16.mxu0 0
  %8281 = vmatmul.mubr.bf16.gmra.mrb[0].mxu0 %v7752
  %v8282 = vpop.f32.mrb[0].mxu0
  %v8283 = vadd.f32 0.0, %v8282
  %v8284 = vpop.f32.mrb[0].mxu0
  %v8285 = vpop.f32.mrb[0].mxu0
  %v8286 = vadd.f32 0.0, %v8285
  %v8287 = vpop.f32.mrb[0].mxu0
  %8288 = vmatprep.mubr.bf16.mxu0 0
  %8289 = vmatmul.mubr.bf16.gmra.mrb[0].mxu0 %v7755
  %v8290 = vpop.f32.mrb[0].mxu0
  %v8291 = vadd.f32 0.0, %v8290
  %v8292 = vpop.f32.mrb[0].mxu0
  %v8293 = vpop.f32.mrb[0].mxu0
  %v8294 = vadd.f32 0.0, %v8293
  %v8295 = vpop.f32.mrb[0].mxu0
  %8296 = vmatprep.mubr.bf16.mxu0 0
  %8297 = vmatmul.mubr.bf16.gmra.mrb[0].mxu0 %v7758
  %v8298 = vpop.f32.mrb[0].mxu0
  %v8299 = vadd.f32 0.0, %v8298
  %v8300 = vpop.f32.mrb[0].mxu0
  %v8301 = vpop.f32.mrb[0].mxu0
  %v8302 = vadd.f32 0.0, %v8301
  %v8303 = vpop.f32.mrb[0].mxu0
  %8304 = vmatprep.mubr.bf16.mxu0 0
  %8305 = vmatmul.mubr.bf16.gmra.mrb[0].mxu0 %v7761
  %v8306 = vpop.f32.mrb[0].mxu0
  %v8307 = vadd.f32 0.0, %v8306
  %v8308 = vpop.f32.mrb[0].mxu0
  %v8309 = vpop.f32.mrb[0].mxu0
  %v8310 = vadd.f32 0.0, %v8309
  %v8311 = vpop.f32.mrb[0].mxu0
  %8312 = vmatprep.mubr.bf16.mxu0 0
  %8313 = vmatmul.mubr.bf16.gmra.mrb[0].mxu0 %v7764
  %v8314 = vpop.f32.mrb[0].mxu0
  %v8315 = vadd.f32 0.0, %v8314
  %v8316 = vpop.f32.mrb[0].mxu0
  %v8317 = vpop.f32.mrb[0].mxu0
  %v8318 = vadd.f32 0.0, %v8317
  %v8319 = vpop.f32.mrb[0].mxu0
  %8320 = vmatprep.mubr.bf16.mxu0 0
  %8321 = vmatmul.mubr.bf16.gmra.mrb[0].mxu0 %v7767
  %v8322 = vpop.f32.mrb[0].mxu0
  %v8323 = vadd.f32 0.0, %v8322
  %v8324 = vpop.f32.mrb[0].mxu0
  %v8325 = vpop.f32.mrb[0].mxu0
  %v8326 = vadd.f32 0.0, %v8325
  %v8327 = vpop.f32.mrb[0].mxu0
  %8328 = vmatprep.mubr.bf16.mxu0 0
  %8329 = vmatmul.mubr.bf16.gmra.mrb[0].mxu0 %v7770
  %v8330 = vpop.f32.mrb[0].mxu0
  %v8331 = vadd.f32 0.0, %v8330
  %v8332 = vpop.f32.mrb[0].mxu0
  %v8333 = vpop.f32.mrb[0].mxu0
  %v8334 = vadd.f32 0.0, %v8333
  %v8335 = vpop.f32.mrb[0].mxu0
  %8336 = vmatprep.mubr.bf16.mxu0 0
  %8337 = vmatmul.mubr.bf16.gmra.mrb[0].mxu0 %v7773
  %v8338 = vpop.f32.mrb[0].mxu0
  %v8339 = vadd.f32 0.0, %v8338
  %v8340 = vpop.f32.mrb[0].mxu0
  %v8341 = vpop.f32.mrb[0].mxu0
  %v8342 = vadd.f32 0.0, %v8341
  %v8343 = vpop.f32.mrb[0].mxu0
  %8344 = vmatprep.mubr.bf16.mxu0 0
  %8345 = vmatmul.mubr.bf16.gmra.mrb[0].mxu0 %v7776
  %v8346 = vpop.f32.mrb[0].mxu0
  %v8347 = vadd.f32 0.0, %v8346
  %v8348 = vpop.f32.mrb[0].mxu0
  %v8349 = vpop.f32.mrb[0].mxu0
  %v8350 = vadd.f32 0.0, %v8349
  %v8351 = vpop.f32.mrb[0].mxu0
  %8352 = vmatprep.mubr.bf16.mxu0 0
  %8353 = vmatmul.mubr.bf16.gmra.mrb[0].mxu0 %v7779
  %v8354 = vpop.f32.mrb[0].mxu0
  %v8355 = vadd.f32 0.0, %v8354
  %v8356 = vpop.f32.mrb[0].mxu0
  %v8357 = vpop.f32.mrb[0].mxu0
  %v8358 = vadd.f32 0.0, %v8357
  %v8359 = vpop.f32.mrb[0].mxu0
  %8360 = vmatprep.mubr.bf16.mxu0 0
  %8361 = vmatmul.mubr.bf16.gmra.mrb[0].mxu0 %v7782
  %v8362 = vpop.f32.mrb[0].mxu0
  %v8363 = vadd.f32 0.0, %v8362
  %v8364 = vpop.f32.mrb[0].mxu0
  %v8365 = vpop.f32.mrb[0].mxu0
  %v8366 = vadd.f32 0.0, %v8365
  %v8367 = vpop.f32.mrb[0].mxu0
  %8368 = vmatprep.mubr.bf16.mxu0 0
  %8369 = vmatmul.mubr.bf16.gmra.mrb[0].mxu0 %v7785
  %v8370 = vpop.f32.mrb[0].mxu0
  %v8371 = vadd.f32 0.0, %v8370
  %v8372 = vpop.f32.mrb[0].mxu0
  %v8373 = vpop.f32.mrb[0].mxu0
  %v8374 = vadd.f32 0.0, %v8373
  %v8375 = vpop.f32.mrb[0].mxu0
  %8376 = vmatprep.mubr.bf16.mxu0 0
  %8377 = vmatmul.mubr.bf16.gmra.mrb[0].mxu0 %v7788
  %v8378 = vpop.f32.mrb[0].mxu0
  %v8379 = vadd.f32 0.0, %v8378
  %v8380 = vpop.f32.mrb[0].mxu0
  %v8381 = vpop.f32.mrb[0].mxu0
  %v8382 = vadd.f32 0.0, %v8381
  %v8383 = vpop.f32.mrb[0].mxu0
  %8384 = vmatprep.mubr.bf16.mxu0 0
  %8385 = vmatmul.mubr.bf16.gmra.mrb[0].mxu0 %v7791
  %v8386 = vpop.f32.mrb[0].mxu0
  %v8387 = vadd.f32 0.0, %v8386
  %v8388 = vpop.f32.mrb[0].mxu0
  %v8389 = vpop.f32.mrb[0].mxu0
  %v8390 = vadd.f32 0.0, %v8389
  %v8391 = vpop.f32.mrb[0].mxu0
  %8392 = vmatprep.mubr.bf16.mxu0 0
  %8393 = vmatmul.mubr.bf16.gmra.mrb[0].mxu0 %v7794
  %v8394 = vpop.f32.mrb[0].mxu0
  %v8395 = vadd.f32 0.0, %v8394
  %v8396 = vpop.f32.mrb[0].mxu0
  %v8397 = vpop.f32.mrb[0].mxu0
  %v8398 = vadd.f32 0.0, %v8397
  %v8399 = vpop.f32.mrb[0].mxu0
  %8400 = vmatprep.mubr.bf16.mxu0 0
  %8401 = vmatmul.mubr.bf16.gmra.mrb[0].mxu0 %v7797
  %v8402 = vpop.f32.mrb[0].mxu0
  %v8403 = vadd.f32 0.0, %v8402
  %v8404 = vpop.f32.mrb[0].mxu0
  %v8405 = vpop.f32.mrb[0].mxu0
  %v8406 = vadd.f32 0.0, %v8405
  %v8407 = vpop.f32.mrb[0].mxu0
  %8408 = vmatprep.mubr.bf16.mxu0 0
  %8409 = vmatmul.mubr.bf16.gmra.mrb[0].mxu0 %v7800
  %v8410 = vpop.f32.mrb[0].mxu0
  %v8411 = vadd.f32 0.0, %v8410
  %v8412 = vpop.f32.mrb[0].mxu0
  %v8413 = vpop.f32.mrb[0].mxu0
  %v8414 = vadd.f32 0.0, %v8413
  %v8415 = vpop.f32.mrb[0].mxu0
  %8416 = vmatprep.mubr.bf16.mxu0 0
  %8417 = vmatmul.mubr.bf16.gmra.mrb[0].mxu0 %v7803
  %v8418 = vpop.f32.mrb[0].mxu0
  %v8419 = vadd.f32 0.0, %v8418
  %v8420 = vpop.f32.mrb[0].mxu0
  %v8421 = vpop.f32.mrb[0].mxu0
  %v8422 = vadd.f32 0.0, %v8421
  %v8423 = vpop.f32.mrb[0].mxu0
  %8424 = vmatprep.mubr.bf16.mxu0 0
  %8425 = vmatmul.mubr.bf16.gmra.mrb[0].mxu0 %v7806
  %v8426 = vpop.f32.mrb[0].mxu0
  %v8427 = vadd.f32 0.0, %v8426
  %v8428 = vpop.f32.mrb[0].mxu0
  %v8429 = vpop.f32.mrb[0].mxu0
  %v8430 = vadd.f32 0.0, %v8429
  %v8431 = vpop.f32.mrb[0].mxu0
  %8432 = vmatprep.mubr.bf16.mxu0 0
  %8433 = vmatmul.mubr.bf16.gmra.mrb[0].mxu0 %v7809
  %v8434 = vpop.f32.mrb[0].mxu0
  %v8435 = vadd.f32 0.0, %v8434
  %v8436 = vpop.f32.mrb[0].mxu0
  %v8437 = vpop.f32.mrb[0].mxu0
  %v8438 = vadd.f32 0.0, %v8437
  %v8439 = vpop.f32.mrb[0].mxu0
  %8440 = vmatprep.mubr.bf16.mxu0 0
  %8441 = vmatmul.mubr.bf16.gmra.mrb[0].mxu0 %v7812
  %v8442 = vpop.f32.mrb[0].mxu0
  %v8443 = vadd.f32 0.0, %v8442
  %v8444 = vpop.f32.mrb[0].mxu0
  %v8445 = vpop.f32.mrb[0].mxu0
  %v8446 = vadd.f32 0.0, %v8445
  %v8447 = vpop.f32.mrb[0].mxu0
  %8448 = vmatprep.mubr.bf16.mxu0 0
  %8449 = vmatmul.mubr.bf16.gmra.mrb[0].mxu0 %v7815
  %v8450 = vpop.f32.mrb[0].mxu0
  %v8451 = vadd.f32 0.0, %v8450
  %v8452 = vpop.f32.mrb[0].mxu0
  %v8453 = vpop.f32.mrb[0].mxu0
  %v8454 = vadd.f32 0.0, %v8453
  %v8455 = vpop.f32.mrb[0].mxu0
  %8456 = vmatprep.mubr.bf16.mxu0 0
  %8457 = vmatmul.mubr.bf16.gmra.mrb[0].mxu0 %v7818
  %v8458 = vpop.f32.mrb[0].mxu0
  %v8459 = vadd.f32 0.0, %v8458
  %v8460 = vpop.f32.mrb[0].mxu0
  %v8461 = vpop.f32.mrb[0].mxu0
  %v8462 = vadd.f32 0.0, %v8461
  %v8463 = vpop.f32.mrb[0].mxu0
  %8464 = vmatprep.mubr.bf16.mxu0 0
  %8465 = vmatmul.mubr.bf16.gmra.mrb[0].mxu0 %v7821
  %v8466 = vpop.f32.mrb[0].mxu0
  %v8467 = vadd.f32 0.0, %v8466
  %v8468 = vpop.f32.mrb[0].mxu0
  %v8469 = vpop.f32.mrb[0].mxu0
  %v8470 = vadd.f32 0.0, %v8469
  %v8471 = vpop.f32.mrb[0].mxu0
  %8472 = vmatprep.mubr.bf16.mxu0 0
  %8473 = vmatmul.mubr.bf16.gmra.mrb[0].mxu0 %v7824
  %v8474 = vpop.f32.mrb[0].mxu0
  %v8475 = vadd.f32 0.0, %v8474
  %v8476 = vpop.f32.mrb[0].mxu0
  %v8477 = vpop.f32.mrb[0].mxu0
  %v8478 = vadd.f32 0.0, %v8477
  %v8479 = vpop.f32.mrb[0].mxu0
  %8480 = vmatprep.mubr.bf16.mxu0 0
  %8481 = vmatmul.mubr.bf16.gmra.mrb[0].mxu0 %v7827
  %v8482 = vpop.f32.mrb[0].mxu0
  %v8483 = vadd.f32 0.0, %v8482
  %v8484 = vpop.f32.mrb[0].mxu0
  %v8485 = vpop.f32.mrb[0].mxu0
  %v8486 = vadd.f32 0.0, %v8485
  %v8487 = vpop.f32.mrb[0].mxu0
  %8488 = vmatprep.mubr.bf16.mxu0 0
  %8489 = vmatmul.mubr.bf16.gmra.mrb[0].mxu0 %v7830
  %v8490 = vpop.f32.mrb[0].mxu0
  %v8491 = vadd.f32 0.0, %v8490
  %v8492 = vpop.f32.mrb[0].mxu0
  %v8493 = vpop.f32.mrb[0].mxu0
  %v8494 = vadd.f32 0.0, %v8493
  %v8495 = vpop.f32.mrb[0].mxu0
  %8496 = vmatprep.mubr.bf16.mxu0 0
  %8497 = vmatmul.mubr.bf16.gmra.mrb[0].mxu0 %v7833
  %v8498 = vpop.f32.mrb[0].mxu0
  %v8499 = vadd.f32 0.0, %v8498
  %v8500 = vpop.f32.mrb[0].mxu0
  %v8501 = vpop.f32.mrb[0].mxu0
  %v8502 = vadd.f32 0.0, %v8501
  %v8503 = vpop.f32.mrb[0].mxu0
  %8504 = vmatprep.mubr.bf16.mxu0 0
  %8505 = vmatmul.mubr.bf16.gmra.mrb[0].mxu0 %v7836
  %v8506 = vpop.f32.mrb[0].mxu0
  %v8507 = vadd.f32 0.0, %v8506
  %v8508 = vpop.f32.mrb[0].mxu0
  %v8509 = vpop.f32.mrb[0].mxu0
  %v8510 = vadd.f32 0.0, %v8509
  %v8511 = vpop.f32.mrb[0].mxu0
  %8512 = vmatprep.mubr.bf16.mxu0 0
  %8513 = vmatmul.mubr.bf16.gmra.mrb[0].mxu0 %v7839
  %v8514 = vpop.f32.mrb[0].mxu0
  %v8515 = vadd.f32 0.0, %v8514
  %v8516 = vpop.f32.mrb[0].mxu0
  %v8517 = vpop.f32.mrb[0].mxu0
  %v8518 = vadd.f32 0.0, %v8517
  %v8519 = vpop.f32.mrb[0].mxu0
  %8520 = vmatprep.mubr.bf16.mxu0 0
  %8521 = vmatmul.mubr.bf16.gmra.mrb[0].mxu0 %v7842
  %v8522 = vpop.f32.mrb[0].mxu0
  %v8523 = vadd.f32 0.0, %v8522
  %v8524 = vpop.f32.mrb[0].mxu0
  %v8525 = vpop.f32.mrb[0].mxu0
  %v8526 = vadd.f32 0.0, %v8525
  %v8527 = vpop.f32.mrb[0].mxu0
  %8528 = vmatprep.mubr.bf16.mxu0 0
  %8529 = vmatmul.mubr.bf16.gmra.mrb[0].mxu0 %v7845
  %v8530 = vpop.f32.mrb[0].mxu0
  %v8531 = vadd.f32 0.0, %v8530
  %v8532 = vpop.f32.mrb[0].mxu0
  %v8533 = vpop.f32.mrb[0].mxu0
  %v8534 = vadd.f32 0.0, %v8533
  %v8535 = vpop.f32.mrb[0].mxu0
  %8536 = vmatprep.mubr.bf16.mxu0 0
  %8537 = vmatmul.mubr.bf16.gmra.mrb[0].mxu0 %v7848
  %v8538 = vpop.f32.mrb[0].mxu0
  %v8539 = vadd.f32 0.0, %v8538
  %v8540 = vpop.f32.mrb[0].mxu0
  %v8541 = vpop.f32.mrb[0].mxu0
  %v8542 = vadd.f32 0.0, %v8541
  %v8543 = vpop.f32.mrb[0].mxu0
  %8544 = vmatprep.mubr.bf16.mxu0 0
  %8545 = vmatmul.mubr.bf16.gmra.mrb[0].mxu0 %v7851
  %v8546 = vpop.f32.mrb[0].mxu0
  %v8547 = vadd.f32 0.0, %v8546
  %v8548 = vpop.f32.mrb[0].mxu0
  %v8549 = vpop.f32.mrb[0].mxu0
  %v8550 = vadd.f32 0.0, %v8549
  %v8551 = vpop.f32.mrb[0].mxu0
  %8552 = vmatprep.mubr.bf16.mxu0 0
  %8553 = vmatmul.mubr.bf16.gmra.mrb[0].mxu0 %v7854
  %v8554 = vpop.f32.mrb[0].mxu0
  %v8555 = vadd.f32 0.0, %v8554
  %v8556 = vpop.f32.mrb[0].mxu0
  %v8557 = vpop.f32.mrb[0].mxu0
  %v8558 = vadd.f32 0.0, %v8557
  %v8559 = vpop.f32.mrb[0].mxu0
  %8560 = vmatprep.mubr.bf16.mxu0 0
  %8561 = vmatmul.mubr.bf16.gmra.mrb[0].mxu0 %v7857
  %v8562 = vpop.f32.mrb[0].mxu0
  %v8563 = vadd.f32 0.0, %v8562
  %v8564 = vpop.f32.mrb[0].mxu0
  %v8565 = vpop.f32.mrb[0].mxu0
  %v8566 = vadd.f32 0.0, %v8565
  %v8567 = vpop.f32.mrb[0].mxu0
  %8568 = vmatprep.mubr.bf16.mxu0 0
  %8569 = vmatmul.mubr.bf16.gmra.mrb[0].mxu0 %v7860
  %v8570 = vpop.f32.mrb[0].mxu0
  %v8571 = vadd.f32 0.0, %v8570
  %v8572 = vpop.f32.mrb[0].mxu0
  %v8573 = vpop.f32.mrb[0].mxu0
  %v8574 = vadd.f32 0.0, %v8573
  %v8575 = vpop.f32.mrb[0].mxu0
  %8576 = vmatprep.mubr.bf16.mxu0 0
  %8577 = vmatmul.mubr.bf16.gmra.mrb[0].mxu0 %v7863
  %v8578 = vpop.f32.mrb[0].mxu0
  %v8579 = vadd.f32 0.0, %v8578
  %v8580 = vpop.f32.mrb[0].mxu0
  %v8581 = vpop.f32.mrb[0].mxu0
  %v8582 = vadd.f32 0.0, %v8581
  %v8583 = vpop.f32.mrb[0].mxu0
  %8584 = vmatprep.mubr.bf16.mxu0 0
  %8585 = vmatmul.mubr.bf16.gmra.mrb[0].mxu0 %v7866
  %v8586 = vpop.f32.mrb[0].mxu0
  %v8587 = vadd.f32 0.0, %v8586
  %v8588 = vpop.f32.mrb[0].mxu0
  %v8589 = vpop.f32.mrb[0].mxu0
  %v8590 = vadd.f32 0.0, %v8589
  %v8591 = vpop.f32.mrb[0].mxu0
  %8592 = vmatprep.mubr.bf16.mxu0 0
  %8593 = vmatmul.mubr.bf16.gmra.mrb[0].mxu0 %v7869
  %v8594 = vpop.f32.mrb[0].mxu0
  %v8595 = vadd.f32 0.0, %v8594
  %v8596 = vpop.f32.mrb[0].mxu0
  %v8597 = vpop.f32.mrb[0].mxu0
  %v8598 = vadd.f32 0.0, %v8597
  %v8599 = vpop.f32.mrb[0].mxu0
  %8600 = vmatprep.mubr.bf16.mxu0 0
  %8601 = vmatmul.mubr.bf16.gmra.mrb[0].mxu0 %v7872
  %v8602 = vpop.f32.mrb[0].mxu0
  %v8603 = vadd.f32 0.0, %v8602
  %v8604 = vpop.f32.mrb[0].mxu0
  %v8605 = vpop.f32.mrb[0].mxu0
  %v8606 = vadd.f32 0.0, %v8605
  %v8607 = vpop.f32.mrb[0].mxu0
  %8608 = vmatprep.mubr.bf16.mxu0 0
  %8609 = vmatmul.mubr.bf16.gmra.mrb[0].mxu0 %v7875
  %v8610 = vpop.f32.mrb[0].mxu0
  %v8611 = vadd.f32 0.0, %v8610
  %v8612 = vpop.f32.mrb[0].mxu0
  %v8613 = vpop.f32.mrb[0].mxu0
  %v8614 = vadd.f32 0.0, %v8613
  %v8615 = vpop.f32.mrb[0].mxu0
  %8616 = vmatprep.mubr.bf16.mxu0 0
  %8617 = vmatmul.mubr.bf16.gmra.mrb[0].mxu0 %v7878
  %v8618 = vpop.f32.mrb[0].mxu0
  %v8619 = vadd.f32 0.0, %v8618
  %v8620 = vpop.f32.mrb[0].mxu0
  %v8621 = vpop.f32.mrb[0].mxu0
  %v8622 = vadd.f32 0.0, %v8621
  %v8623 = vpop.f32.mrb[0].mxu0
  %8624 = vmatprep.mubr.bf16.mxu0 0
  %8625 = vmatmul.mubr.bf16.gmra.mrb[0].mxu0 %v7881
  %v8626 = vpop.f32.mrb[0].mxu0
  %v8627 = vadd.f32 0.0, %v8626
  %v8628 = vpop.f32.mrb[0].mxu0
  %v8629 = vpop.f32.mrb[0].mxu0
  %v8630 = vadd.f32 0.0, %v8629
  %v8631 = vpop.f32.mrb[0].mxu0
  %8632 = vmatprep.mubr.bf16.mxu0 0
  %8633 = vmatmul.mubr.bf16.gmra.mrb[0].mxu0 %v7884
  %v8634 = vpop.f32.mrb[0].mxu0
  %v8635 = vadd.f32 0.0, %v8634
  %v8636 = vpop.f32.mrb[0].mxu0
  %v8637 = vpop.f32.mrb[0].mxu0
  %v8638 = vadd.f32 0.0, %v8637
  %v8639 = vpop.f32.mrb[0].mxu0
  %8640 = vmatprep.mubr.bf16.mxu0 0
  %8641 = vmatmul.mubr.bf16.gmra.mrb[0].mxu0 %v7887
  %v8642 = vpop.f32.mrb[0].mxu0
  %v8643 = vadd.f32 0.0, %v8642
  %v8644 = vpop.f32.mrb[0].mxu0
  %v8645 = vpop.f32.mrb[0].mxu0
  %v8646 = vadd.f32 0.0, %v8645
  %v8647 = vpop.f32.mrb[0].mxu0
  %8648 = vmatprep.mubr.bf16.mxu0 0
  %8649 = vmatmul.mubr.bf16.gmra.mrb[0].mxu0 %v7890
  %v8650 = vpop.f32.mrb[0].mxu0
  %v8651 = vadd.f32 0.0, %v8650
  %v8652 = vpop.f32.mrb[0].mxu0
  %v8653 = vpop.f32.mrb[0].mxu0
  %v8654 = vadd.f32 0.0, %v8653
  %v8655 = vpop.f32.mrb[0].mxu0
  %8656 = vmatprep.mubr.bf16.mxu0 0
  %8657 = vmatmul.mubr.bf16.gmra.mrb[0].mxu0 %v7893
  %v8658 = vpop.f32.mrb[0].mxu0
  %v8659 = vadd.f32 0.0, %v8658
  %v8660 = vpop.f32.mrb[0].mxu0
  %v8661 = vpop.f32.mrb[0].mxu0
  %v8662 = vadd.f32 0.0, %v8661
  %v8663 = vpop.f32.mrb[0].mxu0
  %8664 = vmatprep.mubr.bf16.mxu0 0
  %8665 = vmatmul.mubr.bf16.gmra.mrb[0].mxu0 %v7896
  %v8666 = vpop.f32.mrb[0].mxu0
  %v8667 = vadd.f32 0.0, %v8666
  %v8668 = vpop.f32.mrb[0].mxu0
  %v8669 = vpop.f32.mrb[0].mxu0
  %v8670 = vadd.f32 0.0, %v8669
  %v8671 = vpop.f32.mrb[0].mxu0
  %8672 = vmatprep.mubr.bf16.mxu0 0
  %8673 = vmatmul.mubr.bf16.gmra.mrb[0].mxu0 %v7899
  %v8674 = vpop.f32.mrb[0].mxu0
  %v8675 = vadd.f32 0.0, %v8674
  %v8676 = vpop.f32.mrb[0].mxu0
  %v8677 = vpop.f32.mrb[0].mxu0
  %v8678 = vadd.f32 0.0, %v8677
  %v8679 = vpop.f32.mrb[0].mxu0
  %8680 = vmatprep.mubr.bf16.mxu0 0
  %8681 = vmatmul.mubr.bf16.gmra.mrb[0].mxu0 %v7902
  %v8682 = vpop.f32.mrb[0].mxu0
  %v8683 = vadd.f32 0.0, %v8682
  %v8684 = vpop.f32.mrb[0].mxu0
  %v8685 = vpop.f32.mrb[0].mxu0
  %v8686 = vadd.f32 0.0, %v8685
  %v8687 = vpop.f32.mrb[0].mxu0
  %8688 = vmatprep.mubr.bf16.mxu0 0
  %8689 = vmatmul.mubr.bf16.gmra.mrb[0].mxu0 %v7905
  %v8690 = vpop.f32.mrb[0].mxu0
  %v8691 = vadd.f32 0.0, %v8690
  %v8692 = vpop.f32.mrb[0].mxu0
  %v8693 = vpop.f32.mrb[0].mxu0
  %v8694 = vadd.f32 0.0, %v8693
  %v8695 = vpop.f32.mrb[0].mxu0
  %8696 = vmatprep.mubr.bf16.mxu0 0
  %8697 = vmatmul.mubr.bf16.gmra.mrb[0].mxu0 %v7908
  %v8698 = vpop.f32.mrb[0].mxu0
  %v8699 = vadd.f32 0.0, %v8698
  %v8700 = vpop.f32.mrb[0].mxu0
  %v8701 = vpop.f32.mrb[0].mxu0
  %v8702 = vadd.f32 0.0, %v8701
  %v8703 = vpop.f32.mrb[0].mxu0
  %8704 = vmatprep.mubr.bf16.mxu0 0
  %8705 = vmatmul.mubr.bf16.gmra.mrb[0].mxu0 %v7911
  %v8706 = vpop.f32.mrb[0].mxu0
  %v8707 = vadd.f32 0.0, %v8706
  %v8708 = vpop.f32.mrb[0].mxu0
  %v8709 = vpop.f32.mrb[0].mxu0
  %v8710 = vadd.f32 0.0, %v8709
  %v8711 = vpop.f32.mrb[0].mxu0
  %8712 = vmatprep.mubr.bf16.mxu0 0
  %8713 = vmatmul.mubr.bf16.gmra.mrb[0].mxu0 %v7914
  %v8714 = vpop.f32.mrb[0].mxu0
  %v8715 = vadd.f32 0.0, %v8714
  %v8716 = vpop.f32.mrb[0].mxu0
  %v8717 = vpop.f32.mrb[0].mxu0
  %v8718 = vadd.f32 0.0, %v8717
  %v8719 = vpop.f32.mrb[0].mxu0
  %8720 = vmatprep.mubr.bf16.mxu0 0
  %8721 = vmatmul.mubr.bf16.gmra.mrb[0].mxu0 %v7917
  %v8722 = vpop.f32.mrb[0].mxu0
  %v8723 = vadd.f32 0.0, %v8722
  %v8724 = vpop.f32.mrb[0].mxu0
  %v8725 = vpop.f32.mrb[0].mxu0
  %v8726 = vadd.f32 0.0, %v8725
  %v8727 = vpop.f32.mrb[0].mxu0
  %8728 = vmatprep.mubr.bf16.mxu0 0
  %8729 = vmatmul.mubr.bf16.gmra.mrb[0].mxu0 %v7920
  %v8730 = vpop.f32.mrb[0].mxu0
  %v8731 = vadd.f32 0.0, %v8730
  %v8732 = vpop.f32.mrb[0].mxu0
  %v8733 = vpop.f32.mrb[0].mxu0
  %v8734 = vadd.f32 0.0, %v8733
  %v8735 = vpop.f32.mrb[0].mxu0
  %8736 = vmatprep.mubr.bf16.mxu0 0
  %8737 = vmatmul.mubr.bf16.gmra.mrb[0].mxu0 %v7923
  %v8738 = vpop.f32.mrb[0].mxu0
  %v8739 = vadd.f32 0.0, %v8738
  %v8740 = vpop.f32.mrb[0].mxu0
  %v8741 = vpop.f32.mrb[0].mxu0
  %v8742 = vadd.f32 0.0, %v8741
  %v8743 = vpop.f32.mrb[0].mxu0
  %8744 = vmatprep.mubr.bf16.mxu0 0
  %8745 = vmatmul.mubr.bf16.gmra.mrb[0].mxu0 %v7926
  %v8746 = vpop.f32.mrb[0].mxu0
  %v8747 = vadd.f32 0.0, %v8746
  %v8748 = vpop.f32.mrb[0].mxu0
  %v8749 = vpop.f32.mrb[0].mxu0
  %v8750 = vadd.f32 0.0, %v8749
  %v8751 = vpop.f32.mrb[0].mxu0
  %8752 = vmatprep.mubr.bf16.mxu0 0
  %8753 = vmatmul.mubr.bf16.gmra.mrb[0].mxu0 %v7929
  %v8754 = vpop.f32.mrb[0].mxu0
  %v8755 = vadd.f32 0.0, %v8754
  %v8756 = vpop.f32.mrb[0].mxu0
  %v8757 = vpop.f32.mrb[0].mxu0
  %v8758 = vadd.f32 0.0, %v8757
  %v8759 = vpop.f32.mrb[0].mxu0
  %8760 = vmatprep.mubr.bf16.mxu0 0
  %8761 = vmatmul.mubr.bf16.gmra.mrb[0].mxu0 %v7932
  %v8762 = vpop.f32.mrb[0].mxu0
  %v8763 = vadd.f32 0.0, %v8762
  %v8764 = vpop.f32.mrb[0].mxu0
  %v8765 = vpop.f32.mrb[0].mxu0
  %v8766 = vadd.f32 0.0, %v8765
  %v8767 = vpop.f32.mrb[0].mxu0
  %8768 = vmatprep.mubr.bf16.mxu0 0
  %8769 = vmatmul.mubr.bf16.gmra.mrb[0].mxu0 %v7935
  %v8770 = vpop.f32.mrb[0].mxu0
  %v8771 = vadd.f32 0.0, %v8770
  %v8772 = vpop.f32.mrb[0].mxu0
  %v8773 = vpop.f32.mrb[0].mxu0
  %v8774 = vadd.f32 0.0, %v8773
  %v8775 = vpop.f32.mrb[0].mxu0
  %8776 = vmatprep.mubr.bf16.mxu0 0
  %8777 = vmatmul.mubr.bf16.gmra.mrb[0].mxu0 %v7938
  %v8778 = vpop.f32.mrb[0].mxu0
  %v8779 = vadd.f32 0.0, %v8778
  %v8780 = vpop.f32.mrb[0].mxu0
  %v8781 = vpop.f32.mrb[0].mxu0
  %v8782 = vadd.f32 0.0, %v8781
  %v8783 = vpop.f32.mrb[0].mxu0
  %8784 = vmatprep.mubr.bf16.mxu0 0
  %8785 = vmatmul.mubr.bf16.gmra.mrb[0].mxu0 %v7941
  %v8786 = vpop.f32.mrb[0].mxu0
  %v8787 = vadd.f32 0.0, %v8786
  %v8788 = vpop.f32.mrb[0].mxu0
  %v8789 = vpop.f32.mrb[0].mxu0
  %v8790 = vadd.f32 0.0, %v8789
  %v8791 = vpop.f32.mrb[0].mxu0
  %8792 = vmatprep.mubr.bf16.mxu0 0
  %8793 = vmatmul.mubr.bf16.gmra.mrb[0].mxu0 %v7944
  %v8794 = vpop.f32.mrb[0].mxu0
  %v8795 = vadd.f32 0.0, %v8794
  %v8796 = vpop.f32.mrb[0].mxu0
  %v8797 = vpop.f32.mrb[0].mxu0
  %v8798 = vadd.f32 0.0, %v8797
  %v8799 = vpop.f32.mrb[0].mxu0
  %8800 = vmatprep.mubr.bf16.mxu0 0
  %8801 = vmatmul.mubr.bf16.gmra.mrb[0].mxu0 %v7947
  %v8802 = vpop.f32.mrb[0].mxu0
  %v8803 = vadd.f32 0.0, %v8802
  %v8804 = vpop.f32.mrb[0].mxu0
  %v8805 = vpop.f32.mrb[0].mxu0
  %v8806 = vadd.f32 0.0, %v8805
  %v8807 = vpop.f32.mrb[0].mxu0
  %8808 = vmatprep.mubr.bf16.mxu0 0
  %8809 = vmatmul.mubr.bf16.gmra.mrb[0].mxu0 %v7950
  %v8810 = vpop.f32.mrb[0].mxu0
  %v8811 = vadd.f32 0.0, %v8810
  %v8812 = vpop.f32.mrb[0].mxu0
  %v8813 = vpop.f32.mrb[0].mxu0
  %v8814 = vadd.f32 0.0, %v8813
  %v8815 = vpop.f32.mrb[0].mxu0
  %8816 = vmatprep.mubr.bf16.mxu0 0
  %8817 = vmatmul.mubr.bf16.gmra.mrb[0].mxu0 %v7953
  %v8818 = vpop.f32.mrb[0].mxu0
  %v8819 = vadd.f32 0.0, %v8818
  %v8820 = vpop.f32.mrb[0].mxu0
  %v8821 = vpop.f32.mrb[0].mxu0
  %v8822 = vadd.f32 0.0, %v8821
  %v8823 = vpop.f32.mrb[0].mxu0
  %8824 = vmatprep.mubr.bf16.mxu0 0
  %8825 = vmatmul.mubr.bf16.gmra.mrb[0].mxu0 %v7956
  %v8826 = vpop.f32.mrb[0].mxu0
  %v8827 = vadd.f32 0.0, %v8826
  %v8828 = vpop.f32.mrb[0].mxu0
  %v8829 = vpop.f32.mrb[0].mxu0
  %v8830 = vadd.f32 0.0, %v8829
  %v8831 = vpop.f32.mrb[0].mxu0
  %8832 = vmatprep.mubr.bf16.mxu0 0
  %8833 = vmatmul.mubr.bf16.gmra.mrb[0].mxu0 %v7959
  %v8834 = vpop.f32.mrb[0].mxu0
  %v8835 = vadd.f32 0.0, %v8834
  %v8836 = vpop.f32.mrb[0].mxu0
  %v8837 = vpop.f32.mrb[0].mxu0
  %v8838 = vadd.f32 0.0, %v8837
  %v8839 = vpop.f32.mrb[0].mxu0
  %8840 = vmatprep.mubr.bf16.mxu0 0
  %8841 = vmatmul.mubr.bf16.gmra.mrb[0].mxu0 %v7962
  %v8842 = vpop.f32.mrb[0].mxu0
  %v8843 = vadd.f32 0.0, %v8842
  %v8844 = vpop.f32.mrb[0].mxu0
  %v8845 = vpop.f32.mrb[0].mxu0
  %v8846 = vadd.f32 0.0, %v8845
  %v8847 = vpop.f32.mrb[0].mxu0
  %8848 = vmatprep.mubr.bf16.mxu0 0
  %8849 = vmatmul.mubr.bf16.gmra.mrb[0].mxu0 %v7965
  %v8850 = vpop.f32.mrb[0].mxu0
  %v8851 = vadd.f32 0.0, %v8850
  %v8852 = vpop.f32.mrb[0].mxu0
  %v8853 = vpop.f32.mrb[0].mxu0
  %v8854 = vadd.f32 0.0, %v8853
  %v8855 = vpop.f32.mrb[0].mxu0
  %8856 = vmatprep.mubr.bf16.mxu0 0
  %8857 = vmatmul.mubr.bf16.gmra.mrb[0].mxu0 %v7968
  %v8858 = vpop.f32.mrb[0].mxu0
  %v8859 = vadd.f32 0.0, %v8858
  %v8860 = vpop.f32.mrb[0].mxu0
  %v8861 = vpop.f32.mrb[0].mxu0
  %v8862 = vadd.f32 0.0, %v8861
  %v8863 = vpop.f32.mrb[0].mxu0
  %8864 = vmatprep.mubr.bf16.mxu0 0
  %8865 = vmatmul.mubr.bf16.gmra.mrb[0].mxu0 %v7971
  %v8866 = vpop.f32.mrb[0].mxu0
  %v8867 = vadd.f32 0.0, %v8866
  %v8868 = vpop.f32.mrb[0].mxu0
  %v8869 = vpop.f32.mrb[0].mxu0
  %v8870 = vadd.f32 0.0, %v8869
  %v8871 = vpop.f32.mrb[0].mxu0
  %8872 = vmatprep.mubr.bf16.mxu0 0
  %8873 = vmatmul.mubr.bf16.gmra.mrb[0].mxu0 %v7974
  %v8874 = vpop.f32.mrb[0].mxu0
  %v8875 = vadd.f32 0.0, %v8874
  %v8876 = vpop.f32.mrb[0].mxu0
  %v8877 = vpop.f32.mrb[0].mxu0
  %v8878 = vadd.f32 0.0, %v8877
  %v8879 = vpop.f32.mrb[0].mxu0
  %8880 = vmatprep.mubr.bf16.mxu0 0
  %8881 = vmatmul.mubr.bf16.gmra.mrb[0].mxu0 %v7977
  %v8882 = vpop.f32.mrb[0].mxu0
  %v8883 = vadd.f32 0.0, %v8882
  %v8884 = vpop.f32.mrb[0].mxu0
  %v8885 = vpop.f32.mrb[0].mxu0
  %v8886 = vadd.f32 0.0, %v8885
  %v8887 = vpop.f32.mrb[0].mxu0
  %8888 = vmatprep.mubr.bf16.mxu0 0
  %8889 = vmatmul.mubr.bf16.gmra.mrb[0].mxu0 %v7980
  %v8890 = vpop.f32.mrb[0].mxu0
  %v8891 = vadd.f32 0.0, %v8890
  %v8892 = vpop.f32.mrb[0].mxu0
  %v8893 = vpop.f32.mrb[0].mxu0
  %v8894 = vadd.f32 0.0, %v8893
  %v8895 = vpop.f32.mrb[0].mxu0
  %8896 = vmatprep.mubr.bf16.mxu0 0
  %8897 = vmatmul.mubr.bf16.gmra.mrb[0].mxu0 %v7983
  %v8898 = vpop.f32.mrb[0].mxu0
  %v8899 = vadd.f32 0.0, %v8898
  %v8900 = vpop.f32.mrb[0].mxu0
  %v8901 = vpop.f32.mrb[0].mxu0
  %v8902 = vadd.f32 0.0, %v8901
  %v8903 = vpop.f32.mrb[0].mxu0
  %8904 = vmatprep.mubr.bf16.mxu0 0
  %8905 = vmatmul.mubr.bf16.gmra.mrb[0].mxu0 %v7986
  %v8906 = vpop.f32.mrb[0].mxu0
  %v8907 = vadd.f32 0.0, %v8906
  %v8908 = vpop.f32.mrb[0].mxu0
  %v8909 = vpop.f32.mrb[0].mxu0
  %v8910 = vadd.f32 0.0, %v8909
  %v8911 = vpop.f32.mrb[0].mxu0
  %8912 = vmatprep.mubr.bf16.mxu0 0
  %8913 = vmatmul.mubr.bf16.gmra.mrb[0].mxu0 %v7989
  %v8914 = vpop.f32.mrb[0].mxu0
  %v8915 = vadd.f32 0.0, %v8914
  %v8916 = vpop.f32.mrb[0].mxu0
  %v8917 = vpop.f32.mrb[0].mxu0
  %v8918 = vadd.f32 0.0, %v8917
  %v8919 = vpop.f32.mrb[0].mxu0
  %8920 = vmatprep.mubr.bf16.mxu0 0
  %8921 = vmatmul.mubr.bf16.gmra.mrb[0].mxu0 %v7992
  %v8922 = vpop.f32.mrb[0].mxu0
  %v8923 = vadd.f32 0.0, %v8922
  %v8924 = vpop.f32.mrb[0].mxu0
  %v8925 = vpop.f32.mrb[0].mxu0
  %v8926 = vadd.f32 0.0, %v8925
  %v8927 = vpop.f32.mrb[0].mxu0
  %8928 = vmatprep.mubr.bf16.mxu0 0
  %8929 = vmatmul.mubr.bf16.gmra.mrb[0].mxu0 %v7995
  %v8930 = vpop.f32.mrb[0].mxu0
  %v8931 = vadd.f32 0.0, %v8930
  %v8932 = vpop.f32.mrb[0].mxu0
  %v8933 = vpop.f32.mrb[0].mxu0
  %v8934 = vadd.f32 0.0, %v8933
  %v8935 = vpop.f32.mrb[0].mxu0
  %8936 = vmatprep.mubr.bf16.mxu0 0
  %8937 = vmatmul.mubr.bf16.gmra.mrb[0].mxu0 %v7998
  %v8938 = vpop.f32.mrb[0].mxu0
  %v8939 = vadd.f32 0.0, %v8938
  %v8940 = vpop.f32.mrb[0].mxu0
  %v8941 = vpop.f32.mrb[0].mxu0
  %v8942 = vadd.f32 0.0, %v8941
  %v8943 = vpop.f32.mrb[0].mxu0
  %8944 = vmatprep.mubr.bf16.mxu0 0
  %8945 = vmatmul.mubr.bf16.gmra.mrb[0].mxu0 %v8001
  %v8946 = vpop.f32.mrb[0].mxu0
  %v8947 = vadd.f32 0.0, %v8946
  %v8948 = vpop.f32.mrb[0].mxu0
  %v8949 = vpop.f32.mrb[0].mxu0
  %v8950 = vadd.f32 0.0, %v8949
  %v8951 = vpop.f32.mrb[0].mxu0
  %8952 = vmatprep.mubr.bf16.mxu0 0
  %8953 = vmatmul.mubr.bf16.gmra.mrb[0].mxu0 %v8004
  %v8954 = vpop.f32.mrb[0].mxu0
  %v8955 = vadd.f32 0.0, %v8954
  %v8956 = vpop.f32.mrb[0].mxu0
  %v8957 = vpop.f32.mrb[0].mxu0
  %v8958 = vadd.f32 0.0, %v8957
  %v8959 = vpop.f32.mrb[0].mxu0
  %8960 = vmatprep.mubr.bf16.mxu0 0
  %8961 = vmatmul.mubr.bf16.gmra.mrb[0].mxu0 %v8007
  %v8962 = vpop.f32.mrb[0].mxu0
  %v8963 = vadd.f32 0.0, %v8962
  %v8964 = vpop.f32.mrb[0].mxu0
  %v8965 = vpop.f32.mrb[0].mxu0
  %v8966 = vadd.f32 0.0, %v8965
  %v8967 = vpop.f32.mrb[0].mxu0
  %8968 = vmatprep.mubr.bf16.mxu0 0
  %8969 = vmatmul.mubr.bf16.gmra.mrb[0].mxu0 %v8010
  %v8970 = vpop.f32.mrb[0].mxu0
  %v8971 = vadd.f32 0.0, %v8970
  %v8972 = vpop.f32.mrb[0].mxu0
  %v8973 = vpop.f32.mrb[0].mxu0
  %v8974 = vadd.f32 0.0, %v8973
  %v8975 = vpop.f32.mrb[0].mxu0
  %8976 = vmatprep.mubr.bf16.mxu0 0
  %8977 = vmatmul.mubr.bf16.gmra.mrb[0].mxu0 %v8013
  %v8978 = vpop.f32.mrb[0].mxu0
  %v8979 = vadd.f32 0.0, %v8978
  %v8980 = vpop.f32.mrb[0].mxu0
  %v8981 = vpop.f32.mrb[0].mxu0
  %v8982 = vadd.f32 0.0, %v8981
  %v8983 = vpop.f32.mrb[0].mxu0
  %8984 = vmatprep.mubr.bf16.mxu0 0
  %8985 = vmatmul.mubr.bf16.gmra.mrb[0].mxu0 %v8016
  %v8986 = vpop.f32.mrb[0].mxu0
  %v8987 = vadd.f32 0.0, %v8986
  %v8988 = vpop.f32.mrb[0].mxu0
  %v8989 = vpop.f32.mrb[0].mxu0
  %v8990 = vadd.f32 0.0, %v8989
  %v8991 = vpop.f32.mrb[0].mxu0
  %8992 = vmatprep.mubr.bf16.mxu0 0
  %8993 = vmatmul.mubr.bf16.gmra.mrb[0].mxu0 %v8019
  %v8994 = vpop.f32.mrb[0].mxu0
  %v8995 = vadd.f32 0.0, %v8994
  %v8996 = vpop.f32.mrb[0].mxu0
  %v8997 = vpop.f32.mrb[0].mxu0
  %v8998 = vadd.f32 0.0, %v8997
  %v8999 = vpop.f32.mrb[0].mxu0
  %9000 = vmatprep.mubr.bf16.mxu0 0
  %9001 = vmatmul.mubr.bf16.gmra.mrb[0].mxu0 %v8022
  %v9002 = vpop.f32.mrb[0].mxu0
  %v9003 = vadd.f32 0.0, %v9002
  %v9004 = vpop.f32.mrb[0].mxu0
  %v9005 = vpop.f32.mrb[0].mxu0
  %v9006 = vadd.f32 0.0, %v9005
  %v9007 = vpop.f32.mrb[0].mxu0
  %9008 = vmatprep.mubr.bf16.mxu0 0
  %9009 = vmatmul.mubr.bf16.gmra.mrb[0].mxu0 %v8025
  %v9010 = vpop.f32.mrb[0].mxu0
  %v9011 = vadd.f32 0.0, %v9010
  %v9012 = vpop.f32.mrb[0].mxu0
  %v9013 = vpop.f32.mrb[0].mxu0
  %v9014 = vadd.f32 0.0, %v9013
  %v9015 = vpop.f32.mrb[0].mxu0
  %9016 = vmatprep.mubr.bf16.mxu0 0
  %9017 = vmatmul.mubr.bf16.gmra.mrb[0].mxu0 %v8028
  %v9018 = vpop.f32.mrb[0].mxu0
  %v9019 = vadd.f32 0.0, %v9018
  %v9020 = vpop.f32.mrb[0].mxu0
  %v9021 = vpop.f32.mrb[0].mxu0
  %v9022 = vadd.f32 0.0, %v9021
  %v9023 = vpop.f32.mrb[0].mxu0
  %9024 = vmatprep.mubr.bf16.mxu0 0
  %9025 = vmatmul.mubr.bf16.gmra.mrb[0].mxu0 %v8031
  %v9026 = vpop.f32.mrb[0].mxu0
  %v9027 = vadd.f32 0.0, %v9026
  %v9028 = vpop.f32.mrb[0].mxu0
  %v9029 = vpop.f32.mrb[0].mxu0
  %v9030 = vadd.f32 0.0, %v9029
  %v9031 = vpop.f32.mrb[0].mxu0
  %9032 = vmatprep.mubr.bf16.mxu0 0
  %9033 = vmatmul.mubr.bf16.gmra.mrb[0].mxu0 %v8034
  %v9034 = vpop.f32.mrb[0].mxu0
  %v9035 = vadd.f32 0.0, %v9034
  %v9036 = vpop.f32.mrb[0].mxu0
  %v9037 = vpop.f32.mrb[0].mxu0
  %v9038 = vadd.f32 0.0, %v9037
  %v9039 = vpop.f32.mrb[0].mxu0
  %9040 = vmatprep.mubr.bf16.mxu0 0
  %9041 = vmatmul.mubr.bf16.gmra.mrb[0].mxu0 %v8037
  %v9042 = vpop.f32.mrb[0].mxu0
  %v9043 = vadd.f32 0.0, %v9042
  %v9044 = vpop.f32.mrb[0].mxu0
  %v9045 = vpop.f32.mrb[0].mxu0
  %v9046 = vadd.f32 0.0, %v9045
  %v9047 = vpop.f32.mrb[0].mxu0
  %9048 = vmatprep.mubr.bf16.mxu0 0
  %9049 = vmatmul.mubr.bf16.gmra.mrb[0].mxu0 %v8040
  %v9050 = vpop.f32.mrb[0].mxu0
  %v9051 = vadd.f32 0.0, %v9050
  %v9052 = vpop.f32.mrb[0].mxu0
  %v9053 = vpop.f32.mrb[0].mxu0
  %v9054 = vadd.f32 0.0, %v9053
  %v9055 = vpop.f32.mrb[0].mxu0
  %9056 = vmatprep.mubr.bf16.mxu0 0
  %9057 = vmatmul.mubr.bf16.gmra.mrb[0].mxu0 %v8043
  %v9058 = vpop.f32.mrb[0].mxu0
  %v9059 = vadd.f32 0.0, %v9058
  %v9060 = vpop.f32.mrb[0].mxu0
  %v9061 = vpop.f32.mrb[0].mxu0
  %v9062 = vadd.f32 0.0, %v9061
  %v9063 = vpop.f32.mrb[0].mxu0
  %9064 = vmatprep.mubr.bf16.mxu0 0
  %9065 = vmatmul.mubr.bf16.gmra.mrb[0].mxu0 %v8046
  %v9066 = vpop.f32.mrb[0].mxu0
  %v9067 = vadd.f32 0.0, %v9066
  %v9068 = vpop.f32.mrb[0].mxu0
  %v9069 = vpop.f32.mrb[0].mxu0
  %v9070 = vadd.f32 0.0, %v9069
  %v9071 = vpop.f32.mrb[0].mxu0
  %9072 = vmatprep.mubr.bf16.mxu0 0
  %9073 = vmatmul.mubr.bf16.gmra.mrb[0].mxu0 %v8049
  %v9074 = vpop.f32.mrb[0].mxu0
  %v9075 = vadd.f32 0.0, %v9074
  %v9076 = vpop.f32.mrb[0].mxu0
  %v9077 = vpop.f32.mrb[0].mxu0
  %v9078 = vadd.f32 0.0, %v9077
  %v9079 = vpop.f32.mrb[0].mxu0
  %9080 = vmatprep.mubr.bf16.mxu0 0
  %9081 = vmatmul.mubr.bf16.gmra.mrb[0].mxu0 %v8052
  %v9082 = vpop.f32.mrb[0].mxu0
  %v9083 = vadd.f32 0.0, %v9082
  %v9084 = vpop.f32.mrb[0].mxu0
  %v9085 = vpop.f32.mrb[0].mxu0
  %v9086 = vadd.f32 0.0, %v9085
  %v9087 = vpop.f32.mrb[0].mxu0
  %9088 = vmatprep.mubr.bf16.mxu0 0
  %9089 = vmatmul.mubr.bf16.gmra.mrb[0].mxu0 %v8055
  %v9090 = vpop.f32.mrb[0].mxu0
  %v9091 = vadd.f32 0.0, %v9090
  %v9092 = vpop.f32.mrb[0].mxu0
  %v9093 = vpop.f32.mrb[0].mxu0
  %v9094 = vadd.f32 0.0, %v9093
  %v9095 = vpop.f32.mrb[0].mxu0
  %9096 = vmatprep.mubr.bf16.mxu0 0
  %9097 = vmatmul.mubr.bf16.gmra.mrb[0].mxu0 %v8058
  %v9098 = vpop.f32.mrb[0].mxu0
  %v9099 = vadd.f32 0.0, %v9098
  %v9100 = vpop.f32.mrb[0].mxu0
  %v9101 = vpop.f32.mrb[0].mxu0
  %v9102 = vadd.f32 0.0, %v9101
  %v9103 = vpop.f32.mrb[0].mxu0
  %9104 = vmatprep.mubr.bf16.mxu0 0
  %9105 = vmatmul.mubr.bf16.gmra.mrb[0].mxu0 %v8061
  %v9106 = vpop.f32.mrb[0].mxu0
  %v9107 = vadd.f32 0.0, %v9106
  %v9108 = vpop.f32.mrb[0].mxu0
  %v9109 = vpop.f32.mrb[0].mxu0
  %v9110 = vadd.f32 0.0, %v9109
  %v9111 = vpop.f32.mrb[0].mxu0
  %9112 = vmatprep.mubr.bf16.mxu0 0
  %9113 = vmatmul.mubr.bf16.gmra.mrb[0].mxu0 %v8064
  %v9114 = vpop.f32.mrb[0].mxu0
  %v9115 = vadd.f32 0.0, %v9114
  %v9116 = vpop.f32.mrb[0].mxu0
  %v9117 = vpop.f32.mrb[0].mxu0
  %v9118 = vadd.f32 0.0, %v9117
  %v9119 = vpop.f32.mrb[0].mxu0
  %9120 = vmatprep.mubr.bf16.mxu0 0
  %9121 = vmatmul.mubr.bf16.gmra.mrb[0].mxu0 %v8067
  %v9122 = vpop.f32.mrb[0].mxu0
  %v9123 = vadd.f32 0.0, %v9122
  %v9124 = vpop.f32.mrb[0].mxu0
  %v9125 = vpop.f32.mrb[0].mxu0
  %v9126 = vadd.f32 0.0, %v9125
  %v9127 = vpop.f32.mrb[0].mxu0
  %9128 = vdwg.mxu0
  %v9129 = vadd.f32 %v7099, %v8107
  %v9130 = vadd.f32 %v7100, %v8110
  %v9131 = vadd.f32 %v7101, %v8115
  %v9132 = vadd.f32 %v7102, %v8118
  %v9133 = vadd.f32 %v7103, %v8123
  %v9134 = vadd.f32 %v7104, %v8126
  %v9135 = vadd.f32 %v7105, %v8131
  %v9136 = vadd.f32 %v7106, %v8134
  %v9137 = vadd.f32 %v7107, %v8139
  %v9138 = vadd.f32 %v7108, %v8142
  %v9139 = vadd.f32 %v7109, %v8147
  %v9140 = vadd.f32 %v7110, %v8150
  %v9141 = vadd.f32 %v7111, %v8155
  %v9142 = vadd.f32 %v7112, %v8158
  %v9143 = vadd.f32 %v7113, %v8163
  %v9144 = vadd.f32 %v7114, %v8166
  %v9145 = vadd.f32 %v7115, %v8171
  %v9146 = vadd.f32 %v7116, %v8174
  %v9147 = vadd.f32 %v7117, %v8179
  %v9148 = vadd.f32 %v7118, %v8182
  %v9149 = vadd.f32 %v7119, %v8187
  %v9150 = vadd.f32 %v7120, %v8190
  %v9151 = vadd.f32 %v7121, %v8195
  %v9152 = vadd.f32 %v7122, %v8198
  %v9153 = vadd.f32 %v7123, %v8203
  %v9154 = vadd.f32 %v7124, %v8206
  %v9155 = vadd.f32 %v7125, %v8211
  %v9156 = vadd.f32 %v7126, %v8214
  %v9157 = vadd.f32 %v7127, %v8219
  %v9158 = vadd.f32 %v7128, %v8222
  %v9159 = vadd.f32 %v7129, %v8227
  %v9160 = vadd.f32 %v7130, %v8230
  %v9161 = vadd.f32 %v7131, %v8235
  %v9162 = vadd.f32 %v7132, %v8238
  %v9163 = vadd.f32 %v7133, %v8243
  %v9164 = vadd.f32 %v7134, %v8246
  %v9165 = vadd.f32 %v7135, %v8251
  %v9166 = vadd.f32 %v7136, %v8254
  %v9167 = vadd.f32 %v7137, %v8259
  %v9168 = vadd.f32 %v7138, %v8262
  %v9169 = vadd.f32 %v7139, %v8267
  %v9170 = vadd.f32 %v7140, %v8270
  %v9171 = vadd.f32 %v7141, %v8275
  %v9172 = vadd.f32 %v7142, %v8278
  %v9173 = vadd.f32 %v7143, %v8283
  %v9174 = vadd.f32 %v7144, %v8286
  %v9175 = vadd.f32 %v7145, %v8291
  %v9176 = vadd.f32 %v7146, %v8294
  %v9177 = vadd.f32 %v7147, %v8299
  %v9178 = vadd.f32 %v7148, %v8302
  %v9179 = vadd.f32 %v7149, %v8307
  %v9180 = vadd.f32 %v7150, %v8310
  %v9181 = vadd.f32 %v7151, %v8315
  %v9182 = vadd.f32 %v7152, %v8318
  %v9183 = vadd.f32 %v7153, %v8323
  %v9184 = vadd.f32 %v7154, %v8326
  %v9185 = vadd.f32 %v7155, %v8331
  %v9186 = vadd.f32 %v7156, %v8334
  %v9187 = vadd.f32 %v7157, %v8339
  %v9188 = vadd.f32 %v7158, %v8342
  %v9189 = vadd.f32 %v7159, %v8347
  %v9190 = vadd.f32 %v7160, %v8350
  %v9191 = vadd.f32 %v7161, %v8355
  %v9192 = vadd.f32 %v7162, %v8358
  %v9193 = vadd.f32 %v7163, %v8363
  %v9194 = vadd.f32 %v7164, %v8366
  %v9195 = vadd.f32 %v7165, %v8371
  %v9196 = vadd.f32 %v7166, %v8374
  %v9197 = vadd.f32 %v7167, %v8379
  %v9198 = vadd.f32 %v7168, %v8382
  %v9199 = vadd.f32 %v7169, %v8387
  %v9200 = vadd.f32 %v7170, %v8390
  %v9201 = vadd.f32 %v7171, %v8395
  %v9202 = vadd.f32 %v7172, %v8398
  %v9203 = vadd.f32 %v7173, %v8403
  %v9204 = vadd.f32 %v7174, %v8406
  %v9205 = vadd.f32 %v7175, %v8411
  %v9206 = vadd.f32 %v7176, %v8414
  %v9207 = vadd.f32 %v7177, %v8419
  %v9208 = vadd.f32 %v7178, %v8422
  %v9209 = vadd.f32 %v7179, %v8427
  %v9210 = vadd.f32 %v7180, %v8430
  %v9211 = vadd.f32 %v7181, %v8435
  %v9212 = vadd.f32 %v7182, %v8438
  %v9213 = vadd.f32 %v7183, %v8443
  %v9214 = vadd.f32 %v7184, %v8446
  %v9215 = vadd.f32 %v7185, %v8451
  %v9216 = vadd.f32 %v7186, %v8454
  %v9217 = vadd.f32 %v7187, %v8459
  %v9218 = vadd.f32 %v7188, %v8462
  %v9219 = vadd.f32 %v7189, %v8467
  %v9220 = vadd.f32 %v7190, %v8470
  %v9221 = vadd.f32 %v7191, %v8475
  %v9222 = vadd.f32 %v7192, %v8478
  %v9223 = vadd.f32 %v7193, %v8483
  %v9224 = vadd.f32 %v7194, %v8486
  %v9225 = vadd.f32 %v7195, %v8491
  %v9226 = vadd.f32 %v7196, %v8494
  %v9227 = vadd.f32 %v7197, %v8499
  %v9228 = vadd.f32 %v7198, %v8502
  %v9229 = vadd.f32 %v7199, %v8507
  %v9230 = vadd.f32 %v7200, %v8510
  %v9231 = vadd.f32 %v7201, %v8515
  %v9232 = vadd.f32 %v7202, %v8518
  %v9233 = vadd.f32 %v7203, %v8523
  %v9234 = vadd.f32 %v7204, %v8526
  %v9235 = vadd.f32 %v7205, %v8531
  %v9236 = vadd.f32 %v7206, %v8534
  %v9237 = vadd.f32 %v7207, %v8539
  %v9238 = vadd.f32 %v7208, %v8542
  %v9239 = vadd.f32 %v7209, %v8547
  %v9240 = vadd.f32 %v7210, %v8550
  %v9241 = vadd.f32 %v7211, %v8555
  %v9242 = vadd.f32 %v7212, %v8558
  %v9243 = vadd.f32 %v7213, %v8563
  %v9244 = vadd.f32 %v7214, %v8566
  %v9245 = vadd.f32 %v7215, %v8571
  %v9246 = vadd.f32 %v7216, %v8574
  %v9247 = vadd.f32 %v7217, %v8579
  %v9248 = vadd.f32 %v7218, %v8582
  %v9249 = vadd.f32 %v7219, %v8587
  %v9250 = vadd.f32 %v7220, %v8590
  %v9251 = vadd.f32 %v7221, %v8595
  %v9252 = vadd.f32 %v7222, %v8598
  %v9253 = vadd.f32 %v7223, %v8603
  %v9254 = vadd.f32 %v7224, %v8606
  %v9255 = vadd.f32 %v7225, %v8611
  %v9256 = vadd.f32 %v7226, %v8614
  %v9257 = vadd.f32 %v7227, %v8619
  %v9258 = vadd.f32 %v7228, %v8622
  %v9259 = vadd.f32 %v7229, %v8627
  %v9260 = vadd.f32 %v7230, %v8630
  %v9261 = vadd.f32 %v7231, %v8635
  %v9262 = vadd.f32 %v7232, %v8638
  %v9263 = vadd.f32 %v7233, %v8643
  %v9264 = vadd.f32 %v7234, %v8646
  %v9265 = vadd.f32 %v7235, %v8651
  %v9266 = vadd.f32 %v7236, %v8654
  %v9267 = vadd.f32 %v7237, %v8659
  %v9268 = vadd.f32 %v7238, %v8662
  %v9269 = vadd.f32 %v7239, %v8667
  %v9270 = vadd.f32 %v7240, %v8670
  %v9271 = vadd.f32 %v7241, %v8675
  %v9272 = vadd.f32 %v7242, %v8678
  %v9273 = vadd.f32 %v7243, %v8683
  %v9274 = vadd.f32 %v7244, %v8686
  %v9275 = vadd.f32 %v7245, %v8691
  %v9276 = vadd.f32 %v7246, %v8694
  %v9277 = vadd.f32 %v7247, %v8699
  %v9278 = vadd.f32 %v7248, %v8702
  %v9279 = vadd.f32 %v7249, %v8707
  %v9280 = vadd.f32 %v7250, %v8710
  %v9281 = vadd.f32 %v7251, %v8715
  %v9282 = vadd.f32 %v7252, %v8718
  %v9283 = vadd.f32 %v7253, %v8723
  %v9284 = vadd.f32 %v7254, %v8726
  %v9285 = vadd.f32 %v7255, %v8731
  %v9286 = vadd.f32 %v7256, %v8734
  %v9287 = vadd.f32 %v7257, %v8739
  %v9288 = vadd.f32 %v7258, %v8742
  %v9289 = vadd.f32 %v7259, %v8747
  %v9290 = vadd.f32 %v7260, %v8750
  %v9291 = vadd.f32 %v7261, %v8755
  %v9292 = vadd.f32 %v7262, %v8758
  %v9293 = vadd.f32 %v7263, %v8763
  %v9294 = vadd.f32 %v7264, %v8766
  %v9295 = vadd.f32 %v7265, %v8771
  %v9296 = vadd.f32 %v7266, %v8774
  %v9297 = vadd.f32 %v7267, %v8779
  %v9298 = vadd.f32 %v7268, %v8782
  %v9299 = vadd.f32 %v7269, %v8787
  %v9300 = vadd.f32 %v7270, %v8790
  %v9301 = vadd.f32 %v7271, %v8795
  %v9302 = vadd.f32 %v7272, %v8798
  %v9303 = vadd.f32 %v7273, %v8803
  %v9304 = vadd.f32 %v7274, %v8806
  %v9305 = vadd.f32 %v7275, %v8811
  %v9306 = vadd.f32 %v7276, %v8814
  %v9307 = vadd.f32 %v7277, %v8819
  %v9308 = vadd.f32 %v7278, %v8822
  %v9309 = vadd.f32 %v7279, %v8827
  %v9310 = vadd.f32 %v7280, %v8830
  %v9311 = vadd.f32 %v7281, %v8835
  %v9312 = vadd.f32 %v7282, %v8838
  %v9313 = vadd.f32 %v7283, %v8843
  %v9314 = vadd.f32 %v7284, %v8846
  %v9315 = vadd.f32 %v7285, %v8851
  %v9316 = vadd.f32 %v7286, %v8854
  %v9317 = vadd.f32 %v7287, %v8859
  %v9318 = vadd.f32 %v7288, %v8862
  %v9319 = vadd.f32 %v7289, %v8867
  %v9320 = vadd.f32 %v7290, %v8870
  %v9321 = vadd.f32 %v7291, %v8875
  %v9322 = vadd.f32 %v7292, %v8878
  %v9323 = vadd.f32 %v7293, %v8883
  %v9324 = vadd.f32 %v7294, %v8886
  %v9325 = vadd.f32 %v7295, %v8891
  %v9326 = vadd.f32 %v7296, %v8894
  %v9327 = vadd.f32 %v7297, %v8899
  %v9328 = vadd.f32 %v7298, %v8902
  %v9329 = vadd.f32 %v7299, %v8907
  %v9330 = vadd.f32 %v7300, %v8910
  %v9331 = vadd.f32 %v7301, %v8915
  %v9332 = vadd.f32 %v7302, %v8918
  %v9333 = vadd.f32 %v7303, %v8923
  %v9334 = vadd.f32 %v7304, %v8926
  %v9335 = vadd.f32 %v7305, %v8931
  %v9336 = vadd.f32 %v7306, %v8934
  %v9337 = vadd.f32 %v7307, %v8939
  %v9338 = vadd.f32 %v7308, %v8942
  %v9339 = vadd.f32 %v7309, %v8947
  %v9340 = vadd.f32 %v7310, %v8950
  %v9341 = vadd.f32 %v7311, %v8955
  %v9342 = vadd.f32 %v7312, %v8958
  %v9343 = vadd.f32 %v7313, %v8963
  %v9344 = vadd.f32 %v7314, %v8966
  %v9345 = vadd.f32 %v7315, %v8971
  %v9346 = vadd.f32 %v7316, %v8974
  %v9347 = vadd.f32 %v7317, %v8979
  %v9348 = vadd.f32 %v7318, %v8982
  %v9349 = vadd.f32 %v7319, %v8987
  %v9350 = vadd.f32 %v7320, %v8990
  %v9351 = vadd.f32 %v7321, %v8995
  %v9352 = vadd.f32 %v7322, %v8998
  %v9353 = vadd.f32 %v7323, %v9003
  %v9354 = vadd.f32 %v7324, %v9006
  %v9355 = vadd.f32 %v7325, %v9011
  %v9356 = vadd.f32 %v7326, %v9014
  %v9357 = vadd.f32 %v7327, %v9019
  %v9358 = vadd.f32 %v7328, %v9022
  %v9359 = vadd.f32 %v7329, %v9027
  %v9360 = vadd.f32 %v7330, %v9030
  %v9361 = vadd.f32 %v7331, %v9035
  %v9362 = vadd.f32 %v7332, %v9038
  %v9363 = vadd.f32 %v7333, %v9043
  %v9364 = vadd.f32 %v7334, %v9046
  %v9365 = vadd.f32 %v7335, %v9051
  %v9366 = vadd.f32 %v7336, %v9054
  %v9367 = vadd.f32 %v7337, %v9059
  %v9368 = vadd.f32 %v7338, %v9062
  %v9369 = vadd.f32 %v7339, %v9067
  %v9370 = vadd.f32 %v7340, %v9070
  %v9371 = vadd.f32 %v7341, %v9075
  %v9372 = vadd.f32 %v7342, %v9078
  %v9373 = vadd.f32 %v7343, %v9083
  %v9374 = vadd.f32 %v7344, %v9086
  %v9375 = vadd.f32 %v7345, %v9091
  %v9376 = vadd.f32 %v7346, %v9094
  %v9377 = vadd.f32 %v7347, %v9099
  %v9378 = vadd.f32 %v7348, %v9102
  %v9379 = vadd.f32 %v7349, %v9107
  %v9380 = vadd.f32 %v7350, %v9110
  %v9381 = vadd.f32 %v7351, %v9115
  %v9382 = vadd.f32 %v7352, %v9118
  %v9383 = vadd.f32 %v7353, %v9123
  %v9384 = vadd.f32 %v7354, %v9126
  %v9385 = vadd.s32 %v1371, 3
  %vm9386 = vcmp.eq.s32.totalorder %v40, %v9385
  %v9387 = vsel %vm9386, 1.0, 0.0
  %9388 = vmatprep.subr.mxu0 0.0
  %9389 = vmatpush1.msra.mxu0 %v9387
  %9390 = vmatprep.subr.mxu0 0.0
  %9391 = vmatpush1.msra.mxu0 0.0
  %9392 = vmatprep.subr.mxu0 0.0
  %9393 = vmatpush1.msra.mxu0 0.0
  %9394 = vmatprep.subr.mxu0 0.0
  %9395 = vmatpush1.msra.mxu0 0.0
  %9396 = vmatprep.subr.mxu0 0.0
  %9397 = vmatpush1.msra.mxu0 0.0
  %9398 = vmatprep.subr.mxu0 0.0
  %9399 = vmatpush1.msra.mxu0 0.0
  %9400 = vmatprep.subr.mxu0 0.0
  %9401 = vmatpush1.msra.mxu0 0.0
  %9402 = vmatprep.subr.mxu0 0.0
  %9403 = vmatpush1.msra.mxu0 0.0
  %9404 = vmatprep.subr.mxu0 0.0
  %9405 = vmatpush1.msra.mxu0 0.0
  %9406 = vmatprep.subr.mxu0 0.0
  %9407 = vmatpush1.msra.mxu0 0.0
  %9408 = vmatprep.subr.mxu0 0.0
  %9409 = vmatpush1.msra.mxu0 0.0
  %9410 = vmatprep.subr.mxu0 0.0
  %9411 = vmatpush1.msra.mxu0 0.0
  %9412 = vmatprep.subr.mxu0 0.0
  %9413 = vmatpush1.msra.mxu0 0.0
  %9414 = vmatprep.subr.mxu0 0.0
  %9415 = vmatpush1.msra.mxu0 0.0
  %9416 = vmatprep.subr.mxu0 0.0
  %9417 = vmatpush1.msra.mxu0 0.0
  %9418 = vmatprep.subr.mxu0 0.0
  %9419 = vmatpush1.msra.mxu0 0.0
  %9420 = vmatprep.subr.mxu0 0.0
  %9421 = vmatpush1.msra.mxu0 0.0
  %9422 = vmatprep.subr.mxu0 0.0
  %9423 = vmatpush1.msra.mxu0 0.0
  %9424 = vmatprep.subr.mxu0 0.0
  %9425 = vmatpush1.msra.mxu0 0.0
  %9426 = vmatprep.subr.mxu0 0.0
  %9427 = vmatpush1.msra.mxu0 0.0
  %9428 = vmatprep.subr.mxu0 0.0
  %9429 = vmatpush1.msra.mxu0 0.0
  %9430 = vmatprep.subr.mxu0 0.0
  %9431 = vmatpush1.msra.mxu0 0.0
  %9432 = vmatprep.subr.mxu0 0.0
  %9433 = vmatpush1.msra.mxu0 0.0
  %9434 = vmatprep.subr.mxu0 0.0
  %9435 = vmatpush1.msra.mxu0 0.0
  %9436 = vmatprep.subr.mxu0 0.0
  %9437 = vmatpush1.msra.mxu0 0.0
  %9438 = vmatprep.subr.mxu0 0.0
  %9439 = vmatpush1.msra.mxu0 0.0
  %9440 = vmatprep.subr.mxu0 0.0
  %9441 = vmatpush1.msra.mxu0 0.0
  %9442 = vmatprep.subr.mxu0 0.0
  %9443 = vmatpush1.msra.mxu0 0.0
  %9444 = vmatprep.subr.mxu0 0.0
  %9445 = vmatpush1.msra.mxu0 0.0
  %9446 = vmatprep.subr.mxu0 0.0
  %9447 = vmatpush1.msra.mxu0 0.0
  %9448 = vmatprep.subr.mxu0 0.0
  %9449 = vmatpush1.msra.mxu0 0.0
  %9450 = vmatprep.subr.mxu0 0.0
  %9451 = vmatpush1.msra.mxu0 0.0
  %9452 = vmatprep.mubr.f32.mxu0 0.0
  %9453 = vmatmul.mubr.f32.gmra.mrb[0].mxu0 %v1375
  %v9454 = vpop.f32.mrb[0].mxu0
  %v9455 = vadd.f32 0.0, %v9454
  %v9456 = vpop.f32.mrb[0].mxu0
  %9457 = vdwg.mxu0
  %v9458 = vpack.c.bf16 %v9455, %v9455
  %9459 = vrot.lane.b32.xlu0 %v2216, 104
  %v9460 = vpop.permute.xlu0 %9459
  %9461 = vrot.lane.b32.xlu0 %v2217, 104
  %v9462 = vpop.permute.xlu0 %9461
  %9463 = vrot.lane.b32.xlu0 %v2218, 104
  %v9464 = vpop.permute.xlu0 %9463
  %9465 = vrot.lane.b32.xlu0 %v2219, 104
  %v9466 = vpop.permute.xlu0 %9465
  %9467 = vrot.lane.b32.xlu0 %v2220, 104
  %v9468 = vpop.permute.xlu0 %9467
  %9469 = vrot.lane.b32.xlu0 %v2221, 104
  %v9470 = vpop.permute.xlu0 %9469
  %9471 = vrot.lane.b32.xlu0 %v2222, 104
  %v9472 = vpop.permute.xlu0 %9471
  %9473 = vrot.lane.b32.xlu0 %v2223, 104
  %v9474 = vpop.permute.xlu0 %9473
  %9475 = vrot.lane.b32.xlu0 %v2224, 104
  %v9476 = vpop.permute.xlu0 %9475
  %9477 = vrot.lane.b32.xlu0 %v2225, 104
  %v9478 = vpop.permute.xlu0 %9477
  %9479 = vrot.lane.b32.xlu0 %v2226, 104
  %v9480 = vpop.permute.xlu0 %9479
  %9481 = vrot.lane.b32.xlu0 %v2227, 104
  %v9482 = vpop.permute.xlu0 %9481
  %9483 = vrot.lane.b32.xlu0 %v2228, 104
  %v9484 = vpop.permute.xlu0 %9483
  %9485 = vrot.lane.b32.xlu0 %v2229, 104
  %v9486 = vpop.permute.xlu0 %9485
  %9487 = vrot.lane.b32.xlu0 %v2230, 104
  %v9488 = vpop.permute.xlu0 %9487
  %9489 = vrot.lane.b32.xlu0 %v2231, 104
  %v9490 = vpop.permute.xlu0 %9489
  %9491 = vrot.lane.b32.xlu0 %v2232, 104
  %v9492 = vpop.permute.xlu0 %9491
  %9493 = vrot.lane.b32.xlu0 %v2233, 104
  %v9494 = vpop.permute.xlu0 %9493
  %9495 = vrot.lane.b32.xlu0 %v2234, 104
  %v9496 = vpop.permute.xlu0 %9495
  %9497 = vrot.lane.b32.xlu0 %v2235, 104
  %v9498 = vpop.permute.xlu0 %9497
  %9499 = vrot.lane.b32.xlu0 %v2236, 104
  %v9500 = vpop.permute.xlu0 %9499
  %9501 = vrot.lane.b32.xlu0 %v2237, 104
  %v9502 = vpop.permute.xlu0 %9501
  %9503 = vrot.lane.b32.xlu0 %v2238, 104
  %v9504 = vpop.permute.xlu0 %9503
  %9505 = vrot.lane.b32.xlu0 %v2239, 104
  %v9506 = vpop.permute.xlu0 %9505
  %9507 = vrot.lane.b32.xlu0 %v2240, 104
  %v9508 = vpop.permute.xlu0 %9507
  %9509 = vrot.lane.b32.xlu0 %v2241, 104
  %v9510 = vpop.permute.xlu0 %9509
  %9511 = vrot.lane.b32.xlu0 %v2242, 104
  %v9512 = vpop.permute.xlu0 %9511
  %9513 = vrot.lane.b32.xlu0 %v2243, 104
  %v9514 = vpop.permute.xlu0 %9513
  %9515 = vrot.lane.b32.xlu0 %v2244, 104
  %v9516 = vpop.permute.xlu0 %9515
  %9517 = vrot.lane.b32.xlu0 %v2245, 104
  %v9518 = vpop.permute.xlu0 %9517
  %9519 = vrot.lane.b32.xlu0 %v2246, 104
  %v9520 = vpop.permute.xlu0 %9519
  %9521 = vrot.lane.b32.xlu0 %v2247, 104
  %v9522 = vpop.permute.xlu0 %9521
  %9523 = vrot.lane.b32.xlu0 %v2248, 104
  %v9524 = vpop.permute.xlu0 %9523
  %9525 = vrot.lane.b32.xlu0 %v2249, 104
  %v9526 = vpop.permute.xlu0 %9525
  %9527 = vrot.lane.b32.xlu0 %v2250, 104
  %v9528 = vpop.permute.xlu0 %9527
  %9529 = vrot.lane.b32.xlu0 %v2251, 104
  %v9530 = vpop.permute.xlu0 %9529
  %9531 = vrot.lane.b32.xlu0 %v2252, 104
  %v9532 = vpop.permute.xlu0 %9531
  %9533 = vrot.lane.b32.xlu0 %v2253, 104
  %v9534 = vpop.permute.xlu0 %9533
  %9535 = vrot.lane.b32.xlu0 %v2254, 104
  %v9536 = vpop.permute.xlu0 %9535
  %9537 = vrot.lane.b32.xlu0 %v2255, 104
  %v9538 = vpop.permute.xlu0 %9537
  %9539 = vrot.lane.b32.xlu0 %v2256, 104
  %v9540 = vpop.permute.xlu0 %9539
  %9541 = vrot.lane.b32.xlu0 %v2257, 104
  %v9542 = vpop.permute.xlu0 %9541
  %9543 = vrot.lane.b32.xlu0 %v2258, 104
  %v9544 = vpop.permute.xlu0 %9543
  %9545 = vrot.lane.b32.xlu0 %v2259, 104
  %v9546 = vpop.permute.xlu0 %9545
  %9547 = vrot.lane.b32.xlu0 %v2260, 104
  %v9548 = vpop.permute.xlu0 %9547
  %9549 = vrot.lane.b32.xlu0 %v2261, 104
  %v9550 = vpop.permute.xlu0 %9549
  %9551 = vrot.lane.b32.xlu0 %v2262, 104
  %v9552 = vpop.permute.xlu0 %9551
  %9553 = vrot.lane.b32.xlu0 %v2263, 104
  %v9554 = vpop.permute.xlu0 %9553
  %9555 = vrot.lane.b32.xlu0 %v2264, 104
  %v9556 = vpop.permute.xlu0 %9555
  %9557 = vrot.lane.b32.xlu0 %v2265, 104
  %v9558 = vpop.permute.xlu0 %9557
  %9559 = vrot.lane.b32.xlu0 %v2266, 104
  %v9560 = vpop.permute.xlu0 %9559
  %9561 = vrot.lane.b32.xlu0 %v2267, 104
  %v9562 = vpop.permute.xlu0 %9561
  %9563 = vrot.lane.b32.xlu0 %v2268, 104
  %v9564 = vpop.permute.xlu0 %9563
  %9565 = vrot.lane.b32.xlu0 %v2269, 104
  %v9566 = vpop.permute.xlu0 %9565
  %9567 = vrot.lane.b32.xlu0 %v2270, 104
  %v9568 = vpop.permute.xlu0 %9567
  %9569 = vrot.lane.b32.xlu0 %v2271, 104
  %v9570 = vpop.permute.xlu0 %9569
  %9571 = vrot.lane.b32.xlu0 %v2272, 104
  %v9572 = vpop.permute.xlu0 %9571
  %9573 = vrot.lane.b32.xlu0 %v2273, 104
  %v9574 = vpop.permute.xlu0 %9573
  %9575 = vrot.lane.b32.xlu0 %v2274, 104
  %v9576 = vpop.permute.xlu0 %9575
  %9577 = vrot.lane.b32.xlu0 %v2275, 104
  %v9578 = vpop.permute.xlu0 %9577
  %9579 = vrot.lane.b32.xlu0 %v2276, 104
  %v9580 = vpop.permute.xlu0 %9579
  %9581 = vrot.lane.b32.xlu0 %v2277, 104
  %v9582 = vpop.permute.xlu0 %9581
  %9583 = vrot.lane.b32.xlu0 %v2278, 104
  %v9584 = vpop.permute.xlu0 %9583
  %9585 = vrot.lane.b32.xlu0 %v2279, 104
  %v9586 = vpop.permute.xlu0 %9585
  %9587 = vrot.lane.b32.xlu0 %v2280, 104
  %v9588 = vpop.permute.xlu0 %9587
  %9589 = vrot.lane.b32.xlu0 %v2281, 104
  %v9590 = vpop.permute.xlu0 %9589
  %9591 = vrot.lane.b32.xlu0 %v2282, 104
  %v9592 = vpop.permute.xlu0 %9591
  %9593 = vrot.lane.b32.xlu0 %v2283, 104
  %v9594 = vpop.permute.xlu0 %9593
  %9595 = vrot.lane.b32.xlu0 %v2284, 104
  %v9596 = vpop.permute.xlu0 %9595
  %9597 = vrot.lane.b32.xlu0 %v2285, 104
  %v9598 = vpop.permute.xlu0 %9597
  %9599 = vrot.lane.b32.xlu0 %v2286, 104
  %v9600 = vpop.permute.xlu0 %9599
  %9601 = vrot.lane.b32.xlu0 %v2287, 104
  %v9602 = vpop.permute.xlu0 %9601
  %9603 = vrot.lane.b32.xlu0 %v2288, 104
  %v9604 = vpop.permute.xlu0 %9603
  %9605 = vrot.lane.b32.xlu0 %v2289, 104
  %v9606 = vpop.permute.xlu0 %9605
  %9607 = vrot.lane.b32.xlu0 %v2290, 104
  %v9608 = vpop.permute.xlu0 %9607
  %9609 = vrot.lane.b32.xlu0 %v2291, 104
  %v9610 = vpop.permute.xlu0 %9609
  %9611 = vrot.lane.b32.xlu0 %v2292, 104
  %v9612 = vpop.permute.xlu0 %9611
  %9613 = vrot.lane.b32.xlu0 %v2293, 104
  %v9614 = vpop.permute.xlu0 %9613
  %9615 = vrot.lane.b32.xlu0 %v2294, 104
  %v9616 = vpop.permute.xlu0 %9615
  %9617 = vrot.lane.b32.xlu0 %v2295, 104
  %v9618 = vpop.permute.xlu0 %9617
  %9619 = vrot.lane.b32.xlu0 %v2296, 104
  %v9620 = vpop.permute.xlu0 %9619
  %9621 = vrot.lane.b32.xlu0 %v2297, 104
  %v9622 = vpop.permute.xlu0 %9621
  %9623 = vrot.lane.b32.xlu0 %v2298, 104
  %v9624 = vpop.permute.xlu0 %9623
  %9625 = vrot.lane.b32.xlu0 %v2299, 104
  %v9626 = vpop.permute.xlu0 %9625
  %9627 = vrot.lane.b32.xlu0 %v2300, 104
  %v9628 = vpop.permute.xlu0 %9627
  %9629 = vrot.lane.b32.xlu0 %v2301, 104
  %v9630 = vpop.permute.xlu0 %9629
  %9631 = vrot.lane.b32.xlu0 %v2302, 104
  %v9632 = vpop.permute.xlu0 %9631
  %9633 = vrot.lane.b32.xlu0 %v2303, 104
  %v9634 = vpop.permute.xlu0 %9633
  %9635 = vrot.lane.b32.xlu0 %v2304, 104
  %v9636 = vpop.permute.xlu0 %9635
  %9637 = vrot.lane.b32.xlu0 %v2305, 104
  %v9638 = vpop.permute.xlu0 %9637
  %9639 = vrot.lane.b32.xlu0 %v2306, 104
  %v9640 = vpop.permute.xlu0 %9639
  %9641 = vrot.lane.b32.xlu0 %v2307, 104
  %v9642 = vpop.permute.xlu0 %9641
  %9643 = vrot.lane.b32.xlu0 %v2308, 104
  %v9644 = vpop.permute.xlu0 %9643
  %9645 = vrot.lane.b32.xlu0 %v2309, 104
  %v9646 = vpop.permute.xlu0 %9645
  %9647 = vrot.lane.b32.xlu0 %v2310, 104
  %v9648 = vpop.permute.xlu0 %9647
  %9649 = vrot.lane.b32.xlu0 %v2311, 104
  %v9650 = vpop.permute.xlu0 %9649
  %9651 = vrot.lane.b32.xlu0 %v2312, 104
  %v9652 = vpop.permute.xlu0 %9651
  %9653 = vrot.lane.b32.xlu0 %v2313, 104
  %v9654 = vpop.permute.xlu0 %9653
  %9655 = vrot.lane.b32.xlu0 %v2314, 104
  %v9656 = vpop.permute.xlu0 %9655
  %9657 = vrot.lane.b32.xlu0 %v2315, 104
  %v9658 = vpop.permute.xlu0 %9657
  %9659 = vrot.lane.b32.xlu0 %v2316, 104
  %v9660 = vpop.permute.xlu0 %9659
  %9661 = vrot.lane.b32.xlu0 %v2317, 104
  %v9662 = vpop.permute.xlu0 %9661
  %9663 = vrot.lane.b32.xlu0 %v2318, 104
  %v9664 = vpop.permute.xlu0 %9663
  %9665 = vrot.lane.b32.xlu0 %v2319, 104
  %v9666 = vpop.permute.xlu0 %9665
  %9667 = vrot.lane.b32.xlu0 %v2320, 104
  %v9668 = vpop.permute.xlu0 %9667
  %9669 = vrot.lane.b32.xlu0 %v2321, 104
  %v9670 = vpop.permute.xlu0 %9669
  %9671 = vrot.lane.b32.xlu0 %v2322, 104
  %v9672 = vpop.permute.xlu0 %9671
  %9673 = vrot.lane.b32.xlu0 %v2323, 104
  %v9674 = vpop.permute.xlu0 %9673
  %9675 = vrot.lane.b32.xlu0 %v2324, 104
  %v9676 = vpop.permute.xlu0 %9675
  %9677 = vrot.lane.b32.xlu0 %v2325, 104
  %v9678 = vpop.permute.xlu0 %9677
  %9679 = vrot.lane.b32.xlu0 %v2326, 104
  %v9680 = vpop.permute.xlu0 %9679
  %9681 = vrot.lane.b32.xlu0 %v2327, 104
  %v9682 = vpop.permute.xlu0 %9681
  %9683 = vrot.lane.b32.xlu0 %v2328, 104
  %v9684 = vpop.permute.xlu0 %9683
  %9685 = vrot.lane.b32.xlu0 %v2329, 104
  %v9686 = vpop.permute.xlu0 %9685
  %9687 = vrot.lane.b32.xlu0 %v2330, 104
  %v9688 = vpop.permute.xlu0 %9687
  %9689 = vrot.lane.b32.xlu0 %v2331, 104
  %v9690 = vpop.permute.xlu0 %9689
  %9691 = vrot.lane.b32.xlu0 %v2332, 104
  %v9692 = vpop.permute.xlu0 %9691
  %9693 = vrot.lane.b32.xlu0 %v2333, 104
  %v9694 = vpop.permute.xlu0 %9693
  %9695 = vrot.lane.b32.xlu0 %v2334, 104
  %v9696 = vpop.permute.xlu0 %9695
  %9697 = vrot.lane.b32.xlu0 %v2335, 104
  %v9698 = vpop.permute.xlu0 %9697
  %9699 = vrot.lane.b32.xlu0 %v2336, 104
  %v9700 = vpop.permute.xlu0 %9699
  %9701 = vrot.lane.b32.xlu0 %v2337, 104
  %v9702 = vpop.permute.xlu0 %9701
  %9703 = vrot.lane.b32.xlu0 %v2338, 104
  %v9704 = vpop.permute.xlu0 %9703
  %9705 = vrot.lane.b32.xlu0 %v2339, 104
  %v9706 = vpop.permute.xlu0 %9705
  %9707 = vrot.lane.b32.xlu0 %v2340, 104
  %v9708 = vpop.permute.xlu0 %9707
  %9709 = vrot.lane.b32.xlu0 %v2341, 104
  %v9710 = vpop.permute.xlu0 %9709
  %9711 = vrot.lane.b32.xlu0 %v2342, 104
  %v9712 = vpop.permute.xlu0 %9711
  %9713 = vrot.lane.b32.xlu0 %v2343, 104
  %v9714 = vpop.permute.xlu0 %9713
  %v9716 = vsel %vm453, %v9460, 0
  %v9719 = vsel %vm453, %v9462, 0
  %v9722 = vsel %vm453, %v9464, 0
  %v9725 = vsel %vm453, %v9466, 0
  %v9728 = vsel %vm453, %v9468, 0
  %v9731 = vsel %vm453, %v9470, 0
  %v9734 = vsel %vm453, %v9472, 0
  %v9737 = vsel %vm453, %v9474, 0
  %v9740 = vsel %vm453, %v9476, 0
  %v9743 = vsel %vm453, %v9478, 0
  %v9746 = vsel %vm453, %v9480, 0
  %v9749 = vsel %vm453, %v9482, 0
  %v9752 = vsel %vm453, %v9484, 0
  %v9755 = vsel %vm453, %v9486, 0
  %v9758 = vsel %vm453, %v9488, 0
  %v9761 = vsel %vm453, %v9490, 0
  %v9764 = vsel %vm453, %v9492, 0
  %v9767 = vsel %vm453, %v9494, 0
  %v9770 = vsel %vm453, %v9496, 0
  %v9773 = vsel %vm453, %v9498, 0
  %v9776 = vsel %vm453, %v9500, 0
  %v9779 = vsel %vm453, %v9502, 0
  %v9782 = vsel %vm453, %v9504, 0
  %v9785 = vsel %vm453, %v9506, 0
  %v9788 = vsel %vm453, %v9508, 0
  %v9791 = vsel %vm453, %v9510, 0
  %v9794 = vsel %vm453, %v9512, 0
  %v9797 = vsel %vm453, %v9514, 0
  %v9800 = vsel %vm453, %v9516, 0
  %v9803 = vsel %vm453, %v9518, 0
  %v9806 = vsel %vm453, %v9520, 0
  %v9809 = vsel %vm453, %v9522, 0
  %v9812 = vsel %vm453, %v9524, 0
  %v9815 = vsel %vm453, %v9526, 0
  %v9818 = vsel %vm453, %v9528, 0
  %v9821 = vsel %vm453, %v9530, 0
  %v9824 = vsel %vm453, %v9532, 0
  %v9827 = vsel %vm453, %v9534, 0
  %v9830 = vsel %vm453, %v9536, 0
  %v9833 = vsel %vm453, %v9538, 0
  %v9836 = vsel %vm453, %v9540, 0
  %v9839 = vsel %vm453, %v9542, 0
  %v9842 = vsel %vm453, %v9544, 0
  %v9845 = vsel %vm453, %v9546, 0
  %v9848 = vsel %vm453, %v9548, 0
  %v9851 = vsel %vm453, %v9550, 0
  %v9854 = vsel %vm453, %v9552, 0
  %v9857 = vsel %vm453, %v9554, 0
  %v9860 = vsel %vm453, %v9556, 0
  %v9863 = vsel %vm453, %v9558, 0
  %v9866 = vsel %vm453, %v9560, 0
  %v9869 = vsel %vm453, %v9562, 0
  %v9872 = vsel %vm453, %v9564, 0
  %v9875 = vsel %vm453, %v9566, 0
  %v9878 = vsel %vm453, %v9568, 0
  %v9881 = vsel %vm453, %v9570, 0
  %v9884 = vsel %vm453, %v9572, 0
  %v9887 = vsel %vm453, %v9574, 0
  %v9890 = vsel %vm453, %v9576, 0
  %v9893 = vsel %vm453, %v9578, 0
  %v9896 = vsel %vm453, %v9580, 0
  %v9899 = vsel %vm453, %v9582, 0
  %v9902 = vsel %vm453, %v9584, 0
  %v9905 = vsel %vm453, %v9586, 0
  %v9908 = vsel %vm453, %v9588, 0
  %v9911 = vsel %vm453, %v9590, 0
  %v9914 = vsel %vm453, %v9592, 0
  %v9917 = vsel %vm453, %v9594, 0
  %v9920 = vsel %vm453, %v9596, 0
  %v9923 = vsel %vm453, %v9598, 0
  %v9926 = vsel %vm453, %v9600, 0
  %v9929 = vsel %vm453, %v9602, 0
  %v9932 = vsel %vm453, %v9604, 0
  %v9935 = vsel %vm453, %v9606, 0
  %v9938 = vsel %vm453, %v9608, 0
  %v9941 = vsel %vm453, %v9610, 0
  %v9944 = vsel %vm453, %v9612, 0
  %v9947 = vsel %vm453, %v9614, 0
  %v9950 = vsel %vm453, %v9616, 0
  %v9953 = vsel %vm453, %v9618, 0
  %v9956 = vsel %vm453, %v9620, 0
  %v9959 = vsel %vm453, %v9622, 0
  %v9962 = vsel %vm453, %v9624, 0
  %v9965 = vsel %vm453, %v9626, 0
  %v9968 = vsel %vm453, %v9628, 0
  %v9971 = vsel %vm453, %v9630, 0
  %v9974 = vsel %vm453, %v9632, 0
  %v9977 = vsel %vm453, %v9634, 0
  %v9980 = vsel %vm453, %v9636, 0
  %v9983 = vsel %vm453, %v9638, 0
  %v9986 = vsel %vm453, %v9640, 0
  %v9989 = vsel %vm453, %v9642, 0
  %v9992 = vsel %vm453, %v9644, 0
  %v9995 = vsel %vm453, %v9646, 0
  %v9998 = vsel %vm453, %v9648, 0
  %v10001 = vsel %vm453, %v9650, 0
  %v10004 = vsel %vm453, %v9652, 0
  %v10007 = vsel %vm453, %v9654, 0
  %v10010 = vsel %vm453, %v9656, 0
  %v10013 = vsel %vm453, %v9658, 0
  %v10016 = vsel %vm453, %v9660, 0
  %v10019 = vsel %vm453, %v9662, 0
  %v10022 = vsel %vm453, %v9664, 0
  %v10025 = vsel %vm453, %v9666, 0
  %v10028 = vsel %vm453, %v9668, 0
  %v10031 = vsel %vm453, %v9670, 0
  %v10034 = vsel %vm453, %v9672, 0
  %v10037 = vsel %vm453, %v9674, 0
  %v10040 = vsel %vm453, %v9676, 0
  %v10043 = vsel %vm453, %v9678, 0
  %v10046 = vsel %vm453, %v9680, 0
  %v10049 = vsel %vm453, %v9682, 0
  %v10052 = vsel %vm453, %v9684, 0
  %v10055 = vsel %vm453, %v9686, 0
  %v10058 = vsel %vm453, %v9688, 0
  %v10061 = vsel %vm453, %v9690, 0
  %v10064 = vsel %vm453, %v9692, 0
  %v10067 = vsel %vm453, %v9694, 0
  %v10070 = vsel %vm453, %v9696, 0
  %v10073 = vsel %vm453, %v9698, 0
  %v10076 = vsel %vm453, %v9700, 0
  %v10079 = vsel %vm453, %v9702, 0
  %v10082 = vsel %vm453, %v9704, 0
  %v10085 = vsel %vm453, %v9706, 0
  %v10088 = vsel %vm453, %v9708, 0
  %v10091 = vsel %vm453, %v9710, 0
  %v10094 = vsel %vm453, %v9712, 0
  %v10097 = vsel %vm453, %v9714, 0
  %v10100 = vsel %vm2728, %v9458, 0
  %10102 = vmatprep.subr.bf16.mxu0 0
  %10103 = vmatpush1.bf16.msra.mxu0 %v10100
  %10104 = vmatprep.subr.bf16.mxu0 0
  %10105 = vmatpush1.bf16.msra.mxu0 0
  %10106 = vmatprep.subr.bf16.mxu0 0
  %10107 = vmatpush1.bf16.msra.mxu0 0
  %10108 = vmatprep.subr.bf16.mxu0 0
  %10109 = vmatpush1.bf16.msra.mxu0 0
  %10110 = vmatprep.subr.bf16.mxu0 0
  %10111 = vmatpush1.bf16.msra.mxu0 0
  %10112 = vmatprep.subr.bf16.mxu0 0
  %10113 = vmatpush1.bf16.msra.mxu0 0
  %10114 = vmatprep.subr.bf16.mxu0 0
  %10115 = vmatpush1.bf16.msra.mxu0 0
  %10116 = vmatprep.subr.bf16.mxu0 0
  %10117 = vmatpush1.bf16.msra.mxu0 0
  %10118 = vmatprep.subr.bf16.mxu0 0
  %10119 = vmatpush1.bf16.msra.mxu0 0
  %10120 = vmatprep.subr.bf16.mxu0 0
  %10121 = vmatpush1.bf16.msra.mxu0 0
  %10122 = vmatprep.subr.bf16.mxu0 0
  %10123 = vmatpush1.bf16.msra.mxu0 0
  %10124 = vmatprep.subr.bf16.mxu0 0
  %10125 = vmatpush1.bf16.msra.mxu0 0
  %10126 = vmatprep.subr.bf16.mxu0 0
  %10127 = vmatpush1.bf16.msra.mxu0 0
  %10128 = vmatprep.subr.bf16.mxu0 0
  %10129 = vmatpush1.bf16.msra.mxu0 0
  %10130 = vmatprep.subr.bf16.mxu0 0
  %10131 = vmatpush1.bf16.msra.mxu0 0
  %10132 = vmatprep.subr.bf16.mxu0 0
  %10133 = vmatpush1.bf16.msra.mxu0 0
  %10134 = vmatprep.mubr.bf16.mxu0 0
  %10135 = vmatmul.mubr.bf16.gmra.mrb[0].mxu0 %v9716
  %v10136 = vpop.f32.mrb[0].mxu0
  %v10137 = vadd.f32 0.0, %v10136
  %v10138 = vpop.f32.mrb[0].mxu0
  %v10139 = vpop.f32.mrb[0].mxu0
  %v10140 = vadd.f32 0.0, %v10139
  %v10141 = vpop.f32.mrb[0].mxu0
  %10142 = vmatprep.mubr.bf16.mxu0 0
  %10143 = vmatmul.mubr.bf16.gmra.mrb[0].mxu0 %v9719
  %v10144 = vpop.f32.mrb[0].mxu0
  %v10145 = vadd.f32 0.0, %v10144
  %v10146 = vpop.f32.mrb[0].mxu0
  %v10147 = vpop.f32.mrb[0].mxu0
  %v10148 = vadd.f32 0.0, %v10147
  %v10149 = vpop.f32.mrb[0].mxu0
  %10150 = vmatprep.mubr.bf16.mxu0 0
  %10151 = vmatmul.mubr.bf16.gmra.mrb[0].mxu0 %v9722
  %v10152 = vpop.f32.mrb[0].mxu0
  %v10153 = vadd.f32 0.0, %v10152
  %v10154 = vpop.f32.mrb[0].mxu0
  %v10155 = vpop.f32.mrb[0].mxu0
  %v10156 = vadd.f32 0.0, %v10155
  %v10157 = vpop.f32.mrb[0].mxu0
  %10158 = vmatprep.mubr.bf16.mxu0 0
  %10159 = vmatmul.mubr.bf16.gmra.mrb[0].mxu0 %v9725
  %v10160 = vpop.f32.mrb[0].mxu0
  %v10161 = vadd.f32 0.0, %v10160
  %v10162 = vpop.f32.mrb[0].mxu0
  %v10163 = vpop.f32.mrb[0].mxu0
  %v10164 = vadd.f32 0.0, %v10163
  %v10165 = vpop.f32.mrb[0].mxu0
  %10166 = vmatprep.mubr.bf16.mxu0 0
  %10167 = vmatmul.mubr.bf16.gmra.mrb[0].mxu0 %v9728
  %v10168 = vpop.f32.mrb[0].mxu0
  %v10169 = vadd.f32 0.0, %v10168
  %v10170 = vpop.f32.mrb[0].mxu0
  %v10171 = vpop.f32.mrb[0].mxu0
  %v10172 = vadd.f32 0.0, %v10171
  %v10173 = vpop.f32.mrb[0].mxu0
  %10174 = vmatprep.mubr.bf16.mxu0 0
  %10175 = vmatmul.mubr.bf16.gmra.mrb[0].mxu0 %v9731
  %v10176 = vpop.f32.mrb[0].mxu0
  %v10177 = vadd.f32 0.0, %v10176
  %v10178 = vpop.f32.mrb[0].mxu0
  %v10179 = vpop.f32.mrb[0].mxu0
  %v10180 = vadd.f32 0.0, %v10179
  %v10181 = vpop.f32.mrb[0].mxu0
  %10182 = vmatprep.mubr.bf16.mxu0 0
  %10183 = vmatmul.mubr.bf16.gmra.mrb[0].mxu0 %v9734
  %v10184 = vpop.f32.mrb[0].mxu0
  %v10185 = vadd.f32 0.0, %v10184
  %v10186 = vpop.f32.mrb[0].mxu0
  %v10187 = vpop.f32.mrb[0].mxu0
  %v10188 = vadd.f32 0.0, %v10187
  %v10189 = vpop.f32.mrb[0].mxu0
  %10190 = vmatprep.mubr.bf16.mxu0 0
  %10191 = vmatmul.mubr.bf16.gmra.mrb[0].mxu0 %v9737
  %v10192 = vpop.f32.mrb[0].mxu0
  %v10193 = vadd.f32 0.0, %v10192
  %v10194 = vpop.f32.mrb[0].mxu0
  %v10195 = vpop.f32.mrb[0].mxu0
  %v10196 = vadd.f32 0.0, %v10195
  %v10197 = vpop.f32.mrb[0].mxu0
  %10198 = vmatprep.mubr.bf16.mxu0 0
  %10199 = vmatmul.mubr.bf16.gmra.mrb[0].mxu0 %v9740
  %v10200 = vpop.f32.mrb[0].mxu0
  %v10201 = vadd.f32 0.0, %v10200
  %v10202 = vpop.f32.mrb[0].mxu0
  %v10203 = vpop.f32.mrb[0].mxu0
  %v10204 = vadd.f32 0.0, %v10203
  %v10205 = vpop.f32.mrb[0].mxu0
  %10206 = vmatprep.mubr.bf16.mxu0 0
  %10207 = vmatmul.mubr.bf16.gmra.mrb[0].mxu0 %v9743
  %v10208 = vpop.f32.mrb[0].mxu0
  %v10209 = vadd.f32 0.0, %v10208
  %v10210 = vpop.f32.mrb[0].mxu0
  %v10211 = vpop.f32.mrb[0].mxu0
  %v10212 = vadd.f32 0.0, %v10211
  %v10213 = vpop.f32.mrb[0].mxu0
  %10214 = vmatprep.mubr.bf16.mxu0 0
  %10215 = vmatmul.mubr.bf16.gmra.mrb[0].mxu0 %v9746
  %v10216 = vpop.f32.mrb[0].mxu0
  %v10217 = vadd.f32 0.0, %v10216
  %v10218 = vpop.f32.mrb[0].mxu0
  %v10219 = vpop.f32.mrb[0].mxu0
  %v10220 = vadd.f32 0.0, %v10219
  %v10221 = vpop.f32.mrb[0].mxu0
  %10222 = vmatprep.mubr.bf16.mxu0 0
  %10223 = vmatmul.mubr.bf16.gmra.mrb[0].mxu0 %v9749
  %v10224 = vpop.f32.mrb[0].mxu0
  %v10225 = vadd.f32 0.0, %v10224
  %v10226 = vpop.f32.mrb[0].mxu0
  %v10227 = vpop.f32.mrb[0].mxu0
  %v10228 = vadd.f32 0.0, %v10227
  %v10229 = vpop.f32.mrb[0].mxu0
  %10230 = vmatprep.mubr.bf16.mxu0 0
  %10231 = vmatmul.mubr.bf16.gmra.mrb[0].mxu0 %v9752
  %v10232 = vpop.f32.mrb[0].mxu0
  %v10233 = vadd.f32 0.0, %v10232
  %v10234 = vpop.f32.mrb[0].mxu0
  %v10235 = vpop.f32.mrb[0].mxu0
  %v10236 = vadd.f32 0.0, %v10235
  %v10237 = vpop.f32.mrb[0].mxu0
  %10238 = vmatprep.mubr.bf16.mxu0 0
  %10239 = vmatmul.mubr.bf16.gmra.mrb[0].mxu0 %v9755
  %v10240 = vpop.f32.mrb[0].mxu0
  %v10241 = vadd.f32 0.0, %v10240
  %v10242 = vpop.f32.mrb[0].mxu0
  %v10243 = vpop.f32.mrb[0].mxu0
  %v10244 = vadd.f32 0.0, %v10243
  %v10245 = vpop.f32.mrb[0].mxu0
  %10246 = vmatprep.mubr.bf16.mxu0 0
  %10247 = vmatmul.mubr.bf16.gmra.mrb[0].mxu0 %v9758
  %v10248 = vpop.f32.mrb[0].mxu0
  %v10249 = vadd.f32 0.0, %v10248
  %v10250 = vpop.f32.mrb[0].mxu0
  %v10251 = vpop.f32.mrb[0].mxu0
  %v10252 = vadd.f32 0.0, %v10251
  %v10253 = vpop.f32.mrb[0].mxu0
  %10254 = vmatprep.mubr.bf16.mxu0 0
  %10255 = vmatmul.mubr.bf16.gmra.mrb[0].mxu0 %v9761
  %v10256 = vpop.f32.mrb[0].mxu0
  %v10257 = vadd.f32 0.0, %v10256
  %v10258 = vpop.f32.mrb[0].mxu0
  %v10259 = vpop.f32.mrb[0].mxu0
  %v10260 = vadd.f32 0.0, %v10259
  %v10261 = vpop.f32.mrb[0].mxu0
  %10262 = vmatprep.mubr.bf16.mxu0 0
  %10263 = vmatmul.mubr.bf16.gmra.mrb[0].mxu0 %v9764
  %v10264 = vpop.f32.mrb[0].mxu0
  %v10265 = vadd.f32 0.0, %v10264
  %v10266 = vpop.f32.mrb[0].mxu0
  %v10267 = vpop.f32.mrb[0].mxu0
  %v10268 = vadd.f32 0.0, %v10267
  %v10269 = vpop.f32.mrb[0].mxu0
  %10270 = vmatprep.mubr.bf16.mxu0 0
  %10271 = vmatmul.mubr.bf16.gmra.mrb[0].mxu0 %v9767
  %v10272 = vpop.f32.mrb[0].mxu0
  %v10273 = vadd.f32 0.0, %v10272
  %v10274 = vpop.f32.mrb[0].mxu0
  %v10275 = vpop.f32.mrb[0].mxu0
  %v10276 = vadd.f32 0.0, %v10275
  %v10277 = vpop.f32.mrb[0].mxu0
  %10278 = vmatprep.mubr.bf16.mxu0 0
  %10279 = vmatmul.mubr.bf16.gmra.mrb[0].mxu0 %v9770
  %v10280 = vpop.f32.mrb[0].mxu0
  %v10281 = vadd.f32 0.0, %v10280
  %v10282 = vpop.f32.mrb[0].mxu0
  %v10283 = vpop.f32.mrb[0].mxu0
  %v10284 = vadd.f32 0.0, %v10283
  %v10285 = vpop.f32.mrb[0].mxu0
  %10286 = vmatprep.mubr.bf16.mxu0 0
  %10287 = vmatmul.mubr.bf16.gmra.mrb[0].mxu0 %v9773
  %v10288 = vpop.f32.mrb[0].mxu0
  %v10289 = vadd.f32 0.0, %v10288
  %v10290 = vpop.f32.mrb[0].mxu0
  %v10291 = vpop.f32.mrb[0].mxu0
  %v10292 = vadd.f32 0.0, %v10291
  %v10293 = vpop.f32.mrb[0].mxu0
  %10294 = vmatprep.mubr.bf16.mxu0 0
  %10295 = vmatmul.mubr.bf16.gmra.mrb[0].mxu0 %v9776
  %v10296 = vpop.f32.mrb[0].mxu0
  %v10297 = vadd.f32 0.0, %v10296
  %v10298 = vpop.f32.mrb[0].mxu0
  %v10299 = vpop.f32.mrb[0].mxu0
  %v10300 = vadd.f32 0.0, %v10299
  %v10301 = vpop.f32.mrb[0].mxu0
  %10302 = vmatprep.mubr.bf16.mxu0 0
  %10303 = vmatmul.mubr.bf16.gmra.mrb[0].mxu0 %v9779
  %v10304 = vpop.f32.mrb[0].mxu0
  %v10305 = vadd.f32 0.0, %v10304
  %v10306 = vpop.f32.mrb[0].mxu0
  %v10307 = vpop.f32.mrb[0].mxu0
  %v10308 = vadd.f32 0.0, %v10307
  %v10309 = vpop.f32.mrb[0].mxu0
  %10310 = vmatprep.mubr.bf16.mxu0 0
  %10311 = vmatmul.mubr.bf16.gmra.mrb[0].mxu0 %v9782
  %v10312 = vpop.f32.mrb[0].mxu0
  %v10313 = vadd.f32 0.0, %v10312
  %v10314 = vpop.f32.mrb[0].mxu0
  %v10315 = vpop.f32.mrb[0].mxu0
  %v10316 = vadd.f32 0.0, %v10315
  %v10317 = vpop.f32.mrb[0].mxu0
  %10318 = vmatprep.mubr.bf16.mxu0 0
  %10319 = vmatmul.mubr.bf16.gmra.mrb[0].mxu0 %v9785
  %v10320 = vpop.f32.mrb[0].mxu0
  %v10321 = vadd.f32 0.0, %v10320
  %v10322 = vpop.f32.mrb[0].mxu0
  %v10323 = vpop.f32.mrb[0].mxu0
  %v10324 = vadd.f32 0.0, %v10323
  %v10325 = vpop.f32.mrb[0].mxu0
  %10326 = vmatprep.mubr.bf16.mxu0 0
  %10327 = vmatmul.mubr.bf16.gmra.mrb[0].mxu0 %v9788
  %v10328 = vpop.f32.mrb[0].mxu0
  %v10329 = vadd.f32 0.0, %v10328
  %v10330 = vpop.f32.mrb[0].mxu0
  %v10331 = vpop.f32.mrb[0].mxu0
  %v10332 = vadd.f32 0.0, %v10331
  %v10333 = vpop.f32.mrb[0].mxu0
  %10334 = vmatprep.mubr.bf16.mxu0 0
  %10335 = vmatmul.mubr.bf16.gmra.mrb[0].mxu0 %v9791
  %v10336 = vpop.f32.mrb[0].mxu0
  %v10337 = vadd.f32 0.0, %v10336
  %v10338 = vpop.f32.mrb[0].mxu0
  %v10339 = vpop.f32.mrb[0].mxu0
  %v10340 = vadd.f32 0.0, %v10339
  %v10341 = vpop.f32.mrb[0].mxu0
  %10342 = vmatprep.mubr.bf16.mxu0 0
  %10343 = vmatmul.mubr.bf16.gmra.mrb[0].mxu0 %v9794
  %v10344 = vpop.f32.mrb[0].mxu0
  %v10345 = vadd.f32 0.0, %v10344
  %v10346 = vpop.f32.mrb[0].mxu0
  %v10347 = vpop.f32.mrb[0].mxu0
  %v10348 = vadd.f32 0.0, %v10347
  %v10349 = vpop.f32.mrb[0].mxu0
  %10350 = vmatprep.mubr.bf16.mxu0 0
  %10351 = vmatmul.mubr.bf16.gmra.mrb[0].mxu0 %v9797
  %v10352 = vpop.f32.mrb[0].mxu0
  %v10353 = vadd.f32 0.0, %v10352
  %v10354 = vpop.f32.mrb[0].mxu0
  %v10355 = vpop.f32.mrb[0].mxu0
  %v10356 = vadd.f32 0.0, %v10355
  %v10357 = vpop.f32.mrb[0].mxu0
  %10358 = vmatprep.mubr.bf16.mxu0 0
  %10359 = vmatmul.mubr.bf16.gmra.mrb[0].mxu0 %v9800
  %v10360 = vpop.f32.mrb[0].mxu0
  %v10361 = vadd.f32 0.0, %v10360
  %v10362 = vpop.f32.mrb[0].mxu0
  %v10363 = vpop.f32.mrb[0].mxu0
  %v10364 = vadd.f32 0.0, %v10363
  %v10365 = vpop.f32.mrb[0].mxu0
  %10366 = vmatprep.mubr.bf16.mxu0 0
  %10367 = vmatmul.mubr.bf16.gmra.mrb[0].mxu0 %v9803
  %v10368 = vpop.f32.mrb[0].mxu0
  %v10369 = vadd.f32 0.0, %v10368
  %v10370 = vpop.f32.mrb[0].mxu0
  %v10371 = vpop.f32.mrb[0].mxu0
  %v10372 = vadd.f32 0.0, %v10371
  %v10373 = vpop.f32.mrb[0].mxu0
  %10374 = vmatprep.mubr.bf16.mxu0 0
  %10375 = vmatmul.mubr.bf16.gmra.mrb[0].mxu0 %v9806
  %v10376 = vpop.f32.mrb[0].mxu0
  %v10377 = vadd.f32 0.0, %v10376
  %v10378 = vpop.f32.mrb[0].mxu0
  %v10379 = vpop.f32.mrb[0].mxu0
  %v10380 = vadd.f32 0.0, %v10379
  %v10381 = vpop.f32.mrb[0].mxu0
  %10382 = vmatprep.mubr.bf16.mxu0 0
  %10383 = vmatmul.mubr.bf16.gmra.mrb[0].mxu0 %v9809
  %v10384 = vpop.f32.mrb[0].mxu0
  %v10385 = vadd.f32 0.0, %v10384
  %v10386 = vpop.f32.mrb[0].mxu0
  %v10387 = vpop.f32.mrb[0].mxu0
  %v10388 = vadd.f32 0.0, %v10387
  %v10389 = vpop.f32.mrb[0].mxu0
  %10390 = vmatprep.mubr.bf16.mxu0 0
  %10391 = vmatmul.mubr.bf16.gmra.mrb[0].mxu0 %v9812
  %v10392 = vpop.f32.mrb[0].mxu0
  %v10393 = vadd.f32 0.0, %v10392
  %v10394 = vpop.f32.mrb[0].mxu0
  %v10395 = vpop.f32.mrb[0].mxu0
  %v10396 = vadd.f32 0.0, %v10395
  %v10397 = vpop.f32.mrb[0].mxu0
  %10398 = vmatprep.mubr.bf16.mxu0 0
  %10399 = vmatmul.mubr.bf16.gmra.mrb[0].mxu0 %v9815
  %v10400 = vpop.f32.mrb[0].mxu0
  %v10401 = vadd.f32 0.0, %v10400
  %v10402 = vpop.f32.mrb[0].mxu0
  %v10403 = vpop.f32.mrb[0].mxu0
  %v10404 = vadd.f32 0.0, %v10403
  %v10405 = vpop.f32.mrb[0].mxu0
  %10406 = vmatprep.mubr.bf16.mxu0 0
  %10407 = vmatmul.mubr.bf16.gmra.mrb[0].mxu0 %v9818
  %v10408 = vpop.f32.mrb[0].mxu0
  %v10409 = vadd.f32 0.0, %v10408
  %v10410 = vpop.f32.mrb[0].mxu0
  %v10411 = vpop.f32.mrb[0].mxu0
  %v10412 = vadd.f32 0.0, %v10411
  %v10413 = vpop.f32.mrb[0].mxu0
  %10414 = vmatprep.mubr.bf16.mxu0 0
  %10415 = vmatmul.mubr.bf16.gmra.mrb[0].mxu0 %v9821
  %v10416 = vpop.f32.mrb[0].mxu0
  %v10417 = vadd.f32 0.0, %v10416
  %v10418 = vpop.f32.mrb[0].mxu0
  %v10419 = vpop.f32.mrb[0].mxu0
  %v10420 = vadd.f32 0.0, %v10419
  %v10421 = vpop.f32.mrb[0].mxu0
  %10422 = vmatprep.mubr.bf16.mxu0 0
  %10423 = vmatmul.mubr.bf16.gmra.mrb[0].mxu0 %v9824
  %v10424 = vpop.f32.mrb[0].mxu0
  %v10425 = vadd.f32 0.0, %v10424
  %v10426 = vpop.f32.mrb[0].mxu0
  %v10427 = vpop.f32.mrb[0].mxu0
  %v10428 = vadd.f32 0.0, %v10427
  %v10429 = vpop.f32.mrb[0].mxu0
  %10430 = vmatprep.mubr.bf16.mxu0 0
  %10431 = vmatmul.mubr.bf16.gmra.mrb[0].mxu0 %v9827
  %v10432 = vpop.f32.mrb[0].mxu0
  %v10433 = vadd.f32 0.0, %v10432
  %v10434 = vpop.f32.mrb[0].mxu0
  %v10435 = vpop.f32.mrb[0].mxu0
  %v10436 = vadd.f32 0.0, %v10435
  %v10437 = vpop.f32.mrb[0].mxu0
  %10438 = vmatprep.mubr.bf16.mxu0 0
  %10439 = vmatmul.mubr.bf16.gmra.mrb[0].mxu0 %v9830
  %v10440 = vpop.f32.mrb[0].mxu0
  %v10441 = vadd.f32 0.0, %v10440
  %v10442 = vpop.f32.mrb[0].mxu0
  %v10443 = vpop.f32.mrb[0].mxu0
  %v10444 = vadd.f32 0.0, %v10443
  %v10445 = vpop.f32.mrb[0].mxu0
  %10446 = vmatprep.mubr.bf16.mxu0 0
  %10447 = vmatmul.mubr.bf16.gmra.mrb[0].mxu0 %v9833
  %v10448 = vpop.f32.mrb[0].mxu0
  %v10449 = vadd.f32 0.0, %v10448
  %v10450 = vpop.f32.mrb[0].mxu0
  %v10451 = vpop.f32.mrb[0].mxu0
  %v10452 = vadd.f32 0.0, %v10451
  %v10453 = vpop.f32.mrb[0].mxu0
  %10454 = vmatprep.mubr.bf16.mxu0 0
  %10455 = vmatmul.mubr.bf16.gmra.mrb[0].mxu0 %v9836
  %v10456 = vpop.f32.mrb[0].mxu0
  %v10457 = vadd.f32 0.0, %v10456
  %v10458 = vpop.f32.mrb[0].mxu0
  %v10459 = vpop.f32.mrb[0].mxu0
  %v10460 = vadd.f32 0.0, %v10459
  %v10461 = vpop.f32.mrb[0].mxu0
  %10462 = vmatprep.mubr.bf16.mxu0 0
  %10463 = vmatmul.mubr.bf16.gmra.mrb[0].mxu0 %v9839
  %v10464 = vpop.f32.mrb[0].mxu0
  %v10465 = vadd.f32 0.0, %v10464
  %v10466 = vpop.f32.mrb[0].mxu0
  %v10467 = vpop.f32.mrb[0].mxu0
  %v10468 = vadd.f32 0.0, %v10467
  %v10469 = vpop.f32.mrb[0].mxu0
  %10470 = vmatprep.mubr.bf16.mxu0 0
  %10471 = vmatmul.mubr.bf16.gmra.mrb[0].mxu0 %v9842
  %v10472 = vpop.f32.mrb[0].mxu0
  %v10473 = vadd.f32 0.0, %v10472
  %v10474 = vpop.f32.mrb[0].mxu0
  %v10475 = vpop.f32.mrb[0].mxu0
  %v10476 = vadd.f32 0.0, %v10475
  %v10477 = vpop.f32.mrb[0].mxu0
  %10478 = vmatprep.mubr.bf16.mxu0 0
  %10479 = vmatmul.mubr.bf16.gmra.mrb[0].mxu0 %v9845
  %v10480 = vpop.f32.mrb[0].mxu0
  %v10481 = vadd.f32 0.0, %v10480
  %v10482 = vpop.f32.mrb[0].mxu0
  %v10483 = vpop.f32.mrb[0].mxu0
  %v10484 = vadd.f32 0.0, %v10483
  %v10485 = vpop.f32.mrb[0].mxu0
  %10486 = vmatprep.mubr.bf16.mxu0 0
  %10487 = vmatmul.mubr.bf16.gmra.mrb[0].mxu0 %v9848
  %v10488 = vpop.f32.mrb[0].mxu0
  %v10489 = vadd.f32 0.0, %v10488
  %v10490 = vpop.f32.mrb[0].mxu0
  %v10491 = vpop.f32.mrb[0].mxu0
  %v10492 = vadd.f32 0.0, %v10491
  %v10493 = vpop.f32.mrb[0].mxu0
  %10494 = vmatprep.mubr.bf16.mxu0 0
  %10495 = vmatmul.mubr.bf16.gmra.mrb[0].mxu0 %v9851
  %v10496 = vpop.f32.mrb[0].mxu0
  %v10497 = vadd.f32 0.0, %v10496
  %v10498 = vpop.f32.mrb[0].mxu0
  %v10499 = vpop.f32.mrb[0].mxu0
  %v10500 = vadd.f32 0.0, %v10499
  %v10501 = vpop.f32.mrb[0].mxu0
  %10502 = vmatprep.mubr.bf16.mxu0 0
  %10503 = vmatmul.mubr.bf16.gmra.mrb[0].mxu0 %v9854
  %v10504 = vpop.f32.mrb[0].mxu0
  %v10505 = vadd.f32 0.0, %v10504
  %v10506 = vpop.f32.mrb[0].mxu0
  %v10507 = vpop.f32.mrb[0].mxu0
  %v10508 = vadd.f32 0.0, %v10507
  %v10509 = vpop.f32.mrb[0].mxu0
  %10510 = vmatprep.mubr.bf16.mxu0 0
  %10511 = vmatmul.mubr.bf16.gmra.mrb[0].mxu0 %v9857
  %v10512 = vpop.f32.mrb[0].mxu0
  %v10513 = vadd.f32 0.0, %v10512
  %v10514 = vpop.f32.mrb[0].mxu0
  %v10515 = vpop.f32.mrb[0].mxu0
  %v10516 = vadd.f32 0.0, %v10515
  %v10517 = vpop.f32.mrb[0].mxu0
  %10518 = vmatprep.mubr.bf16.mxu0 0
  %10519 = vmatmul.mubr.bf16.gmra.mrb[0].mxu0 %v9860
  %v10520 = vpop.f32.mrb[0].mxu0
  %v10521 = vadd.f32 0.0, %v10520
  %v10522 = vpop.f32.mrb[0].mxu0
  %v10523 = vpop.f32.mrb[0].mxu0
  %v10524 = vadd.f32 0.0, %v10523
  %v10525 = vpop.f32.mrb[0].mxu0
  %10526 = vmatprep.mubr.bf16.mxu0 0
  %10527 = vmatmul.mubr.bf16.gmra.mrb[0].mxu0 %v9863
  %v10528 = vpop.f32.mrb[0].mxu0
  %v10529 = vadd.f32 0.0, %v10528
  %v10530 = vpop.f32.mrb[0].mxu0
  %v10531 = vpop.f32.mrb[0].mxu0
  %v10532 = vadd.f32 0.0, %v10531
  %v10533 = vpop.f32.mrb[0].mxu0
  %10534 = vmatprep.mubr.bf16.mxu0 0
  %10535 = vmatmul.mubr.bf16.gmra.mrb[0].mxu0 %v9866
  %v10536 = vpop.f32.mrb[0].mxu0
  %v10537 = vadd.f32 0.0, %v10536
  %v10538 = vpop.f32.mrb[0].mxu0
  %v10539 = vpop.f32.mrb[0].mxu0
  %v10540 = vadd.f32 0.0, %v10539
  %v10541 = vpop.f32.mrb[0].mxu0
  %10542 = vmatprep.mubr.bf16.mxu0 0
  %10543 = vmatmul.mubr.bf16.gmra.mrb[0].mxu0 %v9869
  %v10544 = vpop.f32.mrb[0].mxu0
  %v10545 = vadd.f32 0.0, %v10544
  %v10546 = vpop.f32.mrb[0].mxu0
  %v10547 = vpop.f32.mrb[0].mxu0
  %v10548 = vadd.f32 0.0, %v10547
  %v10549 = vpop.f32.mrb[0].mxu0
  %10550 = vmatprep.mubr.bf16.mxu0 0
  %10551 = vmatmul.mubr.bf16.gmra.mrb[0].mxu0 %v9872
  %v10552 = vpop.f32.mrb[0].mxu0
  %v10553 = vadd.f32 0.0, %v10552
  %v10554 = vpop.f32.mrb[0].mxu0
  %v10555 = vpop.f32.mrb[0].mxu0
  %v10556 = vadd.f32 0.0, %v10555
  %v10557 = vpop.f32.mrb[0].mxu0
  %10558 = vmatprep.mubr.bf16.mxu0 0
  %10559 = vmatmul.mubr.bf16.gmra.mrb[0].mxu0 %v9875
  %v10560 = vpop.f32.mrb[0].mxu0
  %v10561 = vadd.f32 0.0, %v10560
  %v10562 = vpop.f32.mrb[0].mxu0
  %v10563 = vpop.f32.mrb[0].mxu0
  %v10564 = vadd.f32 0.0, %v10563
  %v10565 = vpop.f32.mrb[0].mxu0
  %10566 = vmatprep.mubr.bf16.mxu0 0
  %10567 = vmatmul.mubr.bf16.gmra.mrb[0].mxu0 %v9878
  %v10568 = vpop.f32.mrb[0].mxu0
  %v10569 = vadd.f32 0.0, %v10568
  %v10570 = vpop.f32.mrb[0].mxu0
  %v10571 = vpop.f32.mrb[0].mxu0
  %v10572 = vadd.f32 0.0, %v10571
  %v10573 = vpop.f32.mrb[0].mxu0
  %10574 = vmatprep.mubr.bf16.mxu0 0
  %10575 = vmatmul.mubr.bf16.gmra.mrb[0].mxu0 %v9881
  %v10576 = vpop.f32.mrb[0].mxu0
  %v10577 = vadd.f32 0.0, %v10576
  %v10578 = vpop.f32.mrb[0].mxu0
  %v10579 = vpop.f32.mrb[0].mxu0
  %v10580 = vadd.f32 0.0, %v10579
  %v10581 = vpop.f32.mrb[0].mxu0
  %10582 = vmatprep.mubr.bf16.mxu0 0
  %10583 = vmatmul.mubr.bf16.gmra.mrb[0].mxu0 %v9884
  %v10584 = vpop.f32.mrb[0].mxu0
  %v10585 = vadd.f32 0.0, %v10584
  %v10586 = vpop.f32.mrb[0].mxu0
  %v10587 = vpop.f32.mrb[0].mxu0
  %v10588 = vadd.f32 0.0, %v10587
  %v10589 = vpop.f32.mrb[0].mxu0
  %10590 = vmatprep.mubr.bf16.mxu0 0
  %10591 = vmatmul.mubr.bf16.gmra.mrb[0].mxu0 %v9887
  %v10592 = vpop.f32.mrb[0].mxu0
  %v10593 = vadd.f32 0.0, %v10592
  %v10594 = vpop.f32.mrb[0].mxu0
  %v10595 = vpop.f32.mrb[0].mxu0
  %v10596 = vadd.f32 0.0, %v10595
  %v10597 = vpop.f32.mrb[0].mxu0
  %10598 = vmatprep.mubr.bf16.mxu0 0
  %10599 = vmatmul.mubr.bf16.gmra.mrb[0].mxu0 %v9890
  %v10600 = vpop.f32.mrb[0].mxu0
  %v10601 = vadd.f32 0.0, %v10600
  %v10602 = vpop.f32.mrb[0].mxu0
  %v10603 = vpop.f32.mrb[0].mxu0
  %v10604 = vadd.f32 0.0, %v10603
  %v10605 = vpop.f32.mrb[0].mxu0
  %10606 = vmatprep.mubr.bf16.mxu0 0
  %10607 = vmatmul.mubr.bf16.gmra.mrb[0].mxu0 %v9893
  %v10608 = vpop.f32.mrb[0].mxu0
  %v10609 = vadd.f32 0.0, %v10608
  %v10610 = vpop.f32.mrb[0].mxu0
  %v10611 = vpop.f32.mrb[0].mxu0
  %v10612 = vadd.f32 0.0, %v10611
  %v10613 = vpop.f32.mrb[0].mxu0
  %10614 = vmatprep.mubr.bf16.mxu0 0
  %10615 = vmatmul.mubr.bf16.gmra.mrb[0].mxu0 %v9896
  %v10616 = vpop.f32.mrb[0].mxu0
  %v10617 = vadd.f32 0.0, %v10616
  %v10618 = vpop.f32.mrb[0].mxu0
  %v10619 = vpop.f32.mrb[0].mxu0
  %v10620 = vadd.f32 0.0, %v10619
  %v10621 = vpop.f32.mrb[0].mxu0
  %10622 = vmatprep.mubr.bf16.mxu0 0
  %10623 = vmatmul.mubr.bf16.gmra.mrb[0].mxu0 %v9899
  %v10624 = vpop.f32.mrb[0].mxu0
  %v10625 = vadd.f32 0.0, %v10624
  %v10626 = vpop.f32.mrb[0].mxu0
  %v10627 = vpop.f32.mrb[0].mxu0
  %v10628 = vadd.f32 0.0, %v10627
  %v10629 = vpop.f32.mrb[0].mxu0
  %10630 = vmatprep.mubr.bf16.mxu0 0
  %10631 = vmatmul.mubr.bf16.gmra.mrb[0].mxu0 %v9902
  %v10632 = vpop.f32.mrb[0].mxu0
  %v10633 = vadd.f32 0.0, %v10632
  %v10634 = vpop.f32.mrb[0].mxu0
  %v10635 = vpop.f32.mrb[0].mxu0
  %v10636 = vadd.f32 0.0, %v10635
  %v10637 = vpop.f32.mrb[0].mxu0
  %10638 = vmatprep.mubr.bf16.mxu0 0
  %10639 = vmatmul.mubr.bf16.gmra.mrb[0].mxu0 %v9905
  %v10640 = vpop.f32.mrb[0].mxu0
  %v10641 = vadd.f32 0.0, %v10640
  %v10642 = vpop.f32.mrb[0].mxu0
  %v10643 = vpop.f32.mrb[0].mxu0
  %v10644 = vadd.f32 0.0, %v10643
  %v10645 = vpop.f32.mrb[0].mxu0
  %10646 = vmatprep.mubr.bf16.mxu0 0
  %10647 = vmatmul.mubr.bf16.gmra.mrb[0].mxu0 %v9908
  %v10648 = vpop.f32.mrb[0].mxu0
  %v10649 = vadd.f32 0.0, %v10648
  %v10650 = vpop.f32.mrb[0].mxu0
  %v10651 = vpop.f32.mrb[0].mxu0
  %v10652 = vadd.f32 0.0, %v10651
  %v10653 = vpop.f32.mrb[0].mxu0
  %10654 = vmatprep.mubr.bf16.mxu0 0
  %10655 = vmatmul.mubr.bf16.gmra.mrb[0].mxu0 %v9911
  %v10656 = vpop.f32.mrb[0].mxu0
  %v10657 = vadd.f32 0.0, %v10656
  %v10658 = vpop.f32.mrb[0].mxu0
  %v10659 = vpop.f32.mrb[0].mxu0
  %v10660 = vadd.f32 0.0, %v10659
  %v10661 = vpop.f32.mrb[0].mxu0
  %10662 = vmatprep.mubr.bf16.mxu0 0
  %10663 = vmatmul.mubr.bf16.gmra.mrb[0].mxu0 %v9914
  %v10664 = vpop.f32.mrb[0].mxu0
  %v10665 = vadd.f32 0.0, %v10664
  %v10666 = vpop.f32.mrb[0].mxu0
  %v10667 = vpop.f32.mrb[0].mxu0
  %v10668 = vadd.f32 0.0, %v10667
  %v10669 = vpop.f32.mrb[0].mxu0
  %10670 = vmatprep.mubr.bf16.mxu0 0
  %10671 = vmatmul.mubr.bf16.gmra.mrb[0].mxu0 %v9917
  %v10672 = vpop.f32.mrb[0].mxu0
  %v10673 = vadd.f32 0.0, %v10672
  %v10674 = vpop.f32.mrb[0].mxu0
  %v10675 = vpop.f32.mrb[0].mxu0
  %v10676 = vadd.f32 0.0, %v10675
  %v10677 = vpop.f32.mrb[0].mxu0
  %10678 = vmatprep.mubr.bf16.mxu0 0
  %10679 = vmatmul.mubr.bf16.gmra.mrb[0].mxu0 %v9920
  %v10680 = vpop.f32.mrb[0].mxu0
  %v10681 = vadd.f32 0.0, %v10680
  %v10682 = vpop.f32.mrb[0].mxu0
  %v10683 = vpop.f32.mrb[0].mxu0
  %v10684 = vadd.f32 0.0, %v10683
  %v10685 = vpop.f32.mrb[0].mxu0
  %10686 = vmatprep.mubr.bf16.mxu0 0
  %10687 = vmatmul.mubr.bf16.gmra.mrb[0].mxu0 %v9923
  %v10688 = vpop.f32.mrb[0].mxu0
  %v10689 = vadd.f32 0.0, %v10688
  %v10690 = vpop.f32.mrb[0].mxu0
  %v10691 = vpop.f32.mrb[0].mxu0
  %v10692 = vadd.f32 0.0, %v10691
  %v10693 = vpop.f32.mrb[0].mxu0
  %10694 = vmatprep.mubr.bf16.mxu0 0
  %10695 = vmatmul.mubr.bf16.gmra.mrb[0].mxu0 %v9926
  %v10696 = vpop.f32.mrb[0].mxu0
  %v10697 = vadd.f32 0.0, %v10696
  %v10698 = vpop.f32.mrb[0].mxu0
  %v10699 = vpop.f32.mrb[0].mxu0
  %v10700 = vadd.f32 0.0, %v10699
  %v10701 = vpop.f32.mrb[0].mxu0
  %10702 = vmatprep.mubr.bf16.mxu0 0
  %10703 = vmatmul.mubr.bf16.gmra.mrb[0].mxu0 %v9929
  %v10704 = vpop.f32.mrb[0].mxu0
  %v10705 = vadd.f32 0.0, %v10704
  %v10706 = vpop.f32.mrb[0].mxu0
  %v10707 = vpop.f32.mrb[0].mxu0
  %v10708 = vadd.f32 0.0, %v10707
  %v10709 = vpop.f32.mrb[0].mxu0
  %10710 = vmatprep.mubr.bf16.mxu0 0
  %10711 = vmatmul.mubr.bf16.gmra.mrb[0].mxu0 %v9932
  %v10712 = vpop.f32.mrb[0].mxu0
  %v10713 = vadd.f32 0.0, %v10712
  %v10714 = vpop.f32.mrb[0].mxu0
  %v10715 = vpop.f32.mrb[0].mxu0
  %v10716 = vadd.f32 0.0, %v10715
  %v10717 = vpop.f32.mrb[0].mxu0
  %10718 = vmatprep.mubr.bf16.mxu0 0
  %10719 = vmatmul.mubr.bf16.gmra.mrb[0].mxu0 %v9935
  %v10720 = vpop.f32.mrb[0].mxu0
  %v10721 = vadd.f32 0.0, %v10720
  %v10722 = vpop.f32.mrb[0].mxu0
  %v10723 = vpop.f32.mrb[0].mxu0
  %v10724 = vadd.f32 0.0, %v10723
  %v10725 = vpop.f32.mrb[0].mxu0
  %10726 = vmatprep.mubr.bf16.mxu0 0
  %10727 = vmatmul.mubr.bf16.gmra.mrb[0].mxu0 %v9938
  %v10728 = vpop.f32.mrb[0].mxu0
  %v10729 = vadd.f32 0.0, %v10728
  %v10730 = vpop.f32.mrb[0].mxu0
  %v10731 = vpop.f32.mrb[0].mxu0
  %v10732 = vadd.f32 0.0, %v10731
  %v10733 = vpop.f32.mrb[0].mxu0
  %10734 = vmatprep.mubr.bf16.mxu0 0
  %10735 = vmatmul.mubr.bf16.gmra.mrb[0].mxu0 %v9941
  %v10736 = vpop.f32.mrb[0].mxu0
  %v10737 = vadd.f32 0.0, %v10736
  %v10738 = vpop.f32.mrb[0].mxu0
  %v10739 = vpop.f32.mrb[0].mxu0
  %v10740 = vadd.f32 0.0, %v10739
  %v10741 = vpop.f32.mrb[0].mxu0
  %10742 = vmatprep.mubr.bf16.mxu0 0
  %10743 = vmatmul.mubr.bf16.gmra.mrb[0].mxu0 %v9944
  %v10744 = vpop.f32.mrb[0].mxu0
  %v10745 = vadd.f32 0.0, %v10744
  %v10746 = vpop.f32.mrb[0].mxu0
  %v10747 = vpop.f32.mrb[0].mxu0
  %v10748 = vadd.f32 0.0, %v10747
  %v10749 = vpop.f32.mrb[0].mxu0
  %10750 = vmatprep.mubr.bf16.mxu0 0
  %10751 = vmatmul.mubr.bf16.gmra.mrb[0].mxu0 %v9947
  %v10752 = vpop.f32.mrb[0].mxu0
  %v10753 = vadd.f32 0.0, %v10752
  %v10754 = vpop.f32.mrb[0].mxu0
  %v10755 = vpop.f32.mrb[0].mxu0
  %v10756 = vadd.f32 0.0, %v10755
  %v10757 = vpop.f32.mrb[0].mxu0
  %10758 = vmatprep.mubr.bf16.mxu0 0
  %10759 = vmatmul.mubr.bf16.gmra.mrb[0].mxu0 %v9950
  %v10760 = vpop.f32.mrb[0].mxu0
  %v10761 = vadd.f32 0.0, %v10760
  %v10762 = vpop.f32.mrb[0].mxu0
  %v10763 = vpop.f32.mrb[0].mxu0
  %v10764 = vadd.f32 0.0, %v10763
  %v10765 = vpop.f32.mrb[0].mxu0
  %10766 = vmatprep.mubr.bf16.mxu0 0
  %10767 = vmatmul.mubr.bf16.gmra.mrb[0].mxu0 %v9953
  %v10768 = vpop.f32.mrb[0].mxu0
  %v10769 = vadd.f32 0.0, %v10768
  %v10770 = vpop.f32.mrb[0].mxu0
  %v10771 = vpop.f32.mrb[0].mxu0
  %v10772 = vadd.f32 0.0, %v10771
  %v10773 = vpop.f32.mrb[0].mxu0
  %10774 = vmatprep.mubr.bf16.mxu0 0
  %10775 = vmatmul.mubr.bf16.gmra.mrb[0].mxu0 %v9956
  %v10776 = vpop.f32.mrb[0].mxu0
  %v10777 = vadd.f32 0.0, %v10776
  %v10778 = vpop.f32.mrb[0].mxu0
  %v10779 = vpop.f32.mrb[0].mxu0
  %v10780 = vadd.f32 0.0, %v10779
  %v10781 = vpop.f32.mrb[0].mxu0
  %10782 = vmatprep.mubr.bf16.mxu0 0
  %10783 = vmatmul.mubr.bf16.gmra.mrb[0].mxu0 %v9959
  %v10784 = vpop.f32.mrb[0].mxu0
  %v10785 = vadd.f32 0.0, %v10784
  %v10786 = vpop.f32.mrb[0].mxu0
  %v10787 = vpop.f32.mrb[0].mxu0
  %v10788 = vadd.f32 0.0, %v10787
  %v10789 = vpop.f32.mrb[0].mxu0
  %10790 = vmatprep.mubr.bf16.mxu0 0
  %10791 = vmatmul.mubr.bf16.gmra.mrb[0].mxu0 %v9962
  %v10792 = vpop.f32.mrb[0].mxu0
  %v10793 = vadd.f32 0.0, %v10792
  %v10794 = vpop.f32.mrb[0].mxu0
  %v10795 = vpop.f32.mrb[0].mxu0
  %v10796 = vadd.f32 0.0, %v10795
  %v10797 = vpop.f32.mrb[0].mxu0
  %10798 = vmatprep.mubr.bf16.mxu0 0
  %10799 = vmatmul.mubr.bf16.gmra.mrb[0].mxu0 %v9965
  %v10800 = vpop.f32.mrb[0].mxu0
  %v10801 = vadd.f32 0.0, %v10800
  %v10802 = vpop.f32.mrb[0].mxu0
  %v10803 = vpop.f32.mrb[0].mxu0
  %v10804 = vadd.f32 0.0, %v10803
  %v10805 = vpop.f32.mrb[0].mxu0
  %10806 = vmatprep.mubr.bf16.mxu0 0
  %10807 = vmatmul.mubr.bf16.gmra.mrb[0].mxu0 %v9968
  %v10808 = vpop.f32.mrb[0].mxu0
  %v10809 = vadd.f32 0.0, %v10808
  %v10810 = vpop.f32.mrb[0].mxu0
  %v10811 = vpop.f32.mrb[0].mxu0
  %v10812 = vadd.f32 0.0, %v10811
  %v10813 = vpop.f32.mrb[0].mxu0
  %10814 = vmatprep.mubr.bf16.mxu0 0
  %10815 = vmatmul.mubr.bf16.gmra.mrb[0].mxu0 %v9971
  %v10816 = vpop.f32.mrb[0].mxu0
  %v10817 = vadd.f32 0.0, %v10816
  %v10818 = vpop.f32.mrb[0].mxu0
  %v10819 = vpop.f32.mrb[0].mxu0
  %v10820 = vadd.f32 0.0, %v10819
  %v10821 = vpop.f32.mrb[0].mxu0
  %10822 = vmatprep.mubr.bf16.mxu0 0
  %10823 = vmatmul.mubr.bf16.gmra.mrb[0].mxu0 %v9974
  %v10824 = vpop.f32.mrb[0].mxu0
  %v10825 = vadd.f32 0.0, %v10824
  %v10826 = vpop.f32.mrb[0].mxu0
  %v10827 = vpop.f32.mrb[0].mxu0
  %v10828 = vadd.f32 0.0, %v10827
  %v10829 = vpop.f32.mrb[0].mxu0
  %10830 = vmatprep.mubr.bf16.mxu0 0
  %10831 = vmatmul.mubr.bf16.gmra.mrb[0].mxu0 %v9977
  %v10832 = vpop.f32.mrb[0].mxu0
  %v10833 = vadd.f32 0.0, %v10832
  %v10834 = vpop.f32.mrb[0].mxu0
  %v10835 = vpop.f32.mrb[0].mxu0
  %v10836 = vadd.f32 0.0, %v10835
  %v10837 = vpop.f32.mrb[0].mxu0
  %10838 = vmatprep.mubr.bf16.mxu0 0
  %10839 = vmatmul.mubr.bf16.gmra.mrb[0].mxu0 %v9980
  %v10840 = vpop.f32.mrb[0].mxu0
  %v10841 = vadd.f32 0.0, %v10840
  %v10842 = vpop.f32.mrb[0].mxu0
  %v10843 = vpop.f32.mrb[0].mxu0
  %v10844 = vadd.f32 0.0, %v10843
  %v10845 = vpop.f32.mrb[0].mxu0
  %10846 = vmatprep.mubr.bf16.mxu0 0
  %10847 = vmatmul.mubr.bf16.gmra.mrb[0].mxu0 %v9983
  %v10848 = vpop.f32.mrb[0].mxu0
  %v10849 = vadd.f32 0.0, %v10848
  %v10850 = vpop.f32.mrb[0].mxu0
  %v10851 = vpop.f32.mrb[0].mxu0
  %v10852 = vadd.f32 0.0, %v10851
  %v10853 = vpop.f32.mrb[0].mxu0
  %10854 = vmatprep.mubr.bf16.mxu0 0
  %10855 = vmatmul.mubr.bf16.gmra.mrb[0].mxu0 %v9986
  %v10856 = vpop.f32.mrb[0].mxu0
  %v10857 = vadd.f32 0.0, %v10856
  %v10858 = vpop.f32.mrb[0].mxu0
  %v10859 = vpop.f32.mrb[0].mxu0
  %v10860 = vadd.f32 0.0, %v10859
  %v10861 = vpop.f32.mrb[0].mxu0
  %10862 = vmatprep.mubr.bf16.mxu0 0
  %10863 = vmatmul.mubr.bf16.gmra.mrb[0].mxu0 %v9989
  %v10864 = vpop.f32.mrb[0].mxu0
  %v10865 = vadd.f32 0.0, %v10864
  %v10866 = vpop.f32.mrb[0].mxu0
  %v10867 = vpop.f32.mrb[0].mxu0
  %v10868 = vadd.f32 0.0, %v10867
  %v10869 = vpop.f32.mrb[0].mxu0
  %10870 = vmatprep.mubr.bf16.mxu0 0
  %10871 = vmatmul.mubr.bf16.gmra.mrb[0].mxu0 %v9992
  %v10872 = vpop.f32.mrb[0].mxu0
  %v10873 = vadd.f32 0.0, %v10872
  %v10874 = vpop.f32.mrb[0].mxu0
  %v10875 = vpop.f32.mrb[0].mxu0
  %v10876 = vadd.f32 0.0, %v10875
  %v10877 = vpop.f32.mrb[0].mxu0
  %10878 = vmatprep.mubr.bf16.mxu0 0
  %10879 = vmatmul.mubr.bf16.gmra.mrb[0].mxu0 %v9995
  %v10880 = vpop.f32.mrb[0].mxu0
  %v10881 = vadd.f32 0.0, %v10880
  %v10882 = vpop.f32.mrb[0].mxu0
  %v10883 = vpop.f32.mrb[0].mxu0
  %v10884 = vadd.f32 0.0, %v10883
  %v10885 = vpop.f32.mrb[0].mxu0
  %10886 = vmatprep.mubr.bf16.mxu0 0
  %10887 = vmatmul.mubr.bf16.gmra.mrb[0].mxu0 %v9998
  %v10888 = vpop.f32.mrb[0].mxu0
  %v10889 = vadd.f32 0.0, %v10888
  %v10890 = vpop.f32.mrb[0].mxu0
  %v10891 = vpop.f32.mrb[0].mxu0
  %v10892 = vadd.f32 0.0, %v10891
  %v10893 = vpop.f32.mrb[0].mxu0
  %10894 = vmatprep.mubr.bf16.mxu0 0
  %10895 = vmatmul.mubr.bf16.gmra.mrb[0].mxu0 %v10001
  %v10896 = vpop.f32.mrb[0].mxu0
  %v10897 = vadd.f32 0.0, %v10896
  %v10898 = vpop.f32.mrb[0].mxu0
  %v10899 = vpop.f32.mrb[0].mxu0
  %v10900 = vadd.f32 0.0, %v10899
  %v10901 = vpop.f32.mrb[0].mxu0
  %10902 = vmatprep.mubr.bf16.mxu0 0
  %10903 = vmatmul.mubr.bf16.gmra.mrb[0].mxu0 %v10004
  %v10904 = vpop.f32.mrb[0].mxu0
  %v10905 = vadd.f32 0.0, %v10904
  %v10906 = vpop.f32.mrb[0].mxu0
  %v10907 = vpop.f32.mrb[0].mxu0
  %v10908 = vadd.f32 0.0, %v10907
  %v10909 = vpop.f32.mrb[0].mxu0
  %10910 = vmatprep.mubr.bf16.mxu0 0
  %10911 = vmatmul.mubr.bf16.gmra.mrb[0].mxu0 %v10007
  %v10912 = vpop.f32.mrb[0].mxu0
  %v10913 = vadd.f32 0.0, %v10912
  %v10914 = vpop.f32.mrb[0].mxu0
  %v10915 = vpop.f32.mrb[0].mxu0
  %v10916 = vadd.f32 0.0, %v10915
  %v10917 = vpop.f32.mrb[0].mxu0
  %10918 = vmatprep.mubr.bf16.mxu0 0
  %10919 = vmatmul.mubr.bf16.gmra.mrb[0].mxu0 %v10010
  %v10920 = vpop.f32.mrb[0].mxu0
  %v10921 = vadd.f32 0.0, %v10920
  %v10922 = vpop.f32.mrb[0].mxu0
  %v10923 = vpop.f32.mrb[0].mxu0
  %v10924 = vadd.f32 0.0, %v10923
  %v10925 = vpop.f32.mrb[0].mxu0
  %10926 = vmatprep.mubr.bf16.mxu0 0
  %10927 = vmatmul.mubr.bf16.gmra.mrb[0].mxu0 %v10013
  %v10928 = vpop.f32.mrb[0].mxu0
  %v10929 = vadd.f32 0.0, %v10928
  %v10930 = vpop.f32.mrb[0].mxu0
  %v10931 = vpop.f32.mrb[0].mxu0
  %v10932 = vadd.f32 0.0, %v10931
  %v10933 = vpop.f32.mrb[0].mxu0
  %10934 = vmatprep.mubr.bf16.mxu0 0
  %10935 = vmatmul.mubr.bf16.gmra.mrb[0].mxu0 %v10016
  %v10936 = vpop.f32.mrb[0].mxu0
  %v10937 = vadd.f32 0.0, %v10936
  %v10938 = vpop.f32.mrb[0].mxu0
  %v10939 = vpop.f32.mrb[0].mxu0
  %v10940 = vadd.f32 0.0, %v10939
  %v10941 = vpop.f32.mrb[0].mxu0
  %10942 = vmatprep.mubr.bf16.mxu0 0
  %10943 = vmatmul.mubr.bf16.gmra.mrb[0].mxu0 %v10019
  %v10944 = vpop.f32.mrb[0].mxu0
  %v10945 = vadd.f32 0.0, %v10944
  %v10946 = vpop.f32.mrb[0].mxu0
  %v10947 = vpop.f32.mrb[0].mxu0
  %v10948 = vadd.f32 0.0, %v10947
  %v10949 = vpop.f32.mrb[0].mxu0
  %10950 = vmatprep.mubr.bf16.mxu0 0
  %10951 = vmatmul.mubr.bf16.gmra.mrb[0].mxu0 %v10022
  %v10952 = vpop.f32.mrb[0].mxu0
  %v10953 = vadd.f32 0.0, %v10952
  %v10954 = vpop.f32.mrb[0].mxu0
  %v10955 = vpop.f32.mrb[0].mxu0
  %v10956 = vadd.f32 0.0, %v10955
  %v10957 = vpop.f32.mrb[0].mxu0
  %10958 = vmatprep.mubr.bf16.mxu0 0
  %10959 = vmatmul.mubr.bf16.gmra.mrb[0].mxu0 %v10025
  %v10960 = vpop.f32.mrb[0].mxu0
  %v10961 = vadd.f32 0.0, %v10960
  %v10962 = vpop.f32.mrb[0].mxu0
  %v10963 = vpop.f32.mrb[0].mxu0
  %v10964 = vadd.f32 0.0, %v10963
  %v10965 = vpop.f32.mrb[0].mxu0
  %10966 = vmatprep.mubr.bf16.mxu0 0
  %10967 = vmatmul.mubr.bf16.gmra.mrb[0].mxu0 %v10028
  %v10968 = vpop.f32.mrb[0].mxu0
  %v10969 = vadd.f32 0.0, %v10968
  %v10970 = vpop.f32.mrb[0].mxu0
  %v10971 = vpop.f32.mrb[0].mxu0
  %v10972 = vadd.f32 0.0, %v10971
  %v10973 = vpop.f32.mrb[0].mxu0
  %10974 = vmatprep.mubr.bf16.mxu0 0
  %10975 = vmatmul.mubr.bf16.gmra.mrb[0].mxu0 %v10031
  %v10976 = vpop.f32.mrb[0].mxu0
  %v10977 = vadd.f32 0.0, %v10976
  %v10978 = vpop.f32.mrb[0].mxu0
  %v10979 = vpop.f32.mrb[0].mxu0
  %v10980 = vadd.f32 0.0, %v10979
  %v10981 = vpop.f32.mrb[0].mxu0
  %10982 = vmatprep.mubr.bf16.mxu0 0
  %10983 = vmatmul.mubr.bf16.gmra.mrb[0].mxu0 %v10034
  %v10984 = vpop.f32.mrb[0].mxu0
  %v10985 = vadd.f32 0.0, %v10984
  %v10986 = vpop.f32.mrb[0].mxu0
  %v10987 = vpop.f32.mrb[0].mxu0
  %v10988 = vadd.f32 0.0, %v10987
  %v10989 = vpop.f32.mrb[0].mxu0
  %10990 = vmatprep.mubr.bf16.mxu0 0
  %10991 = vmatmul.mubr.bf16.gmra.mrb[0].mxu0 %v10037
  %v10992 = vpop.f32.mrb[0].mxu0
  %v10993 = vadd.f32 0.0, %v10992
  %v10994 = vpop.f32.mrb[0].mxu0
  %v10995 = vpop.f32.mrb[0].mxu0
  %v10996 = vadd.f32 0.0, %v10995
  %v10997 = vpop.f32.mrb[0].mxu0
  %10998 = vmatprep.mubr.bf16.mxu0 0
  %10999 = vmatmul.mubr.bf16.gmra.mrb[0].mxu0 %v10040
  %v11000 = vpop.f32.mrb[0].mxu0
  %v11001 = vadd.f32 0.0, %v11000
  %v11002 = vpop.f32.mrb[0].mxu0
  %v11003 = vpop.f32.mrb[0].mxu0
  %v11004 = vadd.f32 0.0, %v11003
  %v11005 = vpop.f32.mrb[0].mxu0
  %11006 = vmatprep.mubr.bf16.mxu0 0
  %11007 = vmatmul.mubr.bf16.gmra.mrb[0].mxu0 %v10043
  %v11008 = vpop.f32.mrb[0].mxu0
  %v11009 = vadd.f32 0.0, %v11008
  %v11010 = vpop.f32.mrb[0].mxu0
  %v11011 = vpop.f32.mrb[0].mxu0
  %v11012 = vadd.f32 0.0, %v11011
  %v11013 = vpop.f32.mrb[0].mxu0
  %11014 = vmatprep.mubr.bf16.mxu0 0
  %11015 = vmatmul.mubr.bf16.gmra.mrb[0].mxu0 %v10046
  %v11016 = vpop.f32.mrb[0].mxu0
  %v11017 = vadd.f32 0.0, %v11016
  %v11018 = vpop.f32.mrb[0].mxu0
  %v11019 = vpop.f32.mrb[0].mxu0
  %v11020 = vadd.f32 0.0, %v11019
  %v11021 = vpop.f32.mrb[0].mxu0
  %11022 = vmatprep.mubr.bf16.mxu0 0
  %11023 = vmatmul.mubr.bf16.gmra.mrb[0].mxu0 %v10049
  %v11024 = vpop.f32.mrb[0].mxu0
  %v11025 = vadd.f32 0.0, %v11024
  %v11026 = vpop.f32.mrb[0].mxu0
  %v11027 = vpop.f32.mrb[0].mxu0
  %v11028 = vadd.f32 0.0, %v11027
  %v11029 = vpop.f32.mrb[0].mxu0
  %11030 = vmatprep.mubr.bf16.mxu0 0
  %11031 = vmatmul.mubr.bf16.gmra.mrb[0].mxu0 %v10052
  %v11032 = vpop.f32.mrb[0].mxu0
  %v11033 = vadd.f32 0.0, %v11032
  %v11034 = vpop.f32.mrb[0].mxu0
  %v11035 = vpop.f32.mrb[0].mxu0
  %v11036 = vadd.f32 0.0, %v11035
  %v11037 = vpop.f32.mrb[0].mxu0
  %11038 = vmatprep.mubr.bf16.mxu0 0
  %11039 = vmatmul.mubr.bf16.gmra.mrb[0].mxu0 %v10055
  %v11040 = vpop.f32.mrb[0].mxu0
  %v11041 = vadd.f32 0.0, %v11040
  %v11042 = vpop.f32.mrb[0].mxu0
  %v11043 = vpop.f32.mrb[0].mxu0
  %v11044 = vadd.f32 0.0, %v11043
  %v11045 = vpop.f32.mrb[0].mxu0
  %11046 = vmatprep.mubr.bf16.mxu0 0
  %11047 = vmatmul.mubr.bf16.gmra.mrb[0].mxu0 %v10058
  %v11048 = vpop.f32.mrb[0].mxu0
  %v11049 = vadd.f32 0.0, %v11048
  %v11050 = vpop.f32.mrb[0].mxu0
  %v11051 = vpop.f32.mrb[0].mxu0
  %v11052 = vadd.f32 0.0, %v11051
  %v11053 = vpop.f32.mrb[0].mxu0
  %11054 = vmatprep.mubr.bf16.mxu0 0
  %11055 = vmatmul.mubr.bf16.gmra.mrb[0].mxu0 %v10061
  %v11056 = vpop.f32.mrb[0].mxu0
  %v11057 = vadd.f32 0.0, %v11056
  %v11058 = vpop.f32.mrb[0].mxu0
  %v11059 = vpop.f32.mrb[0].mxu0
  %v11060 = vadd.f32 0.0, %v11059
  %v11061 = vpop.f32.mrb[0].mxu0
  %11062 = vmatprep.mubr.bf16.mxu0 0
  %11063 = vmatmul.mubr.bf16.gmra.mrb[0].mxu0 %v10064
  %v11064 = vpop.f32.mrb[0].mxu0
  %v11065 = vadd.f32 0.0, %v11064
  %v11066 = vpop.f32.mrb[0].mxu0
  %v11067 = vpop.f32.mrb[0].mxu0
  %v11068 = vadd.f32 0.0, %v11067
  %v11069 = vpop.f32.mrb[0].mxu0
  %11070 = vmatprep.mubr.bf16.mxu0 0
  %11071 = vmatmul.mubr.bf16.gmra.mrb[0].mxu0 %v10067
  %v11072 = vpop.f32.mrb[0].mxu0
  %v11073 = vadd.f32 0.0, %v11072
  %v11074 = vpop.f32.mrb[0].mxu0
  %v11075 = vpop.f32.mrb[0].mxu0
  %v11076 = vadd.f32 0.0, %v11075
  %v11077 = vpop.f32.mrb[0].mxu0
  %11078 = vmatprep.mubr.bf16.mxu0 0
  %11079 = vmatmul.mubr.bf16.gmra.mrb[0].mxu0 %v10070
  %v11080 = vpop.f32.mrb[0].mxu0
  %v11081 = vadd.f32 0.0, %v11080
  %v11082 = vpop.f32.mrb[0].mxu0
  %v11083 = vpop.f32.mrb[0].mxu0
  %v11084 = vadd.f32 0.0, %v11083
  %v11085 = vpop.f32.mrb[0].mxu0
  %11086 = vmatprep.mubr.bf16.mxu0 0
  %11087 = vmatmul.mubr.bf16.gmra.mrb[0].mxu0 %v10073
  %v11088 = vpop.f32.mrb[0].mxu0
  %v11089 = vadd.f32 0.0, %v11088
  %v11090 = vpop.f32.mrb[0].mxu0
  %v11091 = vpop.f32.mrb[0].mxu0
  %v11092 = vadd.f32 0.0, %v11091
  %v11093 = vpop.f32.mrb[0].mxu0
  %11094 = vmatprep.mubr.bf16.mxu0 0
  %11095 = vmatmul.mubr.bf16.gmra.mrb[0].mxu0 %v10076
  %v11096 = vpop.f32.mrb[0].mxu0
  %v11097 = vadd.f32 0.0, %v11096
  %v11098 = vpop.f32.mrb[0].mxu0
  %v11099 = vpop.f32.mrb[0].mxu0
  %v11100 = vadd.f32 0.0, %v11099
  %v11101 = vpop.f32.mrb[0].mxu0
  %11102 = vmatprep.mubr.bf16.mxu0 0
  %11103 = vmatmul.mubr.bf16.gmra.mrb[0].mxu0 %v10079
  %v11104 = vpop.f32.mrb[0].mxu0
  %v11105 = vadd.f32 0.0, %v11104
  %v11106 = vpop.f32.mrb[0].mxu0
  %v11107 = vpop.f32.mrb[0].mxu0
  %v11108 = vadd.f32 0.0, %v11107
  %v11109 = vpop.f32.mrb[0].mxu0
  %11110 = vmatprep.mubr.bf16.mxu0 0
  %11111 = vmatmul.mubr.bf16.gmra.mrb[0].mxu0 %v10082
  %v11112 = vpop.f32.mrb[0].mxu0
  %v11113 = vadd.f32 0.0, %v11112
  %v11114 = vpop.f32.mrb[0].mxu0
  %v11115 = vpop.f32.mrb[0].mxu0
  %v11116 = vadd.f32 0.0, %v11115
  %v11117 = vpop.f32.mrb[0].mxu0
  %11118 = vmatprep.mubr.bf16.mxu0 0
  %11119 = vmatmul.mubr.bf16.gmra.mrb[0].mxu0 %v10085
  %v11120 = vpop.f32.mrb[0].mxu0
  %v11121 = vadd.f32 0.0, %v11120
  %v11122 = vpop.f32.mrb[0].mxu0
  %v11123 = vpop.f32.mrb[0].mxu0
  %v11124 = vadd.f32 0.0, %v11123
  %v11125 = vpop.f32.mrb[0].mxu0
  %11126 = vmatprep.mubr.bf16.mxu0 0
  %11127 = vmatmul.mubr.bf16.gmra.mrb[0].mxu0 %v10088
  %v11128 = vpop.f32.mrb[0].mxu0
  %v11129 = vadd.f32 0.0, %v11128
  %v11130 = vpop.f32.mrb[0].mxu0
  %v11131 = vpop.f32.mrb[0].mxu0
  %v11132 = vadd.f32 0.0, %v11131
  %v11133 = vpop.f32.mrb[0].mxu0
  %11134 = vmatprep.mubr.bf16.mxu0 0
  %11135 = vmatmul.mubr.bf16.gmra.mrb[0].mxu0 %v10091
  %v11136 = vpop.f32.mrb[0].mxu0
  %v11137 = vadd.f32 0.0, %v11136
  %v11138 = vpop.f32.mrb[0].mxu0
  %v11139 = vpop.f32.mrb[0].mxu0
  %v11140 = vadd.f32 0.0, %v11139
  %v11141 = vpop.f32.mrb[0].mxu0
  %11142 = vmatprep.mubr.bf16.mxu0 0
  %11143 = vmatmul.mubr.bf16.gmra.mrb[0].mxu0 %v10094
  %v11144 = vpop.f32.mrb[0].mxu0
  %v11145 = vadd.f32 0.0, %v11144
  %v11146 = vpop.f32.mrb[0].mxu0
  %v11147 = vpop.f32.mrb[0].mxu0
  %v11148 = vadd.f32 0.0, %v11147
  %v11149 = vpop.f32.mrb[0].mxu0
  %11150 = vmatprep.mubr.bf16.mxu0 0
  %11151 = vmatmul.mubr.bf16.gmra.mrb[0].mxu0 %v10097
  %v11152 = vpop.f32.mrb[0].mxu0
  %v11153 = vadd.f32 0.0, %v11152
  %v11154 = vpop.f32.mrb[0].mxu0
  %v11155 = vpop.f32.mrb[0].mxu0
  %v11156 = vadd.f32 0.0, %v11155
  %v11157 = vpop.f32.mrb[0].mxu0
  %11158 = vdwg.mxu0
  %v11159 = vadd.f32 %v9129, %v10137
  %v11160 = vadd.f32 %v9130, %v10140
  %v11161 = vadd.f32 %v9131, %v10145
  %v11162 = vadd.f32 %v9132, %v10148
  %v11163 = vadd.f32 %v9133, %v10153
  %v11164 = vadd.f32 %v9134, %v10156
  %v11165 = vadd.f32 %v9135, %v10161
  %v11166 = vadd.f32 %v9136, %v10164
  %v11167 = vadd.f32 %v9137, %v10169
  %v11168 = vadd.f32 %v9138, %v10172
  %v11169 = vadd.f32 %v9139, %v10177
  %v11170 = vadd.f32 %v9140, %v10180
  %v11171 = vadd.f32 %v9141, %v10185
  %v11172 = vadd.f32 %v9142, %v10188
  %v11173 = vadd.f32 %v9143, %v10193
  %v11174 = vadd.f32 %v9144, %v10196
  %v11175 = vadd.f32 %v9145, %v10201
  %v11176 = vadd.f32 %v9146, %v10204
  %v11177 = vadd.f32 %v9147, %v10209
  %v11178 = vadd.f32 %v9148, %v10212
  %v11179 = vadd.f32 %v9149, %v10217
  %v11180 = vadd.f32 %v9150, %v10220
  %v11181 = vadd.f32 %v9151, %v10225
  %v11182 = vadd.f32 %v9152, %v10228
  %v11183 = vadd.f32 %v9153, %v10233
  %v11184 = vadd.f32 %v9154, %v10236
  %v11185 = vadd.f32 %v9155, %v10241
  %v11186 = vadd.f32 %v9156, %v10244
  %v11187 = vadd.f32 %v9157, %v10249
  %v11188 = vadd.f32 %v9158, %v10252
  %v11189 = vadd.f32 %v9159, %v10257
  %v11190 = vadd.f32 %v9160, %v10260
  %v11191 = vadd.f32 %v9161, %v10265
  %v11192 = vadd.f32 %v9162, %v10268
  %v11193 = vadd.f32 %v9163, %v10273
  %v11194 = vadd.f32 %v9164, %v10276
  %v11195 = vadd.f32 %v9165, %v10281
  %v11196 = vadd.f32 %v9166, %v10284
  %v11197 = vadd.f32 %v9167, %v10289
  %v11198 = vadd.f32 %v9168, %v10292
  %v11199 = vadd.f32 %v9169, %v10297
  %v11200 = vadd.f32 %v9170, %v10300
  %v11201 = vadd.f32 %v9171, %v10305
  %v11202 = vadd.f32 %v9172, %v10308
  %v11203 = vadd.f32 %v9173, %v10313
  %v11204 = vadd.f32 %v9174, %v10316
  %v11205 = vadd.f32 %v9175, %v10321
  %v11206 = vadd.f32 %v9176, %v10324
  %v11207 = vadd.f32 %v9177, %v10329
  %v11208 = vadd.f32 %v9178, %v10332
  %v11209 = vadd.f32 %v9179, %v10337
  %v11210 = vadd.f32 %v9180, %v10340
  %v11211 = vadd.f32 %v9181, %v10345
  %v11212 = vadd.f32 %v9182, %v10348
  %v11213 = vadd.f32 %v9183, %v10353
  %v11214 = vadd.f32 %v9184, %v10356
  %v11215 = vadd.f32 %v9185, %v10361
  %v11216 = vadd.f32 %v9186, %v10364
  %v11217 = vadd.f32 %v9187, %v10369
  %v11218 = vadd.f32 %v9188, %v10372
  %v11219 = vadd.f32 %v9189, %v10377
  %v11220 = vadd.f32 %v9190, %v10380
  %v11221 = vadd.f32 %v9191, %v10385
  %v11222 = vadd.f32 %v9192, %v10388
  %v11223 = vadd.f32 %v9193, %v10393
  %v11224 = vadd.f32 %v9194, %v10396
  %v11225 = vadd.f32 %v9195, %v10401
  %v11226 = vadd.f32 %v9196, %v10404
  %v11227 = vadd.f32 %v9197, %v10409
  %v11228 = vadd.f32 %v9198, %v10412
  %v11229 = vadd.f32 %v9199, %v10417
  %v11230 = vadd.f32 %v9200, %v10420
  %v11231 = vadd.f32 %v9201, %v10425
  %v11232 = vadd.f32 %v9202, %v10428
  %v11233 = vadd.f32 %v9203, %v10433
  %v11234 = vadd.f32 %v9204, %v10436
  %v11235 = vadd.f32 %v9205, %v10441
  %v11236 = vadd.f32 %v9206, %v10444
  %v11237 = vadd.f32 %v9207, %v10449
  %v11238 = vadd.f32 %v9208, %v10452
  %v11239 = vadd.f32 %v9209, %v10457
  %v11240 = vadd.f32 %v9210, %v10460
  %v11241 = vadd.f32 %v9211, %v10465
  %v11242 = vadd.f32 %v9212, %v10468
  %v11243 = vadd.f32 %v9213, %v10473
  %v11244 = vadd.f32 %v9214, %v10476
  %v11245 = vadd.f32 %v9215, %v10481
  %v11246 = vadd.f32 %v9216, %v10484
  %v11247 = vadd.f32 %v9217, %v10489
  %v11248 = vadd.f32 %v9218, %v10492
  %v11249 = vadd.f32 %v9219, %v10497
  %v11250 = vadd.f32 %v9220, %v10500
  %v11251 = vadd.f32 %v9221, %v10505
  %v11252 = vadd.f32 %v9222, %v10508
  %v11253 = vadd.f32 %v9223, %v10513
  %v11254 = vadd.f32 %v9224, %v10516
  %v11255 = vadd.f32 %v9225, %v10521
  %v11256 = vadd.f32 %v9226, %v10524
  %v11257 = vadd.f32 %v9227, %v10529
  %v11258 = vadd.f32 %v9228, %v10532
  %v11259 = vadd.f32 %v9229, %v10537
  %v11260 = vadd.f32 %v9230, %v10540
  %v11261 = vadd.f32 %v9231, %v10545
  %v11262 = vadd.f32 %v9232, %v10548
  %v11263 = vadd.f32 %v9233, %v10553
  %v11264 = vadd.f32 %v9234, %v10556
  %v11265 = vadd.f32 %v9235, %v10561
  %v11266 = vadd.f32 %v9236, %v10564
  %v11267 = vadd.f32 %v9237, %v10569
  %v11268 = vadd.f32 %v9238, %v10572
  %v11269 = vadd.f32 %v9239, %v10577
  %v11270 = vadd.f32 %v9240, %v10580
  %v11271 = vadd.f32 %v9241, %v10585
  %v11272 = vadd.f32 %v9242, %v10588
  %v11273 = vadd.f32 %v9243, %v10593
  %v11274 = vadd.f32 %v9244, %v10596
  %v11275 = vadd.f32 %v9245, %v10601
  %v11276 = vadd.f32 %v9246, %v10604
  %v11277 = vadd.f32 %v9247, %v10609
  %v11278 = vadd.f32 %v9248, %v10612
  %v11279 = vadd.f32 %v9249, %v10617
  %v11280 = vadd.f32 %v9250, %v10620
  %v11281 = vadd.f32 %v9251, %v10625
  %v11282 = vadd.f32 %v9252, %v10628
  %v11283 = vadd.f32 %v9253, %v10633
  %v11284 = vadd.f32 %v9254, %v10636
  %v11285 = vadd.f32 %v9255, %v10641
  %v11286 = vadd.f32 %v9256, %v10644
  %v11287 = vadd.f32 %v9257, %v10649
  %v11288 = vadd.f32 %v9258, %v10652
  %v11289 = vadd.f32 %v9259, %v10657
  %v11290 = vadd.f32 %v9260, %v10660
  %v11291 = vadd.f32 %v9261, %v10665
  %v11292 = vadd.f32 %v9262, %v10668
  %v11293 = vadd.f32 %v9263, %v10673
  %v11294 = vadd.f32 %v9264, %v10676
  %v11295 = vadd.f32 %v9265, %v10681
  %v11296 = vadd.f32 %v9266, %v10684
  %v11297 = vadd.f32 %v9267, %v10689
  %v11298 = vadd.f32 %v9268, %v10692
  %v11299 = vadd.f32 %v9269, %v10697
  %v11300 = vadd.f32 %v9270, %v10700
  %v11301 = vadd.f32 %v9271, %v10705
  %v11302 = vadd.f32 %v9272, %v10708
  %v11303 = vadd.f32 %v9273, %v10713
  %v11304 = vadd.f32 %v9274, %v10716
  %v11305 = vadd.f32 %v9275, %v10721
  %v11306 = vadd.f32 %v9276, %v10724
  %v11307 = vadd.f32 %v9277, %v10729
  %v11308 = vadd.f32 %v9278, %v10732
  %v11309 = vadd.f32 %v9279, %v10737
  %v11310 = vadd.f32 %v9280, %v10740
  %v11311 = vadd.f32 %v9281, %v10745
  %v11312 = vadd.f32 %v9282, %v10748
  %v11313 = vadd.f32 %v9283, %v10753
  %v11314 = vadd.f32 %v9284, %v10756
  %v11315 = vadd.f32 %v9285, %v10761
  %v11316 = vadd.f32 %v9286, %v10764
  %v11317 = vadd.f32 %v9287, %v10769
  %v11318 = vadd.f32 %v9288, %v10772
  %v11319 = vadd.f32 %v9289, %v10777
  %v11320 = vadd.f32 %v9290, %v10780
  %v11321 = vadd.f32 %v9291, %v10785
  %v11322 = vadd.f32 %v9292, %v10788
  %v11323 = vadd.f32 %v9293, %v10793
  %v11324 = vadd.f32 %v9294, %v10796
  %v11325 = vadd.f32 %v9295, %v10801
  %v11326 = vadd.f32 %v9296, %v10804
  %v11327 = vadd.f32 %v9297, %v10809
  %v11328 = vadd.f32 %v9298, %v10812
  %v11329 = vadd.f32 %v9299, %v10817
  %v11330 = vadd.f32 %v9300, %v10820
  %v11331 = vadd.f32 %v9301, %v10825
  %v11332 = vadd.f32 %v9302, %v10828
  %v11333 = vadd.f32 %v9303, %v10833
  %v11334 = vadd.f32 %v9304, %v10836
  %v11335 = vadd.f32 %v9305, %v10841
  %v11336 = vadd.f32 %v9306, %v10844
  %v11337 = vadd.f32 %v9307, %v10849
  %v11338 = vadd.f32 %v9308, %v10852
  %v11339 = vadd.f32 %v9309, %v10857
  %v11340 = vadd.f32 %v9310, %v10860
  %v11341 = vadd.f32 %v9311, %v10865
  %v11342 = vadd.f32 %v9312, %v10868
  %v11343 = vadd.f32 %v9313, %v10873
  %v11344 = vadd.f32 %v9314, %v10876
  %v11345 = vadd.f32 %v9315, %v10881
  %v11346 = vadd.f32 %v9316, %v10884
  %v11347 = vadd.f32 %v9317, %v10889
  %v11348 = vadd.f32 %v9318, %v10892
  %v11349 = vadd.f32 %v9319, %v10897
  %v11350 = vadd.f32 %v9320, %v10900
  %v11351 = vadd.f32 %v9321, %v10905
  %v11352 = vadd.f32 %v9322, %v10908
  %v11353 = vadd.f32 %v9323, %v10913
  %v11354 = vadd.f32 %v9324, %v10916
  %v11355 = vadd.f32 %v9325, %v10921
  %v11356 = vadd.f32 %v9326, %v10924
  %v11357 = vadd.f32 %v9327, %v10929
  %v11358 = vadd.f32 %v9328, %v10932
  %v11359 = vadd.f32 %v9329, %v10937
  %v11360 = vadd.f32 %v9330, %v10940
  %v11361 = vadd.f32 %v9331, %v10945
  %v11362 = vadd.f32 %v9332, %v10948
  %v11363 = vadd.f32 %v9333, %v10953
  %v11364 = vadd.f32 %v9334, %v10956
  %v11365 = vadd.f32 %v9335, %v10961
  %v11366 = vadd.f32 %v9336, %v10964
  %v11367 = vadd.f32 %v9337, %v10969
  %v11368 = vadd.f32 %v9338, %v10972
  %v11369 = vadd.f32 %v9339, %v10977
  %v11370 = vadd.f32 %v9340, %v10980
  %v11371 = vadd.f32 %v9341, %v10985
  %v11372 = vadd.f32 %v9342, %v10988
  %v11373 = vadd.f32 %v9343, %v10993
  %v11374 = vadd.f32 %v9344, %v10996
  %v11375 = vadd.f32 %v9345, %v11001
  %v11376 = vadd.f32 %v9346, %v11004
  %v11377 = vadd.f32 %v9347, %v11009
  %v11378 = vadd.f32 %v9348, %v11012
  %v11379 = vadd.f32 %v9349, %v11017
  %v11380 = vadd.f32 %v9350, %v11020
  %v11381 = vadd.f32 %v9351, %v11025
  %v11382 = vadd.f32 %v9352, %v11028
  %v11383 = vadd.f32 %v9353, %v11033
  %v11384 = vadd.f32 %v9354, %v11036
  %v11385 = vadd.f32 %v9355, %v11041
  %v11386 = vadd.f32 %v9356, %v11044
  %v11387 = vadd.f32 %v9357, %v11049
  %v11388 = vadd.f32 %v9358, %v11052
  %v11389 = vadd.f32 %v9359, %v11057
  %v11390 = vadd.f32 %v9360, %v11060
  %v11391 = vadd.f32 %v9361, %v11065
  %v11392 = vadd.f32 %v9362, %v11068
  %v11393 = vadd.f32 %v9363, %v11073
  %v11394 = vadd.f32 %v9364, %v11076
  %v11395 = vadd.f32 %v9365, %v11081
  %v11396 = vadd.f32 %v9366, %v11084
  %v11397 = vadd.f32 %v9367, %v11089
  %v11398 = vadd.f32 %v9368, %v11092
  %v11399 = vadd.f32 %v9369, %v11097
  %v11400 = vadd.f32 %v9370, %v11100
  %v11401 = vadd.f32 %v9371, %v11105
  %v11402 = vadd.f32 %v9372, %v11108
  %v11403 = vadd.f32 %v9373, %v11113
  %v11404 = vadd.f32 %v9374, %v11116
  %v11405 = vadd.f32 %v9375, %v11121
  %v11406 = vadd.f32 %v9376, %v11124
  %v11407 = vadd.f32 %v9377, %v11129
  %v11408 = vadd.f32 %v9378, %v11132
  %v11409 = vadd.f32 %v9379, %v11137
  %v11410 = vadd.f32 %v9380, %v11140
  %v11411 = vadd.f32 %v9381, %v11145
  %v11412 = vadd.f32 %v9382, %v11148
  %v11413 = vadd.f32 %v9383, %v11153
  %v11414 = vadd.f32 %v9384, %v11156
  %v11415 = vld [vmem:[%s9] sm:$0xff]
  %v11416 = vld [vmem:[%s9 + $0x8] sm:$0xff]
  %v11417 = vld [vmem:[%s9 + $0x10] sm:$0xff]
  %v11418 = vld [vmem:[%s9 + $0x18] sm:$0xff]
  %v11419 = vld [vmem:[%s9 + $0x20] sm:$0xff]
  %v11420 = vld [vmem:[%s9 + $0x28] sm:$0xff]
  %v11421 = vld [vmem:[%s9 + $0x30] sm:$0xff]
  %v11422 = vld [vmem:[%s9 + $0x38] sm:$0xff]
  %v11423 = vld [vmem:[%s9 + $0x40] sm:$0xff]
  %v11424 = vld [vmem:[%s9 + $0x48] sm:$0xff]
  %v11425 = vld [vmem:[%s9 + $0x50] sm:$0xff]
  %v11426 = vld [vmem:[%s9 + $0x58] sm:$0xff]
  %v11427 = vld [vmem:[%s9 + $0x60] sm:$0xff]
  %v11428 = vld [vmem:[%s9 + $0x68] sm:$0xff]
  %v11429 = vld [vmem:[%s9 + $0x70] sm:$0xff]
  %v11430 = vld [vmem:[%s9 + $0x78] sm:$0xff]
  %v11431 = vld [vmem:[%s9 + $0x80] sm:$0xff]
  %v11432 = vld [vmem:[%s9 + $0x88] sm:$0xff]
  %v11433 = vld [vmem:[%s9 + $0x90] sm:$0xff]
  %v11434 = vld [vmem:[%s9 + $0x98] sm:$0xff]
  %v11435 = vld [vmem:[%s9 + $0xa0] sm:$0xff]
  %v11436 = vld [vmem:[%s9 + $0xa8] sm:$0xff]
  %v11437 = vld [vmem:[%s9 + $0xb0] sm:$0xff]
  %v11438 = vld [vmem:[%s9 + $0xb8] sm:$0xff]
  %v11439 = vld [vmem:[%s9 + $0xc0] sm:$0xff]
  %v11440 = vld [vmem:[%s9 + $0xc8] sm:$0xff]
  %v11441 = vld [vmem:[%s9 + $0xd0] sm:$0xff]
  %v11442 = vld [vmem:[%s9 + $0xd8] sm:$0xff]
  %v11443 = vld [vmem:[%s9 + $0xe0] sm:$0xff]
  %v11444 = vld [vmem:[%s9 + $0xe8] sm:$0xff]
  %v11445 = vld [vmem:[%s9 + $0xf0] sm:$0xff]
  %v11446 = vld [vmem:[%s9 + $0xf8] sm:$0xff]
  %v11447 = vld [vmem:[%s9 + $0x100] sm:$0xff]
  %v11448 = vld [vmem:[%s9 + $0x108] sm:$0xff]
  %v11449 = vld [vmem:[%s9 + $0x110] sm:$0xff]
  %v11450 = vld [vmem:[%s9 + $0x118] sm:$0xff]
  %v11451 = vld [vmem:[%s9 + $0x120] sm:$0xff]
  %v11452 = vld [vmem:[%s9 + $0x128] sm:$0xff]
  %v11453 = vld [vmem:[%s9 + $0x130] sm:$0xff]
  %v11454 = vld [vmem:[%s9 + $0x138] sm:$0xff]
  %v11455 = vld [vmem:[%s9 + $0x140] sm:$0xff]
  %v11456 = vld [vmem:[%s9 + $0x148] sm:$0xff]
  %v11457 = vld [vmem:[%s9 + $0x150] sm:$0xff]
  %v11458 = vld [vmem:[%s9 + $0x158] sm:$0xff]
  %v11459 = vld [vmem:[%s9 + $0x160] sm:$0xff]
  %v11460 = vld [vmem:[%s9 + $0x168] sm:$0xff]
  %v11461 = vld [vmem:[%s9 + $0x170] sm:$0xff]
  %v11462 = vld [vmem:[%s9 + $0x178] sm:$0xff]
  %v11463 = vld [vmem:[%s9 + $0x180] sm:$0xff]
  %v11464 = vld [vmem:[%s9 + $0x188] sm:$0xff]
  %v11465 = vld [vmem:[%s9 + $0x190] sm:$0xff]
  %v11466 = vld [vmem:[%s9 + $0x198] sm:$0xff]
  %v11467 = vld [vmem:[%s9 + $0x1a0] sm:$0xff]
  %v11468 = vld [vmem:[%s9 + $0x1a8] sm:$0xff]
  %v11469 = vld [vmem:[%s9 + $0x1b0] sm:$0xff]
  %v11470 = vld [vmem:[%s9 + $0x1b8] sm:$0xff]
  %v11471 = vld [vmem:[%s9 + $0x1c0] sm:$0xff]
  %v11472 = vld [vmem:[%s9 + $0x1c8] sm:$0xff]
  %v11473 = vld [vmem:[%s9 + $0x1d0] sm:$0xff]
  %v11474 = vld [vmem:[%s9 + $0x1d8] sm:$0xff]
  %v11475 = vld [vmem:[%s9 + $0x1e0] sm:$0xff]
  %v11476 = vld [vmem:[%s9 + $0x1e8] sm:$0xff]
  %v11477 = vld [vmem:[%s9 + $0x1f0] sm:$0xff]
  %v11478 = vld [vmem:[%s9 + $0x1f8] sm:$0xff]
  %v11479 = vpack.c.bf16 %v11160, %v11159
  %v11480 = vpack.c.bf16 %v11162, %v11161
  %v11481 = vpack.c.bf16 %v11164, %v11163
  %v11482 = vpack.c.bf16 %v11166, %v11165
  %v11483 = vpack.c.bf16 %v11168, %v11167
  %v11484 = vpack.c.bf16 %v11170, %v11169
  %v11485 = vpack.c.bf16 %v11172, %v11171
  %v11486 = vpack.c.bf16 %v11174, %v11173
  %v11487 = vpack.c.bf16 %v11176, %v11175
  %v11488 = vpack.c.bf16 %v11178, %v11177
  %v11489 = vpack.c.bf16 %v11180, %v11179
  %v11490 = vpack.c.bf16 %v11182, %v11181
  %v11491 = vpack.c.bf16 %v11184, %v11183
  %v11492 = vpack.c.bf16 %v11186, %v11185
  %v11493 = vpack.c.bf16 %v11188, %v11187
  %v11494 = vpack.c.bf16 %v11190, %v11189
  %v11495 = vpack.c.bf16 %v11192, %v11191
  %v11496 = vpack.c.bf16 %v11194, %v11193
  %v11497 = vpack.c.bf16 %v11196, %v11195
  %v11498 = vpack.c.bf16 %v11198, %v11197
  %v11499 = vpack.c.bf16 %v11200, %v11199
  %v11500 = vpack.c.bf16 %v11202, %v11201
  %v11501 = vpack.c.bf16 %v11204, %v11203
  %v11502 = vpack.c.bf16 %v11206, %v11205
  %v11503 = vpack.c.bf16 %v11208, %v11207
  %v11504 = vpack.c.bf16 %v11210, %v11209
  %v11505 = vpack.c.bf16 %v11212, %v11211
  %v11506 = vpack.c.bf16 %v11214, %v11213
  %v11507 = vpack.c.bf16 %v11216, %v11215
  %v11508 = vpack.c.bf16 %v11218, %v11217
  %v11509 = vpack.c.bf16 %v11220, %v11219
  %v11510 = vpack.c.bf16 %v11222, %v11221
  %v11511 = vpack.c.bf16 %v11224, %v11223
  %v11512 = vpack.c.bf16 %v11226, %v11225
  %v11513 = vpack.c.bf16 %v11228, %v11227
  %v11514 = vpack.c.bf16 %v11230, %v11229
  %v11515 = vpack.c.bf16 %v11232, %v11231
  %v11516 = vpack.c.bf16 %v11234, %v11233
  %v11517 = vpack.c.bf16 %v11236, %v11235
  %v11518 = vpack.c.bf16 %v11238, %v11237
  %v11519 = vpack.c.bf16 %v11240, %v11239
  %v11520 = vpack.c.bf16 %v11242, %v11241
  %v11521 = vpack.c.bf16 %v11244, %v11243
  %v11522 = vpack.c.bf16 %v11246, %v11245
  %v11523 = vpack.c.bf16 %v11248, %v11247
  %v11524 = vpack.c.bf16 %v11250, %v11249
  %v11525 = vpack.c.bf16 %v11252, %v11251
  %v11526 = vpack.c.bf16 %v11254, %v11253
  %v11527 = vpack.c.bf16 %v11256, %v11255
  %v11528 = vpack.c.bf16 %v11258, %v11257
  %v11529 = vpack.c.bf16 %v11260, %v11259
  %v11530 = vpack.c.bf16 %v11262, %v11261
  %v11531 = vpack.c.bf16 %v11264, %v11263
  %v11532 = vpack.c.bf16 %v11266, %v11265
  %v11533 = vpack.c.bf16 %v11268, %v11267
  %v11534 = vpack.c.bf16 %v11270, %v11269
  %v11535 = vpack.c.bf16 %v11272, %v11271
  %v11536 = vpack.c.bf16 %v11274, %v11273
  %v11537 = vpack.c.bf16 %v11276, %v11275
  %v11538 = vpack.c.bf16 %v11278, %v11277
  %v11539 = vpack.c.bf16 %v11280, %v11279
  %v11540 = vpack.c.bf16 %v11282, %v11281
  %v11541 = vpack.c.bf16 %v11284, %v11283
  %v11542 = vpack.c.bf16 %v11286, %v11285
  %v11543 = vpack.c.bf16 %v11288, %v11287
  %v11544 = vpack.c.bf16 %v11290, %v11289
  %v11545 = vpack.c.bf16 %v11292, %v11291
  %v11546 = vpack.c.bf16 %v11294, %v11293
  %v11547 = vpack.c.bf16 %v11296, %v11295
  %v11548 = vpack.c.bf16 %v11298, %v11297
  %v11549 = vpack.c.bf16 %v11300, %v11299
  %v11550 = vpack.c.bf16 %v11302, %v11301
  %v11551 = vpack.c.bf16 %v11304, %v11303
  %v11552 = vpack.c.bf16 %v11306, %v11305
  %v11553 = vpack.c.bf16 %v11308, %v11307
  %v11554 = vpack.c.bf16 %v11310, %v11309
  %v11555 = vpack.c.bf16 %v11312, %v11311
  %v11556 = vpack.c.bf16 %v11314, %v11313
  %v11557 = vpack.c.bf16 %v11316, %v11315
  %v11558 = vpack.c.bf16 %v11318, %v11317
  %v11559 = vpack.c.bf16 %v11320, %v11319
  %v11560 = vpack.c.bf16 %v11322, %v11321
  %v11561 = vpack.c.bf16 %v11324, %v11323
  %v11562 = vpack.c.bf16 %v11326, %v11325
  %v11563 = vpack.c.bf16 %v11328, %v11327
  %v11564 = vpack.c.bf16 %v11330, %v11329
  %v11565 = vpack.c.bf16 %v11332, %v11331
  %v11566 = vpack.c.bf16 %v11334, %v11333
  %v11567 = vpack.c.bf16 %v11336, %v11335
  %v11568 = vpack.c.bf16 %v11338, %v11337
  %v11569 = vpack.c.bf16 %v11340, %v11339
  %v11570 = vpack.c.bf16 %v11342, %v11341
  %v11571 = vpack.c.bf16 %v11344, %v11343
  %v11572 = vpack.c.bf16 %v11346, %v11345
  %v11573 = vpack.c.bf16 %v11348, %v11347
  %v11574 = vpack.c.bf16 %v11350, %v11349
  %v11575 = vpack.c.bf16 %v11352, %v11351
  %v11576 = vpack.c.bf16 %v11354, %v11353
  %v11577 = vpack.c.bf16 %v11356, %v11355
  %v11578 = vpack.c.bf16 %v11358, %v11357
  %v11579 = vpack.c.bf16 %v11360, %v11359
  %v11580 = vpack.c.bf16 %v11362, %v11361
  %v11581 = vpack.c.bf16 %v11364, %v11363
  %v11582 = vpack.c.bf16 %v11366, %v11365
  %v11583 = vpack.c.bf16 %v11368, %v11367
  %v11584 = vpack.c.bf16 %v11370, %v11369
  %v11585 = vpack.c.bf16 %v11372, %v11371
  %v11586 = vpack.c.bf16 %v11374, %v11373
  %v11587 = vpack.c.bf16 %v11376, %v11375
  %v11588 = vpack.c.bf16 %v11378, %v11377
  %v11589 = vpack.c.bf16 %v11380, %v11379
  %v11590 = vpack.c.bf16 %v11382, %v11381
  %v11591 = vpack.c.bf16 %v11384, %v11383
  %v11592 = vpack.c.bf16 %v11386, %v11385
  %v11593 = vpack.c.bf16 %v11388, %v11387
  %v11594 = vpack.c.bf16 %v11390, %v11389
  %v11595 = vpack.c.bf16 %v11392, %v11391
  %v11596 = vpack.c.bf16 %v11394, %v11393
  %v11597 = vpack.c.bf16 %v11396, %v11395
  %v11598 = vpack.c.bf16 %v11398, %v11397
  %v11599 = vpack.c.bf16 %v11400, %v11399
  %v11600 = vpack.c.bf16 %v11402, %v11401
  %v11601 = vpack.c.bf16 %v11404, %v11403
  %v11602 = vpack.c.bf16 %v11406, %v11405
  %v11603 = vpack.c.bf16 %v11408, %v11407
  %v11604 = vpack.c.bf16 %v11410, %v11409
  %v11605 = vpack.c.bf16 %v11412, %v11411
  %v11606 = vpack.c.bf16 %v11414, %v11413
  %v11607 = vld [vmem:[%s10] sm:$0xff]
  %v11608 = vld [vmem:[%s10 + $0x8] sm:$0xff]
  %v11609 = vld [vmem:[%s10 + $0x10] sm:$0xff]
  %v11610 = vld [vmem:[%s10 + $0x18] sm:$0xff]
  %v11611 = vld [vmem:[%s10 + $0x20] sm:$0xff]
  %v11612 = vld [vmem:[%s10 + $0x28] sm:$0xff]
  %v11613 = vld [vmem:[%s10 + $0x30] sm:$0xff]
  %v11614 = vld [vmem:[%s10 + $0x38] sm:$0xff]
  %11616 = vset.pattern.permute.xlu0 0
  %11617 = vperm.xlu0 %11616, %v11607
  %v11618 = vpop.permute.xlu0 %11617
  %11621 = vset.pattern.permute.xlu0 0
  %11622 = vperm.xlu0 %11621, %v11608
  %v11623 = vpop.permute.xlu0 %11622
  %11626 = vset.pattern.permute.xlu0 0
  %11627 = vperm.xlu0 %11626, %v11609
  %v11628 = vpop.permute.xlu0 %11627
  %11631 = vset.pattern.permute.xlu0 0
  %11632 = vperm.xlu0 %11631, %v11610
  %v11633 = vpop.permute.xlu0 %11632
  %11636 = vset.pattern.permute.xlu0 0
  %11637 = vperm.xlu0 %11636, %v11611
  %v11638 = vpop.permute.xlu0 %11637
  %11641 = vset.pattern.permute.xlu0 0
  %11642 = vperm.xlu0 %11641, %v11612
  %v11643 = vpop.permute.xlu0 %11642
  %11646 = vset.pattern.permute.xlu0 0
  %11647 = vperm.xlu0 %11646, %v11613
  %v11648 = vpop.permute.xlu0 %11647
  %11651 = vset.pattern.permute.xlu0 0
  %11652 = vperm.xlu0 %11651, %v11614
  %v11653 = vpop.permute.xlu0 %11652
  %v11719 = vunpack.c.l.b16 %v11415
  %v11720 = vunpack.c.h.b16 %v11415
  %v11721 = vunpack.c.l.b16 %v11416
  %v11722 = vunpack.c.h.b16 %v11416
  %v11723 = vunpack.c.l.b16 %v11417
  %v11724 = vunpack.c.h.b16 %v11417
  %v11725 = vunpack.c.l.b16 %v11418
  %v11726 = vunpack.c.h.b16 %v11418
  %v11727 = vunpack.c.l.b16 %v11419
  %v11728 = vunpack.c.h.b16 %v11419
  %v11729 = vunpack.c.l.b16 %v11420
  %v11730 = vunpack.c.h.b16 %v11420
  %v11731 = vunpack.c.l.b16 %v11421
  %v11732 = vunpack.c.h.b16 %v11421
  %v11733 = vunpack.c.l.b16 %v11422
  %v11734 = vunpack.c.h.b16 %v11422
  %v11735 = vunpack.c.l.b16 %v11423
  %v11736 = vunpack.c.h.b16 %v11423
  %v11737 = vunpack.c.l.b16 %v11424
  %v11738 = vunpack.c.h.b16 %v11424
  %v11739 = vunpack.c.l.b16 %v11425
  %v11740 = vunpack.c.h.b16 %v11425
  %v11741 = vunpack.c.l.b16 %v11426
  %v11742 = vunpack.c.h.b16 %v11426
  %v11743 = vunpack.c.l.b16 %v11427
  %v11744 = vunpack.c.h.b16 %v11427
  %v11745 = vunpack.c.l.b16 %v11428
  %v11746 = vunpack.c.h.b16 %v11428
  %v11747 = vunpack.c.l.b16 %v11429
  %v11748 = vunpack.c.h.b16 %v11429
  %v11749 = vunpack.c.l.b16 %v11430
  %v11750 = vunpack.c.h.b16 %v11430
  %v11751 = vunpack.c.l.b16 %v11431
  %v11752 = vunpack.c.h.b16 %v11431
  %v11753 = vunpack.c.l.b16 %v11432
  %v11754 = vunpack.c.h.b16 %v11432
  %v11755 = vunpack.c.l.b16 %v11433
  %v11756 = vunpack.c.h.b16 %v11433
  %v11757 = vunpack.c.l.b16 %v11434
  %v11758 = vunpack.c.h.b16 %v11434
  %v11759 = vunpack.c.l.b16 %v11435
  %v11760 = vunpack.c.h.b16 %v11435
  %v11761 = vunpack.c.l.b16 %v11436
  %v11762 = vunpack.c.h.b16 %v11436
  %v11763 = vunpack.c.l.b16 %v11437
  %v11764 = vunpack.c.h.b16 %v11437
  %v11765 = vunpack.c.l.b16 %v11438
  %v11766 = vunpack.c.h.b16 %v11438
  %v11767 = vunpack.c.l.b16 %v11439
  %v11768 = vunpack.c.h.b16 %v11439
  %v11769 = vunpack.c.l.b16 %v11440
  %v11770 = vunpack.c.h.b16 %v11440
  %v11771 = vunpack.c.l.b16 %v11441
  %v11772 = vunpack.c.h.b16 %v11441
  %v11773 = vunpack.c.l.b16 %v11442
  %v11774 = vunpack.c.h.b16 %v11442
  %v11775 = vunpack.c.l.b16 %v11443
  %v11776 = vunpack.c.h.b16 %v11443
  %v11777 = vunpack.c.l.b16 %v11444
  %v11778 = vunpack.c.h.b16 %v11444
  %v11779 = vunpack.c.l.b16 %v11445
  %v11780 = vunpack.c.h.b16 %v11445
  %v11781 = vunpack.c.l.b16 %v11446
  %v11782 = vunpack.c.h.b16 %v11446
  %v11783 = vunpack.c.l.b16 %v11447
  %v11784 = vunpack.c.h.b16 %v11447
  %v11785 = vunpack.c.l.b16 %v11448
  %v11786 = vunpack.c.h.b16 %v11448
  %v11787 = vunpack.c.l.b16 %v11449
  %v11788 = vunpack.c.h.b16 %v11449
  %v11789 = vunpack.c.l.b16 %v11450
  %v11790 = vunpack.c.h.b16 %v11450
  %v11791 = vunpack.c.l.b16 %v11451
  %v11792 = vunpack.c.h.b16 %v11451
  %v11793 = vunpack.c.l.b16 %v11452
  %v11794 = vunpack.c.h.b16 %v11452
  %v11795 = vunpack.c.l.b16 %v11453
  %v11796 = vunpack.c.h.b16 %v11453
  %v11797 = vunpack.c.l.b16 %v11454
  %v11798 = vunpack.c.h.b16 %v11454
  %v11799 = vunpack.c.l.b16 %v11455
  %v11800 = vunpack.c.h.b16 %v11455
  %v11801 = vunpack.c.l.b16 %v11456
  %v11802 = vunpack.c.h.b16 %v11456
  %v11803 = vunpack.c.l.b16 %v11457
  %v11804 = vunpack.c.h.b16 %v11457
  %v11805 = vunpack.c.l.b16 %v11458
  %v11806 = vunpack.c.h.b16 %v11458
  %v11807 = vunpack.c.l.b16 %v11459
  %v11808 = vunpack.c.h.b16 %v11459
  %v11809 = vunpack.c.l.b16 %v11460
  %v11810 = vunpack.c.h.b16 %v11460
  %v11811 = vunpack.c.l.b16 %v11461
  %v11812 = vunpack.c.h.b16 %v11461
  %v11813 = vunpack.c.l.b16 %v11462
  %v11814 = vunpack.c.h.b16 %v11462
  %v11815 = vunpack.c.l.b16 %v11463
  %v11816 = vunpack.c.h.b16 %v11463
  %v11817 = vunpack.c.l.b16 %v11464
  %v11818 = vunpack.c.h.b16 %v11464
  %v11819 = vunpack.c.l.b16 %v11465
  %v11820 = vunpack.c.h.b16 %v11465
  %v11821 = vunpack.c.l.b16 %v11466
  %v11822 = vunpack.c.h.b16 %v11466
  %v11823 = vunpack.c.l.b16 %v11467
  %v11824 = vunpack.c.h.b16 %v11467
  %v11825 = vunpack.c.l.b16 %v11468
  %v11826 = vunpack.c.h.b16 %v11468
  %v11827 = vunpack.c.l.b16 %v11469
  %v11828 = vunpack.c.h.b16 %v11469
  %v11829 = vunpack.c.l.b16 %v11470
  %v11830 = vunpack.c.h.b16 %v11470
  %v11831 = vunpack.c.l.b16 %v11471
  %v11832 = vunpack.c.h.b16 %v11471
  %v11833 = vunpack.c.l.b16 %v11472
  %v11834 = vunpack.c.h.b16 %v11472
  %v11835 = vunpack.c.l.b16 %v11473
  %v11836 = vunpack.c.h.b16 %v11473
  %v11837 = vunpack.c.l.b16 %v11474
  %v11838 = vunpack.c.h.b16 %v11474
  %v11839 = vunpack.c.l.b16 %v11475
  %v11840 = vunpack.c.h.b16 %v11475
  %v11841 = vunpack.c.l.b16 %v11476
  %v11842 = vunpack.c.h.b16 %v11476
  %v11843 = vunpack.c.l.b16 %v11477
  %v11844 = vunpack.c.h.b16 %v11477
  %v11845 = vunpack.c.l.b16 %v11478
  %v11846 = vunpack.c.h.b16 %v11478
  %v11847 = vpack.c.b16 %v11735, %v11719
  %v11848 = vpack.c.b16 %v11736, %v11720
  %v11849 = vpack.c.b16 %v11737, %v11721
  %v11850 = vpack.c.b16 %v11738, %v11722
  %v11851 = vpack.c.b16 %v11739, %v11723
  %v11852 = vpack.c.b16 %v11740, %v11724
  %v11853 = vpack.c.b16 %v11741, %v11725
  %v11854 = vpack.c.b16 %v11742, %v11726
  %v11855 = vpack.c.b16 %v11743, %v11727
  %v11856 = vpack.c.b16 %v11744, %v11728
  %v11857 = vpack.c.b16 %v11745, %v11729
  %v11858 = vpack.c.b16 %v11746, %v11730
  %v11859 = vpack.c.b16 %v11747, %v11731
  %v11860 = vpack.c.b16 %v11748, %v11732
  %v11861 = vpack.c.b16 %v11749, %v11733
  %v11862 = vpack.c.b16 %v11750, %v11734
  %v11863 = vpack.c.b16 %v11767, %v11751
  %v11864 = vpack.c.b16 %v11768, %v11752
  %v11865 = vpack.c.b16 %v11769, %v11753
  %v11866 = vpack.c.b16 %v11770, %v11754
  %v11867 = vpack.c.b16 %v11771, %v11755
  %v11868 = vpack.c.b16 %v11772, %v11756
  %v11869 = vpack.c.b16 %v11773, %v11757
  %v11870 = vpack.c.b16 %v11774, %v11758
  %v11871 = vpack.c.b16 %v11775, %v11759
  %v11872 = vpack.c.b16 %v11776, %v11760
  %v11873 = vpack.c.b16 %v11777, %v11761
  %v11874 = vpack.c.b16 %v11778, %v11762
  %v11875 = vpack.c.b16 %v11779, %v11763
  %v11876 = vpack.c.b16 %v11780, %v11764
  %v11877 = vpack.c.b16 %v11781, %v11765
  %v11878 = vpack.c.b16 %v11782, %v11766
  %v11879 = vpack.c.b16 %v11799, %v11783
  %v11880 = vpack.c.b16 %v11800, %v11784
  %v11881 = vpack.c.b16 %v11801, %v11785
  %v11882 = vpack.c.b16 %v11802, %v11786
  %v11883 = vpack.c.b16 %v11803, %v11787
  %v11884 = vpack.c.b16 %v11804, %v11788
  %v11885 = vpack.c.b16 %v11805, %v11789
  %v11886 = vpack.c.b16 %v11806, %v11790
  %v11887 = vpack.c.b16 %v11807, %v11791
  %v11888 = vpack.c.b16 %v11808, %v11792
  %v11889 = vpack.c.b16 %v11809, %v11793
  %v11890 = vpack.c.b16 %v11810, %v11794
  %v11891 = vpack.c.b16 %v11811, %v11795
  %v11892 = vpack.c.b16 %v11812, %v11796
  %v11893 = vpack.c.b16 %v11813, %v11797
  %v11894 = vpack.c.b16 %v11814, %v11798
  %v11895 = vpack.c.b16 %v11831, %v11815
  %v11896 = vpack.c.b16 %v11832, %v11816
  %v11897 = vpack.c.b16 %v11833, %v11817
  %v11898 = vpack.c.b16 %v11834, %v11818
  %v11899 = vpack.c.b16 %v11835, %v11819
  %v11900 = vpack.c.b16 %v11836, %v11820
  %v11901 = vpack.c.b16 %v11837, %v11821
  %v11902 = vpack.c.b16 %v11838, %v11822
  %v11903 = vpack.c.b16 %v11839, %v11823
  %v11904 = vpack.c.b16 %v11840, %v11824
  %v11905 = vpack.c.b16 %v11841, %v11825
  %v11906 = vpack.c.b16 %v11842, %v11826
  %v11907 = vpack.c.b16 %v11843, %v11827
  %v11908 = vpack.c.b16 %v11844, %v11828
  %v11909 = vpack.c.b16 %v11845, %v11829
  %v11910 = vpack.c.b16 %v11846, %v11830
  %11975 = vmatprep.subr.bf16.mxu0 0
  %11976 = vmatpush1.bf16.msra.mxu0 %v11479
  %11977 = vmatprep.subr.bf16.mxu0 0
  %11978 = vmatpush1.bf16.msra.mxu0 %v11480
  %11979 = vmatprep.subr.bf16.mxu0 0
  %11980 = vmatpush1.bf16.msra.mxu0 %v11481
  %11981 = vmatprep.subr.bf16.mxu0 0
  %11982 = vmatpush1.bf16.msra.mxu0 %v11482
  %11983 = vmatprep.subr.bf16.mxu0 0
  %11984 = vmatpush1.bf16.msra.mxu0 %v11483
  %11985 = vmatprep.subr.bf16.mxu0 0
  %11986 = vmatpush1.bf16.msra.mxu0 %v11484
  %11987 = vmatprep.subr.bf16.mxu0 0
  %11988 = vmatpush1.bf16.msra.mxu0 %v11485
  %11989 = vmatprep.subr.bf16.mxu0 0
  %11990 = vmatpush1.bf16.msra.mxu0 %v11486
  %11991 = vmatprep.subr.bf16.mxu0 0
  %11992 = vmatpush1.bf16.msra.mxu0 %v11487
  %11993 = vmatprep.subr.bf16.mxu0 0
  %11994 = vmatpush1.bf16.msra.mxu0 %v11488
  %11995 = vmatprep.subr.bf16.mxu0 0
  %11996 = vmatpush1.bf16.msra.mxu0 %v11489
  %11997 = vmatprep.subr.bf16.mxu0 0
  %11998 = vmatpush1.bf16.msra.mxu0 %v11490
  %11999 = vmatprep.subr.bf16.mxu0 0
  %12000 = vmatpush1.bf16.msra.mxu0 %v11491
  %12001 = vmatprep.subr.bf16.mxu0 0
  %12002 = vmatpush1.bf16.msra.mxu0 %v11492
  %12003 = vmatprep.subr.bf16.mxu0 0
  %12004 = vmatpush1.bf16.msra.mxu0 %v11493
  %12005 = vmatprep.subr.bf16.mxu0 0
  %12006 = vmatpush1.bf16.msra.mxu0 %v11494
  %12007 = vmatprep.mubr.bf16.mxu0 %v11848
  %12008 = vmatmul.mubr.bf16.gmra.mrb[0].mxu0 %v11847
  %v12009 = vpop.f32.mrb[0].mxu0
  %v12010 = vadd.f32 %v11618, %v12009
  %v12011 = vpop.f32.mrb[0].mxu0
  %v12012 = vpop.f32.mrb[0].mxu0
  %v12013 = vadd.f32 %v11623, %v12012
  %v12014 = vpop.f32.mrb[0].mxu0
  %12015 = vmatprep.mubr.bf16.mxu0 %v11864
  %12016 = vmatmul.mubr.bf16.gmra.mrb[0].mxu0 %v11863
  %v12017 = vpop.f32.mrb[0].mxu0
  %v12018 = vadd.f32 %v11628, %v12017
  %v12019 = vpop.f32.mrb[0].mxu0
  %v12020 = vpop.f32.mrb[0].mxu0
  %v12021 = vadd.f32 %v11633, %v12020
  %v12022 = vpop.f32.mrb[0].mxu0
  %12023 = vmatprep.mubr.bf16.mxu0 %v11880
  %12024 = vmatmul.mubr.bf16.gmra.mrb[0].mxu0 %v11879
  %v12025 = vpop.f32.mrb[0].mxu0
  %v12026 = vadd.f32 %v11638, %v12025
  %v12027 = vpop.f32.mrb[0].mxu0
  %v12028 = vpop.f32.mrb[0].mxu0
  %v12029 = vadd.f32 %v11643, %v12028
  %v12030 = vpop.f32.mrb[0].mxu0
  %12031 = vmatprep.mubr.bf16.mxu0 %v11896
  %12032 = vmatmul.mubr.bf16.gmra.mrb[0].mxu0 %v11895
  %v12033 = vpop.f32.mrb[0].mxu0
  %v12034 = vadd.f32 %v11648, %v12033
  %v12035 = vpop.f32.mrb[0].mxu0
  %v12036 = vpop.f32.mrb[0].mxu0
  %v12037 = vadd.f32 %v11653, %v12036
  %v12038 = vpop.f32.mrb[0].mxu0
  %12039 = vdwg.mxu0
  %12040 = vmatprep.subr.bf16.mxu0 0
  %12041 = vmatpush1.bf16.msra.mxu0 %v11495
  %12042 = vmatprep.subr.bf16.mxu0 0
  %12043 = vmatpush1.bf16.msra.mxu0 %v11496
  %12044 = vmatprep.subr.bf16.mxu0 0
  %12045 = vmatpush1.bf16.msra.mxu0 %v11497
  %12046 = vmatprep.subr.bf16.mxu0 0
  %12047 = vmatpush1.bf16.msra.mxu0 %v11498
  %12048 = vmatprep.subr.bf16.mxu0 0
  %12049 = vmatpush1.bf16.msra.mxu0 %v11499
  %12050 = vmatprep.subr.bf16.mxu0 0
  %12051 = vmatpush1.bf16.msra.mxu0 %v11500
  %12052 = vmatprep.subr.bf16.mxu0 0
  %12053 = vmatpush1.bf16.msra.mxu0 %v11501
  %12054 = vmatprep.subr.bf16.mxu0 0
  %12055 = vmatpush1.bf16.msra.mxu0 %v11502
  %12056 = vmatprep.subr.bf16.mxu0 0
  %12057 = vmatpush1.bf16.msra.mxu0 %v11503
  %12058 = vmatprep.subr.bf16.mxu0 0
  %12059 = vmatpush1.bf16.msra.mxu0 %v11504
  %12060 = vmatprep.subr.bf16.mxu0 0
  %12061 = vmatpush1.bf16.msra.mxu0 %v11505
  %12062 = vmatprep.subr.bf16.mxu0 0
  %12063 = vmatpush1.bf16.msra.mxu0 %v11506
  %12064 = vmatprep.subr.bf16.mxu0 0
  %12065 = vmatpush1.bf16.msra.mxu0 %v11507
  %12066 = vmatprep.subr.bf16.mxu0 0
  %12067 = vmatpush1.bf16.msra.mxu0 %v11508
  %12068 = vmatprep.subr.bf16.mxu0 0
  %12069 = vmatpush1.bf16.msra.mxu0 %v11509
  %12070 = vmatprep.subr.bf16.mxu0 0
  %12071 = vmatpush1.bf16.msra.mxu0 %v11510
  %12072 = vmatprep.mubr.bf16.mxu0 %v11850
  %12073 = vmatmul.mubr.bf16.gmra.mrb[0].mxu0 %v11849
  %v12074 = vpop.f32.mrb[0].mxu0
  %v12075 = vadd.f32 %v12010, %v12074
  %v12076 = vpop.f32.mrb[0].mxu0
  %v12077 = vpop.f32.mrb[0].mxu0
  %v12078 = vadd.f32 %v12013, %v12077
  %v12079 = vpop.f32.mrb[0].mxu0
  %12080 = vmatprep.mubr.bf16.mxu0 %v11866
  %12081 = vmatmul.mubr.bf16.gmra.mrb[0].mxu0 %v11865
  %v12082 = vpop.f32.mrb[0].mxu0
  %v12083 = vadd.f32 %v12018, %v12082
  %v12084 = vpop.f32.mrb[0].mxu0
  %v12085 = vpop.f32.mrb[0].mxu0
  %v12086 = vadd.f32 %v12021, %v12085
  %v12087 = vpop.f32.mrb[0].mxu0
  %12088 = vmatprep.mubr.bf16.mxu0 %v11882
  %12089 = vmatmul.mubr.bf16.gmra.mrb[0].mxu0 %v11881
  %v12090 = vpop.f32.mrb[0].mxu0
  %v12091 = vadd.f32 %v12026, %v12090
  %v12092 = vpop.f32.mrb[0].mxu0
  %v12093 = vpop.f32.mrb[0].mxu0
  %v12094 = vadd.f32 %v12029, %v12093
  %v12095 = vpop.f32.mrb[0].mxu0
  %12096 = vmatprep.mubr.bf16.mxu0 %v11898
  %12097 = vmatmul.mubr.bf16.gmra.mrb[0].mxu0 %v11897
  %v12098 = vpop.f32.mrb[0].mxu0
  %v12099 = vadd.f32 %v12034, %v12098
  %v12100 = vpop.f32.mrb[0].mxu0
  %v12101 = vpop.f32.mrb[0].mxu0
  %v12102 = vadd.f32 %v12037, %v12101
  %v12103 = vpop.f32.mrb[0].mxu0
  %12104 = vdwg.mxu0
  %12105 = vmatprep.subr.bf16.mxu0 0
  %12106 = vmatpush1.bf16.msra.mxu0 %v11511
  %12107 = vmatprep.subr.bf16.mxu0 0
  %12108 = vmatpush1.bf16.msra.mxu0 %v11512
  %12109 = vmatprep.subr.bf16.mxu0 0
  %12110 = vmatpush1.bf16.msra.mxu0 %v11513
  %12111 = vmatprep.subr.bf16.mxu0 0
  %12112 = vmatpush1.bf16.msra.mxu0 %v11514
  %12113 = vmatprep.subr.bf16.mxu0 0
  %12114 = vmatpush1.bf16.msra.mxu0 %v11515
  %12115 = vmatprep.subr.bf16.mxu0 0
  %12116 = vmatpush1.bf16.msra.mxu0 %v11516
  %12117 = vmatprep.subr.bf16.mxu0 0
  %12118 = vmatpush1.bf16.msra.mxu0 %v11517
  %12119 = vmatprep.subr.bf16.mxu0 0
  %12120 = vmatpush1.bf16.msra.mxu0 %v11518
  %12121 = vmatprep.subr.bf16.mxu0 0
  %12122 = vmatpush1.bf16.msra.mxu0 %v11519
  %12123 = vmatprep.subr.bf16.mxu0 0
  %12124 = vmatpush1.bf16.msra.mxu0 %v11520
  %12125 = vmatprep.subr.bf16.mxu0 0
  %12126 = vmatpush1.bf16.msra.mxu0 %v11521
  %12127 = vmatprep.subr.bf16.mxu0 0
  %12128 = vmatpush1.bf16.msra.mxu0 %v11522
  %12129 = vmatprep.subr.bf16.mxu0 0
  %12130 = vmatpush1.bf16.msra.mxu0 %v11523
  %12131 = vmatprep.subr.bf16.mxu0 0
  %12132 = vmatpush1.bf16.msra.mxu0 %v11524
  %12133 = vmatprep.subr.bf16.mxu0 0
  %12134 = vmatpush1.bf16.msra.mxu0 %v11525
  %12135 = vmatprep.subr.bf16.mxu0 0
  %12136 = vmatpush1.bf16.msra.mxu0 %v11526
  %12137 = vmatprep.mubr.bf16.mxu0 %v11852
  %12138 = vmatmul.mubr.bf16.gmra.mrb[0].mxu0 %v11851
  %v12139 = vpop.f32.mrb[0].mxu0
  %v12140 = vadd.f32 %v12075, %v12139
  %v12141 = vpop.f32.mrb[0].mxu0
  %v12142 = vpop.f32.mrb[0].mxu0
  %v12143 = vadd.f32 %v12078, %v12142
  %v12144 = vpop.f32.mrb[0].mxu0
  %12145 = vmatprep.mubr.bf16.mxu0 %v11868
  %12146 = vmatmul.mubr.bf16.gmra.mrb[0].mxu0 %v11867
  %v12147 = vpop.f32.mrb[0].mxu0
  %v12148 = vadd.f32 %v12083, %v12147
  %v12149 = vpop.f32.mrb[0].mxu0
  %v12150 = vpop.f32.mrb[0].mxu0
  %v12151 = vadd.f32 %v12086, %v12150
  %v12152 = vpop.f32.mrb[0].mxu0
  %12153 = vmatprep.mubr.bf16.mxu0 %v11884
  %12154 = vmatmul.mubr.bf16.gmra.mrb[0].mxu0 %v11883
  %v12155 = vpop.f32.mrb[0].mxu0
  %v12156 = vadd.f32 %v12091, %v12155
  %v12157 = vpop.f32.mrb[0].mxu0
  %v12158 = vpop.f32.mrb[0].mxu0
  %v12159 = vadd.f32 %v12094, %v12158
  %v12160 = vpop.f32.mrb[0].mxu0
  %12161 = vmatprep.mubr.bf16.mxu0 %v11900
  %12162 = vmatmul.mubr.bf16.gmra.mrb[0].mxu0 %v11899
  %v12163 = vpop.f32.mrb[0].mxu0
  %v12164 = vadd.f32 %v12099, %v12163
  %v12165 = vpop.f32.mrb[0].mxu0
  %v12166 = vpop.f32.mrb[0].mxu0
  %v12167 = vadd.f32 %v12102, %v12166
  %v12168 = vpop.f32.mrb[0].mxu0
  %12169 = vdwg.mxu0
  %12170 = vmatprep.subr.bf16.mxu0 0
  %12171 = vmatpush1.bf16.msra.mxu0 %v11527
  %12172 = vmatprep.subr.bf16.mxu0 0
  %12173 = vmatpush1.bf16.msra.mxu0 %v11528
  %12174 = vmatprep.subr.bf16.mxu0 0
  %12175 = vmatpush1.bf16.msra.mxu0 %v11529
  %12176 = vmatprep.subr.bf16.mxu0 0
  %12177 = vmatpush1.bf16.msra.mxu0 %v11530
  %12178 = vmatprep.subr.bf16.mxu0 0
  %12179 = vmatpush1.bf16.msra.mxu0 %v11531
  %12180 = vmatprep.subr.bf16.mxu0 0
  %12181 = vmatpush1.bf16.msra.mxu0 %v11532
  %12182 = vmatprep.subr.bf16.mxu0 0
  %12183 = vmatpush1.bf16.msra.mxu0 %v11533
  %12184 = vmatprep.subr.bf16.mxu0 0
  %12185 = vmatpush1.bf16.msra.mxu0 %v11534
  %12186 = vmatprep.subr.bf16.mxu0 0
  %12187 = vmatpush1.bf16.msra.mxu0 %v11535
  %12188 = vmatprep.subr.bf16.mxu0 0
  %12189 = vmatpush1.bf16.msra.mxu0 %v11536
  %12190 = vmatprep.subr.bf16.mxu0 0
  %12191 = vmatpush1.bf16.msra.mxu0 %v11537
  %12192 = vmatprep.subr.bf16.mxu0 0
  %12193 = vmatpush1.bf16.msra.mxu0 %v11538
  %12194 = vmatprep.subr.bf16.mxu0 0
  %12195 = vmatpush1.bf16.msra.mxu0 %v11539
  %12196 = vmatprep.subr.bf16.mxu0 0
  %12197 = vmatpush1.bf16.msra.mxu0 %v11540
  %12198 = vmatprep.subr.bf16.mxu0 0
  %12199 = vmatpush1.bf16.msra.mxu0 %v11541
  %12200 = vmatprep.subr.bf16.mxu0 0
  %12201 = vmatpush1.bf16.msra.mxu0 %v11542
  %12202 = vmatprep.mubr.bf16.mxu0 %v11854
  %12203 = vmatmul.mubr.bf16.gmra.mrb[0].mxu0 %v11853
  %v12204 = vpop.f32.mrb[0].mxu0
  %v12205 = vadd.f32 %v12140, %v12204
  %v12206 = vpop.f32.mrb[0].mxu0
  %v12207 = vpop.f32.mrb[0].mxu0
  %v12208 = vadd.f32 %v12143, %v12207
  %v12209 = vpop.f32.mrb[0].mxu0
  %12210 = vmatprep.mubr.bf16.mxu0 %v11870
  %12211 = vmatmul.mubr.bf16.gmra.mrb[0].mxu0 %v11869
  %v12212 = vpop.f32.mrb[0].mxu0
  %v12213 = vadd.f32 %v12148, %v12212
  %v12214 = vpop.f32.mrb[0].mxu0
  %v12215 = vpop.f32.mrb[0].mxu0
  %v12216 = vadd.f32 %v12151, %v12215
  %v12217 = vpop.f32.mrb[0].mxu0
  %12218 = vmatprep.mubr.bf16.mxu0 %v11886
  %12219 = vmatmul.mubr.bf16.gmra.mrb[0].mxu0 %v11885
  %v12220 = vpop.f32.mrb[0].mxu0
  %v12221 = vadd.f32 %v12156, %v12220
  %v12222 = vpop.f32.mrb[0].mxu0
  %v12223 = vpop.f32.mrb[0].mxu0
  %v12224 = vadd.f32 %v12159, %v12223
  %v12225 = vpop.f32.mrb[0].mxu0
  %12226 = vmatprep.mubr.bf16.mxu0 %v11902
  %12227 = vmatmul.mubr.bf16.gmra.mrb[0].mxu0 %v11901
  %v12228 = vpop.f32.mrb[0].mxu0
  %v12229 = vadd.f32 %v12164, %v12228
  %v12230 = vpop.f32.mrb[0].mxu0
  %v12231 = vpop.f32.mrb[0].mxu0
  %v12232 = vadd.f32 %v12167, %v12231
  %v12233 = vpop.f32.mrb[0].mxu0
  %12234 = vdwg.mxu0
  %12235 = vmatprep.subr.bf16.mxu0 0
  %12236 = vmatpush1.bf16.msra.mxu0 %v11543
  %12237 = vmatprep.subr.bf16.mxu0 0
  %12238 = vmatpush1.bf16.msra.mxu0 %v11544
  %12239 = vmatprep.subr.bf16.mxu0 0
  %12240 = vmatpush1.bf16.msra.mxu0 %v11545
  %12241 = vmatprep.subr.bf16.mxu0 0
  %12242 = vmatpush1.bf16.msra.mxu0 %v11546
  %12243 = vmatprep.subr.bf16.mxu0 0
  %12244 = vmatpush1.bf16.msra.mxu0 %v11547
  %12245 = vmatprep.subr.bf16.mxu0 0
  %12246 = vmatpush1.bf16.msra.mxu0 %v11548
  %12247 = vmatprep.subr.bf16.mxu0 0
  %12248 = vmatpush1.bf16.msra.mxu0 %v11549
  %12249 = vmatprep.subr.bf16.mxu0 0
  %12250 = vmatpush1.bf16.msra.mxu0 %v11550
  %12251 = vmatprep.subr.bf16.mxu0 0
  %12252 = vmatpush1.bf16.msra.mxu0 %v11551
  %12253 = vmatprep.subr.bf16.mxu0 0
  %12254 = vmatpush1.bf16.msra.mxu0 %v11552
  %12255 = vmatprep.subr.bf16.mxu0 0
  %12256 = vmatpush1.bf16.msra.mxu0 %v11553
  %12257 = vmatprep.subr.bf16.mxu0 0
  %12258 = vmatpush1.bf16.msra.mxu0 %v11554
  %12259 = vmatprep.subr.bf16.mxu0 0
  %12260 = vmatpush1.bf16.msra.mxu0 %v11555
  %12261 = vmatprep.subr.bf16.mxu0 0
  %12262 = vmatpush1.bf16.msra.mxu0 %v11556
  %12263 = vmatprep.subr.bf16.mxu0 0
  %12264 = vmatpush1.bf16.msra.mxu0 %v11557
  %12265 = vmatprep.subr.bf16.mxu0 0
  %12266 = vmatpush1.bf16.msra.mxu0 %v11558
  %12267 = vmatprep.mubr.bf16.mxu0 %v11856
  %12268 = vmatmul.mubr.bf16.gmra.mrb[0].mxu0 %v11855
  %v12269 = vpop.f32.mrb[0].mxu0
  %v12270 = vadd.f32 %v12205, %v12269
  %v12271 = vpop.f32.mrb[0].mxu0
  %v12272 = vpop.f32.mrb[0].mxu0
  %v12273 = vadd.f32 %v12208, %v12272
  %v12274 = vpop.f32.mrb[0].mxu0
  %12275 = vmatprep.mubr.bf16.mxu0 %v11872
  %12276 = vmatmul.mubr.bf16.gmra.mrb[0].mxu0 %v11871
  %v12277 = vpop.f32.mrb[0].mxu0
  %v12278 = vadd.f32 %v12213, %v12277
  %v12279 = vpop.f32.mrb[0].mxu0
  %v12280 = vpop.f32.mrb[0].mxu0
  %v12281 = vadd.f32 %v12216, %v12280
  %v12282 = vpop.f32.mrb[0].mxu0
  %12283 = vmatprep.mubr.bf16.mxu0 %v11888
  %12284 = vmatmul.mubr.bf16.gmra.mrb[0].mxu0 %v11887
  %v12285 = vpop.f32.mrb[0].mxu0
  %v12286 = vadd.f32 %v12221, %v12285
  %v12287 = vpop.f32.mrb[0].mxu0
  %v12288 = vpop.f32.mrb[0].mxu0
  %v12289 = vadd.f32 %v12224, %v12288
  %v12290 = vpop.f32.mrb[0].mxu0
  %12291 = vmatprep.mubr.bf16.mxu0 %v11904
  %12292 = vmatmul.mubr.bf16.gmra.mrb[0].mxu0 %v11903
  %v12293 = vpop.f32.mrb[0].mxu0
  %v12294 = vadd.f32 %v12229, %v12293
  %v12295 = vpop.f32.mrb[0].mxu0
  %v12296 = vpop.f32.mrb[0].mxu0
  %v12297 = vadd.f32 %v12232, %v12296
  %v12298 = vpop.f32.mrb[0].mxu0
  %12299 = vdwg.mxu0
  %12300 = vmatprep.subr.bf16.mxu0 0
  %12301 = vmatpush1.bf16.msra.mxu0 %v11559
  %12302 = vmatprep.subr.bf16.mxu0 0
  %12303 = vmatpush1.bf16.msra.mxu0 %v11560
  %12304 = vmatprep.subr.bf16.mxu0 0
  %12305 = vmatpush1.bf16.msra.mxu0 %v11561
  %12306 = vmatprep.subr.bf16.mxu0 0
  %12307 = vmatpush1.bf16.msra.mxu0 %v11562
  %12308 = vmatprep.subr.bf16.mxu0 0
  %12309 = vmatpush1.bf16.msra.mxu0 %v11563
  %12310 = vmatprep.subr.bf16.mxu0 0
  %12311 = vmatpush1.bf16.msra.mxu0 %v11564
  %12312 = vmatprep.subr.bf16.mxu0 0
  %12313 = vmatpush1.bf16.msra.mxu0 %v11565
  %12314 = vmatprep.subr.bf16.mxu0 0
  %12315 = vmatpush1.bf16.msra.mxu0 %v11566
  %12316 = vmatprep.subr.bf16.mxu0 0
  %12317 = vmatpush1.bf16.msra.mxu0 %v11567
  %12318 = vmatprep.subr.bf16.mxu0 0
  %12319 = vmatpush1.bf16.msra.mxu0 %v11568
  %12320 = vmatprep.subr.bf16.mxu0 0
  %12321 = vmatpush1.bf16.msra.mxu0 %v11569
  %12322 = vmatprep.subr.bf16.mxu0 0
  %12323 = vmatpush1.bf16.msra.mxu0 %v11570
  %12324 = vmatprep.subr.bf16.mxu0 0
  %12325 = vmatpush1.bf16.msra.mxu0 %v11571
  %12326 = vmatprep.subr.bf16.mxu0 0
  %12327 = vmatpush1.bf16.msra.mxu0 %v11572
  %12328 = vmatprep.subr.bf16.mxu0 0
  %12329 = vmatpush1.bf16.msra.mxu0 %v11573
  %12330 = vmatprep.subr.bf16.mxu0 0
  %12331 = vmatpush1.bf16.msra.mxu0 %v11574
  %12332 = vmatprep.mubr.bf16.mxu0 %v11858
  %12333 = vmatmul.mubr.bf16.gmra.mrb[0].mxu0 %v11857
  %v12334 = vpop.f32.mrb[0].mxu0
  %v12335 = vadd.f32 %v12270, %v12334
  %v12336 = vpop.f32.mrb[0].mxu0
  %v12337 = vpop.f32.mrb[0].mxu0
  %v12338 = vadd.f32 %v12273, %v12337
  %v12339 = vpop.f32.mrb[0].mxu0
  %12340 = vmatprep.mubr.bf16.mxu0 %v11874
  %12341 = vmatmul.mubr.bf16.gmra.mrb[0].mxu0 %v11873
  %v12342 = vpop.f32.mrb[0].mxu0
  %v12343 = vadd.f32 %v12278, %v12342
  %v12344 = vpop.f32.mrb[0].mxu0
  %v12345 = vpop.f32.mrb[0].mxu0
  %v12346 = vadd.f32 %v12281, %v12345
  %v12347 = vpop.f32.mrb[0].mxu0
  %12348 = vmatprep.mubr.bf16.mxu0 %v11890
  %12349 = vmatmul.mubr.bf16.gmra.mrb[0].mxu0 %v11889
  %v12350 = vpop.f32.mrb[0].mxu0
  %v12351 = vadd.f32 %v12286, %v12350
  %v12352 = vpop.f32.mrb[0].mxu0
  %v12353 = vpop.f32.mrb[0].mxu0
  %v12354 = vadd.f32 %v12289, %v12353
  %v12355 = vpop.f32.mrb[0].mxu0
  %12356 = vmatprep.mubr.bf16.mxu0 %v11906
  %12357 = vmatmul.mubr.bf16.gmra.mrb[0].mxu0 %v11905
  %v12358 = vpop.f32.mrb[0].mxu0
  %v12359 = vadd.f32 %v12294, %v12358
  %v12360 = vpop.f32.mrb[0].mxu0
  %v12361 = vpop.f32.mrb[0].mxu0
  %v12362 = vadd.f32 %v12297, %v12361
  %v12363 = vpop.f32.mrb[0].mxu0
  %12364 = vdwg.mxu0
  %12365 = vmatprep.subr.bf16.mxu0 0
  %12366 = vmatpush1.bf16.msra.mxu0 %v11575
  %12367 = vmatprep.subr.bf16.mxu0 0
  %12368 = vmatpush1.bf16.msra.mxu0 %v11576
  %12369 = vmatprep.subr.bf16.mxu0 0
  %12370 = vmatpush1.bf16.msra.mxu0 %v11577
  %12371 = vmatprep.subr.bf16.mxu0 0
  %12372 = vmatpush1.bf16.msra.mxu0 %v11578
  %12373 = vmatprep.subr.bf16.mxu0 0
  %12374 = vmatpush1.bf16.msra.mxu0 %v11579
  %12375 = vmatprep.subr.bf16.mxu0 0
  %12376 = vmatpush1.bf16.msra.mxu0 %v11580
  %12377 = vmatprep.subr.bf16.mxu0 0
  %12378 = vmatpush1.bf16.msra.mxu0 %v11581
  %12379 = vmatprep.subr.bf16.mxu0 0
  %12380 = vmatpush1.bf16.msra.mxu0 %v11582
  %12381 = vmatprep.subr.bf16.mxu0 0
  %12382 = vmatpush1.bf16.msra.mxu0 %v11583
  %12383 = vmatprep.subr.bf16.mxu0 0
  %12384 = vmatpush1.bf16.msra.mxu0 %v11584
  %12385 = vmatprep.subr.bf16.mxu0 0
  %12386 = vmatpush1.bf16.msra.mxu0 %v11585
  %12387 = vmatprep.subr.bf16.mxu0 0
  %12388 = vmatpush1.bf16.msra.mxu0 %v11586
  %12389 = vmatprep.subr.bf16.mxu0 0
  %12390 = vmatpush1.bf16.msra.mxu0 %v11587
  %12391 = vmatprep.subr.bf16.mxu0 0
  %12392 = vmatpush1.bf16.msra.mxu0 %v11588
  %12393 = vmatprep.subr.bf16.mxu0 0
  %12394 = vmatpush1.bf16.msra.mxu0 %v11589
  %12395 = vmatprep.subr.bf16.mxu0 0
  %12396 = vmatpush1.bf16.msra.mxu0 %v11590
  %12397 = vmatprep.mubr.bf16.mxu0 %v11860
  %12398 = vmatmul.mubr.bf16.gmra.mrb[0].mxu0 %v11859
  %v12399 = vpop.f32.mrb[0].mxu0
  %v12400 = vadd.f32 %v12335, %v12399
  %v12401 = vpop.f32.mrb[0].mxu0
  %v12402 = vpop.f32.mrb[0].mxu0
  %v12403 = vadd.f32 %v12338, %v12402
  %v12404 = vpop.f32.mrb[0].mxu0
  %12405 = vmatprep.mubr.bf16.mxu0 %v11876
  %12406 = vmatmul.mubr.bf16.gmra.mrb[0].mxu0 %v11875
  %v12407 = vpop.f32.mrb[0].mxu0
  %v12408 = vadd.f32 %v12343, %v12407
  %v12409 = vpop.f32.mrb[0].mxu0
  %v12410 = vpop.f32.mrb[0].mxu0
  %v12411 = vadd.f32 %v12346, %v12410
  %v12412 = vpop.f32.mrb[0].mxu0
  %12413 = vmatprep.mubr.bf16.mxu0 %v11892
  %12414 = vmatmul.mubr.bf16.gmra.mrb[0].mxu0 %v11891
  %v12415 = vpop.f32.mrb[0].mxu0
  %v12416 = vadd.f32 %v12351, %v12415
  %v12417 = vpop.f32.mrb[0].mxu0
  %v12418 = vpop.f32.mrb[0].mxu0
  %v12419 = vadd.f32 %v12354, %v12418
  %v12420 = vpop.f32.mrb[0].mxu0
  %12421 = vmatprep.mubr.bf16.mxu0 %v11908
  %12422 = vmatmul.mubr.bf16.gmra.mrb[0].mxu0 %v11907
  %v12423 = vpop.f32.mrb[0].mxu0
  %v12424 = vadd.f32 %v12359, %v12423
  %v12425 = vpop.f32.mrb[0].mxu0
  %v12426 = vpop.f32.mrb[0].mxu0
  %v12427 = vadd.f32 %v12362, %v12426
  %v12428 = vpop.f32.mrb[0].mxu0
  %12429 = vdwg.mxu0
  %12430 = vmatprep.subr.bf16.mxu0 0
  %12431 = vmatpush1.bf16.msra.mxu0 %v11591
  %12432 = vmatprep.subr.bf16.mxu0 0
  %12433 = vmatpush1.bf16.msra.mxu0 %v11592
  %12434 = vmatprep.subr.bf16.mxu0 0
  %12435 = vmatpush1.bf16.msra.mxu0 %v11593
  %12436 = vmatprep.subr.bf16.mxu0 0
  %12437 = vmatpush1.bf16.msra.mxu0 %v11594
  %12438 = vmatprep.subr.bf16.mxu0 0
  %12439 = vmatpush1.bf16.msra.mxu0 %v11595
  %12440 = vmatprep.subr.bf16.mxu0 0
  %12441 = vmatpush1.bf16.msra.mxu0 %v11596
  %12442 = vmatprep.subr.bf16.mxu0 0
  %12443 = vmatpush1.bf16.msra.mxu0 %v11597
  %12444 = vmatprep.subr.bf16.mxu0 0
  %12445 = vmatpush1.bf16.msra.mxu0 %v11598
  %12446 = vmatprep.subr.bf16.mxu0 0
  %12447 = vmatpush1.bf16.msra.mxu0 %v11599
  %12448 = vmatprep.subr.bf16.mxu0 0
  %12449 = vmatpush1.bf16.msra.mxu0 %v11600
  %12450 = vmatprep.subr.bf16.mxu0 0
  %12451 = vmatpush1.bf16.msra.mxu0 %v11601
  %12452 = vmatprep.subr.bf16.mxu0 0
  %12453 = vmatpush1.bf16.msra.mxu0 %v11602
  %12454 = vmatprep.subr.bf16.mxu0 0
  %12455 = vmatpush1.bf16.msra.mxu0 %v11603
  %12456 = vmatprep.subr.bf16.mxu0 0
  %12457 = vmatpush1.bf16.msra.mxu0 %v11604
  %12458 = vmatprep.subr.bf16.mxu0 0
  %12459 = vmatpush1.bf16.msra.mxu0 %v11605
  %12460 = vmatprep.subr.bf16.mxu0 0
  %12461 = vmatpush1.bf16.msra.mxu0 %v11606
  %12462 = vmatprep.mubr.bf16.mxu0 %v11862
  %12463 = vmatmul.mubr.bf16.gmra.mrb[0].mxu0 %v11861
  %v12464 = vpop.f32.mrb[0].mxu0
  %v12465 = vadd.f32 %v12400, %v12464
  %v12466 = vpop.f32.mrb[0].mxu0
  %v12467 = vpop.f32.mrb[0].mxu0
  %v12468 = vadd.f32 %v12403, %v12467
  %v12469 = vpop.f32.mrb[0].mxu0
  %12470 = vmatprep.mubr.bf16.mxu0 %v11878
  %12471 = vmatmul.mubr.bf16.gmra.mrb[0].mxu0 %v11877
  %v12472 = vpop.f32.mrb[0].mxu0
  %v12473 = vadd.f32 %v12408, %v12472
  %v12474 = vpop.f32.mrb[0].mxu0
  %v12475 = vpop.f32.mrb[0].mxu0
  %v12476 = vadd.f32 %v12411, %v12475
  %v12477 = vpop.f32.mrb[0].mxu0
  %12478 = vmatprep.mubr.bf16.mxu0 %v11894
  %12479 = vmatmul.mubr.bf16.gmra.mrb[0].mxu0 %v11893
  %v12480 = vpop.f32.mrb[0].mxu0
  %v12481 = vadd.f32 %v12416, %v12480
  %v12482 = vpop.f32.mrb[0].mxu0
  %v12483 = vpop.f32.mrb[0].mxu0
  %v12484 = vadd.f32 %v12419, %v12483
  %v12485 = vpop.f32.mrb[0].mxu0
  %12486 = vmatprep.mubr.bf16.mxu0 %v11910
  %12487 = vmatmul.mubr.bf16.gmra.mrb[0].mxu0 %v11909
  %v12488 = vpop.f32.mrb[0].mxu0
  %v12489 = vadd.f32 %v12424, %v12488
  %v12490 = vpop.f32.mrb[0].mxu0
  %v12491 = vpop.f32.mrb[0].mxu0
  %v12492 = vadd.f32 %v12427, %v12491
  %v12493 = vpop.f32.mrb[0].mxu0
  %12494 = vdwg.mxu0
  %12495 = vst.msk [vmem:[%s11] sm:$0xff] %vm97, %v12465
  %12496 = vst.msk [vmem:[%s11 + $0x8] sm:$0xff] %vm97, %v12468
  %12497 = vst.msk [vmem:[%s11 + $0x10] sm:$0xff] %vm97, %v12473
  %12498 = vst.msk [vmem:[%s11 + $0x18] sm:$0xff] %vm97, %v12476
  %12499 = vst.msk [vmem:[%s11 + $0x20] sm:$0xff] %vm97, %v12481
  %12500 = vst.msk [vmem:[%s11 + $0x28] sm:$0xff] %vm97, %v12484
  %12501 = vst.msk [vmem:[%s11 + $0x30] sm:$0xff] %vm97, %v12489
  %12502 = vst.msk [vmem:[%s11 + $0x38] sm:$0xff] %vm97, %v12492
  // Predicated region
  $region46: #{alexnet1d_forward.1} parent=0 // pred_check
    _
  $region47: #{alexnet1d_forward.1} parent=0 // pred_check_branch
    %12504 = sbr.rel (0) target = $region49
  $region48: #{alexnet1d_forward.1} parent=0 // pred_region
    _
  $region49: #{alexnet1d_forward.1} parent=0 // pred_fallthru
    _
  // Predicated region
  $region50: #{alexnet1d_forward.1} parent=0 // pred_check
    _
  $region51: #{alexnet1d_forward.1} parent=0 // pred_check_branch
    %12506 = sbr.rel (0) target = $region53
  $region52: #{alexnet1d_forward.1} parent=0 // pred_region
    _
  $region53: #{alexnet1d_forward.1} parent=0 // pred_fallthru
    _

</llo_original>
